<compile_context>
chip_gen: v5e
topology: v5e:2x2
jax: 0.10.0
libtpu: 0.0.40
codegen_flags: <defaults>
</compile_context>

<pallas_src>
import numpy as np
import jax
import jax.numpy as jnp
from jax.experimental import pallas as pl
from jax.experimental.pallas import tpu as pltpu

# ----------------------- configuration (module hyperparams) -----------------------
B = 2
IN_PLANES = 8
OUT_PLANES = 8
HEAD = 4
HEAD_DIM = OUT_PLANES // HEAD            # 2
KERNEL_ATT = 7
KERNEL_CONV = 3
KC2 = KERNEL_CONV * KERNEL_CONV          # 9
STRIDE = 1
DILATION = 1
H = 16
W = 16
HW = H * W                               # 256
BH = B * HEAD                            # 8
PAD_ATT = (DILATION * (KERNEL_ATT - 1) + 1) // 2   # 3
WPAD = W + 2 * PAD_ATT                   # 22  reflection-padded row pitch (attention)
OW = (H - 1) * WPAD + W                  # 346 flat window width in pitch-22 layout
CPAD = W + 2                             # 18  zero-padded row pitch (conv branch / input)
CIMG = CPAD * CPAD                       # 324 flat size of one zero-padded image
CONV_W = (H - 1) * CPAD + W              # 286 flat output width in pitch-18 layout
XW = 384                                 # lane-padded width of the input buffer (>= CIMG)
PBUF = 512                               # lane-padded width of the pitch-22 scratch buffers
NCH = 16                                 # channel rows per batch block (8 x + 1 ones + 2 pe + 5 zero)
NROW = HEAD_DIM * B * HEAD               # 16  kernel row count (d*8 + b*4 + head)
WPACK_ROWS = 3 * NROW + KC2 * NROW       # 192 packed weights: qkv(48) + composed conv (9*16)
SPACK_ROWS = ((XW + OW + 7) // 8) * 8    # 736 packed scatter (384) + gather (346) rows
RATE1 = 0.5                              # init_rate_half
RATE2 = 0.5
SCALING = float(HEAD_DIM) ** -0.5

# kernel body is specialized to this instance
assert B == 2 and HEAD_DIM == 2 and OUT_PLANES == HEAD * HEAD_DIM and H == 16 and W == 16


# =====================================================================================
# Fused kernel: one qkv matmul -> scatter matmuls (reflection pad relayout) -> 7x7 local
# attention with two-level online softmax -> gather matmul -> composed 3x3 conv branch.
# =====================================================================================
def acmix_kernel(x_ref, w_ref, s_ref, out_ref, d_scr, v_scr):
    f32 = jnp.float32

    # ---- fused 1x1 convs: q*scaling / (k - pe) / v*rate1, rows = d*8 + b*4 + head -----
    qkv = jnp.dot(w_ref[0:3 * NROW, :], x_ref[...], preferred_element_type=f32)   # (48, 384)

    # ---- reflection pad + pitch-22 relayout via MXU scatter matmuls --------------------
    sp = s_ref[0:XW, :]                                                            # (384, 512)
    q_full = jnp.dot(qkv[0:NROW], sp, preferred_element_type=f32)                  # (16, 512)
    d_scr[...] = jnp.dot(qkv[NROW:2 * NROW], sp, preferred_element_type=f32)       # (k - pe) padded
    v_scr[...] = jnp.dot(qkv[2 * NROW:3 * NROW], sp, preferred_element_type=f32)   # v * rate1 padded
    off = PAD_ATT * WPAD + PAD_ATT                                                  # 69
    q_o = q_full[:, off:off + OW]                                                   # (16, 346)
    q0, q1 = q_o[0:BH], q_o[BH:]

    # ---- 7x7 local attention, two-level (per dy-row) online softmax -------------------
    # NOTE: the reference's q.pe logit term is constant across the 49 window taps and thus
    # cancels in the softmax; it is dropped here (mathematically exact).
    m = l = a0 = a1 = None
    for dy in range(KERNEL_ATT):
        base = dy * WPAD
        d_row = d_scr[:, base:base + OW + KERNEL_ATT - 1]                           # (16, 352)
        scores = []
        row_m = None
        for dx in range(KERNEL_ATT):
            dsl = d_row[:, dx:dx + OW]
            sc = q0 * dsl[0:BH] + q1 * dsl[BH:]                                     # (8, 346)
            scores.append(sc)
            row_m = sc if row_m is None else jnp.maximum(row_m, sc)
        if m is None:
            m_new = row_m
            l = jnp.zeros((BH, OW), f32)
            a0 = jnp.zeros((BH, OW), f32)
            a1 = jnp.zeros((BH, OW), f32)
        else:
            m_new = jnp.maximum(m, row_m)
            alpha = jnp.exp(m - m_new)
            l, a0, a1 = alpha * l, alpha * a0, alpha * a1
        v_row = v_scr[:, base:base + OW + KERNEL_ATT - 1]                           # (16, 352)
        for dx in range(KERNEL_ATT):
            p = jnp.exp(scores[dx] - m_new)
            vsl = v_row[:, dx:dx + OW]
            l = l + p
            a0 = a0 + p * vsl[0:BH]
            a1 = a1 + p * vsl[BH:]
        m = m_new
    inv = pl.reciprocal(l, approx=True)
    att16 = jnp.concatenate([a0 * inv, a1 * inv], axis=0)                           # (16, 346)

    # ---- pitch-22 -> pitch-18 gather of the attention output (MXU); junk columns have
    #      all-zero gather rows, so they never reach the output ------------------------
    out = jnp.dot(att16, s_ref[XW:XW + OW, 0:CONV_W], preferred_element_type=f32)   # (16, 286)

    # ---- conv branch: fc(1x1) + grouped 3x3 dep_conv composed into ONE 3x3 conv applied
    #      directly to the zero-padded input; batch handled block-diagonally in the
    #      weights, so no masks / rolls / per-batch loop -------------------------------
    for kk in range(KC2):
        ky, kx = kk // KERNEL_CONV, kk % KERNEL_CONV
        s0 = ky * CPAD + kx
        wblk = w_ref[3 * NROW + kk * NROW:3 * NROW + (kk + 1) * NROW, :]            # (16, 32)
        out = out + jnp.dot(wblk, x_ref[:, s0:s0 + CONV_W], preferred_element_type=f32)

    out_ref[...] = out


def run_acmix(x_p, w_pack, s_pack):
    return pl.pallas_call(
        acmix_kernel,
        out_shape=jax.ShapeDtypeStruct((NROW, CONV_W), jnp.float32),
        grid=(1,),
        in_specs=[
            pl.BlockSpec((B * NCH, XW), lambda i: (0, 0)),
            pl.BlockSpec((WPACK_ROWS, B * NCH), lambda i: (0, 0)),
            pl.BlockSpec((SPACK_ROWS, PBUF), lambda i: (0, 0)),
        ],
        out_specs=pl.BlockSpec((NROW, CONV_W), lambda i: (0, 0)),
        scratch_shapes=[pltpu.VMEM((NROW, PBUF), jnp.float32),
                        pltpu.VMEM((NROW, PBUF), jnp.float32)],
        compiler_params=pltpu.CompilerParams(dimension_semantics=("arbitrary",)),
    )(x_p, w_pack, s_pack)


# ----------------------------------- host glue --------------------------------------
def conv_p_position(wp, bp, Hc, Wc):
    # position(H, W) followed by the tiny 1x1 conv_p (constant input -> host glue)
    loc_w = jnp.broadcast_to(jnp.linspace(-1.0, 1.0, Wc)[None, :], (Hc, Wc))
    loc_h = jnp.broadcast_to(jnp.linspace(-1.0, 1.0, Hc)[:, None], (Hc, Wc))
    loc = jnp.stack([loc_w, loc_h], axis=0)[None].astype(jnp.float32)          # (1, 2, H, W)
    return jnp.einsum('oc,bchw->bohw', wp, loc) + bp[None, :, None, None]


def build_scatter_pack():
    """Packed constant: reflection-pad scatter (rows 0..383) + output gather (rows 384..)."""
    sp = np.zeros((SPACK_ROWS, PBUF), np.float32)

    def refl(t):  # torch ReflectionPad2d index map for axis length H (=W)
        if t < 0:
            return -t
        if t > H - 1:
            return 2 * (H - 1) - t
        return t

    # interior source (ys, xs) (stored at pitch-18 flat 19 + ys*18 + xs) lands at every
    # reflection-padded pitch-22 position (py, px) that reflects onto it.
    for py in range(WPAD):
        for px in range(WPAD):
            ys, xs = refl(py - PAD_ATT), refl(px - PAD_ATT)
            sp[(ys + 1) * CPAD + (xs + 1), py * WPAD + px] = 1.0
    # pitch-22 -> pitch-18 gather for the attention output (zero rows drop dead columns)
    for y in range(H):
        for x in range(W):
            sp[XW + y * WPAD + x, y * CPAD + x] = 1.0
    return jnp.asarray(sp)


@jax.jit
def acmix_forward(x, w1, b1, w2, b2, w3, b3, wp, bp, wfc, bfc, wdep, bdep):
    f32 = jnp.float32
    # row r = d*8 + b*4 + head  ->  torch channel o = head*2 + d
    perm16 = jnp.array([h * HEAD_DIM + d for d in range(HEAD_DIM) for b in range(B)
                        for h in range(HEAD)], dtype=jnp.int32)
    b_of_r = jnp.array([b for d in range(HEAD_DIM) for b in range(B) for h in range(HEAD)],
                       dtype=jnp.int32)
    d_of_r = jnp.array([d for d in range(HEAD_DIM) for b in range(B) for h in range(HEAD)],
                       dtype=jnp.int32)
    onehot_b = jax.nn.one_hot(b_of_r, B, dtype=f32)                           # (16, 2)

    def place_rows(w_r):  # (16, K<=16) -> (16, 32): per-row batch-block-diagonal placement
        k = w_r.shape[1]
        t = onehot_b[:, :, None] * w_r[:, None, :]
        t = jnp.pad(t, ((0, 0), (0, 0), (0, NCH - k)))
        return t.reshape(NROW, B * NCH)

    # --- fused qkv weights (scaling / rate1 / -pe folded) --------------------------------
    def qkv_rows(wmat, bvec, scale, pe_coef):
        w_r = wmat[perm16] * scale                                             # (16, 8)
        b_r = (bvec[perm16] * scale)[:, None]                                  # (16, 1) ones channel
        pe_c = pe_coef * jax.nn.one_hot(d_of_r, HEAD_DIM, dtype=f32)           # (16, 2) pe channels
        return place_rows(jnp.concatenate([w_r, b_r, pe_c], axis=1))

    wqkv = jnp.concatenate([qkv_rows(w1, b1, SCALING, 0.0),
                            qkv_rows(w2, b2, 1.0, -1.0),
                            qkv_rows(w3, b3, RATE1, 0.0)], axis=0)             # (48, 32)

    # --- conv branch composed host-side: dep_conv( fc( cat(q,k,v) ) ) == 3x3 conv on x_aug
    W_stack = jnp.stack([w1, w2, w3], 0).reshape(3, HEAD, HEAD_DIM, IN_PLANES)  # [s,h,d,c]
    b_stack = jnp.stack([b1, b2, b3], 0).reshape(3, HEAD, HEAD_DIM)             # [s,h,d]
    wfc_r = wfc.reshape(KC2, 3, HEAD)                                           # [j,s,h]
    fcw = jnp.einsum('jsh,shdc->djc', wfc_r, W_stack).reshape(HEAD_DIM * KC2, IN_PLANES)
    fcb = (jnp.einsum('jsh,shd->dj', wfc_r, b_stack).reshape(HEAD_DIM * KC2)
           + jnp.tile(bfc, (HEAD_DIM,)))
    fcq = jnp.concatenate([fcw, fcb[:, None]], axis=1).reshape(HEAD_DIM, KC2, IN_PLANES + 1)
    g_of_o = jnp.arange(OUT_PLANES) // (OUT_PLANES // HEAD_DIM)                 # dep_conv groups
    wcomp = jnp.einsum('ojyx,ojc->oyxc', wdep, fcq[g_of_o])                     # (8, 3, 3, 9)
    wcomp = wcomp.at[:, 1, 1, IN_PLANES].add(bdep) * RATE2                      # dep bias + rate2
    wconv = jnp.concatenate(
        [place_rows(wcomp[perm16, ky, kx, :])
         for ky in range(KERNEL_CONV) for kx in range(KERNEL_CONV)], axis=0)    # (144, 32)
    w_pack = jnp.concatenate([wqkv, wconv], axis=0)                             # (192, 32)

    # --- input in zero-padded pitch-18 layout: per batch 16 rows = 8 channels + interior
    #     indicator + pe[0] + pe[1] + 5 zero rows ------------------------------------------
    pe = conv_p_position(wp, bp, H, W)[0]                                       # (2, 16, 16)
    xb = jnp.pad(x, ((0, 0), (0, 0), (1, 1), (1, 1)))
    peb = jnp.pad(pe, ((0, 0), (1, 1), (1, 1)))
    indb = jnp.pad(jnp.ones((1, H, W), f32), ((0, 0), (1, 1), (1, 1)))
    zpad = jnp.zeros((NCH - IN_PLANES - 1 - HEAD_DIM, CPAD, CPAD), f32)
    x_p = jnp.concatenate(
        [jnp.concatenate([xb[b], indb, peb, zpad], axis=0).reshape(NCH, CIMG) for b in range(B)],
        axis=0)
    x_p = jnp.pad(x_p, ((0, 0), (0, XW - CIMG)))                                # (32, 384)

    s_pack = build_scatter_pack()                                               # constant

    out16 = run_acmix(x_p, w_pack, s_pack)                                      # (16, 286)

    # rows d*8 + b*4 + head, cols y*18 + x  ->  (B, out_planes, H, W), torch channel head*2+d
    cols = (jnp.arange(H)[:, None] * CPAD + jnp.arange(W)[None, :]).reshape(-1)
    out = out16[:, cols].reshape(HEAD_DIM, B, HEAD, H, W)
    out = jnp.transpose(out, (1, 2, 0, 3, 4)).reshape(B, OUT_PLANES, H, W)
    return out


# ------------------------------- pure-JAX reference ---------------------------------
def reference_forward(x, w1, b1, w2, b2, w3, b3, wp, bp, wfc, bfc, wdep, bdep):
    Bc, Cin, Hc, Wc = x.shape
    conv1x1 = lambda inp, w, b: jnp.einsum('oc,bchw->bohw', w, inp) + b[None, :, None, None]
    q, k, v = conv1x1(x, w1, b1), conv1x1(x, w2, b2), conv1x1(x, w3, b3)
    pe = conv_p_position(wp, bp, Hc, Wc)
    q_att = q.reshape(Bc * HEAD, HEAD_DIM, Hc, Wc) * SCALING
    k_att = k.reshape(Bc * HEAD, HEAD_DIM, Hc, Wc)
    v_att = v.reshape(Bc * HEAD, HEAD_DIM, Hc, Wc)
    padspec = ((0, 0), (0, 0), (PAD_ATT, PAD_ATT), (PAD_ATT, PAD_ATT))
    kp = jnp.pad(k_att, padspec, mode='reflect')
    vp = jnp.pad(v_att, padspec, mode='reflect')
    pep = jnp.pad(pe, padspec, mode='reflect')

    def unfold(z):
        cols = [z[:, :, j // KERNEL_ATT:j // KERNEL_ATT + Hc, j % KERNEL_ATT:j % KERNEL_ATT + Wc]
                for j in range(KERNEL_ATT * KERNEL_ATT)]
        return jnp.stack(cols, axis=2)

    uk, urpe, uv = unfold(kp), unfold(pep), unfold(vp)
    att = jnp.sum(q_att[:, :, None] * (uk + pe[:, :, None] - urpe), axis=1)
    att = jax.nn.softmax(att, axis=1)
    out_att = jnp.sum(att[:, None] * uv, axis=2).reshape(Bc, OUT_PLANES, Hc, Wc)

    cat = jnp.concatenate([q.reshape(Bc, HEAD, HEAD_DIM, Hc * Wc),
                           k.reshape(Bc, HEAD, HEAD_DIM, Hc * Wc),
                           v.reshape(Bc, HEAD, HEAD_DIM, Hc * Wc)], axis=1)
    f_all = jnp.einsum('oc,bcdp->bodp', wfc, cat) + bfc[None, :, None, None]
    f_conv = jnp.transpose(f_all, (0, 2, 1, 3)).reshape(Bc, HEAD_DIM * KC2, Hc, Wc)
    out_conv = jax.lax.conv_general_dilated(
        f_conv, wdep, window_strides=(STRIDE, STRIDE), padding=((1, 1), (1, 1)),
        dimension_numbers=('NCHW', 'OIHW', 'NCHW'),
        feature_group_count=HEAD_DIM) + bdep[None, :, None, None]
    return RATE1 * out_att + RATE2 * out_conv


# ------------------------------------- main ------------------------------------------
if __name__ == "__main__":
    key = jax.random.PRNGKey(0)
    ks = jax.random.split(key, 13)
    x = jax.random.normal(ks[0], (B, IN_PLANES, H, W), jnp.float32)

    w1 = jax.random.normal(ks[1], (OUT_PLANES, IN_PLANES), jnp.float32) * 0.2
    b1 = jax.random.normal(ks[2], (OUT_PLANES,), jnp.float32) * 0.1
    w2 = jax.random.normal(ks[3], (OUT_PLANES, IN_PLANES), jnp.float32) * 0.2
    b2 = jax.random.normal(ks[4], (OUT_PLANES,), jnp.float32) * 0.1
    w3 = jax.random.normal(ks[5], (OUT_PLANES, IN_PLANES), jnp.float32) * 0.2
    b3 = jax.random.normal(ks[6], (OUT_PLANES,), jnp.float32) * 0.1
    wp = jax.random.normal(ks[7], (HEAD_DIM, 2), jnp.float32) * 0.2
    bp = jax.random.normal(ks[8], (HEAD_DIM,), jnp.float32) * 0.1
    wfc = jax.random.normal(ks[9], (KC2, 3 * HEAD), jnp.float32) * 0.2
    bfc = jax.random.normal(ks[10], (KC2,), jnp.float32) * 0.1

    # dep_conv: reset_parameters() identity-shift kernel plus a small perturbation so the
    # general grouped-conv path is exercised (zero bias replaced by a small random bias).
    wdep_base = jnp.zeros((KC2, KERNEL_CONV, KERNEL_CONV), jnp.float32)
    for i in range(KC2):
        wdep_base = wdep_base.at[i, i // KERNEL_CONV, i % KERNEL_CONV].set(1.0)
    wdep = (jnp.tile(wdep_base[None], (OUT_PLANES, 1, 1, 1))
            + 0.1 * jax.random.normal(ks[11], (OUT_PLANES, KC2, KERNEL_CONV, KERNEL_CONV),
                                      jnp.float32))
    bdep = 0.1 * jax.random.normal(ks[12], (OUT_PLANES,), jnp.float32)

    params = (w1, b1, w2, b2, w3, b3, wp, bp, wfc, bfc, wdep, bdep)

    out = jax.block_until_ready(acmix_forward(x, *params))
    assert out.shape == (B, OUT_PLANES, H, W)

    ref = jax.block_until_ready(reference_forward(x, *params))
    max_err = float(jnp.max(jnp.abs(out - ref)))
    assert max_err < 2e-2, f"mismatch vs reference: max_err={max_err}"

    print("KERNEL_OK")
</pallas_src>

<mosaic_0001>
module attributes {stable_mosaic.version = 11 : i64} {
  func.func @acmix_kernel(%arg0: i32, %arg1: memref<32x384xf32, #tpu.memory_space<vmem>>, %arg2: memref<192x32xf32, #tpu.memory_space<vmem>>, %arg3: memref<736x512xf32, #tpu.memory_space<vmem>>, %arg4: memref<16x286xf32, #tpu.memory_space<vmem>>, %arg5: memref<16x512xf32, #tpu.memory_space<vmem>>, %arg6: memref<16x512xf32, #tpu.memory_space<vmem>>) attributes {dimension_semantics = [#tpu.dimension_semantics<arbitrary>], iteration_bounds = array<i64: 1>, scalar_prefetch = 0 : i64, scratch_operands = 2 : i64, tpu.core_type = #tpu.core_type<tc>, window_params = [{pipeline_mode = #tpu.pipeline_mode<synchronous>, transform_indices = @transform_0, window_bounds = array<i64: 32, 384>}, {pipeline_mode = #tpu.pipeline_mode<synchronous>, transform_indices = @transform_1, window_bounds = array<i64: 192, 32>}, {pipeline_mode = #tpu.pipeline_mode<synchronous>, transform_indices = @transform_2, window_bounds = array<i64: 736, 512>}, {pipeline_mode = #tpu.pipeline_mode<synchronous>, transform_indices = @transform_3, window_bounds = array<i64: 16, 286>}]} {
    %c0 = arith.constant 0 : index
    %c0_0 = arith.constant 0 : index
    %0 = vector.load %arg2[%c0, %c0_0] : memref<192x32xf32, #tpu.memory_space<vmem>>, vector<48x32xf32>
    %c0_1 = arith.constant 0 : index
    %c0_2 = arith.constant 0 : index
    %1 = vector.load %arg1[%c0_1, %c0_2] : memref<32x384xf32, #tpu.memory_space<vmem>>, vector<32x384xf32>
    %cst = arith.constant dense<0.000000e+00> : vector<48x384xf32>
    %2 = tpu.matmul %0, %1, %cst {dimension_numbers = #tpu.dot_dimension_numbers<[1], [0], [0], [1], [0, 0, 1, 1], [], []>} : vector<48x32xf32>, vector<32x384xf32>, vector<48x384xf32> -> vector<48x384xf32>
    %c0_3 = arith.constant 0 : index
    %c0_4 = arith.constant 0 : index
    %3 = vector.load %arg3[%c0_3, %c0_4] : memref<736x512xf32, #tpu.memory_space<vmem>>, vector<384x512xf32>
    %4 = vector.extract_strided_slice %2 {offsets = [0, 0], sizes = [16, 384], strides = [1, 1]} : vector<48x384xf32> to vector<16x384xf32>
    %cst_5 = arith.constant dense<0.000000e+00> : vector<16x512xf32>
    %5 = tpu.matmul %4, %3, %cst_5 {dimension_numbers = #tpu.dot_dimension_numbers<[1], [0], [0], [1], [0, 0, 1, 1], [], []>} : vector<16x384xf32>, vector<384x512xf32>, vector<16x512xf32> -> vector<16x512xf32>
    %6 = vector.extract_strided_slice %2 {offsets = [16, 0], sizes = [16, 384], strides = [1, 1]} : vector<48x384xf32> to vector<16x384xf32>
    %cst_6 = arith.constant dense<0.000000e+00> : vector<16x512xf32>
    %7 = tpu.matmul %6, %3, %cst_6 {dimension_numbers = #tpu.dot_dimension_numbers<[1], [0], [0], [1], [0, 0, 1, 1], [], []>} : vector<16x384xf32>, vector<384x512xf32>, vector<16x512xf32> -> vector<16x512xf32>
    %c0_7 = arith.constant 0 : index
    %c0_8 = arith.constant 0 : index
    %8 = vector.load %arg5[%c0_7, %c0_8] : memref<16x512xf32, #tpu.memory_space<vmem>>, vector<16x512xf32>
    tpu.vector_store %arg5[%c0_7, %c0_8], %7 {strides = array<i32>} : memref<16x512xf32, #tpu.memory_space<vmem>>, vector<16x512xf32>,
    %9 = vector.extract_strided_slice %2 {offsets = [32, 0], sizes = [16, 384], strides = [1, 1]} : vector<48x384xf32> to vector<16x384xf32>
    %cst_9 = arith.constant dense<0.000000e+00> : vector<16x512xf32>
    %10 = tpu.matmul %9, %3, %cst_9 {dimension_numbers = #tpu.dot_dimension_numbers<[1], [0], [0], [1], [0, 0, 1, 1], [], []>} : vector<16x384xf32>, vector<384x512xf32>, vector<16x512xf32> -> vector<16x512xf32>
    %c0_10 = arith.constant 0 : index
    %c0_11 = arith.constant 0 : index
    %11 = vector.load %arg6[%c0_10, %c0_11] : memref<16x512xf32, #tpu.memory_space<vmem>>, vector<16x512xf32>
    tpu.vector_store %arg6[%c0_10, %c0_11], %10 {strides = array<i32>} : memref<16x512xf32, #tpu.memory_space<vmem>>, vector<16x512xf32>,
    %12 = vector.extract_strided_slice %5 {offsets = [0, 69], sizes = [16, 346], strides = [1, 1]} : vector<16x512xf32> to vector<16x346xf32>
    %13 = vector.extract_strided_slice %12 {offsets = [0, 0], sizes = [8, 346], strides = [1, 1]} : vector<16x346xf32> to vector<8x346xf32>
    %14 = vector.extract_strided_slice %12 {offsets = [8, 0], sizes = [8, 346], strides = [1, 1]} : vector<16x346xf32> to vector<8x346xf32>
    %c0_12 = arith.constant 0 : index
    %c0_13 = arith.constant 0 : index
    %15 = vector.load %arg5[%c0_12, %c0_13] : memref<16x512xf32, #tpu.memory_space<vmem>>, vector<16x352xf32>
    %16 = vector.extract_strided_slice %15 {offsets = [0, 0], sizes = [16, 346], strides = [1, 1]} : vector<16x352xf32> to vector<16x346xf32>
    %17 = vector.extract_strided_slice %16 {offsets = [0, 0], sizes = [8, 346], strides = [1, 1]} : vector<16x346xf32> to vector<8x346xf32>
    %18 = arith.mulf %13, %17 : vector<8x346xf32>
    %19 = vector.extract_strided_slice %16 {offsets = [8, 0], sizes = [8, 346], strides = [1, 1]} : vector<16x346xf32> to vector<8x346xf32>
    %20 = arith.mulf %14, %19 : vector<8x346xf32>
    %21 = arith.addf %18, %20 : vector<8x346xf32>
    %22 = vector.extract_strided_slice %15 {offsets = [0, 1], sizes = [16, 346], strides = [1, 1]} : vector<16x352xf32> to vector<16x346xf32>
    %23 = vector.extract_strided_slice %22 {offsets = [0, 0], sizes = [8, 346], strides = [1, 1]} : vector<16x346xf32> to vector<8x346xf32>
    %24 = arith.mulf %13, %23 : vector<8x346xf32>
    %25 = vector.extract_strided_slice %22 {offsets = [8, 0], sizes = [8, 346], strides = [1, 1]} : vector<16x346xf32> to vector<8x346xf32>
    %26 = arith.mulf %14, %25 : vector<8x346xf32>
    %27 = arith.addf %24, %26 : vector<8x346xf32>
    %28 = arith.maximumf %21, %27 : vector<8x346xf32>
    %29 = vector.extract_strided_slice %15 {offsets = [0, 2], sizes = [16, 346], strides = [1, 1]} : vector<16x352xf32> to vector<16x346xf32>
    %30 = vector.extract_strided_slice %29 {offsets = [0, 0], sizes = [8, 346], strides = [1, 1]} : vector<16x346xf32> to vector<8x346xf32>
    %31 = arith.mulf %13, %30 : vector<8x346xf32>
    %32 = vector.extract_strided_slice %29 {offsets = [8, 0], sizes = [8, 346], strides = [1, 1]} : vector<16x346xf32> to vector<8x346xf32>
    %33 = arith.mulf %14, %32 : vector<8x346xf32>
    %34 = arith.addf %31, %33 : vector<8x346xf32>
    %35 = arith.maximumf %28, %34 : vector<8x346xf32>
    %36 = vector.extract_strided_slice %15 {offsets = [0, 3], sizes = [16, 346], strides = [1, 1]} : vector<16x352xf32> to vector<16x346xf32>
    %37 = vector.extract_strided_slice %36 {offsets = [0, 0], sizes = [8, 346], strides = [1, 1]} : vector<16x346xf32> to vector<8x346xf32>
    %38 = arith.mulf %13, %37 : vector<8x346xf32>
    %39 = vector.extract_strided_slice %36 {offsets = [8, 0], sizes = [8, 346], strides = [1, 1]} : vector<16x346xf32> to vector<8x346xf32>
    %40 = arith.mulf %14, %39 : vector<8x346xf32>
    %41 = arith.addf %38, %40 : vector<8x346xf32>
    %42 = arith.maximumf %35, %41 : vector<8x346xf32>
    %43 = vector.extract_strided_slice %15 {offsets = [0, 4], sizes = [16, 346], strides = [1, 1]} : vector<16x352xf32> to vector<16x346xf32>
    %44 = vector.extract_strided_slice %43 {offsets = [0, 0], sizes = [8, 346], strides = [1, 1]} : vector<16x346xf32> to vector<8x346xf32>
    %45 = arith.mulf %13, %44 : vector<8x346xf32>
    %46 = vector.extract_strided_slice %43 {offsets = [8, 0], sizes = [8, 346], strides = [1, 1]} : vector<16x346xf32> to vector<8x346xf32>
    %47 = arith.mulf %14, %46 : vector<8x346xf32>
    %48 = arith.addf %45, %47 : vector<8x346xf32>
    %49 = arith.maximumf %42, %48 : vector<8x346xf32>
    %50 = vector.extract_strided_slice %15 {offsets = [0, 5], sizes = [16, 346], strides = [1, 1]} : vector<16x352xf32> to vector<16x346xf32>
    %51 = vector.extract_strided_slice %50 {offsets = [0, 0], sizes = [8, 346], strides = [1, 1]} : vector<16x346xf32> to vector<8x346xf32>
    %52 = arith.mulf %13, %51 : vector<8x346xf32>
    %53 = vector.extract_strided_slice %50 {offsets = [8, 0], sizes = [8, 346], strides = [1, 1]} : vector<16x346xf32> to vector<8x346xf32>
    %54 = arith.mulf %14, %53 : vector<8x346xf32>
    %55 = arith.addf %52, %54 : vector<8x346xf32>
    %56 = arith.maximumf %49, %55 : vector<8x346xf32>
    %57 = vector.extract_strided_slice %15 {offsets = [0, 6], sizes = [16, 346], strides = [1, 1]} : vector<16x352xf32> to vector<16x346xf32>
    %58 = vector.extract_strided_slice %57 {offsets = [0, 0], sizes = [8, 346], strides = [1, 1]} : vector<16x346xf32> to vector<8x346xf32>
    %59 = arith.mulf %13, %58 : vector<8x346xf32>
    %60 = vector.extract_strided_slice %57 {offsets = [8, 0], sizes = [8, 346], strides = [1, 1]} : vector<16x346xf32> to vector<8x346xf32>
    %61 = arith.mulf %14, %60 : vector<8x346xf32>
    %62 = arith.addf %59, %61 : vector<8x346xf32>
    %63 = arith.maximumf %56, %62 : vector<8x346xf32>
    %cst_14 = arith.constant 0.000000e+00 : f32
    %64 = vector.broadcast %cst_14 : f32 to vector<8x346xf32>
    %cst_15 = arith.constant 0.000000e+00 : f32
    %65 = vector.broadcast %cst_15 : f32 to vector<8x346xf32>
    %cst_16 = arith.constant 0.000000e+00 : f32
    %66 = vector.broadcast %cst_16 : f32 to vector<8x346xf32>
    %c0_17 = arith.constant 0 : index
    %c0_18 = arith.constant 0 : index
    %67 = vector.load %arg6[%c0_17, %c0_18] : memref<16x512xf32, #tpu.memory_space<vmem>>, vector<16x352xf32>
    %68 = arith.subf %21, %63 : vector<8x346xf32>
    %69 = math.exp %68 : vector<8x346xf32>
    %70 = vector.extract_strided_slice %67 {offsets = [0, 0], sizes = [16, 346], strides = [1, 1]} : vector<16x352xf32> to vector<16x346xf32>
    %71 = arith.addf %64, %69 : vector<8x346xf32>
    %72 = vector.extract_strided_slice %70 {offsets = [0, 0], sizes = [8, 346], strides = [1, 1]} : vector<16x346xf32> to vector<8x346xf32>
    %73 = arith.mulf %69, %72 : vector<8x346xf32>
    %74 = arith.addf %65, %73 : vector<8x346xf32>
    %75 = vector.extract_strided_slice %70 {offsets = [8, 0], sizes = [8, 346], strides = [1, 1]} : vector<16x346xf32> to vector<8x346xf32>
    %76 = arith.mulf %69, %75 : vector<8x346xf32>
    %77 = arith.addf %66, %76 : vector<8x346xf32>
    %78 = arith.subf %27, %63 : vector<8x346xf32>
    %79 = math.exp %78 : vector<8x346xf32>
    %80 = vector.extract_strided_slice %67 {offsets = [0, 1], sizes = [16, 346], strides = [1, 1]} : vector<16x352xf32> to vector<16x346xf32>
    %81 = arith.addf %71, %79 : vector<8x346xf32>
    %82 = vector.extract_strided_slice %80 {offsets = [0, 0], sizes = [8, 346], strides = [1, 1]} : vector<16x346xf32> to vector<8x346xf32>
    %83 = arith.mulf %79, %82 : vector<8x346xf32>
    %84 = arith.addf %74, %83 : vector<8x346xf32>
    %85 = vector.extract_strided_slice %80 {offsets = [8, 0], sizes = [8, 346], strides = [1, 1]} : vector<16x346xf32> to vector<8x346xf32>
    %86 = arith.mulf %79, %85 : vector<8x346xf32>
    %87 = arith.addf %77, %86 : vector<8x346xf32>
    %88 = arith.subf %34, %63 : vector<8x346xf32>
    %89 = math.exp %88 : vector<8x346xf32>
    %90 = vector.extract_strided_slice %67 {offsets = [0, 2], sizes = [16, 346], strides = [1, 1]} : vector<16x352xf32> to vector<16x346xf32>
    %91 = arith.addf %81, %89 : vector<8x346xf32>
    %92 = vector.extract_strided_slice %90 {offsets = [0, 0], sizes = [8, 346], strides = [1, 1]} : vector<16x346xf32> to vector<8x346xf32>
    %93 = arith.mulf %89, %92 : vector<8x346xf32>
    %94 = arith.addf %84, %93 : vector<8x346xf32>
    %95 = vector.extract_strided_slice %90 {offsets = [8, 0], sizes = [8, 346], strides = [1, 1]} : vector<16x346xf32> to vector<8x346xf32>
    %96 = arith.mulf %89, %95 : vector<8x346xf32>
    %97 = arith.addf %87, %96 : vector<8x346xf32>
    %98 = arith.subf %41, %63 : vector<8x346xf32>
    %99 = math.exp %98 : vector<8x346xf32>
    %100 = vector.extract_strided_slice %67 {offsets = [0, 3], sizes = [16, 346], strides = [1, 1]} : vector<16x352xf32> to vector<16x346xf32>
    %101 = arith.addf %91, %99 : vector<8x346xf32>
    %102 = vector.extract_strided_slice %100 {offsets = [0, 0], sizes = [8, 346], strides = [1, 1]} : vector<16x346xf32> to vector<8x346xf32>
    %103 = arith.mulf %99, %102 : vector<8x346xf32>
    %104 = arith.addf %94, %103 : vector<8x346xf32>
    %105 = vector.extract_strided_slice %100 {offsets = [8, 0], sizes = [8, 346], strides = [1, 1]} : vector<16x346xf32> to vector<8x346xf32>
    %106 = arith.mulf %99, %105 : vector<8x346xf32>
    %107 = arith.addf %97, %106 : vector<8x346xf32>
    %108 = arith.subf %48, %63 : vector<8x346xf32>
    %109 = math.exp %108 : vector<8x346xf32>
    %110 = vector.extract_strided_slice %67 {offsets = [0, 4], sizes = [16, 346], strides = [1, 1]} : vector<16x352xf32> to vector<16x346xf32>
    %111 = arith.addf %101, %109 : vector<8x346xf32>
    %112 = vector.extract_strided_slice %110 {offsets = [0, 0], sizes = [8, 346], strides = [1, 1]} : vector<16x346xf32> to vector<8x346xf32>
    %113 = arith.mulf %109, %112 : vector<8x346xf32>
    %114 = arith.addf %104, %113 : vector<8x346xf32>
    %115 = vector.extract_strided_slice %110 {offsets = [8, 0], sizes = [8, 346], strides = [1, 1]} : vector<16x346xf32> to vector<8x346xf32>
    %116 = arith.mulf %109, %115 : vector<8x346xf32>
    %117 = arith.addf %107, %116 : vector<8x346xf32>
    %118 = arith.subf %55, %63 : vector<8x346xf32>
    %119 = math.exp %118 : vector<8x346xf32>
    %120 = vector.extract_strided_slice %67 {offsets = [0, 5], sizes = [16, 346], strides = [1, 1]} : vector<16x352xf32> to vector<16x346xf32>
    %121 = arith.addf %111, %119 : vector<8x346xf32>
    %122 = vector.extract_strided_slice %120 {offsets = [0, 0], sizes = [8, 346], strides = [1, 1]} : vector<16x346xf32> to vector<8x346xf32>
    %123 = arith.mulf %119, %122 : vector<8x346xf32>
    %124 = arith.addf %114, %123 : vector<8x346xf32>
    %125 = vector.extract_strided_slice %120 {offsets = [8, 0], sizes = [8, 346], strides = [1, 1]} : vector<16x346xf32> to vector<8x346xf32>
    %126 = arith.mulf %119, %125 : vector<8x346xf32>
    %127 = arith.addf %117, %126 : vector<8x346xf32>
    %128 = arith.subf %62, %63 : vector<8x346xf32>
    %129 = math.exp %128 : vector<8x346xf32>
    %130 = vector.extract_strided_slice %67 {offsets = [0, 6], sizes = [16, 346], strides = [1, 1]} : vector<16x352xf32> to vector<16x346xf32>
    %131 = arith.addf %121, %129 : vector<8x346xf32>
    %132 = vector.extract_strided_slice %130 {offsets = [0, 0], sizes = [8, 346], strides = [1, 1]} : vector<16x346xf32> to vector<8x346xf32>
    %133 = arith.mulf %129, %132 : vector<8x346xf32>
    %134 = arith.addf %124, %133 : vector<8x346xf32>
    %135 = vector.extract_strided_slice %130 {offsets = [8, 0], sizes = [8, 346], strides = [1, 1]} : vector<16x346xf32> to vector<8x346xf32>
    %136 = arith.mulf %129, %135 : vector<8x346xf32>
    %137 = arith.addf %127, %136 : vector<8x346xf32>
    %c0_19 = arith.constant 0 : index
    %c22 = arith.constant 22 : index
    %138 = vector.load %arg5[%c0_19, %c22] : memref<16x512xf32, #tpu.memory_space<vmem>>, vector<16x352xf32>
    %139 = vector.extract_strided_slice %138 {offsets = [0, 0], sizes = [16, 346], strides = [1, 1]} : vector<16x352xf32> to vector<16x346xf32>
    %140 = vector.extract_strided_slice %139 {offsets = [0, 0], sizes = [8, 346], strides = [1, 1]} : vector<16x346xf32> to vector<8x346xf32>
    %141 = arith.mulf %13, %140 : vector<8x346xf32>
    %142 = vector.extract_strided_slice %139 {offsets = [8, 0], sizes = [8, 346], strides = [1, 1]} : vector<16x346xf32> to vector<8x346xf32>
    %143 = arith.mulf %14, %142 : vector<8x346xf32>
    %144 = arith.addf %141, %143 : vector<8x346xf32>
    %145 = vector.extract_strided_slice %138 {offsets = [0, 1], sizes = [16, 346], strides = [1, 1]} : vector<16x352xf32> to vector<16x346xf32>
    %146 = vector.extract_strided_slice %145 {offsets = [0, 0], sizes = [8, 346], strides = [1, 1]} : vector<16x346xf32> to vector<8x346xf32>
    %147 = arith.mulf %13, %146 : vector<8x346xf32>
    %148 = vector.extract_strided_slice %145 {offsets = [8, 0], sizes = [8, 346], strides = [1, 1]} : vector<16x346xf32> to vector<8x346xf32>
    %149 = arith.mulf %14, %148 : vector<8x346xf32>
    %150 = arith.addf %147, %149 : vector<8x346xf32>
    %151 = arith.maximumf %144, %150 : vector<8x346xf32>
    %152 = vector.extract_strided_slice %138 {offsets = [0, 2], sizes = [16, 346], strides = [1, 1]} : vector<16x352xf32> to vector<16x346xf32>
    %153 = vector.extract_strided_slice %152 {offsets = [0, 0], sizes = [8, 346], strides = [1, 1]} : vector<16x346xf32> to vector<8x346xf32>
    %154 = arith.mulf %13, %153 : vector<8x346xf32>
    %155 = vector.extract_strided_slice %152 {offsets = [8, 0], sizes = [8, 346], strides = [1, 1]} : vector<16x346xf32> to vector<8x346xf32>
    %156 = arith.mulf %14, %155 : vector<8x346xf32>
    %157 = arith.addf %154, %156 : vector<8x346xf32>
    %158 = arith.maximumf %151, %157 : vector<8x346xf32>
    %159 = vector.extract_strided_slice %138 {offsets = [0, 3], sizes = [16, 346], strides = [1, 1]} : vector<16x352xf32> to vector<16x346xf32>
    %160 = vector.extract_strided_slice %159 {offsets = [0, 0], sizes = [8, 346], strides = [1, 1]} : vector<16x346xf32> to vector<8x346xf32>
    %161 = arith.mulf %13, %160 : vector<8x346xf32>
    %162 = vector.extract_strided_slice %159 {offsets = [8, 0], sizes = [8, 346], strides = [1, 1]} : vector<16x346xf32> to vector<8x346xf32>
    %163 = arith.mulf %14, %162 : vector<8x346xf32>
    %164 = arith.addf %161, %163 : vector<8x346xf32>
    %165 = arith.maximumf %158, %164 : vector<8x346xf32>
    %166 = vector.extract_strided_slice %138 {offsets = [0, 4], sizes = [16, 346], strides = [1, 1]} : vector<16x352xf32> to vector<16x346xf32>
    %167 = vector.extract_strided_slice %166 {offsets = [0, 0], sizes = [8, 346], strides = [1, 1]} : vector<16x346xf32> to vector<8x346xf32>
    %168 = arith.mulf %13, %167 : vector<8x346xf32>
    %169 = vector.extract_strided_slice %166 {offsets = [8, 0], sizes = [8, 346], strides = [1, 1]} : vector<16x346xf32> to vector<8x346xf32>
    %170 = arith.mulf %14, %169 : vector<8x346xf32>
    %171 = arith.addf %168, %170 : vector<8x346xf32>
    %172 = arith.maximumf %165, %171 : vector<8x346xf32>
    %173 = vector.extract_strided_slice %138 {offsets = [0, 5], sizes = [16, 346], strides = [1, 1]} : vector<16x352xf32> to vector<16x346xf32>
    %174 = vector.extract_strided_slice %173 {offsets = [0, 0], sizes = [8, 346], strides = [1, 1]} : vector<16x346xf32> to vector<8x346xf32>
    %175 = arith.mulf %13, %174 : vector<8x346xf32>
    %176 = vector.extract_strided_slice %173 {offsets = [8, 0], sizes = [8, 346], strides = [1, 1]} : vector<16x346xf32> to vector<8x346xf32>
    %177 = arith.mulf %14, %176 : vector<8x346xf32>
    %178 = arith.addf %175, %177 : vector<8x346xf32>
    %179 = arith.maximumf %172, %178 : vector<8x346xf32>
    %180 = vector.extract_strided_slice %138 {offsets = [0, 6], sizes = [16, 346], strides = [1, 1]} : vector<16x352xf32> to vector<16x346xf32>
    %181 = vector.extract_strided_slice %180 {offsets = [0, 0], sizes = [8, 346], strides = [1, 1]} : vector<16x346xf32> to vector<8x346xf32>
    %182 = arith.mulf %13, %181 : vector<8x346xf32>
    %183 = vector.extract_strided_slice %180 {offsets = [8, 0], sizes = [8, 346], strides = [1, 1]} : vector<16x346xf32> to vector<8x346xf32>
    %184 = arith.mulf %14, %183 : vector<8x346xf32>
    %185 = arith.addf %182, %184 : vector<8x346xf32>
    %186 = arith.maximumf %179, %185 : vector<8x346xf32>
    %187 = arith.maximumf %63, %186 : vector<8x346xf32>
    %188 = arith.subf %63, %187 : vector<8x346xf32>
    %189 = math.exp %188 : vector<8x346xf32>
    %190 = arith.mulf %189, %131 : vector<8x346xf32>
    %191 = arith.mulf %189, %134 : vector<8x346xf32>
    %192 = arith.mulf %189, %137 : vector<8x346xf32>
    %c0_20 = arith.constant 0 : index
    %c22_21 = arith.constant 22 : index
    %193 = vector.load %arg6[%c0_20, %c22_21] : memref<16x512xf32, #tpu.memory_space<vmem>>, vector<16x352xf32>
    %194 = arith.subf %144, %187 : vector<8x346xf32>
    %195 = math.exp %194 : vector<8x346xf32>
    %196 = vector.extract_strided_slice %193 {offsets = [0, 0], sizes = [16, 346], strides = [1, 1]} : vector<16x352xf32> to vector<16x346xf32>
    %197 = arith.addf %190, %195 : vector<8x346xf32>
    %198 = vector.extract_strided_slice %196 {offsets = [0, 0], sizes = [8, 346], strides = [1, 1]} : vector<16x346xf32> to vector<8x346xf32>
    %199 = arith.mulf %195, %198 : vector<8x346xf32>
    %200 = arith.addf %191, %199 : vector<8x346xf32>
    %201 = vector.extract_strided_slice %196 {offsets = [8, 0], sizes = [8, 346], strides = [1, 1]} : vector<16x346xf32> to vector<8x346xf32>
    %202 = arith.mulf %195, %201 : vector<8x346xf32>
    %203 = arith.addf %192, %202 : vector<8x346xf32>
    %204 = arith.subf %150, %187 : vector<8x346xf32>
    %205 = math.exp %204 : vector<8x346xf32>
    %206 = vector.extract_strided_slice %193 {offsets = [0, 1], sizes = [16, 346], strides = [1, 1]} : vector<16x352xf32> to vector<16x346xf32>
    %207 = arith.addf %197, %205 : vector<8x346xf32>
    %208 = vector.extract_strided_slice %206 {offsets = [0, 0], sizes = [8, 346], strides = [1, 1]} : vector<16x346xf32> to vector<8x346xf32>
    %209 = arith.mulf %205, %208 : vector<8x346xf32>
    %210 = arith.addf %200, %209 : vector<8x346xf32>
    %211 = vector.extract_strided_slice %206 {offsets = [8, 0], sizes = [8, 346], strides = [1, 1]} : vector<16x346xf32> to vector<8x346xf32>
    %212 = arith.mulf %205, %211 : vector<8x346xf32>
    %213 = arith.addf %203, %212 : vector<8x346xf32>
    %214 = arith.subf %157, %187 : vector<8x346xf32>
    %215 = math.exp %214 : vector<8x346xf32>
    %216 = vector.extract_strided_slice %193 {offsets = [0, 2], sizes = [16, 346], strides = [1, 1]} : vector<16x352xf32> to vector<16x346xf32>
    %217 = arith.addf %207, %215 : vector<8x346xf32>
    %218 = vector.extract_strided_slice %216 {offsets = [0, 0], sizes = [8, 346], strides = [1, 1]} : vector<16x346xf32> to vector<8x346xf32>
    %219 = arith.mulf %215, %218 : vector<8x346xf32>
    %220 = arith.addf %210, %219 : vector<8x346xf32>
    %221 = vector.extract_strided_slice %216 {offsets = [8, 0], sizes = [8, 346], strides = [1, 1]} : vector<16x346xf32> to vector<8x346xf32>
    %222 = arith.mulf %215, %221 : vector<8x346xf32>
    %223 = arith.addf %213, %222 : vector<8x346xf32>
    %224 = arith.subf %164, %187 : vector<8x346xf32>
    %225 = math.exp %224 : vector<8x346xf32>
    %226 = vector.extract_strided_slice %193 {offsets = [0, 3], sizes = [16, 346], strides = [1, 1]} : vector<16x352xf32> to vector<16x346xf32>
    %227 = arith.addf %217, %225 : vector<8x346xf32>
    %228 = vector.extract_strided_slice %226 {offsets = [0, 0], sizes = [8, 346], strides = [1, 1]} : vector<16x346xf32> to vector<8x346xf32>
    %229 = arith.mulf %225, %228 : vector<8x346xf32>
    %230 = arith.addf %220, %229 : vector<8x346xf32>
    %231 = vector.extract_strided_slice %226 {offsets = [8, 0], sizes = [8, 346], strides = [1, 1]} : vector<16x346xf32> to vector<8x346xf32>
    %232 = arith.mulf %225, %231 : vector<8x346xf32>
    %233 = arith.addf %223, %232 : vector<8x346xf32>
    %234 = arith.subf %171, %187 : vector<8x346xf32>
    %235 = math.exp %234 : vector<8x346xf32>
    %236 = vector.extract_strided_slice %193 {offsets = [0, 4], sizes = [16, 346], strides = [1, 1]} : vector<16x352xf32> to vector<16x346xf32>
    %237 = arith.addf %227, %235 : vector<8x346xf32>
    %238 = vector.extract_strided_slice %236 {offsets = [0, 0], sizes = [8, 346], strides = [1, 1]} : vector<16x346xf32> to vector<8x346xf32>
    %239 = arith.mulf %235, %238 : vector<8x346xf32>
    %240 = arith.addf %230, %239 : vector<8x346xf32>
    %241 = vector.extract_strided_slice %236 {offsets = [8, 0], sizes = [8, 346], strides = [1, 1]} : vector<16x346xf32> to vector<8x346xf32>
    %242 = arith.mulf %235, %241 : vector<8x346xf32>
    %243 = arith.addf %233, %242 : vector<8x346xf32>
    %244 = arith.subf %178, %187 : vector<8x346xf32>
    %245 = math.exp %244 : vector<8x346xf32>
    %246 = vector.extract_strided_slice %193 {offsets = [0, 5], sizes = [16, 346], strides = [1, 1]} : vector<16x352xf32> to vector<16x346xf32>
    %247 = arith.addf %237, %245 : vector<8x346xf32>
    %248 = vector.extract_strided_slice %246 {offsets = [0, 0], sizes = [8, 346], strides = [1, 1]} : vector<16x346xf32> to vector<8x346xf32>
    %249 = arith.mulf %245, %248 : vector<8x346xf32>
    %250 = arith.addf %240, %249 : vector<8x346xf32>
    %251 = vector.extract_strided_slice %246 {offsets = [8, 0], sizes = [8, 346], strides = [1, 1]} : vector<16x346xf32> to vector<8x346xf32>
    %252 = arith.mulf %245, %251 : vector<8x346xf32>
    %253 = arith.addf %243, %252 : vector<8x346xf32>
    %254 = arith.subf %185, %187 : vector<8x346xf32>
    %255 = math.exp %254 : vector<8x346xf32>
    %256 = vector.extract_strided_slice %193 {offsets = [0, 6], sizes = [16, 346], strides = [1, 1]} : vector<16x352xf32> to vector<16x346xf32>
    %257 = arith.addf %247, %255 : vector<8x346xf32>
    %258 = vector.extract_strided_slice %256 {offsets = [0, 0], sizes = [8, 346], strides = [1, 1]} : vector<16x346xf32> to vector<8x346xf32>
    %259 = arith.mulf %255, %258 : vector<8x346xf32>
    %260 = arith.addf %250, %259 : vector<8x346xf32>
    %261 = vector.extract_strided_slice %256 {offsets = [8, 0], sizes = [8, 346], strides = [1, 1]} : vector<16x346xf32> to vector<8x346xf32>
    %262 = arith.mulf %255, %261 : vector<8x346xf32>
    %263 = arith.addf %253, %262 : vector<8x346xf32>
    %c0_22 = arith.constant 0 : index
    %c44 = arith.constant 44 : index
    %264 = vector.load %arg5[%c0_22, %c44] : memref<16x512xf32, #tpu.memory_space<vmem>>, vector<16x352xf32>
    %265 = vector.extract_strided_slice %264 {offsets = [0, 0], sizes = [16, 346], strides = [1, 1]} : vector<16x352xf32> to vector<16x346xf32>
    %266 = vector.extract_strided_slice %265 {offsets = [0, 0], sizes = [8, 346], strides = [1, 1]} : vector<16x346xf32> to vector<8x346xf32>
    %267 = arith.mulf %13, %266 : vector<8x346xf32>
    %268 = vector.extract_strided_slice %265 {offsets = [8, 0], sizes = [8, 346], strides = [1, 1]} : vector<16x346xf32> to vector<8x346xf32>
    %269 = arith.mulf %14, %268 : vector<8x346xf32>
    %270 = arith.addf %267, %269 : vector<8x346xf32>
    %271 = vector.extract_strided_slice %264 {offsets = [0, 1], sizes = [16, 346], strides = [1, 1]} : vector<16x352xf32> to vector<16x346xf32>
    %272 = vector.extract_strided_slice %271 {offsets = [0, 0], sizes = [8, 346], strides = [1, 1]} : vector<16x346xf32> to vector<8x346xf32>
    %273 = arith.mulf %13, %272 : vector<8x346xf32>
    %274 = vector.extract_strided_slice %271 {offsets = [8, 0], sizes = [8, 346], strides = [1, 1]} : vector<16x346xf32> to vector<8x346xf32>
    %275 = arith.mulf %14, %274 : vector<8x346xf32>
    %276 = arith.addf %273, %275 : vector<8x346xf32>
    %277 = arith.maximumf %270, %276 : vector<8x346xf32>
    %278 = vector.extract_strided_slice %264 {offsets = [0, 2], sizes = [16, 346], strides = [1, 1]} : vector<16x352xf32> to vector<16x346xf32>
    %279 = vector.extract_strided_slice %278 {offsets = [0, 0], sizes = [8, 346], strides = [1, 1]} : vector<16x346xf32> to vector<8x346xf32>
    %280 = arith.mulf %13, %279 : vector<8x346xf32>
    %281 = vector.extract_strided_slice %278 {offsets = [8, 0], sizes = [8, 346], strides = [1, 1]} : vector<16x346xf32> to vector<8x346xf32>
    %282 = arith.mulf %14, %281 : vector<8x346xf32>
    %283 = arith.addf %280, %282 : vector<8x346xf32>
    %284 = arith.maximumf %277, %283 : vector<8x346xf32>
    %285 = vector.extract_strided_slice %264 {offsets = [0, 3], sizes = [16, 346], strides = [1, 1]} : vector<16x352xf32> to vector<16x346xf32>
    %286 = vector.extract_strided_slice %285 {offsets = [0, 0], sizes = [8, 346], strides = [1, 1]} : vector<16x346xf32> to vector<8x346xf32>
    %287 = arith.mulf %13, %286 : vector<8x346xf32>
    %288 = vector.extract_strided_slice %285 {offsets = [8, 0], sizes = [8, 346], strides = [1, 1]} : vector<16x346xf32> to vector<8x346xf32>
    %289 = arith.mulf %14, %288 : vector<8x346xf32>
    %290 = arith.addf %287, %289 : vector<8x346xf32>
    %291 = arith.maximumf %284, %290 : vector<8x346xf32>
    %292 = vector.extract_strided_slice %264 {offsets = [0, 4], sizes = [16, 346], strides = [1, 1]} : vector<16x352xf32> to vector<16x346xf32>
    %293 = vector.extract_strided_slice %292 {offsets = [0, 0], sizes = [8, 346], strides = [1, 1]} : vector<16x346xf32> to vector<8x346xf32>
    %294 = arith.mulf %13, %293 : vector<8x346xf32>
    %295 = vector.extract_strided_slice %292 {offsets = [8, 0], sizes = [8, 346], strides = [1, 1]} : vector<16x346xf32> to vector<8x346xf32>
    %296 = arith.mulf %14, %295 : vector<8x346xf32>
    %297 = arith.addf %294, %296 : vector<8x346xf32>
    %298 = arith.maximumf %291, %297 : vector<8x346xf32>
    %299 = vector.extract_strided_slice %264 {offsets = [0, 5], sizes = [16, 346], strides = [1, 1]} : vector<16x352xf32> to vector<16x346xf32>
    %300 = vector.extract_strided_slice %299 {offsets = [0, 0], sizes = [8, 346], strides = [1, 1]} : vector<16x346xf32> to vector<8x346xf32>
    %301 = arith.mulf %13, %300 : vector<8x346xf32>
    %302 = vector.extract_strided_slice %299 {offsets = [8, 0], sizes = [8, 346], strides = [1, 1]} : vector<16x346xf32> to vector<8x346xf32>
    %303 = arith.mulf %14, %302 : vector<8x346xf32>
    %304 = arith.addf %301, %303 : vector<8x346xf32>
    %305 = arith.maximumf %298, %304 : vector<8x346xf32>
    %306 = vector.extract_strided_slice %264 {offsets = [0, 6], sizes = [16, 346], strides = [1, 1]} : vector<16x352xf32> to vector<16x346xf32>
    %307 = vector.extract_strided_slice %306 {offsets = [0, 0], sizes = [8, 346], strides = [1, 1]} : vector<16x346xf32> to vector<8x346xf32>
    %308 = arith.mulf %13, %307 : vector<8x346xf32>
    %309 = vector.extract_strided_slice %306 {offsets = [8, 0], sizes = [8, 346], strides = [1, 1]} : vector<16x346xf32> to vector<8x346xf32>
    %310 = arith.mulf %14, %309 : vector<8x346xf32>
    %311 = arith.addf %308, %310 : vector<8x346xf32>
    %312 = arith.maximumf %305, %311 : vector<8x346xf32>
    %313 = arith.maximumf %187, %312 : vector<8x346xf32>
    %314 = arith.subf %187, %313 : vector<8x346xf32>
    %315 = math.exp %314 : vector<8x346xf32>
    %316 = arith.mulf %315, %257 : vector<8x346xf32>
    %317 = arith.mulf %315, %260 : vector<8x346xf32>
    %318 = arith.mulf %315, %263 : vector<8x346xf32>
    %c0_23 = arith.constant 0 : index
    %c44_24 = arith.constant 44 : index
    %319 = vector.load %arg6[%c0_23, %c44_24] : memref<16x512xf32, #tpu.memory_space<vmem>>, vector<16x352xf32>
    %320 = arith.subf %270, %313 : vector<8x346xf32>
    %321 = math.exp %320 : vector<8x346xf32>
    %322 = vector.extract_strided_slice %319 {offsets = [0, 0], sizes = [16, 346], strides = [1, 1]} : vector<16x352xf32> to vector<16x346xf32>
    %323 = arith.addf %316, %321 : vector<8x346xf32>
    %324 = vector.extract_strided_slice %322 {offsets = [0, 0], sizes = [8, 346], strides = [1, 1]} : vector<16x346xf32> to vector<8x346xf32>
    %325 = arith.mulf %321, %324 : vector<8x346xf32>
    %326 = arith.addf %317, %325 : vector<8x346xf32>
    %327 = vector.extract_strided_slice %322 {offsets = [8, 0], sizes = [8, 346], strides = [1, 1]} : vector<16x346xf32> to vector<8x346xf32>
    %328 = arith.mulf %321, %327 : vector<8x346xf32>
    %329 = arith.addf %318, %328 : vector<8x346xf32>
    %330 = arith.subf %276, %313 : vector<8x346xf32>
    %331 = math.exp %330 : vector<8x346xf32>
    %332 = vector.extract_strided_slice %319 {offsets = [0, 1], sizes = [16, 346], strides = [1, 1]} : vector<16x352xf32> to vector<16x346xf32>
    %333 = arith.addf %323, %331 : vector<8x346xf32>
    %334 = vector.extract_strided_slice %332 {offsets = [0, 0], sizes = [8, 346], strides = [1, 1]} : vector<16x346xf32> to vector<8x346xf32>
    %335 = arith.mulf %331, %334 : vector<8x346xf32>
    %336 = arith.addf %326, %335 : vector<8x346xf32>
    %337 = vector.extract_strided_slice %332 {offsets = [8, 0], sizes = [8, 346], strides = [1, 1]} : vector<16x346xf32> to vector<8x346xf32>
    %338 = arith.mulf %331, %337 : vector<8x346xf32>
    %339 = arith.addf %329, %338 : vector<8x346xf32>
    %340 = arith.subf %283, %313 : vector<8x346xf32>
    %341 = math.exp %340 : vector<8x346xf32>
    %342 = vector.extract_strided_slice %319 {offsets = [0, 2], sizes = [16, 346], strides = [1, 1]} : vector<16x352xf32> to vector<16x346xf32>
    %343 = arith.addf %333, %341 : vector<8x346xf32>
    %344 = vector.extract_strided_slice %342 {offsets = [0, 0], sizes = [8, 346], strides = [1, 1]} : vector<16x346xf32> to vector<8x346xf32>
    %345 = arith.mulf %341, %344 : vector<8x346xf32>
    %346 = arith.addf %336, %345 : vector<8x346xf32>
    %347 = vector.extract_strided_slice %342 {offsets = [8, 0], sizes = [8, 346], strides = [1, 1]} : vector<16x346xf32> to vector<8x346xf32>
    %348 = arith.mulf %341, %347 : vector<8x346xf32>
    %349 = arith.addf %339, %348 : vector<8x346xf32>
    %350 = arith.subf %290, %313 : vector<8x346xf32>
    %351 = math.exp %350 : vector<8x346xf32>
    %352 = vector.extract_strided_slice %319 {offsets = [0, 3], sizes = [16, 346], strides = [1, 1]} : vector<16x352xf32> to vector<16x346xf32>
    %353 = arith.addf %343, %351 : vector<8x346xf32>
    %354 = vector.extract_strided_slice %352 {offsets = [0, 0], sizes = [8, 346], strides = [1, 1]} : vector<16x346xf32> to vector<8x346xf32>
    %355 = arith.mulf %351, %354 : vector<8x346xf32>
    %356 = arith.addf %346, %355 : vector<8x346xf32>
    %357 = vector.extract_strided_slice %352 {offsets = [8, 0], sizes = [8, 346], strides = [1, 1]} : vector<16x346xf32> to vector<8x346xf32>
    %358 = arith.mulf %351, %357 : vector<8x346xf32>
    %359 = arith.addf %349, %358 : vector<8x346xf32>
    %360 = arith.subf %297, %313 : vector<8x346xf32>
    %361 = math.exp %360 : vector<8x346xf32>
    %362 = vector.extract_strided_slice %319 {offsets = [0, 4], sizes = [16, 346], strides = [1, 1]} : vector<16x352xf32> to vector<16x346xf32>
    %363 = arith.addf %353, %361 : vector<8x346xf32>
    %364 = vector.extract_strided_slice %362 {offsets = [0, 0], sizes = [8, 346], strides = [1, 1]} : vector<16x346xf32> to vector<8x346xf32>
    %365 = arith.mulf %361, %364 : vector<8x346xf32>
    %366 = arith.addf %356, %365 : vector<8x346xf32>
    %367 = vector.extract_strided_slice %362 {offsets = [8, 0], sizes = [8, 346], strides = [1, 1]} : vector<16x346xf32> to vector<8x346xf32>
    %368 = arith.mulf %361, %367 : vector<8x346xf32>
    %369 = arith.addf %359, %368 : vector<8x346xf32>
    %370 = arith.subf %304, %313 : vector<8x346xf32>
    %371 = math.exp %370 : vector<8x346xf32>
    %372 = vector.extract_strided_slice %319 {offsets = [0, 5], sizes = [16, 346], strides = [1, 1]} : vector<16x352xf32> to vector<16x346xf32>
    %373 = arith.addf %363, %371 : vector<8x346xf32>
    %374 = vector.extract_strided_slice %372 {offsets = [0, 0], sizes = [8, 346], strides = [1, 1]} : vector<16x346xf32> to vector<8x346xf32>
    %375 = arith.mulf %371, %374 : vector<8x346xf32>
    %376 = arith.addf %366, %375 : vector<8x346xf32>
    %377 = vector.extract_strided_slice %372 {offsets = [8, 0], sizes = [8, 346], strides = [1, 1]} : vector<16x346xf32> to vector<8x346xf32>
    %378 = arith.mulf %371, %377 : vector<8x346xf32>
    %379 = arith.addf %369, %378 : vector<8x346xf32>
    %380 = arith.subf %311, %313 : vector<8x346xf32>
    %381 = math.exp %380 : vector<8x346xf32>
    %382 = vector.extract_strided_slice %319 {offsets = [0, 6], sizes = [16, 346], strides = [1, 1]} : vector<16x352xf32> to vector<16x346xf32>
    %383 = arith.addf %373, %381 : vector<8x346xf32>
    %384 = vector.extract_strided_slice %382 {offsets = [0, 0], sizes = [8, 346], strides = [1, 1]} : vector<16x346xf32> to vector<8x346xf32>
    %385 = arith.mulf %381, %384 : vector<8x346xf32>
    %386 = arith.addf %376, %385 : vector<8x346xf32>
    %387 = vector.extract_strided_slice %382 {offsets = [8, 0], sizes = [8, 346], strides = [1, 1]} : vector<16x346xf32> to vector<8x346xf32>
    %388 = arith.mulf %381, %387 : vector<8x346xf32>
    %389 = arith.addf %379, %388 : vector<8x346xf32>
    %c0_25 = arith.constant 0 : index
    %c66 = arith.constant 66 : index
    %390 = vector.load %arg5[%c0_25, %c66] : memref<16x512xf32, #tpu.memory_space<vmem>>, vector<16x352xf32>
    %391 = vector.extract_strided_slice %390 {offsets = [0, 0], sizes = [16, 346], strides = [1, 1]} : vector<16x352xf32> to vector<16x346xf32>
    %392 = vector.extract_strided_slice %391 {offsets = [0, 0], sizes = [8, 346], strides = [1, 1]} : vector<16x346xf32> to vector<8x346xf32>
    %393 = arith.mulf %13, %392 : vector<8x346xf32>
    %394 = vector.extract_strided_slice %391 {offsets = [8, 0], sizes = [8, 346], strides = [1, 1]} : vector<16x346xf32> to vector<8x346xf32>
    %395 = arith.mulf %14, %394 : vector<8x346xf32>
    %396 = arith.addf %393, %395 : vector<8x346xf32>
    %397 = vector.extract_strided_slice %390 {offsets = [0, 1], sizes = [16, 346], strides = [1, 1]} : vector<16x352xf32> to vector<16x346xf32>
    %398 = vector.extract_strided_slice %397 {offsets = [0, 0], sizes = [8, 346], strides = [1, 1]} : vector<16x346xf32> to vector<8x346xf32>
    %399 = arith.mulf %13, %398 : vector<8x346xf32>
    %400 = vector.extract_strided_slice %397 {offsets = [8, 0], sizes = [8, 346], strides = [1, 1]} : vector<16x346xf32> to vector<8x346xf32>
    %401 = arith.mulf %14, %400 : vector<8x346xf32>
    %402 = arith.addf %399, %401 : vector<8x346xf32>
    %403 = arith.maximumf %396, %402 : vector<8x346xf32>
    %404 = vector.extract_strided_slice %390 {offsets = [0, 2], sizes = [16, 346], strides = [1, 1]} : vector<16x352xf32> to vector<16x346xf32>
    %405 = vector.extract_strided_slice %404 {offsets = [0, 0], sizes = [8, 346], strides = [1, 1]} : vector<16x346xf32> to vector<8x346xf32>
    %406 = arith.mulf %13, %405 : vector<8x346xf32>
    %407 = vector.extract_strided_slice %404 {offsets = [8, 0], sizes = [8, 346], strides = [1, 1]} : vector<16x346xf32> to vector<8x346xf32>
    %408 = arith.mulf %14, %407 : vector<8x346xf32>
    %409 = arith.addf %406, %408 : vector<8x346xf32>
    %410 = arith.maximumf %403, %409 : vector<8x346xf32>
    %411 = vector.extract_strided_slice %390 {offsets = [0, 3], sizes = [16, 346], strides = [1, 1]} : vector<16x352xf32> to vector<16x346xf32>
    %412 = vector.extract_strided_slice %411 {offsets = [0, 0], sizes = [8, 346], strides = [1, 1]} : vector<16x346xf32> to vector<8x346xf32>
    %413 = arith.mulf %13, %412 : vector<8x346xf32>
    %414 = vector.extract_strided_slice %411 {offsets = [8, 0], sizes = [8, 346], strides = [1, 1]} : vector<16x346xf32> to vector<8x346xf32>
    %415 = arith.mulf %14, %414 : vector<8x346xf32>
    %416 = arith.addf %413, %415 : vector<8x346xf32>
    %417 = arith.maximumf %410, %416 : vector<8x346xf32>
    %418 = vector.extract_strided_slice %390 {offsets = [0, 4], sizes = [16, 346], strides = [1, 1]} : vector<16x352xf32> to vector<16x346xf32>
    %419 = vector.extract_strided_slice %418 {offsets = [0, 0], sizes = [8, 346], strides = [1, 1]} : vector<16x346xf32> to vector<8x346xf32>
    %420 = arith.mulf %13, %419 : vector<8x346xf32>
    %421 = vector.extract_strided_slice %418 {offsets = [8, 0], sizes = [8, 346], strides = [1, 1]} : vector<16x346xf32> to vector<8x346xf32>
    %422 = arith.mulf %14, %421 : vector<8x346xf32>
    %423 = arith.addf %420, %422 : vector<8x346xf32>
    %424 = arith.maximumf %417, %423 : vector<8x346xf32>
    %425 = vector.extract_strided_slice %390 {offsets = [0, 5], sizes = [16, 346], strides = [1, 1]} : vector<16x352xf32> to vector<16x346xf32>
    %426 = vector.extract_strided_slice %425 {offsets = [0, 0], sizes = [8, 346], strides = [1, 1]} : vector<16x346xf32> to vector<8x346xf32>
    %427 = arith.mulf %13, %426 : vector<8x346xf32>
    %428 = vector.extract_strided_slice %425 {offsets = [8, 0], sizes = [8, 346], strides = [1, 1]} : vector<16x346xf32> to vector<8x346xf32>
    %429 = arith.mulf %14, %428 : vector<8x346xf32>
    %430 = arith.addf %427, %429 : vector<8x346xf32>
    %431 = arith.maximumf %424, %430 : vector<8x346xf32>
    %432 = vector.extract_strided_slice %390 {offsets = [0, 6], sizes = [16, 346], strides = [1, 1]} : vector<16x352xf32> to vector<16x346xf32>
    %433 = vector.extract_strided_slice %432 {offsets = [0, 0], sizes = [8, 346], strides = [1, 1]} : vector<16x346xf32> to vector<8x346xf32>
    %434 = arith.mulf %13, %433 : vector<8x346xf32>
    %435 = vector.extract_strided_slice %432 {offsets = [8, 0], sizes = [8, 346], strides = [1, 1]} : vector<16x346xf32> to vector<8x346xf32>
    %436 = arith.mulf %14, %435 : vector<8x346xf32>
    %437 = arith.addf %434, %436 : vector<8x346xf32>
    %438 = arith.maximumf %431, %437 : vector<8x346xf32>
    %439 = arith.maximumf %313, %438 : vector<8x346xf32>
    %440 = arith.subf %313, %439 : vector<8x346xf32>
    %441 = math.exp %440 : vector<8x346xf32>
    %442 = arith.mulf %441, %383 : vector<8x346xf32>
    %443 = arith.mulf %441, %386 : vector<8x346xf32>
    %444 = arith.mulf %441, %389 : vector<8x346xf32>
    %c0_26 = arith.constant 0 : index
    %c66_27 = arith.constant 66 : index
    %445 = vector.load %arg6[%c0_26, %c66_27] : memref<16x512xf32, #tpu.memory_space<vmem>>, vector<16x352xf32>
    %446 = arith.subf %396, %439 : vector<8x346xf32>
    %447 = math.exp %446 : vector<8x346xf32>
    %448 = vector.extract_strided_slice %445 {offsets = [0, 0], sizes = [16, 346], strides = [1, 1]} : vector<16x352xf32> to vector<16x346xf32>
    %449 = arith.addf %442, %447 : vector<8x346xf32>
    %450 = vector.extract_strided_slice %448 {offsets = [0, 0], sizes = [8, 346], strides = [1, 1]} : vector<16x346xf32> to vector<8x346xf32>
    %451 = arith.mulf %447, %450 : vector<8x346xf32>
    %452 = arith.addf %443, %451 : vector<8x346xf32>
    %453 = vector.extract_strided_slice %448 {offsets = [8, 0], sizes = [8, 346], strides = [1, 1]} : vector<16x346xf32> to vector<8x346xf32>
    %454 = arith.mulf %447, %453 : vector<8x346xf32>
    %455 = arith.addf %444, %454 : vector<8x346xf32>
    %456 = arith.subf %402, %439 : vector<8x346xf32>
    %457 = math.exp %456 : vector<8x346xf32>
    %458 = vector.extract_strided_slice %445 {offsets = [0, 1], sizes = [16, 346], strides = [1, 1]} : vector<16x352xf32> to vector<16x346xf32>
    %459 = arith.addf %449, %457 : vector<8x346xf32>
    %460 = vector.extract_strided_slice %458 {offsets = [0, 0], sizes = [8, 346], strides = [1, 1]} : vector<16x346xf32> to vector<8x346xf32>
    %461 = arith.mulf %457, %460 : vector<8x346xf32>
    %462 = arith.addf %452, %461 : vector<8x346xf32>
    %463 = vector.extract_strided_slice %458 {offsets = [8, 0], sizes = [8, 346], strides = [1, 1]} : vector<16x346xf32> to vector<8x346xf32>
    %464 = arith.mulf %457, %463 : vector<8x346xf32>
    %465 = arith.addf %455, %464 : vector<8x346xf32>
    %466 = arith.subf %409, %439 : vector<8x346xf32>
    %467 = math.exp %466 : vector<8x346xf32>
    %468 = vector.extract_strided_slice %445 {offsets = [0, 2], sizes = [16, 346], strides = [1, 1]} : vector<16x352xf32> to vector<16x346xf32>
    %469 = arith.addf %459, %467 : vector<8x346xf32>
    %470 = vector.extract_strided_slice %468 {offsets = [0, 0], sizes = [8, 346], strides = [1, 1]} : vector<16x346xf32> to vector<8x346xf32>
    %471 = arith.mulf %467, %470 : vector<8x346xf32>
    %472 = arith.addf %462, %471 : vector<8x346xf32>
    %473 = vector.extract_strided_slice %468 {offsets = [8, 0], sizes = [8, 346], strides = [1, 1]} : vector<16x346xf32> to vector<8x346xf32>
    %474 = arith.mulf %467, %473 : vector<8x346xf32>
    %475 = arith.addf %465, %474 : vector<8x346xf32>
    %476 = arith.subf %416, %439 : vector<8x346xf32>
    %477 = math.exp %476 : vector<8x346xf32>
    %478 = vector.extract_strided_slice %445 {offsets = [0, 3], sizes = [16, 346], strides = [1, 1]} : vector<16x352xf32> to vector<16x346xf32>
    %479 = arith.addf %469, %477 : vector<8x346xf32>
    %480 = vector.extract_strided_slice %478 {offsets = [0, 0], sizes = [8, 346], strides = [1, 1]} : vector<16x346xf32> to vector<8x346xf32>
    %481 = arith.mulf %477, %480 : vector<8x346xf32>
    %482 = arith.addf %472, %481 : vector<8x346xf32>
    %483 = vector.extract_strided_slice %478 {offsets = [8, 0], sizes = [8, 346], strides = [1, 1]} : vector<16x346xf32> to vector<8x346xf32>
    %484 = arith.mulf %477, %483 : vector<8x346xf32>
    %485 = arith.addf %475, %484 : vector<8x346xf32>
    %486 = arith.subf %423, %439 : vector<8x346xf32>
    %487 = math.exp %486 : vector<8x346xf32>
    %488 = vector.extract_strided_slice %445 {offsets = [0, 4], sizes = [16, 346], strides = [1, 1]} : vector<16x352xf32> to vector<16x346xf32>
    %489 = arith.addf %479, %487 : vector<8x346xf32>
    %490 = vector.extract_strided_slice %488 {offsets = [0, 0], sizes = [8, 346], strides = [1, 1]} : vector<16x346xf32> to vector<8x346xf32>
    %491 = arith.mulf %487, %490 : vector<8x346xf32>
    %492 = arith.addf %482, %491 : vector<8x346xf32>
    %493 = vector.extract_strided_slice %488 {offsets = [8, 0], sizes = [8, 346], strides = [1, 1]} : vector<16x346xf32> to vector<8x346xf32>
    %494 = arith.mulf %487, %493 : vector<8x346xf32>
    %495 = arith.addf %485, %494 : vector<8x346xf32>
    %496 = arith.subf %430, %439 : vector<8x346xf32>
    %497 = math.exp %496 : vector<8x346xf32>
    %498 = vector.extract_strided_slice %445 {offsets = [0, 5], sizes = [16, 346], strides = [1, 1]} : vector<16x352xf32> to vector<16x346xf32>
    %499 = arith.addf %489, %497 : vector<8x346xf32>
    %500 = vector.extract_strided_slice %498 {offsets = [0, 0], sizes = [8, 346], strides = [1, 1]} : vector<16x346xf32> to vector<8x346xf32>
    %501 = arith.mulf %497, %500 : vector<8x346xf32>
    %502 = arith.addf %492, %501 : vector<8x346xf32>
    %503 = vector.extract_strided_slice %498 {offsets = [8, 0], sizes = [8, 346], strides = [1, 1]} : vector<16x346xf32> to vector<8x346xf32>
    %504 = arith.mulf %497, %503 : vector<8x346xf32>
    %505 = arith.addf %495, %504 : vector<8x346xf32>
    %506 = arith.subf %437, %439 : vector<8x346xf32>
    %507 = math.exp %506 : vector<8x346xf32>
    %508 = vector.extract_strided_slice %445 {offsets = [0, 6], sizes = [16, 346], strides = [1, 1]} : vector<16x352xf32> to vector<16x346xf32>
    %509 = arith.addf %499, %507 : vector<8x346xf32>
    %510 = vector.extract_strided_slice %508 {offsets = [0, 0], sizes = [8, 346], strides = [1, 1]} : vector<16x346xf32> to vector<8x346xf32>
    %511 = arith.mulf %507, %510 : vector<8x346xf32>
    %512 = arith.addf %502, %511 : vector<8x346xf32>
    %513 = vector.extract_strided_slice %508 {offsets = [8, 0], sizes = [8, 346], strides = [1, 1]} : vector<16x346xf32> to vector<8x346xf32>
    %514 = arith.mulf %507, %513 : vector<8x346xf32>
    %515 = arith.addf %505, %514 : vector<8x346xf32>
    %c0_28 = arith.constant 0 : index
    %c88 = arith.constant 88 : index
    %516 = vector.load %arg5[%c0_28, %c88] : memref<16x512xf32, #tpu.memory_space<vmem>>, vector<16x352xf32>
    %517 = vector.extract_strided_slice %516 {offsets = [0, 0], sizes = [16, 346], strides = [1, 1]} : vector<16x352xf32> to vector<16x346xf32>
    %518 = vector.extract_strided_slice %517 {offsets = [0, 0], sizes = [8, 346], strides = [1, 1]} : vector<16x346xf32> to vector<8x346xf32>
    %519 = arith.mulf %13, %518 : vector<8x346xf32>
    %520 = vector.extract_strided_slice %517 {offsets = [8, 0], sizes = [8, 346], strides = [1, 1]} : vector<16x346xf32> to vector<8x346xf32>
    %521 = arith.mulf %14, %520 : vector<8x346xf32>
    %522 = arith.addf %519, %521 : vector<8x346xf32>
    %523 = vector.extract_strided_slice %516 {offsets = [0, 1], sizes = [16, 346], strides = [1, 1]} : vector<16x352xf32> to vector<16x346xf32>
    %524 = vector.extract_strided_slice %523 {offsets = [0, 0], sizes = [8, 346], strides = [1, 1]} : vector<16x346xf32> to vector<8x346xf32>
    %525 = arith.mulf %13, %524 : vector<8x346xf32>
    %526 = vector.extract_strided_slice %523 {offsets = [8, 0], sizes = [8, 346], strides = [1, 1]} : vector<16x346xf32> to vector<8x346xf32>
    %527 = arith.mulf %14, %526 : vector<8x346xf32>
    %528 = arith.addf %525, %527 : vector<8x346xf32>
    %529 = arith.maximumf %522, %528 : vector<8x346xf32>
    %530 = vector.extract_strided_slice %516 {offsets = [0, 2], sizes = [16, 346], strides = [1, 1]} : vector<16x352xf32> to vector<16x346xf32>
    %531 = vector.extract_strided_slice %530 {offsets = [0, 0], sizes = [8, 346], strides = [1, 1]} : vector<16x346xf32> to vector<8x346xf32>
    %532 = arith.mulf %13, %531 : vector<8x346xf32>
    %533 = vector.extract_strided_slice %530 {offsets = [8, 0], sizes = [8, 346], strides = [1, 1]} : vector<16x346xf32> to vector<8x346xf32>
    %534 = arith.mulf %14, %533 : vector<8x346xf32>
    %535 = arith.addf %532, %534 : vector<8x346xf32>
    %536 = arith.maximumf %529, %535 : vector<8x346xf32>
    %537 = vector.extract_strided_slice %516 {offsets = [0, 3], sizes = [16, 346], strides = [1, 1]} : vector<16x352xf32> to vector<16x346xf32>
    %538 = vector.extract_strided_slice %537 {offsets = [0, 0], sizes = [8, 346], strides = [1, 1]} : vector<16x346xf32> to vector<8x346xf32>
    %539 = arith.mulf %13, %538 : vector<8x346xf32>
    %540 = vector.extract_strided_slice %537 {offsets = [8, 0], sizes = [8, 346], strides = [1, 1]} : vector<16x346xf32> to vector<8x346xf32>
    %541 = arith.mulf %14, %540 : vector<8x346xf32>
    %542 = arith.addf %539, %541 : vector<8x346xf32>
    %543 = arith.maximumf %536, %542 : vector<8x346xf32>
    %544 = vector.extract_strided_slice %516 {offsets = [0, 4], sizes = [16, 346], strides = [1, 1]} : vector<16x352xf32> to vector<16x346xf32>
    %545 = vector.extract_strided_slice %544 {offsets = [0, 0], sizes = [8, 346], strides = [1, 1]} : vector<16x346xf32> to vector<8x346xf32>
    %546 = arith.mulf %13, %545 : vector<8x346xf32>
    %547 = vector.extract_strided_slice %544 {offsets = [8, 0], sizes = [8, 346], strides = [1, 1]} : vector<16x346xf32> to vector<8x346xf32>
    %548 = arith.mulf %14, %547 : vector<8x346xf32>
    %549 = arith.addf %546, %548 : vector<8x346xf32>
    %550 = arith.maximumf %543, %549 : vector<8x346xf32>
    %551 = vector.extract_strided_slice %516 {offsets = [0, 5], sizes = [16, 346], strides = [1, 1]} : vector<16x352xf32> to vector<16x346xf32>
    %552 = vector.extract_strided_slice %551 {offsets = [0, 0], sizes = [8, 346], strides = [1, 1]} : vector<16x346xf32> to vector<8x346xf32>
    %553 = arith.mulf %13, %552 : vector<8x346xf32>
    %554 = vector.extract_strided_slice %551 {offsets = [8, 0], sizes = [8, 346], strides = [1, 1]} : vector<16x346xf32> to vector<8x346xf32>
    %555 = arith.mulf %14, %554 : vector<8x346xf32>
    %556 = arith.addf %553, %555 : vector<8x346xf32>
    %557 = arith.maximumf %550, %556 : vector<8x346xf32>
    %558 = vector.extract_strided_slice %516 {offsets = [0, 6], sizes = [16, 346], strides = [1, 1]} : vector<16x352xf32> to vector<16x346xf32>
    %559 = vector.extract_strided_slice %558 {offsets = [0, 0], sizes = [8, 346], strides = [1, 1]} : vector<16x346xf32> to vector<8x346xf32>
    %560 = arith.mulf %13, %559 : vector<8x346xf32>
    %561 = vector.extract_strided_slice %558 {offsets = [8, 0], sizes = [8, 346], strides = [1, 1]} : vector<16x346xf32> to vector<8x346xf32>
    %562 = arith.mulf %14, %561 : vector<8x346xf32>
    %563 = arith.addf %560, %562 : vector<8x346xf32>
    %564 = arith.maximumf %557, %563 : vector<8x346xf32>
    %565 = arith.maximumf %439, %564 : vector<8x346xf32>
    %566 = arith.subf %439, %565 : vector<8x346xf32>
    %567 = math.exp %566 : vector<8x346xf32>
    %568 = arith.mulf %567, %509 : vector<8x346xf32>
    %569 = arith.mulf %567, %512 : vector<8x346xf32>
    %570 = arith.mulf %567, %515 : vector<8x346xf32>
    %c0_29 = arith.constant 0 : index
    %c88_30 = arith.constant 88 : index
    %571 = vector.load %arg6[%c0_29, %c88_30] : memref<16x512xf32, #tpu.memory_space<vmem>>, vector<16x352xf32>
    %572 = arith.subf %522, %565 : vector<8x346xf32>
    %573 = math.exp %572 : vector<8x346xf32>
    %574 = vector.extract_strided_slice %571 {offsets = [0, 0], sizes = [16, 346], strides = [1, 1]} : vector<16x352xf32> to vector<16x346xf32>
    %575 = arith.addf %568, %573 : vector<8x346xf32>
    %576 = vector.extract_strided_slice %574 {offsets = [0, 0], sizes = [8, 346], strides = [1, 1]} : vector<16x346xf32> to vector<8x346xf32>
    %577 = arith.mulf %573, %576 : vector<8x346xf32>
    %578 = arith.addf %569, %577 : vector<8x346xf32>
    %579 = vector.extract_strided_slice %574 {offsets = [8, 0], sizes = [8, 346], strides = [1, 1]} : vector<16x346xf32> to vector<8x346xf32>
    %580 = arith.mulf %573, %579 : vector<8x346xf32>
    %581 = arith.addf %570, %580 : vector<8x346xf32>
    %582 = arith.subf %528, %565 : vector<8x346xf32>
    %583 = math.exp %582 : vector<8x346xf32>
    %584 = vector.extract_strided_slice %571 {offsets = [0, 1], sizes = [16, 346], strides = [1, 1]} : vector<16x352xf32> to vector<16x346xf32>
    %585 = arith.addf %575, %583 : vector<8x346xf32>
    %586 = vector.extract_strided_slice %584 {offsets = [0, 0], sizes = [8, 346], strides = [1, 1]} : vector<16x346xf32> to vector<8x346xf32>
    %587 = arith.mulf %583, %586 : vector<8x346xf32>
    %588 = arith.addf %578, %587 : vector<8x346xf32>
    %589 = vector.extract_strided_slice %584 {offsets = [8, 0], sizes = [8, 346], strides = [1, 1]} : vector<16x346xf32> to vector<8x346xf32>
    %590 = arith.mulf %583, %589 : vector<8x346xf32>
    %591 = arith.addf %581, %590 : vector<8x346xf32>
    %592 = arith.subf %535, %565 : vector<8x346xf32>
    %593 = math.exp %592 : vector<8x346xf32>
    %594 = vector.extract_strided_slice %571 {offsets = [0, 2], sizes = [16, 346], strides = [1, 1]} : vector<16x352xf32> to vector<16x346xf32>
    %595 = arith.addf %585, %593 : vector<8x346xf32>
    %596 = vector.extract_strided_slice %594 {offsets = [0, 0], sizes = [8, 346], strides = [1, 1]} : vector<16x346xf32> to vector<8x346xf32>
    %597 = arith.mulf %593, %596 : vector<8x346xf32>
    %598 = arith.addf %588, %597 : vector<8x346xf32>
    %599 = vector.extract_strided_slice %594 {offsets = [8, 0], sizes = [8, 346], strides = [1, 1]} : vector<16x346xf32> to vector<8x346xf32>
    %600 = arith.mulf %593, %599 : vector<8x346xf32>
    %601 = arith.addf %591, %600 : vector<8x346xf32>
    %602 = arith.subf %542, %565 : vector<8x346xf32>
    %603 = math.exp %602 : vector<8x346xf32>
    %604 = vector.extract_strided_slice %571 {offsets = [0, 3], sizes = [16, 346], strides = [1, 1]} : vector<16x352xf32> to vector<16x346xf32>
    %605 = arith.addf %595, %603 : vector<8x346xf32>
    %606 = vector.extract_strided_slice %604 {offsets = [0, 0], sizes = [8, 346], strides = [1, 1]} : vector<16x346xf32> to vector<8x346xf32>
    %607 = arith.mulf %603, %606 : vector<8x346xf32>
    %608 = arith.addf %598, %607 : vector<8x346xf32>
    %609 = vector.extract_strided_slice %604 {offsets = [8, 0], sizes = [8, 346], strides = [1, 1]} : vector<16x346xf32> to vector<8x346xf32>
    %610 = arith.mulf %603, %609 : vector<8x346xf32>
    %611 = arith.addf %601, %610 : vector<8x346xf32>
    %612 = arith.subf %549, %565 : vector<8x346xf32>
    %613 = math.exp %612 : vector<8x346xf32>
    %614 = vector.extract_strided_slice %571 {offsets = [0, 4], sizes = [16, 346], strides = [1, 1]} : vector<16x352xf32> to vector<16x346xf32>
    %615 = arith.addf %605, %613 : vector<8x346xf32>
    %616 = vector.extract_strided_slice %614 {offsets = [0, 0], sizes = [8, 346], strides = [1, 1]} : vector<16x346xf32> to vector<8x346xf32>
    %617 = arith.mulf %613, %616 : vector<8x346xf32>
    %618 = arith.addf %608, %617 : vector<8x346xf32>
    %619 = vector.extract_strided_slice %614 {offsets = [8, 0], sizes = [8, 346], strides = [1, 1]} : vector<16x346xf32> to vector<8x346xf32>
    %620 = arith.mulf %613, %619 : vector<8x346xf32>
    %621 = arith.addf %611, %620 : vector<8x346xf32>
    %622 = arith.subf %556, %565 : vector<8x346xf32>
    %623 = math.exp %622 : vector<8x346xf32>
    %624 = vector.extract_strided_slice %571 {offsets = [0, 5], sizes = [16, 346], strides = [1, 1]} : vector<16x352xf32> to vector<16x346xf32>
    %625 = arith.addf %615, %623 : vector<8x346xf32>
    %626 = vector.extract_strided_slice %624 {offsets = [0, 0], sizes = [8, 346], strides = [1, 1]} : vector<16x346xf32> to vector<8x346xf32>
    %627 = arith.mulf %623, %626 : vector<8x346xf32>
    %628 = arith.addf %618, %627 : vector<8x346xf32>
    %629 = vector.extract_strided_slice %624 {offsets = [8, 0], sizes = [8, 346], strides = [1, 1]} : vector<16x346xf32> to vector<8x346xf32>
    %630 = arith.mulf %623, %629 : vector<8x346xf32>
    %631 = arith.addf %621, %630 : vector<8x346xf32>
    %632 = arith.subf %563, %565 : vector<8x346xf32>
    %633 = math.exp %632 : vector<8x346xf32>
    %634 = vector.extract_strided_slice %571 {offsets = [0, 6], sizes = [16, 346], strides = [1, 1]} : vector<16x352xf32> to vector<16x346xf32>
    %635 = arith.addf %625, %633 : vector<8x346xf32>
    %636 = vector.extract_strided_slice %634 {offsets = [0, 0], sizes = [8, 346], strides = [1, 1]} : vector<16x346xf32> to vector<8x346xf32>
    %637 = arith.mulf %633, %636 : vector<8x346xf32>
    %638 = arith.addf %628, %637 : vector<8x346xf32>
    %639 = vector.extract_strided_slice %634 {offsets = [8, 0], sizes = [8, 346], strides = [1, 1]} : vector<16x346xf32> to vector<8x346xf32>
    %640 = arith.mulf %633, %639 : vector<8x346xf32>
    %641 = arith.addf %631, %640 : vector<8x346xf32>
    %c0_31 = arith.constant 0 : index
    %c110 = arith.constant 110 : index
    %642 = vector.load %arg5[%c0_31, %c110] : memref<16x512xf32, #tpu.memory_space<vmem>>, vector<16x352xf32>
    %643 = vector.extract_strided_slice %642 {offsets = [0, 0], sizes = [16, 346], strides = [1, 1]} : vector<16x352xf32> to vector<16x346xf32>
    %644 = vector.extract_strided_slice %643 {offsets = [0, 0], sizes = [8, 346], strides = [1, 1]} : vector<16x346xf32> to vector<8x346xf32>
    %645 = arith.mulf %13, %644 : vector<8x346xf32>
    %646 = vector.extract_strided_slice %643 {offsets = [8, 0], sizes = [8, 346], strides = [1, 1]} : vector<16x346xf32> to vector<8x346xf32>
    %647 = arith.mulf %14, %646 : vector<8x346xf32>
    %648 = arith.addf %645, %647 : vector<8x346xf32>
    %649 = vector.extract_strided_slice %642 {offsets = [0, 1], sizes = [16, 346], strides = [1, 1]} : vector<16x352xf32> to vector<16x346xf32>
    %650 = vector.extract_strided_slice %649 {offsets = [0, 0], sizes = [8, 346], strides = [1, 1]} : vector<16x346xf32> to vector<8x346xf32>
    %651 = arith.mulf %13, %650 : vector<8x346xf32>
    %652 = vector.extract_strided_slice %649 {offsets = [8, 0], sizes = [8, 346], strides = [1, 1]} : vector<16x346xf32> to vector<8x346xf32>
    %653 = arith.mulf %14, %652 : vector<8x346xf32>
    %654 = arith.addf %651, %653 : vector<8x346xf32>
    %655 = arith.maximumf %648, %654 : vector<8x346xf32>
    %656 = vector.extract_strided_slice %642 {offsets = [0, 2], sizes = [16, 346], strides = [1, 1]} : vector<16x352xf32> to vector<16x346xf32>
    %657 = vector.extract_strided_slice %656 {offsets = [0, 0], sizes = [8, 346], strides = [1, 1]} : vector<16x346xf32> to vector<8x346xf32>
    %658 = arith.mulf %13, %657 : vector<8x346xf32>
    %659 = vector.extract_strided_slice %656 {offsets = [8, 0], sizes = [8, 346], strides = [1, 1]} : vector<16x346xf32> to vector<8x346xf32>
    %660 = arith.mulf %14, %659 : vector<8x346xf32>
    %661 = arith.addf %658, %660 : vector<8x346xf32>
    %662 = arith.maximumf %655, %661 : vector<8x346xf32>
    %663 = vector.extract_strided_slice %642 {offsets = [0, 3], sizes = [16, 346], strides = [1, 1]} : vector<16x352xf32> to vector<16x346xf32>
    %664 = vector.extract_strided_slice %663 {offsets = [0, 0], sizes = [8, 346], strides = [1, 1]} : vector<16x346xf32> to vector<8x346xf32>
    %665 = arith.mulf %13, %664 : vector<8x346xf32>
    %666 = vector.extract_strided_slice %663 {offsets = [8, 0], sizes = [8, 346], strides = [1, 1]} : vector<16x346xf32> to vector<8x346xf32>
    %667 = arith.mulf %14, %666 : vector<8x346xf32>
    %668 = arith.addf %665, %667 : vector<8x346xf32>
    %669 = arith.maximumf %662, %668 : vector<8x346xf32>
    %670 = vector.extract_strided_slice %642 {offsets = [0, 4], sizes = [16, 346], strides = [1, 1]} : vector<16x352xf32> to vector<16x346xf32>
    %671 = vector.extract_strided_slice %670 {offsets = [0, 0], sizes = [8, 346], strides = [1, 1]} : vector<16x346xf32> to vector<8x346xf32>
    %672 = arith.mulf %13, %671 : vector<8x346xf32>
    %673 = vector.extract_strided_slice %670 {offsets = [8, 0], sizes = [8, 346], strides = [1, 1]} : vector<16x346xf32> to vector<8x346xf32>
    %674 = arith.mulf %14, %673 : vector<8x346xf32>
    %675 = arith.addf %672, %674 : vector<8x346xf32>
    %676 = arith.maximumf %669, %675 : vector<8x346xf32>
    %677 = vector.extract_strided_slice %642 {offsets = [0, 5], sizes = [16, 346], strides = [1, 1]} : vector<16x352xf32> to vector<16x346xf32>
    %678 = vector.extract_strided_slice %677 {offsets = [0, 0], sizes = [8, 346], strides = [1, 1]} : vector<16x346xf32> to vector<8x346xf32>
    %679 = arith.mulf %13, %678 : vector<8x346xf32>
    %680 = vector.extract_strided_slice %677 {offsets = [8, 0], sizes = [8, 346], strides = [1, 1]} : vector<16x346xf32> to vector<8x346xf32>
    %681 = arith.mulf %14, %680 : vector<8x346xf32>
    %682 = arith.addf %679, %681 : vector<8x346xf32>
    %683 = arith.maximumf %676, %682 : vector<8x346xf32>
    %684 = vector.extract_strided_slice %642 {offsets = [0, 6], sizes = [16, 346], strides = [1, 1]} : vector<16x352xf32> to vector<16x346xf32>
    %685 = vector.extract_strided_slice %684 {offsets = [0, 0], sizes = [8, 346], strides = [1, 1]} : vector<16x346xf32> to vector<8x346xf32>
    %686 = arith.mulf %13, %685 : vector<8x346xf32>
    %687 = vector.extract_strided_slice %684 {offsets = [8, 0], sizes = [8, 346], strides = [1, 1]} : vector<16x346xf32> to vector<8x346xf32>
    %688 = arith.mulf %14, %687 : vector<8x346xf32>
    %689 = arith.addf %686, %688 : vector<8x346xf32>
    %690 = arith.maximumf %683, %689 : vector<8x346xf32>
    %691 = arith.maximumf %565, %690 : vector<8x346xf32>
    %692 = arith.subf %565, %691 : vector<8x346xf32>
    %693 = math.exp %692 : vector<8x346xf32>
    %694 = arith.mulf %693, %635 : vector<8x346xf32>
    %695 = arith.mulf %693, %638 : vector<8x346xf32>
    %696 = arith.mulf %693, %641 : vector<8x346xf32>
    %c0_32 = arith.constant 0 : index
    %c110_33 = arith.constant 110 : index
    %697 = vector.load %arg6[%c0_32, %c110_33] : memref<16x512xf32, #tpu.memory_space<vmem>>, vector<16x352xf32>
    %698 = arith.subf %648, %691 : vector<8x346xf32>
    %699 = math.exp %698 : vector<8x346xf32>
    %700 = vector.extract_strided_slice %697 {offsets = [0, 0], sizes = [16, 346], strides = [1, 1]} : vector<16x352xf32> to vector<16x346xf32>
    %701 = arith.addf %694, %699 : vector<8x346xf32>
    %702 = vector.extract_strided_slice %700 {offsets = [0, 0], sizes = [8, 346], strides = [1, 1]} : vector<16x346xf32> to vector<8x346xf32>
    %703 = arith.mulf %699, %702 : vector<8x346xf32>
    %704 = arith.addf %695, %703 : vector<8x346xf32>
    %705 = vector.extract_strided_slice %700 {offsets = [8, 0], sizes = [8, 346], strides = [1, 1]} : vector<16x346xf32> to vector<8x346xf32>
    %706 = arith.mulf %699, %705 : vector<8x346xf32>
    %707 = arith.addf %696, %706 : vector<8x346xf32>
    %708 = arith.subf %654, %691 : vector<8x346xf32>
    %709 = math.exp %708 : vector<8x346xf32>
    %710 = vector.extract_strided_slice %697 {offsets = [0, 1], sizes = [16, 346], strides = [1, 1]} : vector<16x352xf32> to vector<16x346xf32>
    %711 = arith.addf %701, %709 : vector<8x346xf32>
    %712 = vector.extract_strided_slice %710 {offsets = [0, 0], sizes = [8, 346], strides = [1, 1]} : vector<16x346xf32> to vector<8x346xf32>
    %713 = arith.mulf %709, %712 : vector<8x346xf32>
    %714 = arith.addf %704, %713 : vector<8x346xf32>
    %715 = vector.extract_strided_slice %710 {offsets = [8, 0], sizes = [8, 346], strides = [1, 1]} : vector<16x346xf32> to vector<8x346xf32>
    %716 = arith.mulf %709, %715 : vector<8x346xf32>
    %717 = arith.addf %707, %716 : vector<8x346xf32>
    %718 = arith.subf %661, %691 : vector<8x346xf32>
    %719 = math.exp %718 : vector<8x346xf32>
    %720 = vector.extract_strided_slice %697 {offsets = [0, 2], sizes = [16, 346], strides = [1, 1]} : vector<16x352xf32> to vector<16x346xf32>
    %721 = arith.addf %711, %719 : vector<8x346xf32>
    %722 = vector.extract_strided_slice %720 {offsets = [0, 0], sizes = [8, 346], strides = [1, 1]} : vector<16x346xf32> to vector<8x346xf32>
    %723 = arith.mulf %719, %722 : vector<8x346xf32>
    %724 = arith.addf %714, %723 : vector<8x346xf32>
    %725 = vector.extract_strided_slice %720 {offsets = [8, 0], sizes = [8, 346], strides = [1, 1]} : vector<16x346xf32> to vector<8x346xf32>
    %726 = arith.mulf %719, %725 : vector<8x346xf32>
    %727 = arith.addf %717, %726 : vector<8x346xf32>
    %728 = arith.subf %668, %691 : vector<8x346xf32>
    %729 = math.exp %728 : vector<8x346xf32>
    %730 = vector.extract_strided_slice %697 {offsets = [0, 3], sizes = [16, 346], strides = [1, 1]} : vector<16x352xf32> to vector<16x346xf32>
    %731 = arith.addf %721, %729 : vector<8x346xf32>
    %732 = vector.extract_strided_slice %730 {offsets = [0, 0], sizes = [8, 346], strides = [1, 1]} : vector<16x346xf32> to vector<8x346xf32>
    %733 = arith.mulf %729, %732 : vector<8x346xf32>
    %734 = arith.addf %724, %733 : vector<8x346xf32>
    %735 = vector.extract_strided_slice %730 {offsets = [8, 0], sizes = [8, 346], strides = [1, 1]} : vector<16x346xf32> to vector<8x346xf32>
    %736 = arith.mulf %729, %735 : vector<8x346xf32>
    %737 = arith.addf %727, %736 : vector<8x346xf32>
    %738 = arith.subf %675, %691 : vector<8x346xf32>
    %739 = math.exp %738 : vector<8x346xf32>
    %740 = vector.extract_strided_slice %697 {offsets = [0, 4], sizes = [16, 346], strides = [1, 1]} : vector<16x352xf32> to vector<16x346xf32>
    %741 = arith.addf %731, %739 : vector<8x346xf32>
    %742 = vector.extract_strided_slice %740 {offsets = [0, 0], sizes = [8, 346], strides = [1, 1]} : vector<16x346xf32> to vector<8x346xf32>
    %743 = arith.mulf %739, %742 : vector<8x346xf32>
    %744 = arith.addf %734, %743 : vector<8x346xf32>
    %745 = vector.extract_strided_slice %740 {offsets = [8, 0], sizes = [8, 346], strides = [1, 1]} : vector<16x346xf32> to vector<8x346xf32>
    %746 = arith.mulf %739, %745 : vector<8x346xf32>
    %747 = arith.addf %737, %746 : vector<8x346xf32>
    %748 = arith.subf %682, %691 : vector<8x346xf32>
    %749 = math.exp %748 : vector<8x346xf32>
    %750 = vector.extract_strided_slice %697 {offsets = [0, 5], sizes = [16, 346], strides = [1, 1]} : vector<16x352xf32> to vector<16x346xf32>
    %751 = arith.addf %741, %749 : vector<8x346xf32>
    %752 = vector.extract_strided_slice %750 {offsets = [0, 0], sizes = [8, 346], strides = [1, 1]} : vector<16x346xf32> to vector<8x346xf32>
    %753 = arith.mulf %749, %752 : vector<8x346xf32>
    %754 = arith.addf %744, %753 : vector<8x346xf32>
    %755 = vector.extract_strided_slice %750 {offsets = [8, 0], sizes = [8, 346], strides = [1, 1]} : vector<16x346xf32> to vector<8x346xf32>
    %756 = arith.mulf %749, %755 : vector<8x346xf32>
    %757 = arith.addf %747, %756 : vector<8x346xf32>
    %758 = arith.subf %689, %691 : vector<8x346xf32>
    %759 = math.exp %758 : vector<8x346xf32>
    %760 = vector.extract_strided_slice %697 {offsets = [0, 6], sizes = [16, 346], strides = [1, 1]} : vector<16x352xf32> to vector<16x346xf32>
    %761 = arith.addf %751, %759 : vector<8x346xf32>
    %762 = vector.extract_strided_slice %760 {offsets = [0, 0], sizes = [8, 346], strides = [1, 1]} : vector<16x346xf32> to vector<8x346xf32>
    %763 = arith.mulf %759, %762 : vector<8x346xf32>
    %764 = arith.addf %754, %763 : vector<8x346xf32>
    %765 = vector.extract_strided_slice %760 {offsets = [8, 0], sizes = [8, 346], strides = [1, 1]} : vector<16x346xf32> to vector<8x346xf32>
    %766 = arith.mulf %759, %765 : vector<8x346xf32>
    %767 = arith.addf %757, %766 : vector<8x346xf32>
    %c0_34 = arith.constant 0 : index
    %c132 = arith.constant 132 : index
    %768 = vector.load %arg5[%c0_34, %c132] : memref<16x512xf32, #tpu.memory_space<vmem>>, vector<16x352xf32>
    %769 = vector.extract_strided_slice %768 {offsets = [0, 0], sizes = [16, 346], strides = [1, 1]} : vector<16x352xf32> to vector<16x346xf32>
    %770 = vector.extract_strided_slice %769 {offsets = [0, 0], sizes = [8, 346], strides = [1, 1]} : vector<16x346xf32> to vector<8x346xf32>
    %771 = arith.mulf %13, %770 : vector<8x346xf32>
    %772 = vector.extract_strided_slice %769 {offsets = [8, 0], sizes = [8, 346], strides = [1, 1]} : vector<16x346xf32> to vector<8x346xf32>
    %773 = arith.mulf %14, %772 : vector<8x346xf32>
    %774 = arith.addf %771, %773 : vector<8x346xf32>
    %775 = vector.extract_strided_slice %768 {offsets = [0, 1], sizes = [16, 346], strides = [1, 1]} : vector<16x352xf32> to vector<16x346xf32>
    %776 = vector.extract_strided_slice %775 {offsets = [0, 0], sizes = [8, 346], strides = [1, 1]} : vector<16x346xf32> to vector<8x346xf32>
    %777 = arith.mulf %13, %776 : vector<8x346xf32>
    %778 = vector.extract_strided_slice %775 {offsets = [8, 0], sizes = [8, 346], strides = [1, 1]} : vector<16x346xf32> to vector<8x346xf32>
    %779 = arith.mulf %14, %778 : vector<8x346xf32>
    %780 = arith.addf %777, %779 : vector<8x346xf32>
    %781 = arith.maximumf %774, %780 : vector<8x346xf32>
    %782 = vector.extract_strided_slice %768 {offsets = [0, 2], sizes = [16, 346], strides = [1, 1]} : vector<16x352xf32> to vector<16x346xf32>
    %783 = vector.extract_strided_slice %782 {offsets = [0, 0], sizes = [8, 346], strides = [1, 1]} : vector<16x346xf32> to vector<8x346xf32>
    %784 = arith.mulf %13, %783 : vector<8x346xf32>
    %785 = vector.extract_strided_slice %782 {offsets = [8, 0], sizes = [8, 346], strides = [1, 1]} : vector<16x346xf32> to vector<8x346xf32>
    %786 = arith.mulf %14, %785 : vector<8x346xf32>
    %787 = arith.addf %784, %786 : vector<8x346xf32>
    %788 = arith.maximumf %781, %787 : vector<8x346xf32>
    %789 = vector.extract_strided_slice %768 {offsets = [0, 3], sizes = [16, 346], strides = [1, 1]} : vector<16x352xf32> to vector<16x346xf32>
    %790 = vector.extract_strided_slice %789 {offsets = [0, 0], sizes = [8, 346], strides = [1, 1]} : vector<16x346xf32> to vector<8x346xf32>
    %791 = arith.mulf %13, %790 : vector<8x346xf32>
    %792 = vector.extract_strided_slice %789 {offsets = [8, 0], sizes = [8, 346], strides = [1, 1]} : vector<16x346xf32> to vector<8x346xf32>
    %793 = arith.mulf %14, %792 : vector<8x346xf32>
    %794 = arith.addf %791, %793 : vector<8x346xf32>
    %795 = arith.maximumf %788, %794 : vector<8x346xf32>
    %796 = vector.extract_strided_slice %768 {offsets = [0, 4], sizes = [16, 346], strides = [1, 1]} : vector<16x352xf32> to vector<16x346xf32>
    %797 = vector.extract_strided_slice %796 {offsets = [0, 0], sizes = [8, 346], strides = [1, 1]} : vector<16x346xf32> to vector<8x346xf32>
    %798 = arith.mulf %13, %797 : vector<8x346xf32>
    %799 = vector.extract_strided_slice %796 {offsets = [8, 0], sizes = [8, 346], strides = [1, 1]} : vector<16x346xf32> to vector<8x346xf32>
    %800 = arith.mulf %14, %799 : vector<8x346xf32>
    %801 = arith.addf %798, %800 : vector<8x346xf32>
    %802 = arith.maximumf %795, %801 : vector<8x346xf32>
    %803 = vector.extract_strided_slice %768 {offsets = [0, 5], sizes = [16, 346], strides = [1, 1]} : vector<16x352xf32> to vector<16x346xf32>
    %804 = vector.extract_strided_slice %803 {offsets = [0, 0], sizes = [8, 346], strides = [1, 1]} : vector<16x346xf32> to vector<8x346xf32>
    %805 = arith.mulf %13, %804 : vector<8x346xf32>
    %806 = vector.extract_strided_slice %803 {offsets = [8, 0], sizes = [8, 346], strides = [1, 1]} : vector<16x346xf32> to vector<8x346xf32>
    %807 = arith.mulf %14, %806 : vector<8x346xf32>
    %808 = arith.addf %805, %807 : vector<8x346xf32>
    %809 = arith.maximumf %802, %808 : vector<8x346xf32>
    %810 = vector.extract_strided_slice %768 {offsets = [0, 6], sizes = [16, 346], strides = [1, 1]} : vector<16x352xf32> to vector<16x346xf32>
    %811 = vector.extract_strided_slice %810 {offsets = [0, 0], sizes = [8, 346], strides = [1, 1]} : vector<16x346xf32> to vector<8x346xf32>
    %812 = arith.mulf %13, %811 : vector<8x346xf32>
    %813 = vector.extract_strided_slice %810 {offsets = [8, 0], sizes = [8, 346], strides = [1, 1]} : vector<16x346xf32> to vector<8x346xf32>
    %814 = arith.mulf %14, %813 : vector<8x346xf32>
    %815 = arith.addf %812, %814 : vector<8x346xf32>
    %816 = arith.maximumf %809, %815 : vector<8x346xf32>
    %817 = arith.maximumf %691, %816 : vector<8x346xf32>
    %818 = arith.subf %691, %817 : vector<8x346xf32>
    %819 = math.exp %818 : vector<8x346xf32>
    %820 = arith.mulf %819, %761 : vector<8x346xf32>
    %821 = arith.mulf %819, %764 : vector<8x346xf32>
    %822 = arith.mulf %819, %767 : vector<8x346xf32>
    %c0_35 = arith.constant 0 : index
    %c132_36 = arith.constant 132 : index
    %823 = vector.load %arg6[%c0_35, %c132_36] : memref<16x512xf32, #tpu.memory_space<vmem>>, vector<16x352xf32>
    %824 = arith.subf %774, %817 : vector<8x346xf32>
    %825 = math.exp %824 : vector<8x346xf32>
    %826 = vector.extract_strided_slice %823 {offsets = [0, 0], sizes = [16, 346], strides = [1, 1]} : vector<16x352xf32> to vector<16x346xf32>
    %827 = arith.addf %820, %825 : vector<8x346xf32>
    %828 = vector.extract_strided_slice %826 {offsets = [0, 0], sizes = [8, 346], strides = [1, 1]} : vector<16x346xf32> to vector<8x346xf32>
    %829 = arith.mulf %825, %828 : vector<8x346xf32>
    %830 = arith.addf %821, %829 : vector<8x346xf32>
    %831 = vector.extract_strided_slice %826 {offsets = [8, 0], sizes = [8, 346], strides = [1, 1]} : vector<16x346xf32> to vector<8x346xf32>
    %832 = arith.mulf %825, %831 : vector<8x346xf32>
    %833 = arith.addf %822, %832 : vector<8x346xf32>
    %834 = arith.subf %780, %817 : vector<8x346xf32>
    %835 = math.exp %834 : vector<8x346xf32>
    %836 = vector.extract_strided_slice %823 {offsets = [0, 1], sizes = [16, 346], strides = [1, 1]} : vector<16x352xf32> to vector<16x346xf32>
    %837 = arith.addf %827, %835 : vector<8x346xf32>
    %838 = vector.extract_strided_slice %836 {offsets = [0, 0], sizes = [8, 346], strides = [1, 1]} : vector<16x346xf32> to vector<8x346xf32>
    %839 = arith.mulf %835, %838 : vector<8x346xf32>
    %840 = arith.addf %830, %839 : vector<8x346xf32>
    %841 = vector.extract_strided_slice %836 {offsets = [8, 0], sizes = [8, 346], strides = [1, 1]} : vector<16x346xf32> to vector<8x346xf32>
    %842 = arith.mulf %835, %841 : vector<8x346xf32>
    %843 = arith.addf %833, %842 : vector<8x346xf32>
    %844 = arith.subf %787, %817 : vector<8x346xf32>
    %845 = math.exp %844 : vector<8x346xf32>
    %846 = vector.extract_strided_slice %823 {offsets = [0, 2], sizes = [16, 346], strides = [1, 1]} : vector<16x352xf32> to vector<16x346xf32>
    %847 = arith.addf %837, %845 : vector<8x346xf32>
    %848 = vector.extract_strided_slice %846 {offsets = [0, 0], sizes = [8, 346], strides = [1, 1]} : vector<16x346xf32> to vector<8x346xf32>
    %849 = arith.mulf %845, %848 : vector<8x346xf32>
    %850 = arith.addf %840, %849 : vector<8x346xf32>
    %851 = vector.extract_strided_slice %846 {offsets = [8, 0], sizes = [8, 346], strides = [1, 1]} : vector<16x346xf32> to vector<8x346xf32>
    %852 = arith.mulf %845, %851 : vector<8x346xf32>
    %853 = arith.addf %843, %852 : vector<8x346xf32>
    %854 = arith.subf %794, %817 : vector<8x346xf32>
    %855 = math.exp %854 : vector<8x346xf32>
    %856 = vector.extract_strided_slice %823 {offsets = [0, 3], sizes = [16, 346], strides = [1, 1]} : vector<16x352xf32> to vector<16x346xf32>
    %857 = arith.addf %847, %855 : vector<8x346xf32>
    %858 = vector.extract_strided_slice %856 {offsets = [0, 0], sizes = [8, 346], strides = [1, 1]} : vector<16x346xf32> to vector<8x346xf32>
    %859 = arith.mulf %855, %858 : vector<8x346xf32>
    %860 = arith.addf %850, %859 : vector<8x346xf32>
    %861 = vector.extract_strided_slice %856 {offsets = [8, 0], sizes = [8, 346], strides = [1, 1]} : vector<16x346xf32> to vector<8x346xf32>
    %862 = arith.mulf %855, %861 : vector<8x346xf32>
    %863 = arith.addf %853, %862 : vector<8x346xf32>
    %864 = arith.subf %801, %817 : vector<8x346xf32>
    %865 = math.exp %864 : vector<8x346xf32>
    %866 = vector.extract_strided_slice %823 {offsets = [0, 4], sizes = [16, 346], strides = [1, 1]} : vector<16x352xf32> to vector<16x346xf32>
    %867 = arith.addf %857, %865 : vector<8x346xf32>
    %868 = vector.extract_strided_slice %866 {offsets = [0, 0], sizes = [8, 346], strides = [1, 1]} : vector<16x346xf32> to vector<8x346xf32>
    %869 = arith.mulf %865, %868 : vector<8x346xf32>
    %870 = arith.addf %860, %869 : vector<8x346xf32>
    %871 = vector.extract_strided_slice %866 {offsets = [8, 0], sizes = [8, 346], strides = [1, 1]} : vector<16x346xf32> to vector<8x346xf32>
    %872 = arith.mulf %865, %871 : vector<8x346xf32>
    %873 = arith.addf %863, %872 : vector<8x346xf32>
    %874 = arith.subf %808, %817 : vector<8x346xf32>
    %875 = math.exp %874 : vector<8x346xf32>
    %876 = vector.extract_strided_slice %823 {offsets = [0, 5], sizes = [16, 346], strides = [1, 1]} : vector<16x352xf32> to vector<16x346xf32>
    %877 = arith.addf %867, %875 : vector<8x346xf32>
    %878 = vector.extract_strided_slice %876 {offsets = [0, 0], sizes = [8, 346], strides = [1, 1]} : vector<16x346xf32> to vector<8x346xf32>
    %879 = arith.mulf %875, %878 : vector<8x346xf32>
    %880 = arith.addf %870, %879 : vector<8x346xf32>
    %881 = vector.extract_strided_slice %876 {offsets = [8, 0], sizes = [8, 346], strides = [1, 1]} : vector<16x346xf32> to vector<8x346xf32>
    %882 = arith.mulf %875, %881 : vector<8x346xf32>
    %883 = arith.addf %873, %882 : vector<8x346xf32>
    %884 = arith.subf %815, %817 : vector<8x346xf32>
    %885 = math.exp %884 : vector<8x346xf32>
    %886 = vector.extract_strided_slice %823 {offsets = [0, 6], sizes = [16, 346], strides = [1, 1]} : vector<16x352xf32> to vector<16x346xf32>
    %887 = arith.addf %877, %885 : vector<8x346xf32>
    %888 = vector.extract_strided_slice %886 {offsets = [0, 0], sizes = [8, 346], strides = [1, 1]} : vector<16x346xf32> to vector<8x346xf32>
    %889 = arith.mulf %885, %888 : vector<8x346xf32>
    %890 = arith.addf %880, %889 : vector<8x346xf32>
    %891 = vector.extract_strided_slice %886 {offsets = [8, 0], sizes = [8, 346], strides = [1, 1]} : vector<16x346xf32> to vector<8x346xf32>
    %892 = arith.mulf %885, %891 : vector<8x346xf32>
    %893 = arith.addf %883, %892 : vector<8x346xf32>
    %894 = tpu.reciprocal %887 {approx = true} : vector<8x346xf32> -> vector<8x346xf32>
    %895 = arith.mulf %890, %894 : vector<8x346xf32>
    %896 = arith.mulf %893, %894 : vector<8x346xf32>
    %897 = tpu.concatenate %895, %896 in 0 : vector<8x346xf32>, vector<8x346xf32> -> vector<16x346xf32>
    %c384 = arith.constant 384 : index
    %c0_37 = arith.constant 0 : index
    %898 = vector.load %arg3[%c384, %c0_37] : memref<736x512xf32, #tpu.memory_space<vmem>>, vector<346x286xf32>
    %cst_38 = arith.constant dense<0.000000e+00> : vector<16x286xf32>
    %899 = tpu.matmul %897, %898, %cst_38 {dimension_numbers = #tpu.dot_dimension_numbers<[1], [0], [0], [1], [0, 0, 1, 1], [], []>} : vector<16x346xf32>, vector<346x286xf32>, vector<16x286xf32> -> vector<16x286xf32>
    %c48 = arith.constant 48 : index
    %c0_39 = arith.constant 0 : index
    %900 = vector.load %arg2[%c48, %c0_39] : memref<192x32xf32, #tpu.memory_space<vmem>>, vector<16x32xf32>
    %c0_40 = arith.constant 0 : index
    %c0_41 = arith.constant 0 : index
    %901 = vector.load %arg1[%c0_40, %c0_41] : memref<32x384xf32, #tpu.memory_space<vmem>>, vector<32x286xf32>
    %cst_42 = arith.constant dense<0.000000e+00> : vector<16x286xf32>
    %902 = tpu.matmul %900, %901, %cst_42 {dimension_numbers = #tpu.dot_dimension_numbers<[1], [0], [0], [1], [0, 0, 1, 1], [], []>} : vector<16x32xf32>, vector<32x286xf32>, vector<16x286xf32> -> vector<16x286xf32>
    %903 = arith.addf %899, %902 : vector<16x286xf32>
    %c64 = arith.constant 64 : index
    %c0_43 = arith.constant 0 : index
    %904 = vector.load %arg2[%c64, %c0_43] : memref<192x32xf32, #tpu.memory_space<vmem>>, vector<16x32xf32>
    %c0_44 = arith.constant 0 : index
    %c1 = arith.constant 1 : index
    %905 = vector.load %arg1[%c0_44, %c1] : memref<32x384xf32, #tpu.memory_space<vmem>>, vector<32x286xf32>
    %cst_45 = arith.constant dense<0.000000e+00> : vector<16x286xf32>
    %906 = tpu.matmul %904, %905, %cst_45 {dimension_numbers = #tpu.dot_dimension_numbers<[1], [0], [0], [1], [0, 0, 1, 1], [], []>} : vector<16x32xf32>, vector<32x286xf32>, vector<16x286xf32> -> vector<16x286xf32>
    %907 = arith.addf %903, %906 : vector<16x286xf32>
    %c80 = arith.constant 80 : index
    %c0_46 = arith.constant 0 : index
    %908 = vector.load %arg2[%c80, %c0_46] : memref<192x32xf32, #tpu.memory_space<vmem>>, vector<16x32xf32>
    %c0_47 = arith.constant 0 : index
    %c2 = arith.constant 2 : index
    %909 = vector.load %arg1[%c0_47, %c2] : memref<32x384xf32, #tpu.memory_space<vmem>>, vector<32x286xf32>
    %cst_48 = arith.constant dense<0.000000e+00> : vector<16x286xf32>
    %910 = tpu.matmul %908, %909, %cst_48 {dimension_numbers = #tpu.dot_dimension_numbers<[1], [0], [0], [1], [0, 0, 1, 1], [], []>} : vector<16x32xf32>, vector<32x286xf32>, vector<16x286xf32> -> vector<16x286xf32>
    %911 = arith.addf %907, %910 : vector<16x286xf32>
    %c96 = arith.constant 96 : index
    %c0_49 = arith.constant 0 : index
    %912 = vector.load %arg2[%c96, %c0_49] : memref<192x32xf32, #tpu.memory_space<vmem>>, vector<16x32xf32>
    %c0_50 = arith.constant 0 : index
    %c18 = arith.constant 18 : index
    %913 = vector.load %arg1[%c0_50, %c18] : memref<32x384xf32, #tpu.memory_space<vmem>>, vector<32x286xf32>
    %cst_51 = arith.constant dense<0.000000e+00> : vector<16x286xf32>
    %914 = tpu.matmul %912, %913, %cst_51 {dimension_numbers = #tpu.dot_dimension_numbers<[1], [0], [0], [1], [0, 0, 1, 1], [], []>} : vector<16x32xf32>, vector<32x286xf32>, vector<16x286xf32> -> vector<16x286xf32>
    %915 = arith.addf %911, %914 : vector<16x286xf32>
    %c112 = arith.constant 112 : index
    %c0_52 = arith.constant 0 : index
    %916 = vector.load %arg2[%c112, %c0_52] : memref<192x32xf32, #tpu.memory_space<vmem>>, vector<16x32xf32>
    %c0_53 = arith.constant 0 : index
    %c19 = arith.constant 19 : index
    %917 = vector.load %arg1[%c0_53, %c19] : memref<32x384xf32, #tpu.memory_space<vmem>>, vector<32x286xf32>
    %cst_54 = arith.constant dense<0.000000e+00> : vector<16x286xf32>
    %918 = tpu.matmul %916, %917, %cst_54 {dimension_numbers = #tpu.dot_dimension_numbers<[1], [0], [0], [1], [0, 0, 1, 1], [], []>} : vector<16x32xf32>, vector<32x286xf32>, vector<16x286xf32> -> vector<16x286xf32>
    %919 = arith.addf %915, %918 : vector<16x286xf32>
    %c128 = arith.constant 128 : index
    %c0_55 = arith.constant 0 : index
    %920 = vector.load %arg2[%c128, %c0_55] : memref<192x32xf32, #tpu.memory_space<vmem>>, vector<16x32xf32>
    %c0_56 = arith.constant 0 : index
    %c20 = arith.constant 20 : index
    %921 = vector.load %arg1[%c0_56, %c20] : memref<32x384xf32, #tpu.memory_space<vmem>>, vector<32x286xf32>
    %cst_57 = arith.constant dense<0.000000e+00> : vector<16x286xf32>
    %922 = tpu.matmul %920, %921, %cst_57 {dimension_numbers = #tpu.dot_dimension_numbers<[1], [0], [0], [1], [0, 0, 1, 1], [], []>} : vector<16x32xf32>, vector<32x286xf32>, vector<16x286xf32> -> vector<16x286xf32>
    %923 = arith.addf %919, %922 : vector<16x286xf32>
    %c144 = arith.constant 144 : index
    %c0_58 = arith.constant 0 : index
    %924 = vector.load %arg2[%c144, %c0_58] : memref<192x32xf32, #tpu.memory_space<vmem>>, vector<16x32xf32>
    %c0_59 = arith.constant 0 : index
    %c36 = arith.constant 36 : index
    %925 = vector.load %arg1[%c0_59, %c36] : memref<32x384xf32, #tpu.memory_space<vmem>>, vector<32x286xf32>
    %cst_60 = arith.constant dense<0.000000e+00> : vector<16x286xf32>
    %926 = tpu.matmul %924, %925, %cst_60 {dimension_numbers = #tpu.dot_dimension_numbers<[1], [0], [0], [1], [0, 0, 1, 1], [], []>} : vector<16x32xf32>, vector<32x286xf32>, vector<16x286xf32> -> vector<16x286xf32>
    %927 = arith.addf %923, %926 : vector<16x286xf32>
    %c160 = arith.constant 160 : index
    %c0_61 = arith.constant 0 : index
    %928 = vector.load %arg2[%c160, %c0_61] : memref<192x32xf32, #tpu.memory_space<vmem>>, vector<16x32xf32>
    %c0_62 = arith.constant 0 : index
    %c37 = arith.constant 37 : index
    %929 = vector.load %arg1[%c0_62, %c37] : memref<32x384xf32, #tpu.memory_space<vmem>>, vector<32x286xf32>
    %cst_63 = arith.constant dense<0.000000e+00> : vector<16x286xf32>
    %930 = tpu.matmul %928, %929, %cst_63 {dimension_numbers = #tpu.dot_dimension_numbers<[1], [0], [0], [1], [0, 0, 1, 1], [], []>} : vector<16x32xf32>, vector<32x286xf32>, vector<16x286xf32> -> vector<16x286xf32>
    %931 = arith.addf %927, %930 : vector<16x286xf32>
    %c176 = arith.constant 176 : index
    %c0_64 = arith.constant 0 : index
    %932 = vector.load %arg2[%c176, %c0_64] : memref<192x32xf32, #tpu.memory_space<vmem>>, vector<16x32xf32>
    %c0_65 = arith.constant 0 : index
    %c38 = arith.constant 38 : index
    %933 = vector.load %arg1[%c0_65, %c38] : memref<32x384xf32, #tpu.memory_space<vmem>>, vector<32x286xf32>
    %cst_66 = arith.constant dense<0.000000e+00> : vector<16x286xf32>
    %934 = tpu.matmul %932, %933, %cst_66 {dimension_numbers = #tpu.dot_dimension_numbers<[1], [0], [0], [1], [0, 0, 1, 1], [], []>} : vector<16x32xf32>, vector<32x286xf32>, vector<16x286xf32> -> vector<16x286xf32>
    %935 = arith.addf %931, %934 : vector<16x286xf32>
    %c0_67 = arith.constant 0 : index
    %c0_68 = arith.constant 0 : index
    %936 = vector.load %arg4[%c0_67, %c0_68] : memref<16x286xf32, #tpu.memory_space<vmem>>, vector<16x286xf32>
    tpu.vector_store %arg4[%c0_67, %c0_68], %935 {strides = array<i32>} : memref<16x286xf32, #tpu.memory_space<vmem>>, vector<16x286xf32>,
    return
  }
  func.func @transform_0(%arg0: i32) -> (i32, i32) {
    %c0_i32 = arith.constant 0 : i32
    %c0_i32_0 = arith.constant 0 : i32
    %c0_i32_1 = arith.constant 0 : i32
    return %c0_i32, %c0_i32_0 : i32, i32
  }
  func.func @transform_1(%arg0: i32) -> (i32, i32) {
    %c0_i32 = arith.constant 0 : i32
    %c0_i32_0 = arith.constant 0 : i32
    %c0_i32_1 = arith.constant 0 : i32
    return %c0_i32, %c0_i32_0 : i32, i32
  }
  func.func @transform_2(%arg0: i32) -> (i32, i32) {
    %c0_i32 = arith.constant 0 : i32
    %c0_i32_0 = arith.constant 0 : i32
    %c0_i32_1 = arith.constant 0 : i32
    return %c0_i32, %c0_i32_0 : i32, i32
  }
  func.func @transform_3(%arg0: i32) -> (i32, i32) {
    %c0_i32 = arith.constant 0 : i32
    %c0_i32_0 = arith.constant 0 : i32
    %c0_i32_1 = arith.constant 0 : i32
    return %c0_i32, %c0_i32_0 : i32, i32
  }
}

</mosaic_0001>

<llo_original>
// kernel: acmix_forward.1
$region0: #{acmix_forward.1}
  #allocation0 [shape = 'u32[]', space=smem, size = 0x4, offset = 0x4, fixed_abs, tag = 'smem constant byte address 0x4 - core index']
  #allocation1 [shape = 'u32[72,128]{1,0:T(1,128)}', space=vmem, size = 0x9000, scoped, tag = 'internal scratch']
  #allocation2 [shape = 'f32[16,512]{1,0:T(8,128)}', space=vmem, size = 0x8000, scoped, tag = 'scratch operand']
  #allocation3 [shape = 'f32[16,512]{1,0:T(8,128)}', space=vmem, size = 0x8000, scoped, tag = 'scratch operand']
  %s0 = inlined_call_operand.vmem [shape: f32[32,384], index: 0, kind: input, shape index: {}]
  %s1 = inlined_call_operand.vmem [shape: f32[192,32], index: 1, kind: input, shape index: {}]
  %s2 = inlined_call_operand.vmem [shape: f32[736,512], index: 2, kind: input, shape index: {}]
  %s3 = inlined_call_operand.vmem [shape: f32[16,286], index: 3, kind: output, shape index: {}]
  %s4 = sld [smem:[#allocation0]]
  $region22: #{acmix_forward.1} parent=0
    _
  %s6 = ssub.s32 1, %s4
  %s7 = scalar_select 0, %s6, %s4
  // Predicated region
  $region2: #{acmix_forward.1} parent=0 // pred_check
    _
  $region3: #{acmix_forward.1} parent=0 // pred_check_branch
    %9 = sbr.rel (0) target = $region5
  $region4: #{acmix_forward.1} parent=0 // pred_region
    _
  $region5: #{acmix_forward.1} parent=0 // pred_fallthru
    _
  // Predicated region
  $region6: #{acmix_forward.1} parent=0 // pred_check
    _
  $region7: #{acmix_forward.1} parent=0 // pred_check_branch
    %11 = sbr.rel (0) target = $region9
  $region8: #{acmix_forward.1} parent=0 // pred_region
    _
  $region9: #{acmix_forward.1} parent=0 // pred_fallthru
    _
  // Predicated region
  $region10: #{acmix_forward.1} parent=0 // pred_check
    _
  $region11: #{acmix_forward.1} parent=0 // pred_check_branch
    %13 = sbr.rel (0) target = $region13
  $region12: #{acmix_forward.1} parent=0 // pred_region
    _
  $region13: #{acmix_forward.1} parent=0 // pred_fallthru
    _
  %v14 = vld [vmem:[%s1] sm:$0xff]
  %v15 = vld [vmem:[%s1 + $0x8] sm:$0xff]
  %v16 = vld [vmem:[%s1 + $0x10] sm:$0xff]
  %v17 = vld [vmem:[%s1 + $0x18] sm:$0xff]
  %v18 = vld [vmem:[%s1 + $0x20] sm:$0xff]
  %v19 = vld [vmem:[%s1 + $0x28] sm:$0xff]
  %v20 = vld [vmem:[%s0] sm:$0xff]
  %v21 = vld [vmem:[%s0 + $0x8] sm:$0xff]
  %v22 = vld [vmem:[%s0 + $0x10] sm:$0xff]
  %v23 = vld [vmem:[%s0 + $0x18] sm:$0xff]
  %v24 = vld [vmem:[%s0 + $0x20] sm:$0xff]
  %v25 = vld [vmem:[%s0 + $0x28] sm:$0xff]
  %v26 = vld [vmem:[%s0 + $0x30] sm:$0xff]
  %v27 = vld [vmem:[%s0 + $0x38] sm:$0xff]
  %v28 = vld [vmem:[%s0 + $0x40] sm:$0xff]
  %v29 = vld [vmem:[%s0 + $0x48] sm:$0xff]
  %v30 = vld [vmem:[%s0 + $0x50] sm:$0xff]
  %v31 = vld [vmem:[%s0 + $0x58] sm:$0xff]
  %vm32 = vcmask 261120
  %v34 = vsel %vm32, %v14, 0
  %v37 = vsel %vm32, %v15, 0
  %v40 = vsel %vm32, %v16, 0
  %v43 = vsel %vm32, %v17, 0
  %v46 = vsel %vm32, %v18, 0
  %v49 = vsel %vm32, %v19, 0
  %51 = vmatpush.msra.mxu0 0.0
  %52 = vmatpush.msra.mxu0 0.0
  %53 = vmatpush.msra.mxu0 0.0
  %54 = vmatpush.msra.mxu0 0.0
  %55 = vmatpush.msra.mxu0 0.0
  %56 = vmatpush.msra.mxu0 0.0
  %57 = vmatpush.msra.mxu0 0.0
  %58 = vmatpush.msra.mxu0 0.0
  %59 = vmatpush.msra.mxu0 0.0
  %60 = vmatpush.msra.mxu0 0.0
  %61 = vmatpush.msra.mxu0 0.0
  %62 = vmatpush.msra.mxu0 0.0
  %63 = vmatpush.msra.mxu0 %v29
  %64 = vmatpush.msra.mxu0 %v26
  %65 = vmatpush.msra.mxu0 %v23
  %66 = vmatpush.msra.mxu0 %v20
  %67 = vmatmul.f32.gmra.mxu0 %v34
  %v68 = vpop.f32.mrf.mxu0
  %v69 = vadd.f32 0.0, %v68
  %70 = vmatmul.f32.gmra.mxu0 %v37
  %v71 = vpop.f32.mrf.mxu0
  %v72 = vadd.f32 0.0, %v71
  %73 = vmatmul.f32.gmra.mxu0 %v40
  %v74 = vpop.f32.mrf.mxu0
  %v75 = vadd.f32 0.0, %v74
  %76 = vmatmul.f32.gmra.mxu0 %v43
  %v77 = vpop.f32.mrf.mxu0
  %v78 = vadd.f32 0.0, %v77
  %79 = vmatmul.f32.gmra.mxu0 %v46
  %v80 = vpop.f32.mrf.mxu0
  %v81 = vadd.f32 0.0, %v80
  %82 = vmatmul.f32.gmra.mxu0 %v49
  %v83 = vpop.f32.mrf.mxu0
  %v84 = vadd.f32 0.0, %v83
  %85 = vdwg.mxu0
  %86 = vmatpush.msra.mxu0 0.0
  %87 = vmatpush.msra.mxu0 0.0
  %88 = vmatpush.msra.mxu0 0.0
  %89 = vmatpush.msra.mxu0 0.0
  %90 = vmatpush.msra.mxu0 0.0
  %91 = vmatpush.msra.mxu0 0.0
  %92 = vmatpush.msra.mxu0 0.0
  %93 = vmatpush.msra.mxu0 0.0
  %94 = vmatpush.msra.mxu0 0.0
  %95 = vmatpush.msra.mxu0 0.0
  %96 = vmatpush.msra.mxu0 0.0
  %97 = vmatpush.msra.mxu0 0.0
  %98 = vmatpush.msra.mxu0 %v30
  %99 = vmatpush.msra.mxu0 %v27
  %100 = vmatpush.msra.mxu0 %v24
  %101 = vmatpush.msra.mxu0 %v21
  %102 = vmatmul.f32.gmra.mxu0 %v34
  %v103 = vpop.f32.mrf.mxu0
  %v104 = vadd.f32 0.0, %v103
  %105 = vmatmul.f32.gmra.mxu0 %v37
  %v106 = vpop.f32.mrf.mxu0
  %v107 = vadd.f32 0.0, %v106
  %108 = vmatmul.f32.gmra.mxu0 %v40
  %v109 = vpop.f32.mrf.mxu0
  %v110 = vadd.f32 0.0, %v109
  %111 = vmatmul.f32.gmra.mxu0 %v43
  %v112 = vpop.f32.mrf.mxu0
  %v113 = vadd.f32 0.0, %v112
  %114 = vmatmul.f32.gmra.mxu0 %v46
  %v115 = vpop.f32.mrf.mxu0
  %v116 = vadd.f32 0.0, %v115
  %117 = vmatmul.f32.gmra.mxu0 %v49
  %v118 = vpop.f32.mrf.mxu0
  %v119 = vadd.f32 0.0, %v118
  %120 = vdwg.mxu0
  %121 = vmatpush.msra.mxu0 0.0
  %122 = vmatpush.msra.mxu0 0.0
  %123 = vmatpush.msra.mxu0 0.0
  %124 = vmatpush.msra.mxu0 0.0
  %125 = vmatpush.msra.mxu0 0.0
  %126 = vmatpush.msra.mxu0 0.0
  %127 = vmatpush.msra.mxu0 0.0
  %128 = vmatpush.msra.mxu0 0.0
  %129 = vmatpush.msra.mxu0 0.0
  %130 = vmatpush.msra.mxu0 0.0
  %131 = vmatpush.msra.mxu0 0.0
  %132 = vmatpush.msra.mxu0 0.0
  %133 = vmatpush.msra.mxu0 %v31
  %134 = vmatpush.msra.mxu0 %v28
  %135 = vmatpush.msra.mxu0 %v25
  %136 = vmatpush.msra.mxu0 %v22
  %137 = vmatmul.f32.gmra.mxu0 %v34
  %v138 = vpop.f32.mrf.mxu0
  %v139 = vadd.f32 0.0, %v138
  %140 = vmatmul.f32.gmra.mxu0 %v37
  %v141 = vpop.f32.mrf.mxu0
  %v142 = vadd.f32 0.0, %v141
  %143 = vmatmul.f32.gmra.mxu0 %v40
  %v144 = vpop.f32.mrf.mxu0
  %v145 = vadd.f32 0.0, %v144
  %146 = vmatmul.f32.gmra.mxu0 %v43
  %v147 = vpop.f32.mrf.mxu0
  %v148 = vadd.f32 0.0, %v147
  %149 = vmatmul.f32.gmra.mxu0 %v46
  %v150 = vpop.f32.mrf.mxu0
  %v151 = vadd.f32 0.0, %v150
  %152 = vmatmul.f32.gmra.mxu0 %v49
  %v153 = vpop.f32.mrf.mxu0
  %v154 = vadd.f32 0.0, %v153
  %155 = vdwg.mxu0
  %v156 = vld [vmem:[%s2] sm:$0xff]
  %v157 = vld [vmem:[%s2 + $0x8] sm:$0xff]
  %v158 = vld [vmem:[%s2 + $0x10] sm:$0xff]
  %v159 = vld [vmem:[%s2 + $0x18] sm:$0xff]
  %v160 = vld [vmem:[%s2 + $0x20] sm:$0xff]
  %v161 = vld [vmem:[%s2 + $0x28] sm:$0xff]
  %v162 = vld [vmem:[%s2 + $0x30] sm:$0xff]
  %v163 = vld [vmem:[%s2 + $0x38] sm:$0xff]
  %v164 = vld [vmem:[%s2 + $0x40] sm:$0xff]
  %v165 = vld [vmem:[%s2 + $0x48] sm:$0xff]
  %v166 = vld [vmem:[%s2 + $0x50] sm:$0xff]
  %v167 = vld [vmem:[%s2 + $0x58] sm:$0xff]
  %v168 = vld [vmem:[%s2 + $0x60] sm:$0xff]
  %v169 = vld [vmem:[%s2 + $0x68] sm:$0xff]
  %v170 = vld [vmem:[%s2 + $0x70] sm:$0xff]
  %v171 = vld [vmem:[%s2 + $0x78] sm:$0xff]
  %v172 = vld [vmem:[%s2 + $0x80] sm:$0xff]
  %v173 = vld [vmem:[%s2 + $0x88] sm:$0xff]
  %v174 = vld [vmem:[%s2 + $0x90] sm:$0xff]
  %v175 = vld [vmem:[%s2 + $0x98] sm:$0xff]
  %v176 = vld [vmem:[%s2 + $0xa0] sm:$0xff]
  %v177 = vld [vmem:[%s2 + $0xa8] sm:$0xff]
  %v178 = vld [vmem:[%s2 + $0xb0] sm:$0xff]
  %v179 = vld [vmem:[%s2 + $0xb8] sm:$0xff]
  %v180 = vld [vmem:[%s2 + $0xc0] sm:$0xff]
  %v181 = vld [vmem:[%s2 + $0xc8] sm:$0xff]
  %v182 = vld [vmem:[%s2 + $0xd0] sm:$0xff]
  %v183 = vld [vmem:[%s2 + $0xd8] sm:$0xff]
  %v184 = vld [vmem:[%s2 + $0xe0] sm:$0xff]
  %v185 = vld [vmem:[%s2 + $0xe8] sm:$0xff]
  %v186 = vld [vmem:[%s2 + $0xf0] sm:$0xff]
  %v187 = vld [vmem:[%s2 + $0xf8] sm:$0xff]
  %v188 = vld [vmem:[%s2 + $0x100] sm:$0xff]
  %v189 = vld [vmem:[%s2 + $0x108] sm:$0xff]
  %v190 = vld [vmem:[%s2 + $0x110] sm:$0xff]
  %v191 = vld [vmem:[%s2 + $0x118] sm:$0xff]
  %v192 = vld [vmem:[%s2 + $0x120] sm:$0xff]
  %v193 = vld [vmem:[%s2 + $0x128] sm:$0xff]
  %v194 = vld [vmem:[%s2 + $0x130] sm:$0xff]
  %v195 = vld [vmem:[%s2 + $0x138] sm:$0xff]
  %v196 = vld [vmem:[%s2 + $0x140] sm:$0xff]
  %v197 = vld [vmem:[%s2 + $0x148] sm:$0xff]
  %v198 = vld [vmem:[%s2 + $0x150] sm:$0xff]
  %v199 = vld [vmem:[%s2 + $0x158] sm:$0xff]
  %v200 = vld [vmem:[%s2 + $0x160] sm:$0xff]
  %v201 = vld [vmem:[%s2 + $0x168] sm:$0xff]
  %v202 = vld [vmem:[%s2 + $0x170] sm:$0xff]
  %v203 = vld [vmem:[%s2 + $0x178] sm:$0xff]
  %v204 = vld [vmem:[%s2 + $0x180] sm:$0xff]
  %v205 = vld [vmem:[%s2 + $0x188] sm:$0xff]
  %v206 = vld [vmem:[%s2 + $0x190] sm:$0xff]
  %v207 = vld [vmem:[%s2 + $0x198] sm:$0xff]
  %v208 = vld [vmem:[%s2 + $0x1a0] sm:$0xff]
  %v209 = vld [vmem:[%s2 + $0x1a8] sm:$0xff]
  %v210 = vld [vmem:[%s2 + $0x1b0] sm:$0xff]
  %v211 = vld [vmem:[%s2 + $0x1b8] sm:$0xff]
  %v212 = vld [vmem:[%s2 + $0x1c0] sm:$0xff]
  %v213 = vld [vmem:[%s2 + $0x1c8] sm:$0xff]
  %v214 = vld [vmem:[%s2 + $0x1d0] sm:$0xff]
  %v215 = vld [vmem:[%s2 + $0x1d8] sm:$0xff]
  %v216 = vld [vmem:[%s2 + $0x1e0] sm:$0xff]
  %v217 = vld [vmem:[%s2 + $0x1e8] sm:$0xff]
  %v218 = vld [vmem:[%s2 + $0x1f0] sm:$0xff]
  %v219 = vld [vmem:[%s2 + $0x1f8] sm:$0xff]
  %v220 = vld [vmem:[%s2 + $0x200] sm:$0xff]
  %v221 = vld [vmem:[%s2 + $0x208] sm:$0xff]
  %v222 = vld [vmem:[%s2 + $0x210] sm:$0xff]
  %v223 = vld [vmem:[%s2 + $0x218] sm:$0xff]
  %v224 = vld [vmem:[%s2 + $0x220] sm:$0xff]
  %v225 = vld [vmem:[%s2 + $0x228] sm:$0xff]
  %v226 = vld [vmem:[%s2 + $0x230] sm:$0xff]
  %v227 = vld [vmem:[%s2 + $0x238] sm:$0xff]
  %v228 = vld [vmem:[%s2 + $0x240] sm:$0xff]
  %v229 = vld [vmem:[%s2 + $0x248] sm:$0xff]
  %v230 = vld [vmem:[%s2 + $0x250] sm:$0xff]
  %v231 = vld [vmem:[%s2 + $0x258] sm:$0xff]
  %v232 = vld [vmem:[%s2 + $0x260] sm:$0xff]
  %v233 = vld [vmem:[%s2 + $0x268] sm:$0xff]
  %v234 = vld [vmem:[%s2 + $0x270] sm:$0xff]
  %v235 = vld [vmem:[%s2 + $0x278] sm:$0xff]
  %v236 = vld [vmem:[%s2 + $0x280] sm:$0xff]
  %v237 = vld [vmem:[%s2 + $0x288] sm:$0xff]
  %v238 = vld [vmem:[%s2 + $0x290] sm:$0xff]
  %v239 = vld [vmem:[%s2 + $0x298] sm:$0xff]
  %v240 = vld [vmem:[%s2 + $0x2a0] sm:$0xff]
  %v241 = vld [vmem:[%s2 + $0x2a8] sm:$0xff]
  %v242 = vld [vmem:[%s2 + $0x2b0] sm:$0xff]
  %v243 = vld [vmem:[%s2 + $0x2b8] sm:$0xff]
  %v244 = vld [vmem:[%s2 + $0x2c0] sm:$0xff]
  %v245 = vld [vmem:[%s2 + $0x2c8] sm:$0xff]
  %v246 = vld [vmem:[%s2 + $0x2d0] sm:$0xff]
  %v247 = vld [vmem:[%s2 + $0x2d8] sm:$0xff]
  %v248 = vld [vmem:[%s2 + $0x2e0] sm:$0xff]
  %v249 = vld [vmem:[%s2 + $0x2e8] sm:$0xff]
  %v250 = vld [vmem:[%s2 + $0x2f0] sm:$0xff]
  %v251 = vld [vmem:[%s2 + $0x2f8] sm:$0xff]
  %v252 = vld [vmem:[%s2 + $0x300] sm:$0xff]
  %v253 = vld [vmem:[%s2 + $0x308] sm:$0xff]
  %v254 = vld [vmem:[%s2 + $0x310] sm:$0xff]
  %v255 = vld [vmem:[%s2 + $0x318] sm:$0xff]
  %v256 = vld [vmem:[%s2 + $0x320] sm:$0xff]
  %v257 = vld [vmem:[%s2 + $0x328] sm:$0xff]
  %v258 = vld [vmem:[%s2 + $0x330] sm:$0xff]
  %v259 = vld [vmem:[%s2 + $0x338] sm:$0xff]
  %v260 = vld [vmem:[%s2 + $0x340] sm:$0xff]
  %v261 = vld [vmem:[%s2 + $0x348] sm:$0xff]
  %v262 = vld [vmem:[%s2 + $0x350] sm:$0xff]
  %v263 = vld [vmem:[%s2 + $0x358] sm:$0xff]
  %v264 = vld [vmem:[%s2 + $0x360] sm:$0xff]
  %v265 = vld [vmem:[%s2 + $0x368] sm:$0xff]
  %v266 = vld [vmem:[%s2 + $0x370] sm:$0xff]
  %v267 = vld [vmem:[%s2 + $0x378] sm:$0xff]
  %v268 = vld [vmem:[%s2 + $0x380] sm:$0xff]
  %v269 = vld [vmem:[%s2 + $0x388] sm:$0xff]
  %v270 = vld [vmem:[%s2 + $0x390] sm:$0xff]
  %v271 = vld [vmem:[%s2 + $0x398] sm:$0xff]
  %v272 = vld [vmem:[%s2 + $0x3a0] sm:$0xff]
  %v273 = vld [vmem:[%s2 + $0x3a8] sm:$0xff]
  %v274 = vld [vmem:[%s2 + $0x3b0] sm:$0xff]
  %v275 = vld [vmem:[%s2 + $0x3b8] sm:$0xff]
  %v276 = vld [vmem:[%s2 + $0x3c0] sm:$0xff]
  %v277 = vld [vmem:[%s2 + $0x3c8] sm:$0xff]
  %v278 = vld [vmem:[%s2 + $0x3d0] sm:$0xff]
  %v279 = vld [vmem:[%s2 + $0x3d8] sm:$0xff]
  %v280 = vld [vmem:[%s2 + $0x3e0] sm:$0xff]
  %v281 = vld [vmem:[%s2 + $0x3e8] sm:$0xff]
  %v282 = vld [vmem:[%s2 + $0x3f0] sm:$0xff]
  %v283 = vld [vmem:[%s2 + $0x3f8] sm:$0xff]
  %v284 = vld [vmem:[%s2 + $0x400] sm:$0xff]
  %v285 = vld [vmem:[%s2 + $0x408] sm:$0xff]
  %v286 = vld [vmem:[%s2 + $0x410] sm:$0xff]
  %v287 = vld [vmem:[%s2 + $0x418] sm:$0xff]
  %v288 = vld [vmem:[%s2 + $0x420] sm:$0xff]
  %v289 = vld [vmem:[%s2 + $0x428] sm:$0xff]
  %v290 = vld [vmem:[%s2 + $0x430] sm:$0xff]
  %v291 = vld [vmem:[%s2 + $0x438] sm:$0xff]
  %v292 = vld [vmem:[%s2 + $0x440] sm:$0xff]
  %v293 = vld [vmem:[%s2 + $0x448] sm:$0xff]
  %v294 = vld [vmem:[%s2 + $0x450] sm:$0xff]
  %v295 = vld [vmem:[%s2 + $0x458] sm:$0xff]
  %v296 = vld [vmem:[%s2 + $0x460] sm:$0xff]
  %v297 = vld [vmem:[%s2 + $0x468] sm:$0xff]
  %v298 = vld [vmem:[%s2 + $0x470] sm:$0xff]
  %v299 = vld [vmem:[%s2 + $0x478] sm:$0xff]
  %v300 = vld [vmem:[%s2 + $0x480] sm:$0xff]
  %v301 = vld [vmem:[%s2 + $0x488] sm:$0xff]
  %v302 = vld [vmem:[%s2 + $0x490] sm:$0xff]
  %v303 = vld [vmem:[%s2 + $0x498] sm:$0xff]
  %v304 = vld [vmem:[%s2 + $0x4a0] sm:$0xff]
  %v305 = vld [vmem:[%s2 + $0x4a8] sm:$0xff]
  %v306 = vld [vmem:[%s2 + $0x4b0] sm:$0xff]
  %v307 = vld [vmem:[%s2 + $0x4b8] sm:$0xff]
  %v308 = vld [vmem:[%s2 + $0x4c0] sm:$0xff]
  %v309 = vld [vmem:[%s2 + $0x4c8] sm:$0xff]
  %v310 = vld [vmem:[%s2 + $0x4d0] sm:$0xff]
  %v311 = vld [vmem:[%s2 + $0x4d8] sm:$0xff]
  %v312 = vld [vmem:[%s2 + $0x4e0] sm:$0xff]
  %v313 = vld [vmem:[%s2 + $0x4e8] sm:$0xff]
  %v314 = vld [vmem:[%s2 + $0x4f0] sm:$0xff]
  %v315 = vld [vmem:[%s2 + $0x4f8] sm:$0xff]
  %v316 = vld [vmem:[%s2 + $0x500] sm:$0xff]
  %v317 = vld [vmem:[%s2 + $0x508] sm:$0xff]
  %v318 = vld [vmem:[%s2 + $0x510] sm:$0xff]
  %v319 = vld [vmem:[%s2 + $0x518] sm:$0xff]
  %v320 = vld [vmem:[%s2 + $0x520] sm:$0xff]
  %v321 = vld [vmem:[%s2 + $0x528] sm:$0xff]
  %v322 = vld [vmem:[%s2 + $0x530] sm:$0xff]
  %v323 = vld [vmem:[%s2 + $0x538] sm:$0xff]
  %v324 = vld [vmem:[%s2 + $0x540] sm:$0xff]
  %v325 = vld [vmem:[%s2 + $0x548] sm:$0xff]
  %v326 = vld [vmem:[%s2 + $0x550] sm:$0xff]
  %v327 = vld [vmem:[%s2 + $0x558] sm:$0xff]
  %v328 = vld [vmem:[%s2 + $0x560] sm:$0xff]
  %v329 = vld [vmem:[%s2 + $0x568] sm:$0xff]
  %v330 = vld [vmem:[%s2 + $0x570] sm:$0xff]
  %v331 = vld [vmem:[%s2 + $0x578] sm:$0xff]
  %v332 = vld [vmem:[%s2 + $0x580] sm:$0xff]
  %v333 = vld [vmem:[%s2 + $0x588] sm:$0xff]
  %v334 = vld [vmem:[%s2 + $0x590] sm:$0xff]
  %v335 = vld [vmem:[%s2 + $0x598] sm:$0xff]
  %v336 = vld [vmem:[%s2 + $0x5a0] sm:$0xff]
  %v337 = vld [vmem:[%s2 + $0x5a8] sm:$0xff]
  %v338 = vld [vmem:[%s2 + $0x5b0] sm:$0xff]
  %v339 = vld [vmem:[%s2 + $0x5b8] sm:$0xff]
  %v340 = vld [vmem:[%s2 + $0x5c0] sm:$0xff]
  %v341 = vld [vmem:[%s2 + $0x5c8] sm:$0xff]
  %v342 = vld [vmem:[%s2 + $0x5d0] sm:$0xff]
  %v343 = vld [vmem:[%s2 + $0x5d8] sm:$0xff]
  %v344 = vld [vmem:[%s2 + $0x5e0] sm:$0xff]
  %v345 = vld [vmem:[%s2 + $0x5e8] sm:$0xff]
  %v346 = vld [vmem:[%s2 + $0x5f0] sm:$0xff]
  %v347 = vld [vmem:[%s2 + $0x5f8] sm:$0xff]
  %348 = vmatpush.msra.mxu0 %v216
  %349 = vmatpush.msra.mxu0 %v212
  %350 = vmatpush.msra.mxu0 %v208
  %351 = vmatpush.msra.mxu0 %v204
  %352 = vmatpush.msra.mxu0 %v200
  %353 = vmatpush.msra.mxu0 %v196
  %354 = vmatpush.msra.mxu0 %v192
  %355 = vmatpush.msra.mxu0 %v188
  %356 = vmatpush.msra.mxu0 %v184
  %357 = vmatpush.msra.mxu0 %v180
  %358 = vmatpush.msra.mxu0 %v176
  %359 = vmatpush.msra.mxu0 %v172
  %360 = vmatpush.msra.mxu0 %v168
  %361 = vmatpush.msra.mxu0 %v164
  %362 = vmatpush.msra.mxu0 %v160
  %363 = vmatpush.msra.mxu0 %v156
  %364 = vmatmul.f32.gmra.mxu0 %v69
  %v365 = vpop.f32.mrf.mxu0
  %v366 = vadd.f32 0.0, %v365
  %367 = vmatmul.f32.gmra.mxu0 %v72
  %v368 = vpop.f32.mrf.mxu0
  %v369 = vadd.f32 0.0, %v368
  %370 = vdwg.mxu0
  %371 = vmatpush.msra.mxu0 %v280
  %372 = vmatpush.msra.mxu0 %v276
  %373 = vmatpush.msra.mxu0 %v272
  %374 = vmatpush.msra.mxu0 %v268
  %375 = vmatpush.msra.mxu0 %v264
  %376 = vmatpush.msra.mxu0 %v260
  %377 = vmatpush.msra.mxu0 %v256
  %378 = vmatpush.msra.mxu0 %v252
  %379 = vmatpush.msra.mxu0 %v248
  %380 = vmatpush.msra.mxu0 %v244
  %381 = vmatpush.msra.mxu0 %v240
  %382 = vmatpush.msra.mxu0 %v236
  %383 = vmatpush.msra.mxu0 %v232
  %384 = vmatpush.msra.mxu0 %v228
  %385 = vmatpush.msra.mxu0 %v224
  %386 = vmatpush.msra.mxu0 %v220
  %387 = vmatmul.f32.gmra.mxu0 %v104
  %v388 = vpop.f32.mrf.mxu0
  %v389 = vadd.f32 %v366, %v388
  %390 = vmatmul.f32.gmra.mxu0 %v107
  %v391 = vpop.f32.mrf.mxu0
  %v392 = vadd.f32 %v369, %v391
  %393 = vdwg.mxu0
  %394 = vmatpush.msra.mxu0 %v344
  %395 = vmatpush.msra.mxu0 %v340
  %396 = vmatpush.msra.mxu0 %v336
  %397 = vmatpush.msra.mxu0 %v332
  %398 = vmatpush.msra.mxu0 %v328
  %399 = vmatpush.msra.mxu0 %v324
  %400 = vmatpush.msra.mxu0 %v320
  %401 = vmatpush.msra.mxu0 %v316
  %402 = vmatpush.msra.mxu0 %v312
  %403 = vmatpush.msra.mxu0 %v308
  %404 = vmatpush.msra.mxu0 %v304
  %405 = vmatpush.msra.mxu0 %v300
  %406 = vmatpush.msra.mxu0 %v296
  %407 = vmatpush.msra.mxu0 %v292
  %408 = vmatpush.msra.mxu0 %v288
  %409 = vmatpush.msra.mxu0 %v284
  %410 = vmatmul.f32.gmra.mxu0 %v139
  %v411 = vpop.f32.mrf.mxu0
  %v412 = vadd.f32 %v389, %v411
  %413 = vmatmul.f32.gmra.mxu0 %v142
  %v414 = vpop.f32.mrf.mxu0
  %v415 = vadd.f32 %v392, %v414
  %416 = vdwg.mxu0
  %417 = vmatpush.msra.mxu0 %v217
  %418 = vmatpush.msra.mxu0 %v213
  %419 = vmatpush.msra.mxu0 %v209
  %420 = vmatpush.msra.mxu0 %v205
  %421 = vmatpush.msra.mxu0 %v201
  %422 = vmatpush.msra.mxu0 %v197
  %423 = vmatpush.msra.mxu0 %v193
  %424 = vmatpush.msra.mxu0 %v189
  %425 = vmatpush.msra.mxu0 %v185
  %426 = vmatpush.msra.mxu0 %v181
  %427 = vmatpush.msra.mxu0 %v177
  %428 = vmatpush.msra.mxu0 %v173
  %429 = vmatpush.msra.mxu0 %v169
  %430 = vmatpush.msra.mxu0 %v165
  %431 = vmatpush.msra.mxu0 %v161
  %432 = vmatpush.msra.mxu0 %v157
  %433 = vmatmul.f32.gmra.mxu0 %v69
  %v434 = vpop.f32.mrf.mxu0
  %v435 = vadd.f32 0.0, %v434
  %436 = vmatmul.f32.gmra.mxu0 %v72
  %v437 = vpop.f32.mrf.mxu0
  %v438 = vadd.f32 0.0, %v437
  %439 = vdwg.mxu0
  %440 = vmatpush.msra.mxu0 %v281
  %441 = vmatpush.msra.mxu0 %v277
  %442 = vmatpush.msra.mxu0 %v273
  %443 = vmatpush.msra.mxu0 %v269
  %444 = vmatpush.msra.mxu0 %v265
  %445 = vmatpush.msra.mxu0 %v261
  %446 = vmatpush.msra.mxu0 %v257
  %447 = vmatpush.msra.mxu0 %v253
  %448 = vmatpush.msra.mxu0 %v249
  %449 = vmatpush.msra.mxu0 %v245
  %450 = vmatpush.msra.mxu0 %v241
  %451 = vmatpush.msra.mxu0 %v237
  %452 = vmatpush.msra.mxu0 %v233
  %453 = vmatpush.msra.mxu0 %v229
  %454 = vmatpush.msra.mxu0 %v225
  %455 = vmatpush.msra.mxu0 %v221
  %456 = vmatmul.f32.gmra.mxu0 %v104
  %v457 = vpop.f32.mrf.mxu0
  %v458 = vadd.f32 %v435, %v457
  %459 = vmatmul.f32.gmra.mxu0 %v107
  %v460 = vpop.f32.mrf.mxu0
  %v461 = vadd.f32 %v438, %v460
  %462 = vdwg.mxu0
  %463 = vmatpush.msra.mxu0 %v345
  %464 = vmatpush.msra.mxu0 %v341
  %465 = vmatpush.msra.mxu0 %v337
  %466 = vmatpush.msra.mxu0 %v333
  %467 = vmatpush.msra.mxu0 %v329
  %468 = vmatpush.msra.mxu0 %v325
  %469 = vmatpush.msra.mxu0 %v321
  %470 = vmatpush.msra.mxu0 %v317
  %471 = vmatpush.msra.mxu0 %v313
  %472 = vmatpush.msra.mxu0 %v309
  %473 = vmatpush.msra.mxu0 %v305
  %474 = vmatpush.msra.mxu0 %v301
  %475 = vmatpush.msra.mxu0 %v297
  %476 = vmatpush.msra.mxu0 %v293
  %477 = vmatpush.msra.mxu0 %v289
  %478 = vmatpush.msra.mxu0 %v285
  %479 = vmatmul.f32.gmra.mxu0 %v139
  %v480 = vpop.f32.mrf.mxu0
  %v481 = vadd.f32 %v458, %v480
  %482 = vmatmul.f32.gmra.mxu0 %v142
  %v483 = vpop.f32.mrf.mxu0
  %v484 = vadd.f32 %v461, %v483
  %485 = vdwg.mxu0
  %486 = vmatpush.msra.mxu0 %v218
  %487 = vmatpush.msra.mxu0 %v214
  %488 = vmatpush.msra.mxu0 %v210
  %489 = vmatpush.msra.mxu0 %v206
  %490 = vmatpush.msra.mxu0 %v202
  %491 = vmatpush.msra.mxu0 %v198
  %492 = vmatpush.msra.mxu0 %v194
  %493 = vmatpush.msra.mxu0 %v190
  %494 = vmatpush.msra.mxu0 %v186
  %495 = vmatpush.msra.mxu0 %v182
  %496 = vmatpush.msra.mxu0 %v178
  %497 = vmatpush.msra.mxu0 %v174
  %498 = vmatpush.msra.mxu0 %v170
  %499 = vmatpush.msra.mxu0 %v166
  %500 = vmatpush.msra.mxu0 %v162
  %501 = vmatpush.msra.mxu0 %v158
  %502 = vmatmul.f32.gmra.mxu0 %v69
  %v503 = vpop.f32.mrf.mxu0
  %v504 = vadd.f32 0.0, %v503
  %505 = vmatmul.f32.gmra.mxu0 %v72
  %v506 = vpop.f32.mrf.mxu0
  %v507 = vadd.f32 0.0, %v506
  %508 = vdwg.mxu0
  %509 = vmatpush.msra.mxu0 %v282
  %510 = vmatpush.msra.mxu0 %v278
  %511 = vmatpush.msra.mxu0 %v274
  %512 = vmatpush.msra.mxu0 %v270
  %513 = vmatpush.msra.mxu0 %v266
  %514 = vmatpush.msra.mxu0 %v262
  %515 = vmatpush.msra.mxu0 %v258
  %516 = vmatpush.msra.mxu0 %v254
  %517 = vmatpush.msra.mxu0 %v250
  %518 = vmatpush.msra.mxu0 %v246
  %519 = vmatpush.msra.mxu0 %v242
  %520 = vmatpush.msra.mxu0 %v238
  %521 = vmatpush.msra.mxu0 %v234
  %522 = vmatpush.msra.mxu0 %v230
  %523 = vmatpush.msra.mxu0 %v226
  %524 = vmatpush.msra.mxu0 %v222
  %525 = vmatmul.f32.gmra.mxu0 %v104
  %v526 = vpop.f32.mrf.mxu0
  %v527 = vadd.f32 %v504, %v526
  %528 = vmatmul.f32.gmra.mxu0 %v107
  %v529 = vpop.f32.mrf.mxu0
  %v530 = vadd.f32 %v507, %v529
  %531 = vdwg.mxu0
  %532 = vmatpush.msra.mxu0 %v346
  %533 = vmatpush.msra.mxu0 %v342
  %534 = vmatpush.msra.mxu0 %v338
  %535 = vmatpush.msra.mxu0 %v334
  %536 = vmatpush.msra.mxu0 %v330
  %537 = vmatpush.msra.mxu0 %v326
  %538 = vmatpush.msra.mxu0 %v322
  %539 = vmatpush.msra.mxu0 %v318
  %540 = vmatpush.msra.mxu0 %v314
  %541 = vmatpush.msra.mxu0 %v310
  %542 = vmatpush.msra.mxu0 %v306
  %543 = vmatpush.msra.mxu0 %v302
  %544 = vmatpush.msra.mxu0 %v298
  %545 = vmatpush.msra.mxu0 %v294
  %546 = vmatpush.msra.mxu0 %v290
  %547 = vmatpush.msra.mxu0 %v286
  %548 = vmatmul.f32.gmra.mxu0 %v139
  %v549 = vpop.f32.mrf.mxu0
  %v550 = vadd.f32 %v527, %v549
  %551 = vmatmul.f32.gmra.mxu0 %v142
  %v552 = vpop.f32.mrf.mxu0
  %v553 = vadd.f32 %v530, %v552
  %554 = vdwg.mxu0
  %555 = vmatpush.msra.mxu0 %v219
  %556 = vmatpush.msra.mxu0 %v215
  %557 = vmatpush.msra.mxu0 %v211
  %558 = vmatpush.msra.mxu0 %v207
  %559 = vmatpush.msra.mxu0 %v203
  %560 = vmatpush.msra.mxu0 %v199
  %561 = vmatpush.msra.mxu0 %v195
  %562 = vmatpush.msra.mxu0 %v191
  %563 = vmatpush.msra.mxu0 %v187
  %564 = vmatpush.msra.mxu0 %v183
  %565 = vmatpush.msra.mxu0 %v179
  %566 = vmatpush.msra.mxu0 %v175
  %567 = vmatpush.msra.mxu0 %v171
  %568 = vmatpush.msra.mxu0 %v167
  %569 = vmatpush.msra.mxu0 %v163
  %570 = vmatpush.msra.mxu0 %v159
  %571 = vmatmul.f32.gmra.mxu0 %v69
  %v572 = vpop.f32.mrf.mxu0
  %v573 = vadd.f32 0.0, %v572
  %574 = vmatmul.f32.gmra.mxu0 %v72
  %v575 = vpop.f32.mrf.mxu0
  %v576 = vadd.f32 0.0, %v575
  %577 = vdwg.mxu0
  %578 = vmatpush.msra.mxu0 %v283
  %579 = vmatpush.msra.mxu0 %v279
  %580 = vmatpush.msra.mxu0 %v275
  %581 = vmatpush.msra.mxu0 %v271
  %582 = vmatpush.msra.mxu0 %v267
  %583 = vmatpush.msra.mxu0 %v263
  %584 = vmatpush.msra.mxu0 %v259
  %585 = vmatpush.msra.mxu0 %v255
  %586 = vmatpush.msra.mxu0 %v251
  %587 = vmatpush.msra.mxu0 %v247
  %588 = vmatpush.msra.mxu0 %v243
  %589 = vmatpush.msra.mxu0 %v239
  %590 = vmatpush.msra.mxu0 %v235
  %591 = vmatpush.msra.mxu0 %v231
  %592 = vmatpush.msra.mxu0 %v227
  %593 = vmatpush.msra.mxu0 %v223
  %594 = vmatmul.f32.gmra.mxu0 %v104
  %v595 = vpop.f32.mrf.mxu0
  %v596 = vadd.f32 %v573, %v595
  %597 = vmatmul.f32.gmra.mxu0 %v107
  %v598 = vpop.f32.mrf.mxu0
  %v599 = vadd.f32 %v576, %v598
  %600 = vdwg.mxu0
  %601 = vmatpush.msra.mxu0 %v347
  %602 = vmatpush.msra.mxu0 %v343
  %603 = vmatpush.msra.mxu0 %v339
  %604 = vmatpush.msra.mxu0 %v335
  %605 = vmatpush.msra.mxu0 %v331
  %606 = vmatpush.msra.mxu0 %v327
  %607 = vmatpush.msra.mxu0 %v323
  %608 = vmatpush.msra.mxu0 %v319
  %609 = vmatpush.msra.mxu0 %v315
  %610 = vmatpush.msra.mxu0 %v311
  %611 = vmatpush.msra.mxu0 %v307
  %612 = vmatpush.msra.mxu0 %v303
  %613 = vmatpush.msra.mxu0 %v299
  %614 = vmatpush.msra.mxu0 %v295
  %615 = vmatpush.msra.mxu0 %v291
  %616 = vmatpush.msra.mxu0 %v287
  %617 = vmatmul.f32.gmra.mxu0 %v139
  %v618 = vpop.f32.mrf.mxu0
  %v619 = vadd.f32 %v596, %v618
  %620 = vmatmul.f32.gmra.mxu0 %v142
  %v621 = vpop.f32.mrf.mxu0
  %v622 = vadd.f32 %v599, %v621
  %623 = vdwg.mxu0
  %624 = vmatpush.msra.mxu0 %v216
  %625 = vmatpush.msra.mxu0 %v212
  %626 = vmatpush.msra.mxu0 %v208
  %627 = vmatpush.msra.mxu0 %v204
  %628 = vmatpush.msra.mxu0 %v200
  %629 = vmatpush.msra.mxu0 %v196
  %630 = vmatpush.msra.mxu0 %v192
  %631 = vmatpush.msra.mxu0 %v188
  %632 = vmatpush.msra.mxu0 %v184
  %633 = vmatpush.msra.mxu0 %v180
  %634 = vmatpush.msra.mxu0 %v176
  %635 = vmatpush.msra.mxu0 %v172
  %636 = vmatpush.msra.mxu0 %v168
  %637 = vmatpush.msra.mxu0 %v164
  %638 = vmatpush.msra.mxu0 %v160
  %639 = vmatpush.msra.mxu0 %v156
  %640 = vmatmul.f32.gmra.mxu0 %v75
  %v641 = vpop.f32.mrf.mxu0
  %v642 = vadd.f32 0.0, %v641
  %643 = vmatmul.f32.gmra.mxu0 %v78
  %v644 = vpop.f32.mrf.mxu0
  %v645 = vadd.f32 0.0, %v644
  %646 = vdwg.mxu0
  %647 = vmatpush.msra.mxu0 %v280
  %648 = vmatpush.msra.mxu0 %v276
  %649 = vmatpush.msra.mxu0 %v272
  %650 = vmatpush.msra.mxu0 %v268
  %651 = vmatpush.msra.mxu0 %v264
  %652 = vmatpush.msra.mxu0 %v260
  %653 = vmatpush.msra.mxu0 %v256
  %654 = vmatpush.msra.mxu0 %v252
  %655 = vmatpush.msra.mxu0 %v248
  %656 = vmatpush.msra.mxu0 %v244
  %657 = vmatpush.msra.mxu0 %v240
  %658 = vmatpush.msra.mxu0 %v236
  %659 = vmatpush.msra.mxu0 %v232
  %660 = vmatpush.msra.mxu0 %v228
  %661 = vmatpush.msra.mxu0 %v224
  %662 = vmatpush.msra.mxu0 %v220
  %663 = vmatmul.f32.gmra.mxu0 %v110
  %v664 = vpop.f32.mrf.mxu0
  %v665 = vadd.f32 %v642, %v664
  %666 = vmatmul.f32.gmra.mxu0 %v113
  %v667 = vpop.f32.mrf.mxu0
  %v668 = vadd.f32 %v645, %v667
  %669 = vdwg.mxu0
  %670 = vmatpush.msra.mxu0 %v344
  %671 = vmatpush.msra.mxu0 %v340
  %672 = vmatpush.msra.mxu0 %v336
  %673 = vmatpush.msra.mxu0 %v332
  %674 = vmatpush.msra.mxu0 %v328
  %675 = vmatpush.msra.mxu0 %v324
  %676 = vmatpush.msra.mxu0 %v320
  %677 = vmatpush.msra.mxu0 %v316
  %678 = vmatpush.msra.mxu0 %v312
  %679 = vmatpush.msra.mxu0 %v308
  %680 = vmatpush.msra.mxu0 %v304
  %681 = vmatpush.msra.mxu0 %v300
  %682 = vmatpush.msra.mxu0 %v296
  %683 = vmatpush.msra.mxu0 %v292
  %684 = vmatpush.msra.mxu0 %v288
  %685 = vmatpush.msra.mxu0 %v284
  %686 = vmatmul.f32.gmra.mxu0 %v145
  %v687 = vpop.f32.mrf.mxu0
  %v688 = vadd.f32 %v665, %v687
  %689 = vmatmul.f32.gmra.mxu0 %v148
  %v690 = vpop.f32.mrf.mxu0
  %v691 = vadd.f32 %v668, %v690
  %692 = vdwg.mxu0
  %693 = vmatpush.msra.mxu0 %v217
  %694 = vmatpush.msra.mxu0 %v213
  %695 = vmatpush.msra.mxu0 %v209
  %696 = vmatpush.msra.mxu0 %v205
  %697 = vmatpush.msra.mxu0 %v201
  %698 = vmatpush.msra.mxu0 %v197
  %699 = vmatpush.msra.mxu0 %v193
  %700 = vmatpush.msra.mxu0 %v189
  %701 = vmatpush.msra.mxu0 %v185
  %702 = vmatpush.msra.mxu0 %v181
  %703 = vmatpush.msra.mxu0 %v177
  %704 = vmatpush.msra.mxu0 %v173
  %705 = vmatpush.msra.mxu0 %v169
  %706 = vmatpush.msra.mxu0 %v165
  %707 = vmatpush.msra.mxu0 %v161
  %708 = vmatpush.msra.mxu0 %v157
  %709 = vmatmul.f32.gmra.mxu0 %v75
  %v710 = vpop.f32.mrf.mxu0
  %v711 = vadd.f32 0.0, %v710
  %712 = vmatmul.f32.gmra.mxu0 %v78
  %v713 = vpop.f32.mrf.mxu0
  %v714 = vadd.f32 0.0, %v713
  %715 = vdwg.mxu0
  %716 = vmatpush.msra.mxu0 %v281
  %717 = vmatpush.msra.mxu0 %v277
  %718 = vmatpush.msra.mxu0 %v273
  %719 = vmatpush.msra.mxu0 %v269
  %720 = vmatpush.msra.mxu0 %v265
  %721 = vmatpush.msra.mxu0 %v261
  %722 = vmatpush.msra.mxu0 %v257
  %723 = vmatpush.msra.mxu0 %v253
  %724 = vmatpush.msra.mxu0 %v249
  %725 = vmatpush.msra.mxu0 %v245
  %726 = vmatpush.msra.mxu0 %v241
  %727 = vmatpush.msra.mxu0 %v237
  %728 = vmatpush.msra.mxu0 %v233
  %729 = vmatpush.msra.mxu0 %v229
  %730 = vmatpush.msra.mxu0 %v225
  %731 = vmatpush.msra.mxu0 %v221
  %732 = vmatmul.f32.gmra.mxu0 %v110
  %v733 = vpop.f32.mrf.mxu0
  %v734 = vadd.f32 %v711, %v733
  %735 = vmatmul.f32.gmra.mxu0 %v113
  %v736 = vpop.f32.mrf.mxu0
  %v737 = vadd.f32 %v714, %v736
  %738 = vdwg.mxu0
  %739 = vmatpush.msra.mxu0 %v345
  %740 = vmatpush.msra.mxu0 %v341
  %741 = vmatpush.msra.mxu0 %v337
  %742 = vmatpush.msra.mxu0 %v333
  %743 = vmatpush.msra.mxu0 %v329
  %744 = vmatpush.msra.mxu0 %v325
  %745 = vmatpush.msra.mxu0 %v321
  %746 = vmatpush.msra.mxu0 %v317
  %747 = vmatpush.msra.mxu0 %v313
  %748 = vmatpush.msra.mxu0 %v309
  %749 = vmatpush.msra.mxu0 %v305
  %750 = vmatpush.msra.mxu0 %v301
  %751 = vmatpush.msra.mxu0 %v297
  %752 = vmatpush.msra.mxu0 %v293
  %753 = vmatpush.msra.mxu0 %v289
  %754 = vmatpush.msra.mxu0 %v285
  %755 = vmatmul.f32.gmra.mxu0 %v145
  %v756 = vpop.f32.mrf.mxu0
  %v757 = vadd.f32 %v734, %v756
  %758 = vmatmul.f32.gmra.mxu0 %v148
  %v759 = vpop.f32.mrf.mxu0
  %v760 = vadd.f32 %v737, %v759
  %761 = vdwg.mxu0
  %762 = vmatpush.msra.mxu0 %v218
  %763 = vmatpush.msra.mxu0 %v214
  %764 = vmatpush.msra.mxu0 %v210
  %765 = vmatpush.msra.mxu0 %v206
  %766 = vmatpush.msra.mxu0 %v202
  %767 = vmatpush.msra.mxu0 %v198
  %768 = vmatpush.msra.mxu0 %v194
  %769 = vmatpush.msra.mxu0 %v190
  %770 = vmatpush.msra.mxu0 %v186
  %771 = vmatpush.msra.mxu0 %v182
  %772 = vmatpush.msra.mxu0 %v178
  %773 = vmatpush.msra.mxu0 %v174
  %774 = vmatpush.msra.mxu0 %v170
  %775 = vmatpush.msra.mxu0 %v166
  %776 = vmatpush.msra.mxu0 %v162
  %777 = vmatpush.msra.mxu0 %v158
  %778 = vmatmul.f32.gmra.mxu0 %v75
  %v779 = vpop.f32.mrf.mxu0
  %v780 = vadd.f32 0.0, %v779
  %781 = vmatmul.f32.gmra.mxu0 %v78
  %v782 = vpop.f32.mrf.mxu0
  %v783 = vadd.f32 0.0, %v782
  %784 = vdwg.mxu0
  %785 = vmatpush.msra.mxu0 %v282
  %786 = vmatpush.msra.mxu0 %v278
  %787 = vmatpush.msra.mxu0 %v274
  %788 = vmatpush.msra.mxu0 %v270
  %789 = vmatpush.msra.mxu0 %v266
  %790 = vmatpush.msra.mxu0 %v262
  %791 = vmatpush.msra.mxu0 %v258
  %792 = vmatpush.msra.mxu0 %v254
  %793 = vmatpush.msra.mxu0 %v250
  %794 = vmatpush.msra.mxu0 %v246
  %795 = vmatpush.msra.mxu0 %v242
  %796 = vmatpush.msra.mxu0 %v238
  %797 = vmatpush.msra.mxu0 %v234
  %798 = vmatpush.msra.mxu0 %v230
  %799 = vmatpush.msra.mxu0 %v226
  %800 = vmatpush.msra.mxu0 %v222
  %801 = vmatmul.f32.gmra.mxu0 %v110
  %v802 = vpop.f32.mrf.mxu0
  %v803 = vadd.f32 %v780, %v802
  %804 = vmatmul.f32.gmra.mxu0 %v113
  %v805 = vpop.f32.mrf.mxu0
  %v806 = vadd.f32 %v783, %v805
  %807 = vdwg.mxu0
  %808 = vmatpush.msra.mxu0 %v346
  %809 = vmatpush.msra.mxu0 %v342
  %810 = vmatpush.msra.mxu0 %v338
  %811 = vmatpush.msra.mxu0 %v334
  %812 = vmatpush.msra.mxu0 %v330
  %813 = vmatpush.msra.mxu0 %v326
  %814 = vmatpush.msra.mxu0 %v322
  %815 = vmatpush.msra.mxu0 %v318
  %816 = vmatpush.msra.mxu0 %v314
  %817 = vmatpush.msra.mxu0 %v310
  %818 = vmatpush.msra.mxu0 %v306
  %819 = vmatpush.msra.mxu0 %v302
  %820 = vmatpush.msra.mxu0 %v298
  %821 = vmatpush.msra.mxu0 %v294
  %822 = vmatpush.msra.mxu0 %v290
  %823 = vmatpush.msra.mxu0 %v286
  %824 = vmatmul.f32.gmra.mxu0 %v145
  %v825 = vpop.f32.mrf.mxu0
  %v826 = vadd.f32 %v803, %v825
  %827 = vmatmul.f32.gmra.mxu0 %v148
  %v828 = vpop.f32.mrf.mxu0
  %v829 = vadd.f32 %v806, %v828
  %830 = vdwg.mxu0
  %831 = vmatpush.msra.mxu0 %v219
  %832 = vmatpush.msra.mxu0 %v215
  %833 = vmatpush.msra.mxu0 %v211
  %834 = vmatpush.msra.mxu0 %v207
  %835 = vmatpush.msra.mxu0 %v203
  %836 = vmatpush.msra.mxu0 %v199
  %837 = vmatpush.msra.mxu0 %v195
  %838 = vmatpush.msra.mxu0 %v191
  %839 = vmatpush.msra.mxu0 %v187
  %840 = vmatpush.msra.mxu0 %v183
  %841 = vmatpush.msra.mxu0 %v179
  %842 = vmatpush.msra.mxu0 %v175
  %843 = vmatpush.msra.mxu0 %v171
  %844 = vmatpush.msra.mxu0 %v167
  %845 = vmatpush.msra.mxu0 %v163
  %846 = vmatpush.msra.mxu0 %v159
  %847 = vmatmul.f32.gmra.mxu0 %v75
  %v848 = vpop.f32.mrf.mxu0
  %v849 = vadd.f32 0.0, %v848
  %850 = vmatmul.f32.gmra.mxu0 %v78
  %v851 = vpop.f32.mrf.mxu0
  %v852 = vadd.f32 0.0, %v851
  %853 = vdwg.mxu0
  %854 = vmatpush.msra.mxu0 %v283
  %855 = vmatpush.msra.mxu0 %v279
  %856 = vmatpush.msra.mxu0 %v275
  %857 = vmatpush.msra.mxu0 %v271
  %858 = vmatpush.msra.mxu0 %v267
  %859 = vmatpush.msra.mxu0 %v263
  %860 = vmatpush.msra.mxu0 %v259
  %861 = vmatpush.msra.mxu0 %v255
  %862 = vmatpush.msra.mxu0 %v251
  %863 = vmatpush.msra.mxu0 %v247
  %864 = vmatpush.msra.mxu0 %v243
  %865 = vmatpush.msra.mxu0 %v239
  %866 = vmatpush.msra.mxu0 %v235
  %867 = vmatpush.msra.mxu0 %v231
  %868 = vmatpush.msra.mxu0 %v227
  %869 = vmatpush.msra.mxu0 %v223
  %870 = vmatmul.f32.gmra.mxu0 %v110
  %v871 = vpop.f32.mrf.mxu0
  %v872 = vadd.f32 %v849, %v871
  %873 = vmatmul.f32.gmra.mxu0 %v113
  %v874 = vpop.f32.mrf.mxu0
  %v875 = vadd.f32 %v852, %v874
  %876 = vdwg.mxu0
  %877 = vmatpush.msra.mxu0 %v347
  %878 = vmatpush.msra.mxu0 %v343
  %879 = vmatpush.msra.mxu0 %v339
  %880 = vmatpush.msra.mxu0 %v335
  %881 = vmatpush.msra.mxu0 %v331
  %882 = vmatpush.msra.mxu0 %v327
  %883 = vmatpush.msra.mxu0 %v323
  %884 = vmatpush.msra.mxu0 %v319
  %885 = vmatpush.msra.mxu0 %v315
  %886 = vmatpush.msra.mxu0 %v311
  %887 = vmatpush.msra.mxu0 %v307
  %888 = vmatpush.msra.mxu0 %v303
  %889 = vmatpush.msra.mxu0 %v299
  %890 = vmatpush.msra.mxu0 %v295
  %891 = vmatpush.msra.mxu0 %v291
  %892 = vmatpush.msra.mxu0 %v287
  %893 = vmatmul.f32.gmra.mxu0 %v145
  %v894 = vpop.f32.mrf.mxu0
  %v895 = vadd.f32 %v872, %v894
  %896 = vmatmul.f32.gmra.mxu0 %v148
  %v897 = vpop.f32.mrf.mxu0
  %v898 = vadd.f32 %v875, %v897
  %899 = vdwg.mxu0
  %900 = vst [vmem:[#allocation2] sm:$0xff] %v688
  %901 = vst [vmem:[#allocation2 + $0x8] sm:$0xff] %v757
  %902 = vst [vmem:[#allocation2 + $0x10] sm:$0xff] %v826
  %903 = vst [vmem:[#allocation2 + $0x18] sm:$0xff] %v895
  %904 = vst [vmem:[#allocation2 + $0x20] sm:$0xff] %v691
  %905 = vst [vmem:[#allocation2 + $0x28] sm:$0xff] %v760
  %906 = vst [vmem:[#allocation2 + $0x30] sm:$0xff] %v829
  %907 = vst [vmem:[#allocation2 + $0x38] sm:$0xff] %v898
  %908 = vmatpush.msra.mxu0 %v216
  %909 = vmatpush.msra.mxu0 %v212
  %910 = vmatpush.msra.mxu0 %v208
  %911 = vmatpush.msra.mxu0 %v204
  %912 = vmatpush.msra.mxu0 %v200
  %913 = vmatpush.msra.mxu0 %v196
  %914 = vmatpush.msra.mxu0 %v192
  %915 = vmatpush.msra.mxu0 %v188
  %916 = vmatpush.msra.mxu0 %v184
  %917 = vmatpush.msra.mxu0 %v180
  %918 = vmatpush.msra.mxu0 %v176
  %919 = vmatpush.msra.mxu0 %v172
  %920 = vmatpush.msra.mxu0 %v168
  %921 = vmatpush.msra.mxu0 %v164
  %922 = vmatpush.msra.mxu0 %v160
  %923 = vmatpush.msra.mxu0 %v156
  %924 = vmatmul.f32.gmra.mxu0 %v81
  %v925 = vpop.f32.mrf.mxu0
  %v926 = vadd.f32 0.0, %v925
  %927 = vmatmul.f32.gmra.mxu0 %v84
  %v928 = vpop.f32.mrf.mxu0
  %v929 = vadd.f32 0.0, %v928
  %930 = vdwg.mxu0
  %931 = vmatpush.msra.mxu0 %v280
  %932 = vmatpush.msra.mxu0 %v276
  %933 = vmatpush.msra.mxu0 %v272
  %934 = vmatpush.msra.mxu0 %v268
  %935 = vmatpush.msra.mxu0 %v264
  %936 = vmatpush.msra.mxu0 %v260
  %937 = vmatpush.msra.mxu0 %v256
  %938 = vmatpush.msra.mxu0 %v252
  %939 = vmatpush.msra.mxu0 %v248
  %940 = vmatpush.msra.mxu0 %v244
  %941 = vmatpush.msra.mxu0 %v240
  %942 = vmatpush.msra.mxu0 %v236
  %943 = vmatpush.msra.mxu0 %v232
  %944 = vmatpush.msra.mxu0 %v228
  %945 = vmatpush.msra.mxu0 %v224
  %946 = vmatpush.msra.mxu0 %v220
  %947 = vmatmul.f32.gmra.mxu0 %v116
  %v948 = vpop.f32.mrf.mxu0
  %v949 = vadd.f32 %v926, %v948
  %950 = vmatmul.f32.gmra.mxu0 %v119
  %v951 = vpop.f32.mrf.mxu0
  %v952 = vadd.f32 %v929, %v951
  %953 = vdwg.mxu0
  %954 = vmatpush.msra.mxu0 %v344
  %955 = vmatpush.msra.mxu0 %v340
  %956 = vmatpush.msra.mxu0 %v336
  %957 = vmatpush.msra.mxu0 %v332
  %958 = vmatpush.msra.mxu0 %v328
  %959 = vmatpush.msra.mxu0 %v324
  %960 = vmatpush.msra.mxu0 %v320
  %961 = vmatpush.msra.mxu0 %v316
  %962 = vmatpush.msra.mxu0 %v312
  %963 = vmatpush.msra.mxu0 %v308
  %964 = vmatpush.msra.mxu0 %v304
  %965 = vmatpush.msra.mxu0 %v300
  %966 = vmatpush.msra.mxu0 %v296
  %967 = vmatpush.msra.mxu0 %v292
  %968 = vmatpush.msra.mxu0 %v288
  %969 = vmatpush.msra.mxu0 %v284
  %970 = vmatmul.f32.gmra.mxu0 %v151
  %v971 = vpop.f32.mrf.mxu0
  %v972 = vadd.f32 %v949, %v971
  %973 = vmatmul.f32.gmra.mxu0 %v154
  %v974 = vpop.f32.mrf.mxu0
  %v975 = vadd.f32 %v952, %v974
  %976 = vdwg.mxu0
  %977 = vmatpush.msra.mxu0 %v217
  %978 = vmatpush.msra.mxu0 %v213
  %979 = vmatpush.msra.mxu0 %v209
  %980 = vmatpush.msra.mxu0 %v205
  %981 = vmatpush.msra.mxu0 %v201
  %982 = vmatpush.msra.mxu0 %v197
  %983 = vmatpush.msra.mxu0 %v193
  %984 = vmatpush.msra.mxu0 %v189
  %985 = vmatpush.msra.mxu0 %v185
  %986 = vmatpush.msra.mxu0 %v181
  %987 = vmatpush.msra.mxu0 %v177
  %988 = vmatpush.msra.mxu0 %v173
  %989 = vmatpush.msra.mxu0 %v169
  %990 = vmatpush.msra.mxu0 %v165
  %991 = vmatpush.msra.mxu0 %v161
  %992 = vmatpush.msra.mxu0 %v157
  %993 = vmatmul.f32.gmra.mxu0 %v81
  %v994 = vpop.f32.mrf.mxu0
  %v995 = vadd.f32 0.0, %v994
  %996 = vmatmul.f32.gmra.mxu0 %v84
  %v997 = vpop.f32.mrf.mxu0
  %v998 = vadd.f32 0.0, %v997
  %999 = vdwg.mxu0
  %1000 = vmatpush.msra.mxu0 %v281
  %1001 = vmatpush.msra.mxu0 %v277
  %1002 = vmatpush.msra.mxu0 %v273
  %1003 = vmatpush.msra.mxu0 %v269
  %1004 = vmatpush.msra.mxu0 %v265
  %1005 = vmatpush.msra.mxu0 %v261
  %1006 = vmatpush.msra.mxu0 %v257
  %1007 = vmatpush.msra.mxu0 %v253
  %1008 = vmatpush.msra.mxu0 %v249
  %1009 = vmatpush.msra.mxu0 %v245
  %1010 = vmatpush.msra.mxu0 %v241
  %1011 = vmatpush.msra.mxu0 %v237
  %1012 = vmatpush.msra.mxu0 %v233
  %1013 = vmatpush.msra.mxu0 %v229
  %1014 = vmatpush.msra.mxu0 %v225
  %1015 = vmatpush.msra.mxu0 %v221
  %1016 = vmatmul.f32.gmra.mxu0 %v116
  %v1017 = vpop.f32.mrf.mxu0
  %v1018 = vadd.f32 %v995, %v1017
  %1019 = vmatmul.f32.gmra.mxu0 %v119
  %v1020 = vpop.f32.mrf.mxu0
  %v1021 = vadd.f32 %v998, %v1020
  %1022 = vdwg.mxu0
  %1023 = vmatpush.msra.mxu0 %v345
  %1024 = vmatpush.msra.mxu0 %v341
  %1025 = vmatpush.msra.mxu0 %v337
  %1026 = vmatpush.msra.mxu0 %v333
  %1027 = vmatpush.msra.mxu0 %v329
  %1028 = vmatpush.msra.mxu0 %v325
  %1029 = vmatpush.msra.mxu0 %v321
  %1030 = vmatpush.msra.mxu0 %v317
  %1031 = vmatpush.msra.mxu0 %v313
  %1032 = vmatpush.msra.mxu0 %v309
  %1033 = vmatpush.msra.mxu0 %v305
  %1034 = vmatpush.msra.mxu0 %v301
  %1035 = vmatpush.msra.mxu0 %v297
  %1036 = vmatpush.msra.mxu0 %v293
  %1037 = vmatpush.msra.mxu0 %v289
  %1038 = vmatpush.msra.mxu0 %v285
  %1039 = vmatmul.f32.gmra.mxu0 %v151
  %v1040 = vpop.f32.mrf.mxu0
  %v1041 = vadd.f32 %v1018, %v1040
  %1042 = vmatmul.f32.gmra.mxu0 %v154
  %v1043 = vpop.f32.mrf.mxu0
  %v1044 = vadd.f32 %v1021, %v1043
  %1045 = vdwg.mxu0
  %1046 = vmatpush.msra.mxu0 %v218
  %1047 = vmatpush.msra.mxu0 %v214
  %1048 = vmatpush.msra.mxu0 %v210
  %1049 = vmatpush.msra.mxu0 %v206
  %1050 = vmatpush.msra.mxu0 %v202
  %1051 = vmatpush.msra.mxu0 %v198
  %1052 = vmatpush.msra.mxu0 %v194
  %1053 = vmatpush.msra.mxu0 %v190
  %1054 = vmatpush.msra.mxu0 %v186
  %1055 = vmatpush.msra.mxu0 %v182
  %1056 = vmatpush.msra.mxu0 %v178
  %1057 = vmatpush.msra.mxu0 %v174
  %1058 = vmatpush.msra.mxu0 %v170
  %1059 = vmatpush.msra.mxu0 %v166
  %1060 = vmatpush.msra.mxu0 %v162
  %1061 = vmatpush.msra.mxu0 %v158
  %1062 = vmatmul.f32.gmra.mxu0 %v81
  %v1063 = vpop.f32.mrf.mxu0
  %v1064 = vadd.f32 0.0, %v1063
  %1065 = vmatmul.f32.gmra.mxu0 %v84
  %v1066 = vpop.f32.mrf.mxu0
  %v1067 = vadd.f32 0.0, %v1066
  %1068 = vdwg.mxu0
  %1069 = vmatpush.msra.mxu0 %v282
  %1070 = vmatpush.msra.mxu0 %v278
  %1071 = vmatpush.msra.mxu0 %v274
  %1072 = vmatpush.msra.mxu0 %v270
  %1073 = vmatpush.msra.mxu0 %v266
  %1074 = vmatpush.msra.mxu0 %v262
  %1075 = vmatpush.msra.mxu0 %v258
  %1076 = vmatpush.msra.mxu0 %v254
  %1077 = vmatpush.msra.mxu0 %v250
  %1078 = vmatpush.msra.mxu0 %v246
  %1079 = vmatpush.msra.mxu0 %v242
  %1080 = vmatpush.msra.mxu0 %v238
  %1081 = vmatpush.msra.mxu0 %v234
  %1082 = vmatpush.msra.mxu0 %v230
  %1083 = vmatpush.msra.mxu0 %v226
  %1084 = vmatpush.msra.mxu0 %v222
  %1085 = vmatmul.f32.gmra.mxu0 %v116
  %v1086 = vpop.f32.mrf.mxu0
  %v1087 = vadd.f32 %v1064, %v1086
  %1088 = vmatmul.f32.gmra.mxu0 %v119
  %v1089 = vpop.f32.mrf.mxu0
  %v1090 = vadd.f32 %v1067, %v1089
  %1091 = vdwg.mxu0
  %1092 = vmatpush.msra.mxu0 %v346
  %1093 = vmatpush.msra.mxu0 %v342
  %1094 = vmatpush.msra.mxu0 %v338
  %1095 = vmatpush.msra.mxu0 %v334
  %1096 = vmatpush.msra.mxu0 %v330
  %1097 = vmatpush.msra.mxu0 %v326
  %1098 = vmatpush.msra.mxu0 %v322
  %1099 = vmatpush.msra.mxu0 %v318
  %1100 = vmatpush.msra.mxu0 %v314
  %1101 = vmatpush.msra.mxu0 %v310
  %1102 = vmatpush.msra.mxu0 %v306
  %1103 = vmatpush.msra.mxu0 %v302
  %1104 = vmatpush.msra.mxu0 %v298
  %1105 = vmatpush.msra.mxu0 %v294
  %1106 = vmatpush.msra.mxu0 %v290
  %1107 = vmatpush.msra.mxu0 %v286
  %1108 = vmatmul.f32.gmra.mxu0 %v151
  %v1109 = vpop.f32.mrf.mxu0
  %v1110 = vadd.f32 %v1087, %v1109
  %1111 = vmatmul.f32.gmra.mxu0 %v154
  %v1112 = vpop.f32.mrf.mxu0
  %v1113 = vadd.f32 %v1090, %v1112
  %1114 = vdwg.mxu0
  %1115 = vmatpush.msra.mxu0 %v219
  %1116 = vmatpush.msra.mxu0 %v215
  %1117 = vmatpush.msra.mxu0 %v211
  %1118 = vmatpush.msra.mxu0 %v207
  %1119 = vmatpush.msra.mxu0 %v203
  %1120 = vmatpush.msra.mxu0 %v199
  %1121 = vmatpush.msra.mxu0 %v195
  %1122 = vmatpush.msra.mxu0 %v191
  %1123 = vmatpush.msra.mxu0 %v187
  %1124 = vmatpush.msra.mxu0 %v183
  %1125 = vmatpush.msra.mxu0 %v179
  %1126 = vmatpush.msra.mxu0 %v175
  %1127 = vmatpush.msra.mxu0 %v171
  %1128 = vmatpush.msra.mxu0 %v167
  %1129 = vmatpush.msra.mxu0 %v163
  %1130 = vmatpush.msra.mxu0 %v159
  %1131 = vmatmul.f32.gmra.mxu0 %v81
  %v1132 = vpop.f32.mrf.mxu0
  %v1133 = vadd.f32 0.0, %v1132
  %1134 = vmatmul.f32.gmra.mxu0 %v84
  %v1135 = vpop.f32.mrf.mxu0
  %v1136 = vadd.f32 0.0, %v1135
  %1137 = vdwg.mxu0
  %1138 = vmatpush.msra.mxu0 %v283
  %1139 = vmatpush.msra.mxu0 %v279
  %1140 = vmatpush.msra.mxu0 %v275
  %1141 = vmatpush.msra.mxu0 %v271
  %1142 = vmatpush.msra.mxu0 %v267
  %1143 = vmatpush.msra.mxu0 %v263
  %1144 = vmatpush.msra.mxu0 %v259
  %1145 = vmatpush.msra.mxu0 %v255
  %1146 = vmatpush.msra.mxu0 %v251
  %1147 = vmatpush.msra.mxu0 %v247
  %1148 = vmatpush.msra.mxu0 %v243
  %1149 = vmatpush.msra.mxu0 %v239
  %1150 = vmatpush.msra.mxu0 %v235
  %1151 = vmatpush.msra.mxu0 %v231
  %1152 = vmatpush.msra.mxu0 %v227
  %1153 = vmatpush.msra.mxu0 %v223
  %1154 = vmatmul.f32.gmra.mxu0 %v116
  %v1155 = vpop.f32.mrf.mxu0
  %v1156 = vadd.f32 %v1133, %v1155
  %1157 = vmatmul.f32.gmra.mxu0 %v119
  %v1158 = vpop.f32.mrf.mxu0
  %v1159 = vadd.f32 %v1136, %v1158
  %1160 = vdwg.mxu0
  %1161 = vmatpush.msra.mxu0 %v347
  %1162 = vmatpush.msra.mxu0 %v343
  %1163 = vmatpush.msra.mxu0 %v339
  %1164 = vmatpush.msra.mxu0 %v335
  %1165 = vmatpush.msra.mxu0 %v331
  %1166 = vmatpush.msra.mxu0 %v327
  %1167 = vmatpush.msra.mxu0 %v323
  %1168 = vmatpush.msra.mxu0 %v319
  %1169 = vmatpush.msra.mxu0 %v315
  %1170 = vmatpush.msra.mxu0 %v311
  %1171 = vmatpush.msra.mxu0 %v307
  %1172 = vmatpush.msra.mxu0 %v303
  %1173 = vmatpush.msra.mxu0 %v299
  %1174 = vmatpush.msra.mxu0 %v295
  %1175 = vmatpush.msra.mxu0 %v291
  %1176 = vmatpush.msra.mxu0 %v287
  %1177 = vmatmul.f32.gmra.mxu0 %v151
  %v1178 = vpop.f32.mrf.mxu0
  %v1179 = vadd.f32 %v1156, %v1178
  %1180 = vmatmul.f32.gmra.mxu0 %v154
  %v1181 = vpop.f32.mrf.mxu0
  %v1182 = vadd.f32 %v1159, %v1181
  %1183 = vdwg.mxu0
  %1184 = vst [vmem:[#allocation3] sm:$0xff] %v972
  %1185 = vst [vmem:[#allocation3 + $0x8] sm:$0xff] %v1041
  %1186 = vst [vmem:[#allocation3 + $0x10] sm:$0xff] %v1110
  %1187 = vst [vmem:[#allocation3 + $0x18] sm:$0xff] %v1179
  %1188 = vst [vmem:[#allocation3 + $0x20] sm:$0xff] %v975
  %1189 = vst [vmem:[#allocation3 + $0x28] sm:$0xff] %v1044
  %1190 = vst [vmem:[#allocation3 + $0x30] sm:$0xff] %v1113
  %1191 = vst [vmem:[#allocation3 + $0x38] sm:$0xff] %v1182
  %v1192 = vld [vmem:[#allocation2] sm:$0xff]
  %v1193 = vld [vmem:[#allocation2 + $0x8] sm:$0xff]
  %v1194 = vld [vmem:[#allocation2 + $0x10] sm:$0xff]
  %v1195 = vld [vmem:[#allocation2 + $0x20] sm:$0xff]
  %v1196 = vld [vmem:[#allocation2 + $0x28] sm:$0xff]
  %v1197 = vld [vmem:[#allocation2 + $0x30] sm:$0xff]
  %1201 = vrot.lane.b32.xlu0 %v1192, 69
  %v1202 = vpop.permute.xlu0 %1201
  %1203 = vrot.lane.b32.xlu0 %v1193, 69
  %v1204 = vpop.permute.xlu0 %1203
  %1205 = vrot.lane.b32.xlu0 %v1194, 69
  %v1206 = vpop.permute.xlu0 %1205
  %vm1207 = vcmask 564224
  %v1208 = vsel %vm1207, %v1202, %v1204
  %v1209 = vsel %vm1207, %v1204, %v1206
  %v1214 = vmul.f32 %v412, %v1202
  %v1215 = vmul.f32 %v481, %v1208
  %v1216 = vmul.f32 %v550, %v1209
  %v1217 = vmul.f32 %v619, %v1206
  %1221 = vrot.lane.b32.xlu0 %v1195, 69
  %v1222 = vpop.permute.xlu0 %1221
  %1223 = vrot.lane.b32.xlu0 %v1196, 69
  %v1224 = vpop.permute.xlu0 %1223
  %1225 = vrot.lane.b32.xlu0 %v1197, 69
  %v1226 = vpop.permute.xlu0 %1225
  %v1227 = vsel %vm1207, %v1222, %v1224
  %v1228 = vsel %vm1207, %v1224, %v1226
  %v1233 = vmul.f32 %v415, %v1222
  %v1234 = vmul.f32 %v484, %v1227
  %v1235 = vmul.f32 %v553, %v1228
  %v1236 = vmul.f32 %v622, %v1226
  %v1237 = vadd.f32 %v1214, %v1233
  %v1238 = vadd.f32 %v1215, %v1234
  %v1239 = vadd.f32 %v1216, %v1235
  %v1240 = vadd.f32 %v1217, %v1236
  %1241 = vrot.lane.b32.xlu0 %v1192, 68
  %v1242 = vpop.permute.xlu0 %1241
  %1243 = vrot.lane.b32.xlu0 %v1193, 68
  %v1244 = vpop.permute.xlu0 %1243
  %1245 = vrot.lane.b32.xlu0 %v1194, 68
  %v1246 = vpop.permute.xlu0 %1245
  %vm1247 = vcmask 556032
  %v1248 = vsel %vm1247, %v1242, %v1244
  %v1249 = vsel %vm1247, %v1244, %v1246
  %v1254 = vmul.f32 %v412, %v1242
  %v1255 = vmul.f32 %v481, %v1248
  %v1256 = vmul.f32 %v550, %v1249
  %v1257 = vmul.f32 %v619, %v1246
  %1258 = vrot.lane.b32.xlu0 %v1195, 68
  %v1259 = vpop.permute.xlu0 %1258
  %1260 = vrot.lane.b32.xlu0 %v1196, 68
  %v1261 = vpop.permute.xlu0 %1260
  %1262 = vrot.lane.b32.xlu0 %v1197, 68
  %v1263 = vpop.permute.xlu0 %1262
  %v1264 = vsel %vm1247, %v1259, %v1261
  %v1265 = vsel %vm1247, %v1261, %v1263
  %v1270 = vmul.f32 %v415, %v1259
  %v1271 = vmul.f32 %v484, %v1264
  %v1272 = vmul.f32 %v553, %v1265
  %v1273 = vmul.f32 %v622, %v1263
  %v1274 = vadd.f32 %v1254, %v1270
  %v1275 = vadd.f32 %v1255, %v1271
  %v1276 = vadd.f32 %v1256, %v1272
  %v1277 = vadd.f32 %v1257, %v1273
  %v1278 = vmax.f32 %v1237, %v1274
  %v1279 = vmax.f32 %v1238, %v1275
  %v1280 = vmax.f32 %v1239, %v1276
  %v1281 = vmax.f32 %v1240, %v1277
  %1282 = vrot.lane.b32.xlu0 %v1192, 67
  %v1283 = vpop.permute.xlu0 %1282
  %1284 = vrot.lane.b32.xlu0 %v1193, 67
  %v1285 = vpop.permute.xlu0 %1284
  %1286 = vrot.lane.b32.xlu0 %v1194, 67
  %v1287 = vpop.permute.xlu0 %1286
  %vm1288 = vcmask 547840
  %v1289 = vsel %vm1288, %v1283, %v1285
  %v1290 = vsel %vm1288, %v1285, %v1287
  %v1295 = vmul.f32 %v412, %v1283
  %v1296 = vmul.f32 %v481, %v1289
  %v1297 = vmul.f32 %v550, %v1290
  %v1298 = vmul.f32 %v619, %v1287
  %1299 = vrot.lane.b32.xlu0 %v1195, 67
  %v1300 = vpop.permute.xlu0 %1299
  %1301 = vrot.lane.b32.xlu0 %v1196, 67
  %v1302 = vpop.permute.xlu0 %1301
  %1303 = vrot.lane.b32.xlu0 %v1197, 67
  %v1304 = vpop.permute.xlu0 %1303
  %v1305 = vsel %vm1288, %v1300, %v1302
  %v1306 = vsel %vm1288, %v1302, %v1304
  %v1311 = vmul.f32 %v415, %v1300
  %v1312 = vmul.f32 %v484, %v1305
  %v1313 = vmul.f32 %v553, %v1306
  %v1314 = vmul.f32 %v622, %v1304
  %v1315 = vadd.f32 %v1295, %v1311
  %v1316 = vadd.f32 %v1296, %v1312
  %v1317 = vadd.f32 %v1297, %v1313
  %v1318 = vadd.f32 %v1298, %v1314
  %v1319 = vmax.f32 %v1278, %v1315
  %v1320 = vmax.f32 %v1279, %v1316
  %v1321 = vmax.f32 %v1280, %v1317
  %v1322 = vmax.f32 %v1281, %v1318
  %1323 = vrot.lane.b32.xlu0 %v1192, 66
  %v1324 = vpop.permute.xlu0 %1323
  %1325 = vrot.lane.b32.xlu0 %v1193, 66
  %v1326 = vpop.permute.xlu0 %1325
  %1327 = vrot.lane.b32.xlu0 %v1194, 66
  %v1328 = vpop.permute.xlu0 %1327
  %vm1329 = vcmask 539648
  %v1330 = vsel %vm1329, %v1324, %v1326
  %v1331 = vsel %vm1329, %v1326, %v1328
  %v1336 = vmul.f32 %v412, %v1324
  %v1337 = vmul.f32 %v481, %v1330
  %v1338 = vmul.f32 %v550, %v1331
  %v1339 = vmul.f32 %v619, %v1328
  %1340 = vrot.lane.b32.xlu0 %v1195, 66
  %v1341 = vpop.permute.xlu0 %1340
  %1342 = vrot.lane.b32.xlu0 %v1196, 66
  %v1343 = vpop.permute.xlu0 %1342
  %1344 = vrot.lane.b32.xlu0 %v1197, 66
  %v1345 = vpop.permute.xlu0 %1344
  %v1346 = vsel %vm1329, %v1341, %v1343
  %v1347 = vsel %vm1329, %v1343, %v1345
  %v1352 = vmul.f32 %v415, %v1341
  %v1353 = vmul.f32 %v484, %v1346
  %v1354 = vmul.f32 %v553, %v1347
  %v1355 = vmul.f32 %v622, %v1345
  %v1356 = vadd.f32 %v1336, %v1352
  %v1357 = vadd.f32 %v1337, %v1353
  %v1358 = vadd.f32 %v1338, %v1354
  %v1359 = vadd.f32 %v1339, %v1355
  %v1360 = vmax.f32 %v1319, %v1356
  %v1361 = vmax.f32 %v1320, %v1357
  %v1362 = vmax.f32 %v1321, %v1358
  %v1363 = vmax.f32 %v1322, %v1359
  %1364 = vrot.lane.b32.xlu0 %v1192, 65
  %v1365 = vpop.permute.xlu0 %1364
  %1366 = vrot.lane.b32.xlu0 %v1193, 65
  %v1367 = vpop.permute.xlu0 %1366
  %1368 = vrot.lane.b32.xlu0 %v1194, 65
  %v1369 = vpop.permute.xlu0 %1368
  %vm1370 = vcmask 531456
  %v1371 = vsel %vm1370, %v1365, %v1367
  %v1372 = vsel %vm1370, %v1367, %v1369
  %v1377 = vmul.f32 %v412, %v1365
  %v1378 = vmul.f32 %v481, %v1371
  %v1379 = vmul.f32 %v550, %v1372
  %v1380 = vmul.f32 %v619, %v1369
  %1381 = vrot.lane.b32.xlu0 %v1195, 65
  %v1382 = vpop.permute.xlu0 %1381
  %1383 = vrot.lane.b32.xlu0 %v1196, 65
  %v1384 = vpop.permute.xlu0 %1383
  %1385 = vrot.lane.b32.xlu0 %v1197, 65
  %v1386 = vpop.permute.xlu0 %1385
  %v1387 = vsel %vm1370, %v1382, %v1384
  %v1388 = vsel %vm1370, %v1384, %v1386
  %v1393 = vmul.f32 %v415, %v1382
  %v1394 = vmul.f32 %v484, %v1387
  %v1395 = vmul.f32 %v553, %v1388
  %v1396 = vmul.f32 %v622, %v1386
  %v1397 = vadd.f32 %v1377, %v1393
  %v1398 = vadd.f32 %v1378, %v1394
  %v1399 = vadd.f32 %v1379, %v1395
  %v1400 = vadd.f32 %v1380, %v1396
  %v1401 = vmax.f32 %v1360, %v1397
  %v1402 = vmax.f32 %v1361, %v1398
  %v1403 = vmax.f32 %v1362, %v1399
  %v1404 = vmax.f32 %v1363, %v1400
  %1405 = vrot.lane.b32.xlu0 %v1192, 64
  %v1406 = vpop.permute.xlu0 %1405
  %1407 = vrot.lane.b32.xlu0 %v1193, 64
  %v1408 = vpop.permute.xlu0 %1407
  %1409 = vrot.lane.b32.xlu0 %v1194, 64
  %v1410 = vpop.permute.xlu0 %1409
  %vm1411 = vcmask 523264
  %v1412 = vsel %vm1411, %v1406, %v1408
  %v1413 = vsel %vm1411, %v1408, %v1410
  %v1418 = vmul.f32 %v412, %v1406
  %v1419 = vmul.f32 %v481, %v1412
  %v1420 = vmul.f32 %v550, %v1413
  %v1421 = vmul.f32 %v619, %v1410
  %1422 = vrot.lane.b32.xlu0 %v1195, 64
  %v1423 = vpop.permute.xlu0 %1422
  %1424 = vrot.lane.b32.xlu0 %v1196, 64
  %v1425 = vpop.permute.xlu0 %1424
  %1426 = vrot.lane.b32.xlu0 %v1197, 64
  %v1427 = vpop.permute.xlu0 %1426
  %v1428 = vsel %vm1411, %v1423, %v1425
  %v1429 = vsel %vm1411, %v1425, %v1427
  %v1434 = vmul.f32 %v415, %v1423
  %v1435 = vmul.f32 %v484, %v1428
  %v1436 = vmul.f32 %v553, %v1429
  %v1437 = vmul.f32 %v622, %v1427
  %v1438 = vadd.f32 %v1418, %v1434
  %v1439 = vadd.f32 %v1419, %v1435
  %v1440 = vadd.f32 %v1420, %v1436
  %v1441 = vadd.f32 %v1421, %v1437
  %v1442 = vmax.f32 %v1401, %v1438
  %v1443 = vmax.f32 %v1402, %v1439
  %v1444 = vmax.f32 %v1403, %v1440
  %v1445 = vmax.f32 %v1404, %v1441
  %1446 = vrot.lane.b32.xlu0 %v1192, 63
  %v1447 = vpop.permute.xlu0 %1446
  %1448 = vrot.lane.b32.xlu0 %v1193, 63
  %v1449 = vpop.permute.xlu0 %1448
  %1450 = vrot.lane.b32.xlu0 %v1194, 63
  %v1451 = vpop.permute.xlu0 %1450
  %vm1452 = vcmask 515072
  %v1453 = vsel %vm1452, %v1447, %v1449
  %v1454 = vsel %vm1452, %v1449, %v1451
  %v1459 = vmul.f32 %v412, %v1447
  %v1460 = vmul.f32 %v481, %v1453
  %v1461 = vmul.f32 %v550, %v1454
  %v1462 = vmul.f32 %v619, %v1451
  %1463 = vrot.lane.b32.xlu0 %v1195, 63
  %v1464 = vpop.permute.xlu0 %1463
  %1465 = vrot.lane.b32.xlu0 %v1196, 63
  %v1466 = vpop.permute.xlu0 %1465
  %1467 = vrot.lane.b32.xlu0 %v1197, 63
  %v1468 = vpop.permute.xlu0 %1467
  %v1469 = vsel %vm1452, %v1464, %v1466
  %v1470 = vsel %vm1452, %v1466, %v1468
  %v1475 = vmul.f32 %v415, %v1464
  %v1476 = vmul.f32 %v484, %v1469
  %v1477 = vmul.f32 %v553, %v1470
  %v1478 = vmul.f32 %v622, %v1468
  %v1479 = vadd.f32 %v1459, %v1475
  %v1480 = vadd.f32 %v1460, %v1476
  %v1481 = vadd.f32 %v1461, %v1477
  %v1482 = vadd.f32 %v1462, %v1478
  %v1483 = vmax.f32 %v1442, %v1479
  %v1484 = vmax.f32 %v1443, %v1480
  %v1485 = vmax.f32 %v1444, %v1481
  %v1486 = vmax.f32 %v1445, %v1482
  %v1487 = vld [vmem:[#allocation3] sm:$0xff]
  %v1488 = vld [vmem:[#allocation3 + $0x8] sm:$0xff]
  %v1489 = vld [vmem:[#allocation3 + $0x10] sm:$0xff]
  %v1490 = vld [vmem:[#allocation3 + $0x20] sm:$0xff]
  %v1491 = vld [vmem:[#allocation3 + $0x28] sm:$0xff]
  %v1492 = vld [vmem:[#allocation3 + $0x30] sm:$0xff]
  %v1493 = vsub.f32 %v1237, %v1483
  %v1494 = vsub.f32 %v1238, %v1484
  %v1495 = vsub.f32 %v1239, %v1485
  %v1496 = vsub.f32 %v1240, %v1486
  %v1497 = vmul.f32 %v1493, 1.442695
  %v1498 = vpow.pop %v1497
  %v1499 = vmul.f32 %v1494, 1.442695
  %v1500 = vpow.pop %v1499
  %v1501 = vmul.f32 %v1495, 1.442695
  %v1502 = vpow.pop %v1501
  %v1503 = vmul.f32 %v1496, 1.442695
  %v1504 = vpow.pop %v1503
  %v1505 = vadd.f32 %v1498, 0.0
  %v1506 = vadd.f32 %v1500, 0.0
  %v1507 = vadd.f32 %v1502, 0.0
  %v1508 = vadd.f32 %v1504, 0.0
  %1512 = vrot.lane.b32.xlu0 %v1487, 69
  %v1513 = vpop.permute.xlu0 %1512
  %1514 = vrot.lane.b32.xlu0 %v1488, 69
  %v1515 = vpop.permute.xlu0 %1514
  %1516 = vrot.lane.b32.xlu0 %v1489, 69
  %v1517 = vpop.permute.xlu0 %1516
  %v1518 = vsel %vm1207, %v1513, %v1515
  %v1519 = vsel %vm1207, %v1515, %v1517
  %v1524 = vmul.f32 %v1498, %v1513
  %v1525 = vmul.f32 %v1500, %v1518
  %v1526 = vmul.f32 %v1502, %v1519
  %v1527 = vmul.f32 %v1504, %v1517
  %v1528 = vadd.f32 %v1524, 0.0
  %v1529 = vadd.f32 %v1525, 0.0
  %v1530 = vadd.f32 %v1526, 0.0
  %v1531 = vadd.f32 %v1527, 0.0
  %1535 = vrot.lane.b32.xlu0 %v1490, 69
  %v1536 = vpop.permute.xlu0 %1535
  %1537 = vrot.lane.b32.xlu0 %v1491, 69
  %v1538 = vpop.permute.xlu0 %1537
  %1539 = vrot.lane.b32.xlu0 %v1492, 69
  %v1540 = vpop.permute.xlu0 %1539
  %v1541 = vsel %vm1207, %v1536, %v1538
  %v1542 = vsel %vm1207, %v1538, %v1540
  %v1547 = vmul.f32 %v1498, %v1536
  %v1548 = vmul.f32 %v1500, %v1541
  %v1549 = vmul.f32 %v1502, %v1542
  %v1550 = vmul.f32 %v1504, %v1540
  %v1551 = vadd.f32 %v1547, 0.0
  %v1552 = vadd.f32 %v1548, 0.0
  %v1553 = vadd.f32 %v1549, 0.0
  %v1554 = vadd.f32 %v1550, 0.0
  %v1555 = vsub.f32 %v1274, %v1483
  %v1556 = vsub.f32 %v1275, %v1484
  %v1557 = vsub.f32 %v1276, %v1485
  %v1558 = vsub.f32 %v1277, %v1486
  %v1559 = vmul.f32 %v1555, 1.442695
  %v1560 = vpow.pop %v1559
  %v1561 = vmul.f32 %v1556, 1.442695
  %v1562 = vpow.pop %v1561
  %v1563 = vmul.f32 %v1557, 1.442695
  %v1564 = vpow.pop %v1563
  %v1565 = vmul.f32 %v1558, 1.442695
  %v1566 = vpow.pop %v1565
  %v1567 = vadd.f32 %v1505, %v1560
  %v1568 = vadd.f32 %v1506, %v1562
  %v1569 = vadd.f32 %v1507, %v1564
  %v1570 = vadd.f32 %v1508, %v1566
  %1571 = vrot.lane.b32.xlu0 %v1487, 68
  %v1572 = vpop.permute.xlu0 %1571
  %1573 = vrot.lane.b32.xlu0 %v1488, 68
  %v1574 = vpop.permute.xlu0 %1573
  %1575 = vrot.lane.b32.xlu0 %v1489, 68
  %v1576 = vpop.permute.xlu0 %1575
  %v1577 = vsel %vm1247, %v1572, %v1574
  %v1578 = vsel %vm1247, %v1574, %v1576
  %v1583 = vmul.f32 %v1560, %v1572
  %v1584 = vmul.f32 %v1562, %v1577
  %v1585 = vmul.f32 %v1564, %v1578
  %v1586 = vmul.f32 %v1566, %v1576
  %v1587 = vadd.f32 %v1528, %v1583
  %v1588 = vadd.f32 %v1529, %v1584
  %v1589 = vadd.f32 %v1530, %v1585
  %v1590 = vadd.f32 %v1531, %v1586
  %1591 = vrot.lane.b32.xlu0 %v1490, 68
  %v1592 = vpop.permute.xlu0 %1591
  %1593 = vrot.lane.b32.xlu0 %v1491, 68
  %v1594 = vpop.permute.xlu0 %1593
  %1595 = vrot.lane.b32.xlu0 %v1492, 68
  %v1596 = vpop.permute.xlu0 %1595
  %v1597 = vsel %vm1247, %v1592, %v1594
  %v1598 = vsel %vm1247, %v1594, %v1596
  %v1603 = vmul.f32 %v1560, %v1592
  %v1604 = vmul.f32 %v1562, %v1597
  %v1605 = vmul.f32 %v1564, %v1598
  %v1606 = vmul.f32 %v1566, %v1596
  %v1607 = vadd.f32 %v1551, %v1603
  %v1608 = vadd.f32 %v1552, %v1604
  %v1609 = vadd.f32 %v1553, %v1605
  %v1610 = vadd.f32 %v1554, %v1606
  %v1611 = vsub.f32 %v1315, %v1483
  %v1612 = vsub.f32 %v1316, %v1484
  %v1613 = vsub.f32 %v1317, %v1485
  %v1614 = vsub.f32 %v1318, %v1486
  %v1615 = vmul.f32 %v1611, 1.442695
  %v1616 = vpow.pop %v1615
  %v1617 = vmul.f32 %v1612, 1.442695
  %v1618 = vpow.pop %v1617
  %v1619 = vmul.f32 %v1613, 1.442695
  %v1620 = vpow.pop %v1619
  %v1621 = vmul.f32 %v1614, 1.442695
  %v1622 = vpow.pop %v1621
  %v1623 = vadd.f32 %v1567, %v1616
  %v1624 = vadd.f32 %v1568, %v1618
  %v1625 = vadd.f32 %v1569, %v1620
  %v1626 = vadd.f32 %v1570, %v1622
  %1627 = vrot.lane.b32.xlu0 %v1487, 67
  %v1628 = vpop.permute.xlu0 %1627
  %1629 = vrot.lane.b32.xlu0 %v1488, 67
  %v1630 = vpop.permute.xlu0 %1629
  %1631 = vrot.lane.b32.xlu0 %v1489, 67
  %v1632 = vpop.permute.xlu0 %1631
  %v1633 = vsel %vm1288, %v1628, %v1630
  %v1634 = vsel %vm1288, %v1630, %v1632
  %v1639 = vmul.f32 %v1616, %v1628
  %v1640 = vmul.f32 %v1618, %v1633
  %v1641 = vmul.f32 %v1620, %v1634
  %v1642 = vmul.f32 %v1622, %v1632
  %v1643 = vadd.f32 %v1587, %v1639
  %v1644 = vadd.f32 %v1588, %v1640
  %v1645 = vadd.f32 %v1589, %v1641
  %v1646 = vadd.f32 %v1590, %v1642
  %1647 = vrot.lane.b32.xlu0 %v1490, 67
  %v1648 = vpop.permute.xlu0 %1647
  %1649 = vrot.lane.b32.xlu0 %v1491, 67
  %v1650 = vpop.permute.xlu0 %1649
  %1651 = vrot.lane.b32.xlu0 %v1492, 67
  %v1652 = vpop.permute.xlu0 %1651
  %v1653 = vsel %vm1288, %v1648, %v1650
  %v1654 = vsel %vm1288, %v1650, %v1652
  %v1659 = vmul.f32 %v1616, %v1648
  %v1660 = vmul.f32 %v1618, %v1653
  %v1661 = vmul.f32 %v1620, %v1654
  %v1662 = vmul.f32 %v1622, %v1652
  %v1663 = vadd.f32 %v1607, %v1659
  %v1664 = vadd.f32 %v1608, %v1660
  %v1665 = vadd.f32 %v1609, %v1661
  %v1666 = vadd.f32 %v1610, %v1662
  %v1667 = vsub.f32 %v1356, %v1483
  %v1668 = vsub.f32 %v1357, %v1484
  %v1669 = vsub.f32 %v1358, %v1485
  %v1670 = vsub.f32 %v1359, %v1486
  %v1671 = vmul.f32 %v1667, 1.442695
  %v1672 = vpow.pop %v1671
  %v1673 = vmul.f32 %v1668, 1.442695
  %v1674 = vpow.pop %v1673
  %v1675 = vmul.f32 %v1669, 1.442695
  %v1676 = vpow.pop %v1675
  %v1677 = vmul.f32 %v1670, 1.442695
  %v1678 = vpow.pop %v1677
  %v1679 = vadd.f32 %v1623, %v1672
  %v1680 = vadd.f32 %v1624, %v1674
  %v1681 = vadd.f32 %v1625, %v1676
  %v1682 = vadd.f32 %v1626, %v1678
  %1683 = vrot.lane.b32.xlu0 %v1487, 66
  %v1684 = vpop.permute.xlu0 %1683
  %1685 = vrot.lane.b32.xlu0 %v1488, 66
  %v1686 = vpop.permute.xlu0 %1685
  %1687 = vrot.lane.b32.xlu0 %v1489, 66
  %v1688 = vpop.permute.xlu0 %1687
  %v1689 = vsel %vm1329, %v1684, %v1686
  %v1690 = vsel %vm1329, %v1686, %v1688
  %v1695 = vmul.f32 %v1672, %v1684
  %v1696 = vmul.f32 %v1674, %v1689
  %v1697 = vmul.f32 %v1676, %v1690
  %v1698 = vmul.f32 %v1678, %v1688
  %v1699 = vadd.f32 %v1643, %v1695
  %v1700 = vadd.f32 %v1644, %v1696
  %v1701 = vadd.f32 %v1645, %v1697
  %v1702 = vadd.f32 %v1646, %v1698
  %1703 = vrot.lane.b32.xlu0 %v1490, 66
  %v1704 = vpop.permute.xlu0 %1703
  %1705 = vrot.lane.b32.xlu0 %v1491, 66
  %v1706 = vpop.permute.xlu0 %1705
  %1707 = vrot.lane.b32.xlu0 %v1492, 66
  %v1708 = vpop.permute.xlu0 %1707
  %v1709 = vsel %vm1329, %v1704, %v1706
  %v1710 = vsel %vm1329, %v1706, %v1708
  %v1715 = vmul.f32 %v1672, %v1704
  %v1716 = vmul.f32 %v1674, %v1709
  %v1717 = vmul.f32 %v1676, %v1710
  %v1718 = vmul.f32 %v1678, %v1708
  %v1719 = vadd.f32 %v1663, %v1715
  %v1720 = vadd.f32 %v1664, %v1716
  %v1721 = vadd.f32 %v1665, %v1717
  %v1722 = vadd.f32 %v1666, %v1718
  %v1723 = vsub.f32 %v1397, %v1483
  %v1724 = vsub.f32 %v1398, %v1484
  %v1725 = vsub.f32 %v1399, %v1485
  %v1726 = vsub.f32 %v1400, %v1486
  %v1727 = vmul.f32 %v1723, 1.442695
  %v1728 = vpow.pop %v1727
  %v1729 = vmul.f32 %v1724, 1.442695
  %v1730 = vpow.pop %v1729
  %v1731 = vmul.f32 %v1725, 1.442695
  %v1732 = vpow.pop %v1731
  %v1733 = vmul.f32 %v1726, 1.442695
  %v1734 = vpow.pop %v1733
  %v1735 = vadd.f32 %v1679, %v1728
  %v1736 = vadd.f32 %v1680, %v1730
  %v1737 = vadd.f32 %v1681, %v1732
  %v1738 = vadd.f32 %v1682, %v1734
  %1739 = vrot.lane.b32.xlu0 %v1487, 65
  %v1740 = vpop.permute.xlu0 %1739
  %1741 = vrot.lane.b32.xlu0 %v1488, 65
  %v1742 = vpop.permute.xlu0 %1741
  %1743 = vrot.lane.b32.xlu0 %v1489, 65
  %v1744 = vpop.permute.xlu0 %1743
  %v1745 = vsel %vm1370, %v1740, %v1742
  %v1746 = vsel %vm1370, %v1742, %v1744
  %v1751 = vmul.f32 %v1728, %v1740
  %v1752 = vmul.f32 %v1730, %v1745
  %v1753 = vmul.f32 %v1732, %v1746
  %v1754 = vmul.f32 %v1734, %v1744
  %v1755 = vadd.f32 %v1699, %v1751
  %v1756 = vadd.f32 %v1700, %v1752
  %v1757 = vadd.f32 %v1701, %v1753
  %v1758 = vadd.f32 %v1702, %v1754
  %1759 = vrot.lane.b32.xlu0 %v1490, 65
  %v1760 = vpop.permute.xlu0 %1759
  %1761 = vrot.lane.b32.xlu0 %v1491, 65
  %v1762 = vpop.permute.xlu0 %1761
  %1763 = vrot.lane.b32.xlu0 %v1492, 65
  %v1764 = vpop.permute.xlu0 %1763
  %v1765 = vsel %vm1370, %v1760, %v1762
  %v1766 = vsel %vm1370, %v1762, %v1764
  %v1771 = vmul.f32 %v1728, %v1760
  %v1772 = vmul.f32 %v1730, %v1765
  %v1773 = vmul.f32 %v1732, %v1766
  %v1774 = vmul.f32 %v1734, %v1764
  %v1775 = vadd.f32 %v1719, %v1771
  %v1776 = vadd.f32 %v1720, %v1772
  %v1777 = vadd.f32 %v1721, %v1773
  %v1778 = vadd.f32 %v1722, %v1774
  %v1779 = vsub.f32 %v1438, %v1483
  %v1780 = vsub.f32 %v1439, %v1484
  %v1781 = vsub.f32 %v1440, %v1485
  %v1782 = vsub.f32 %v1441, %v1486
  %v1783 = vmul.f32 %v1779, 1.442695
  %v1784 = vpow.pop %v1783
  %v1785 = vmul.f32 %v1780, 1.442695
  %v1786 = vpow.pop %v1785
  %v1787 = vmul.f32 %v1781, 1.442695
  %v1788 = vpow.pop %v1787
  %v1789 = vmul.f32 %v1782, 1.442695
  %v1790 = vpow.pop %v1789
  %v1791 = vadd.f32 %v1735, %v1784
  %v1792 = vadd.f32 %v1736, %v1786
  %v1793 = vadd.f32 %v1737, %v1788
  %v1794 = vadd.f32 %v1738, %v1790
  %1795 = vrot.lane.b32.xlu0 %v1487, 64
  %v1796 = vpop.permute.xlu0 %1795
  %1797 = vrot.lane.b32.xlu0 %v1488, 64
  %v1798 = vpop.permute.xlu0 %1797
  %1799 = vrot.lane.b32.xlu0 %v1489, 64
  %v1800 = vpop.permute.xlu0 %1799
  %v1801 = vsel %vm1411, %v1796, %v1798
  %v1802 = vsel %vm1411, %v1798, %v1800
  %v1807 = vmul.f32 %v1784, %v1796
  %v1808 = vmul.f32 %v1786, %v1801
  %v1809 = vmul.f32 %v1788, %v1802
  %v1810 = vmul.f32 %v1790, %v1800
  %v1811 = vadd.f32 %v1755, %v1807
  %v1812 = vadd.f32 %v1756, %v1808
  %v1813 = vadd.f32 %v1757, %v1809
  %v1814 = vadd.f32 %v1758, %v1810
  %1815 = vrot.lane.b32.xlu0 %v1490, 64
  %v1816 = vpop.permute.xlu0 %1815
  %1817 = vrot.lane.b32.xlu0 %v1491, 64
  %v1818 = vpop.permute.xlu0 %1817
  %1819 = vrot.lane.b32.xlu0 %v1492, 64
  %v1820 = vpop.permute.xlu0 %1819
  %v1821 = vsel %vm1411, %v1816, %v1818
  %v1822 = vsel %vm1411, %v1818, %v1820
  %v1827 = vmul.f32 %v1784, %v1816
  %v1828 = vmul.f32 %v1786, %v1821
  %v1829 = vmul.f32 %v1788, %v1822
  %v1830 = vmul.f32 %v1790, %v1820
  %v1831 = vadd.f32 %v1775, %v1827
  %v1832 = vadd.f32 %v1776, %v1828
  %v1833 = vadd.f32 %v1777, %v1829
  %v1834 = vadd.f32 %v1778, %v1830
  %v1835 = vsub.f32 %v1479, %v1483
  %v1836 = vsub.f32 %v1480, %v1484
  %v1837 = vsub.f32 %v1481, %v1485
  %v1838 = vsub.f32 %v1482, %v1486
  %v1839 = vmul.f32 %v1835, 1.442695
  %v1840 = vpow.pop %v1839
  %v1841 = vmul.f32 %v1836, 1.442695
  %v1842 = vpow.pop %v1841
  %v1843 = vmul.f32 %v1837, 1.442695
  %v1844 = vpow.pop %v1843
  %v1845 = vmul.f32 %v1838, 1.442695
  %v1846 = vpow.pop %v1845
  %v1847 = vadd.f32 %v1791, %v1840
  %v1848 = vadd.f32 %v1792, %v1842
  %v1849 = vadd.f32 %v1793, %v1844
  %v1850 = vadd.f32 %v1794, %v1846
  %1851 = vrot.lane.b32.xlu0 %v1487, 63
  %v1852 = vpop.permute.xlu0 %1851
  %1853 = vrot.lane.b32.xlu0 %v1488, 63
  %v1854 = vpop.permute.xlu0 %1853
  %1855 = vrot.lane.b32.xlu0 %v1489, 63
  %v1856 = vpop.permute.xlu0 %1855
  %v1857 = vsel %vm1452, %v1852, %v1854
  %v1858 = vsel %vm1452, %v1854, %v1856
  %v1863 = vmul.f32 %v1840, %v1852
  %v1864 = vmul.f32 %v1842, %v1857
  %v1865 = vmul.f32 %v1844, %v1858
  %v1866 = vmul.f32 %v1846, %v1856
  %v1867 = vadd.f32 %v1811, %v1863
  %v1868 = vadd.f32 %v1812, %v1864
  %v1869 = vadd.f32 %v1813, %v1865
  %v1870 = vadd.f32 %v1814, %v1866
  %1871 = vrot.lane.b32.xlu0 %v1490, 63
  %v1872 = vpop.permute.xlu0 %1871
  %1873 = vrot.lane.b32.xlu0 %v1491, 63
  %v1874 = vpop.permute.xlu0 %1873
  %1875 = vrot.lane.b32.xlu0 %v1492, 63
  %v1876 = vpop.permute.xlu0 %1875
  %v1877 = vsel %vm1452, %v1872, %v1874
  %v1878 = vsel %vm1452, %v1874, %v1876
  %v1883 = vmul.f32 %v1840, %v1872
  %v1884 = vmul.f32 %v1842, %v1877
  %v1885 = vmul.f32 %v1844, %v1878
  %v1886 = vmul.f32 %v1846, %v1876
  %v1887 = vadd.f32 %v1831, %v1883
  %v1888 = vadd.f32 %v1832, %v1884
  %v1889 = vadd.f32 %v1833, %v1885
  %v1890 = vadd.f32 %v1834, %v1886
  %1891 = vrot.lane.b32.xlu0 %v1192, 47
  %v1892 = vpop.permute.xlu0 %1891
  %1893 = vrot.lane.b32.xlu0 %v1193, 47
  %v1894 = vpop.permute.xlu0 %1893
  %1895 = vrot.lane.b32.xlu0 %v1194, 47
  %v1896 = vpop.permute.xlu0 %1895
  %vm1897 = vcmask 384000
  %v1898 = vsel %vm1897, %v1892, %v1894
  %v1899 = vsel %vm1897, %v1894, %v1896
  %v1904 = vmul.f32 %v412, %v1892
  %v1905 = vmul.f32 %v481, %v1898
  %v1906 = vmul.f32 %v550, %v1899
  %v1907 = vmul.f32 %v619, %v1896
  %1908 = vrot.lane.b32.xlu0 %v1195, 47
  %v1909 = vpop.permute.xlu0 %1908
  %1910 = vrot.lane.b32.xlu0 %v1196, 47
  %v1911 = vpop.permute.xlu0 %1910
  %1912 = vrot.lane.b32.xlu0 %v1197, 47
  %v1913 = vpop.permute.xlu0 %1912
  %v1914 = vsel %vm1897, %v1909, %v1911
  %v1915 = vsel %vm1897, %v1911, %v1913
  %v1920 = vmul.f32 %v415, %v1909
  %v1921 = vmul.f32 %v484, %v1914
  %v1922 = vmul.f32 %v553, %v1915
  %v1923 = vmul.f32 %v622, %v1913
  %v1924 = vadd.f32 %v1904, %v1920
  %v1925 = vadd.f32 %v1905, %v1921
  %v1926 = vadd.f32 %v1906, %v1922
  %v1927 = vadd.f32 %v1907, %v1923
  %1928 = vrot.lane.b32.xlu0 %v1192, 46
  %v1929 = vpop.permute.xlu0 %1928
  %1930 = vrot.lane.b32.xlu0 %v1193, 46
  %v1931 = vpop.permute.xlu0 %1930
  %1932 = vrot.lane.b32.xlu0 %v1194, 46
  %v1933 = vpop.permute.xlu0 %1932
  %vm1934 = vcmask 375808
  %v1935 = vsel %vm1934, %v1929, %v1931
  %v1936 = vsel %vm1934, %v1931, %v1933
  %v1941 = vmul.f32 %v412, %v1929
  %v1942 = vmul.f32 %v481, %v1935
  %v1943 = vmul.f32 %v550, %v1936
  %v1944 = vmul.f32 %v619, %v1933
  %1945 = vrot.lane.b32.xlu0 %v1195, 46
  %v1946 = vpop.permute.xlu0 %1945
  %1947 = vrot.lane.b32.xlu0 %v1196, 46
  %v1948 = vpop.permute.xlu0 %1947
  %1949 = vrot.lane.b32.xlu0 %v1197, 46
  %v1950 = vpop.permute.xlu0 %1949
  %v1951 = vsel %vm1934, %v1946, %v1948
  %v1952 = vsel %vm1934, %v1948, %v1950
  %v1957 = vmul.f32 %v415, %v1946
  %v1958 = vmul.f32 %v484, %v1951
  %v1959 = vmul.f32 %v553, %v1952
  %v1960 = vmul.f32 %v622, %v1950
  %v1961 = vadd.f32 %v1941, %v1957
  %v1962 = vadd.f32 %v1942, %v1958
  %v1963 = vadd.f32 %v1943, %v1959
  %v1964 = vadd.f32 %v1944, %v1960
  %v1965 = vmax.f32 %v1924, %v1961
  %v1966 = vmax.f32 %v1925, %v1962
  %v1967 = vmax.f32 %v1926, %v1963
  %v1968 = vmax.f32 %v1927, %v1964
  %1969 = vrot.lane.b32.xlu0 %v1192, 45
  %v1970 = vpop.permute.xlu0 %1969
  %1971 = vrot.lane.b32.xlu0 %v1193, 45
  %v1972 = vpop.permute.xlu0 %1971
  %1973 = vrot.lane.b32.xlu0 %v1194, 45
  %v1974 = vpop.permute.xlu0 %1973
  %vm1975 = vcmask 367616
  %v1976 = vsel %vm1975, %v1970, %v1972
  %v1977 = vsel %vm1975, %v1972, %v1974
  %v1982 = vmul.f32 %v412, %v1970
  %v1983 = vmul.f32 %v481, %v1976
  %v1984 = vmul.f32 %v550, %v1977
  %v1985 = vmul.f32 %v619, %v1974
  %1986 = vrot.lane.b32.xlu0 %v1195, 45
  %v1987 = vpop.permute.xlu0 %1986
  %1988 = vrot.lane.b32.xlu0 %v1196, 45
  %v1989 = vpop.permute.xlu0 %1988
  %1990 = vrot.lane.b32.xlu0 %v1197, 45
  %v1991 = vpop.permute.xlu0 %1990
  %v1992 = vsel %vm1975, %v1987, %v1989
  %v1993 = vsel %vm1975, %v1989, %v1991
  %v1998 = vmul.f32 %v415, %v1987
  %v1999 = vmul.f32 %v484, %v1992
  %v2000 = vmul.f32 %v553, %v1993
  %v2001 = vmul.f32 %v622, %v1991
  %v2002 = vadd.f32 %v1982, %v1998
  %v2003 = vadd.f32 %v1983, %v1999
  %v2004 = vadd.f32 %v1984, %v2000
  %v2005 = vadd.f32 %v1985, %v2001
  %v2006 = vmax.f32 %v1965, %v2002
  %v2007 = vmax.f32 %v1966, %v2003
  %v2008 = vmax.f32 %v1967, %v2004
  %v2009 = vmax.f32 %v1968, %v2005
  %2010 = vrot.lane.b32.xlu0 %v1192, 44
  %v2011 = vpop.permute.xlu0 %2010
  %2012 = vrot.lane.b32.xlu0 %v1193, 44
  %v2013 = vpop.permute.xlu0 %2012
  %2014 = vrot.lane.b32.xlu0 %v1194, 44
  %v2015 = vpop.permute.xlu0 %2014
  %vm2016 = vcmask 359424
  %v2017 = vsel %vm2016, %v2011, %v2013
  %v2018 = vsel %vm2016, %v2013, %v2015
  %v2023 = vmul.f32 %v412, %v2011
  %v2024 = vmul.f32 %v481, %v2017
  %v2025 = vmul.f32 %v550, %v2018
  %v2026 = vmul.f32 %v619, %v2015
  %2027 = vrot.lane.b32.xlu0 %v1195, 44
  %v2028 = vpop.permute.xlu0 %2027
  %2029 = vrot.lane.b32.xlu0 %v1196, 44
  %v2030 = vpop.permute.xlu0 %2029
  %2031 = vrot.lane.b32.xlu0 %v1197, 44
  %v2032 = vpop.permute.xlu0 %2031
  %v2033 = vsel %vm2016, %v2028, %v2030
  %v2034 = vsel %vm2016, %v2030, %v2032
  %v2039 = vmul.f32 %v415, %v2028
  %v2040 = vmul.f32 %v484, %v2033
  %v2041 = vmul.f32 %v553, %v2034
  %v2042 = vmul.f32 %v622, %v2032
  %v2043 = vadd.f32 %v2023, %v2039
  %v2044 = vadd.f32 %v2024, %v2040
  %v2045 = vadd.f32 %v2025, %v2041
  %v2046 = vadd.f32 %v2026, %v2042
  %v2047 = vmax.f32 %v2006, %v2043
  %v2048 = vmax.f32 %v2007, %v2044
  %v2049 = vmax.f32 %v2008, %v2045
  %v2050 = vmax.f32 %v2009, %v2046
  %2051 = vrot.lane.b32.xlu0 %v1192, 43
  %v2052 = vpop.permute.xlu0 %2051
  %2053 = vrot.lane.b32.xlu0 %v1193, 43
  %v2054 = vpop.permute.xlu0 %2053
  %2055 = vrot.lane.b32.xlu0 %v1194, 43
  %v2056 = vpop.permute.xlu0 %2055
  %vm2057 = vcmask 351232
  %v2058 = vsel %vm2057, %v2052, %v2054
  %v2059 = vsel %vm2057, %v2054, %v2056
  %v2064 = vmul.f32 %v412, %v2052
  %v2065 = vmul.f32 %v481, %v2058
  %v2066 = vmul.f32 %v550, %v2059
  %v2067 = vmul.f32 %v619, %v2056
  %2068 = vrot.lane.b32.xlu0 %v1195, 43
  %v2069 = vpop.permute.xlu0 %2068
  %2070 = vrot.lane.b32.xlu0 %v1196, 43
  %v2071 = vpop.permute.xlu0 %2070
  %2072 = vrot.lane.b32.xlu0 %v1197, 43
  %v2073 = vpop.permute.xlu0 %2072
  %v2074 = vsel %vm2057, %v2069, %v2071
  %v2075 = vsel %vm2057, %v2071, %v2073
  %v2080 = vmul.f32 %v415, %v2069
  %v2081 = vmul.f32 %v484, %v2074
  %v2082 = vmul.f32 %v553, %v2075
  %v2083 = vmul.f32 %v622, %v2073
  %v2084 = vadd.f32 %v2064, %v2080
  %v2085 = vadd.f32 %v2065, %v2081
  %v2086 = vadd.f32 %v2066, %v2082
  %v2087 = vadd.f32 %v2067, %v2083
  %v2088 = vmax.f32 %v2047, %v2084
  %v2089 = vmax.f32 %v2048, %v2085
  %v2090 = vmax.f32 %v2049, %v2086
  %v2091 = vmax.f32 %v2050, %v2087
  %2092 = vrot.lane.b32.xlu0 %v1192, 42
  %v2093 = vpop.permute.xlu0 %2092
  %2094 = vrot.lane.b32.xlu0 %v1193, 42
  %v2095 = vpop.permute.xlu0 %2094
  %2096 = vrot.lane.b32.xlu0 %v1194, 42
  %v2097 = vpop.permute.xlu0 %2096
  %vm2098 = vcmask 343040
  %v2099 = vsel %vm2098, %v2093, %v2095
  %v2100 = vsel %vm2098, %v2095, %v2097
  %v2105 = vmul.f32 %v412, %v2093
  %v2106 = vmul.f32 %v481, %v2099
  %v2107 = vmul.f32 %v550, %v2100
  %v2108 = vmul.f32 %v619, %v2097
  %2109 = vrot.lane.b32.xlu0 %v1195, 42
  %v2110 = vpop.permute.xlu0 %2109
  %2111 = vrot.lane.b32.xlu0 %v1196, 42
  %v2112 = vpop.permute.xlu0 %2111
  %2113 = vrot.lane.b32.xlu0 %v1197, 42
  %v2114 = vpop.permute.xlu0 %2113
  %v2115 = vsel %vm2098, %v2110, %v2112
  %v2116 = vsel %vm2098, %v2112, %v2114
  %v2121 = vmul.f32 %v415, %v2110
  %v2122 = vmul.f32 %v484, %v2115
  %v2123 = vmul.f32 %v553, %v2116
  %v2124 = vmul.f32 %v622, %v2114
  %v2125 = vadd.f32 %v2105, %v2121
  %v2126 = vadd.f32 %v2106, %v2122
  %v2127 = vadd.f32 %v2107, %v2123
  %v2128 = vadd.f32 %v2108, %v2124
  %v2129 = vmax.f32 %v2088, %v2125
  %v2130 = vmax.f32 %v2089, %v2126
  %v2131 = vmax.f32 %v2090, %v2127
  %v2132 = vmax.f32 %v2091, %v2128
  %2133 = vrot.lane.b32.xlu0 %v1192, 41
  %v2134 = vpop.permute.xlu0 %2133
  %2135 = vrot.lane.b32.xlu0 %v1193, 41
  %v2136 = vpop.permute.xlu0 %2135
  %2137 = vrot.lane.b32.xlu0 %v1194, 41
  %v2138 = vpop.permute.xlu0 %2137
  %vm2139 = vcmask 334848
  %v2140 = vsel %vm2139, %v2134, %v2136
  %v2141 = vsel %vm2139, %v2136, %v2138
  %v2146 = vmul.f32 %v412, %v2134
  %v2147 = vmul.f32 %v481, %v2140
  %v2148 = vmul.f32 %v550, %v2141
  %v2149 = vmul.f32 %v619, %v2138
  %2150 = vrot.lane.b32.xlu0 %v1195, 41
  %v2151 = vpop.permute.xlu0 %2150
  %2152 = vrot.lane.b32.xlu0 %v1196, 41
  %v2153 = vpop.permute.xlu0 %2152
  %2154 = vrot.lane.b32.xlu0 %v1197, 41
  %v2155 = vpop.permute.xlu0 %2154
  %v2156 = vsel %vm2139, %v2151, %v2153
  %v2157 = vsel %vm2139, %v2153, %v2155
  %v2162 = vmul.f32 %v415, %v2151
  %v2163 = vmul.f32 %v484, %v2156
  %v2164 = vmul.f32 %v553, %v2157
  %v2165 = vmul.f32 %v622, %v2155
  %v2166 = vadd.f32 %v2146, %v2162
  %v2167 = vadd.f32 %v2147, %v2163
  %v2168 = vadd.f32 %v2148, %v2164
  %v2169 = vadd.f32 %v2149, %v2165
  %v2170 = vmax.f32 %v2129, %v2166
  %v2171 = vmax.f32 %v2130, %v2167
  %v2172 = vmax.f32 %v2131, %v2168
  %v2173 = vmax.f32 %v2132, %v2169
  %v2174 = vmax.f32 %v1483, %v2170
  %v2175 = vmax.f32 %v1484, %v2171
  %v2176 = vmax.f32 %v1485, %v2172
  %v2177 = vmax.f32 %v1486, %v2173
  %v2178 = vsub.f32 %v1483, %v2174
  %v2179 = vsub.f32 %v1484, %v2175
  %v2180 = vsub.f32 %v1485, %v2176
  %v2181 = vsub.f32 %v1486, %v2177
  %v2182 = vmul.f32 %v2178, 1.442695
  %v2183 = vpow.pop %v2182
  %v2184 = vmul.f32 %v2179, 1.442695
  %v2185 = vpow.pop %v2184
  %v2186 = vmul.f32 %v2180, 1.442695
  %v2187 = vpow.pop %v2186
  %v2188 = vmul.f32 %v2181, 1.442695
  %v2189 = vpow.pop %v2188
  %v2190 = vmul.f32 %v2183, %v1847
  %v2191 = vmul.f32 %v2185, %v1848
  %v2192 = vmul.f32 %v2187, %v1849
  %v2193 = vmul.f32 %v2189, %v1850
  %v2194 = vmul.f32 %v2183, %v1867
  %v2195 = vmul.f32 %v2185, %v1868
  %v2196 = vmul.f32 %v2187, %v1869
  %v2197 = vmul.f32 %v2189, %v1870
  %v2198 = vmul.f32 %v2183, %v1887
  %v2199 = vmul.f32 %v2185, %v1888
  %v2200 = vmul.f32 %v2187, %v1889
  %v2201 = vmul.f32 %v2189, %v1890
  %v2202 = vsub.f32 %v1924, %v2174
  %v2203 = vsub.f32 %v1925, %v2175
  %v2204 = vsub.f32 %v1926, %v2176
  %v2205 = vsub.f32 %v1927, %v2177
  %v2206 = vmul.f32 %v2202, 1.442695
  %v2207 = vpow.pop %v2206
  %v2208 = vmul.f32 %v2203, 1.442695
  %v2209 = vpow.pop %v2208
  %v2210 = vmul.f32 %v2204, 1.442695
  %v2211 = vpow.pop %v2210
  %v2212 = vmul.f32 %v2205, 1.442695
  %v2213 = vpow.pop %v2212
  %v2214 = vadd.f32 %v2190, %v2207
  %v2215 = vadd.f32 %v2191, %v2209
  %v2216 = vadd.f32 %v2192, %v2211
  %v2217 = vadd.f32 %v2193, %v2213
  %2218 = vrot.lane.b32.xlu0 %v1487, 47
  %v2219 = vpop.permute.xlu0 %2218
  %2220 = vrot.lane.b32.xlu0 %v1488, 47
  %v2221 = vpop.permute.xlu0 %2220
  %2222 = vrot.lane.b32.xlu0 %v1489, 47
  %v2223 = vpop.permute.xlu0 %2222
  %v2224 = vsel %vm1897, %v2219, %v2221
  %v2225 = vsel %vm1897, %v2221, %v2223
  %v2230 = vmul.f32 %v2207, %v2219
  %v2231 = vmul.f32 %v2209, %v2224
  %v2232 = vmul.f32 %v2211, %v2225
  %v2233 = vmul.f32 %v2213, %v2223
  %v2234 = vadd.f32 %v2194, %v2230
  %v2235 = vadd.f32 %v2195, %v2231
  %v2236 = vadd.f32 %v2196, %v2232
  %v2237 = vadd.f32 %v2197, %v2233
  %2238 = vrot.lane.b32.xlu0 %v1490, 47
  %v2239 = vpop.permute.xlu0 %2238
  %2240 = vrot.lane.b32.xlu0 %v1491, 47
  %v2241 = vpop.permute.xlu0 %2240
  %2242 = vrot.lane.b32.xlu0 %v1492, 47
  %v2243 = vpop.permute.xlu0 %2242
  %v2244 = vsel %vm1897, %v2239, %v2241
  %v2245 = vsel %vm1897, %v2241, %v2243
  %v2250 = vmul.f32 %v2207, %v2239
  %v2251 = vmul.f32 %v2209, %v2244
  %v2252 = vmul.f32 %v2211, %v2245
  %v2253 = vmul.f32 %v2213, %v2243
  %v2254 = vadd.f32 %v2198, %v2250
  %v2255 = vadd.f32 %v2199, %v2251
  %v2256 = vadd.f32 %v2200, %v2252
  %v2257 = vadd.f32 %v2201, %v2253
  %v2258 = vsub.f32 %v1961, %v2174
  %v2259 = vsub.f32 %v1962, %v2175
  %v2260 = vsub.f32 %v1963, %v2176
  %v2261 = vsub.f32 %v1964, %v2177
  %v2262 = vmul.f32 %v2258, 1.442695
  %v2263 = vpow.pop %v2262
  %v2264 = vmul.f32 %v2259, 1.442695
  %v2265 = vpow.pop %v2264
  %v2266 = vmul.f32 %v2260, 1.442695
  %v2267 = vpow.pop %v2266
  %v2268 = vmul.f32 %v2261, 1.442695
  %v2269 = vpow.pop %v2268
  %v2270 = vadd.f32 %v2214, %v2263
  %v2271 = vadd.f32 %v2215, %v2265
  %v2272 = vadd.f32 %v2216, %v2267
  %v2273 = vadd.f32 %v2217, %v2269
  %2274 = vrot.lane.b32.xlu0 %v1487, 46
  %v2275 = vpop.permute.xlu0 %2274
  %2276 = vrot.lane.b32.xlu0 %v1488, 46
  %v2277 = vpop.permute.xlu0 %2276
  %2278 = vrot.lane.b32.xlu0 %v1489, 46
  %v2279 = vpop.permute.xlu0 %2278
  %v2280 = vsel %vm1934, %v2275, %v2277
  %v2281 = vsel %vm1934, %v2277, %v2279
  %v2286 = vmul.f32 %v2263, %v2275
  %v2287 = vmul.f32 %v2265, %v2280
  %v2288 = vmul.f32 %v2267, %v2281
  %v2289 = vmul.f32 %v2269, %v2279
  %v2290 = vadd.f32 %v2234, %v2286
  %v2291 = vadd.f32 %v2235, %v2287
  %v2292 = vadd.f32 %v2236, %v2288
  %v2293 = vadd.f32 %v2237, %v2289
  %2294 = vrot.lane.b32.xlu0 %v1490, 46
  %v2295 = vpop.permute.xlu0 %2294
  %2296 = vrot.lane.b32.xlu0 %v1491, 46
  %v2297 = vpop.permute.xlu0 %2296
  %2298 = vrot.lane.b32.xlu0 %v1492, 46
  %v2299 = vpop.permute.xlu0 %2298
  %v2300 = vsel %vm1934, %v2295, %v2297
  %v2301 = vsel %vm1934, %v2297, %v2299
  %v2306 = vmul.f32 %v2263, %v2295
  %v2307 = vmul.f32 %v2265, %v2300
  %v2308 = vmul.f32 %v2267, %v2301
  %v2309 = vmul.f32 %v2269, %v2299
  %v2310 = vadd.f32 %v2254, %v2306
  %v2311 = vadd.f32 %v2255, %v2307
  %v2312 = vadd.f32 %v2256, %v2308
  %v2313 = vadd.f32 %v2257, %v2309
  %v2314 = vsub.f32 %v2002, %v2174
  %v2315 = vsub.f32 %v2003, %v2175
  %v2316 = vsub.f32 %v2004, %v2176
  %v2317 = vsub.f32 %v2005, %v2177
  %v2318 = vmul.f32 %v2314, 1.442695
  %v2319 = vpow.pop %v2318
  %v2320 = vmul.f32 %v2315, 1.442695
  %v2321 = vpow.pop %v2320
  %v2322 = vmul.f32 %v2316, 1.442695
  %v2323 = vpow.pop %v2322
  %v2324 = vmul.f32 %v2317, 1.442695
  %v2325 = vpow.pop %v2324
  %v2326 = vadd.f32 %v2270, %v2319
  %v2327 = vadd.f32 %v2271, %v2321
  %v2328 = vadd.f32 %v2272, %v2323
  %v2329 = vadd.f32 %v2273, %v2325
  %2330 = vrot.lane.b32.xlu0 %v1487, 45
  %v2331 = vpop.permute.xlu0 %2330
  %2332 = vrot.lane.b32.xlu0 %v1488, 45
  %v2333 = vpop.permute.xlu0 %2332
  %2334 = vrot.lane.b32.xlu0 %v1489, 45
  %v2335 = vpop.permute.xlu0 %2334
  %v2336 = vsel %vm1975, %v2331, %v2333
  %v2337 = vsel %vm1975, %v2333, %v2335
  %v2342 = vmul.f32 %v2319, %v2331
  %v2343 = vmul.f32 %v2321, %v2336
  %v2344 = vmul.f32 %v2323, %v2337
  %v2345 = vmul.f32 %v2325, %v2335
  %v2346 = vadd.f32 %v2290, %v2342
  %v2347 = vadd.f32 %v2291, %v2343
  %v2348 = vadd.f32 %v2292, %v2344
  %v2349 = vadd.f32 %v2293, %v2345
  %2350 = vrot.lane.b32.xlu0 %v1490, 45
  %v2351 = vpop.permute.xlu0 %2350
  %2352 = vrot.lane.b32.xlu0 %v1491, 45
  %v2353 = vpop.permute.xlu0 %2352
  %2354 = vrot.lane.b32.xlu0 %v1492, 45
  %v2355 = vpop.permute.xlu0 %2354
  %v2356 = vsel %vm1975, %v2351, %v2353
  %v2357 = vsel %vm1975, %v2353, %v2355
  %v2362 = vmul.f32 %v2319, %v2351
  %v2363 = vmul.f32 %v2321, %v2356
  %v2364 = vmul.f32 %v2323, %v2357
  %v2365 = vmul.f32 %v2325, %v2355
  %v2366 = vadd.f32 %v2310, %v2362
  %v2367 = vadd.f32 %v2311, %v2363
  %v2368 = vadd.f32 %v2312, %v2364
  %v2369 = vadd.f32 %v2313, %v2365
  %v2370 = vsub.f32 %v2043, %v2174
  %v2371 = vsub.f32 %v2044, %v2175
  %v2372 = vsub.f32 %v2045, %v2176
  %v2373 = vsub.f32 %v2046, %v2177
  %v2374 = vmul.f32 %v2370, 1.442695
  %v2375 = vpow.pop %v2374
  %v2376 = vmul.f32 %v2371, 1.442695
  %v2377 = vpow.pop %v2376
  %v2378 = vmul.f32 %v2372, 1.442695
  %v2379 = vpow.pop %v2378
  %v2380 = vmul.f32 %v2373, 1.442695
  %v2381 = vpow.pop %v2380
  %v2382 = vadd.f32 %v2326, %v2375
  %v2383 = vadd.f32 %v2327, %v2377
  %v2384 = vadd.f32 %v2328, %v2379
  %v2385 = vadd.f32 %v2329, %v2381
  %2386 = vrot.lane.b32.xlu0 %v1487, 44
  %v2387 = vpop.permute.xlu0 %2386
  %2388 = vrot.lane.b32.xlu0 %v1488, 44
  %v2389 = vpop.permute.xlu0 %2388
  %2390 = vrot.lane.b32.xlu0 %v1489, 44
  %v2391 = vpop.permute.xlu0 %2390
  %v2392 = vsel %vm2016, %v2387, %v2389
  %v2393 = vsel %vm2016, %v2389, %v2391
  %v2398 = vmul.f32 %v2375, %v2387
  %v2399 = vmul.f32 %v2377, %v2392
  %v2400 = vmul.f32 %v2379, %v2393
  %v2401 = vmul.f32 %v2381, %v2391
  %v2402 = vadd.f32 %v2346, %v2398
  %v2403 = vadd.f32 %v2347, %v2399
  %v2404 = vadd.f32 %v2348, %v2400
  %v2405 = vadd.f32 %v2349, %v2401
  %2406 = vrot.lane.b32.xlu0 %v1490, 44
  %v2407 = vpop.permute.xlu0 %2406
  %2408 = vrot.lane.b32.xlu0 %v1491, 44
  %v2409 = vpop.permute.xlu0 %2408
  %2410 = vrot.lane.b32.xlu0 %v1492, 44
  %v2411 = vpop.permute.xlu0 %2410
  %v2412 = vsel %vm2016, %v2407, %v2409
  %v2413 = vsel %vm2016, %v2409, %v2411
  %v2418 = vmul.f32 %v2375, %v2407
  %v2419 = vmul.f32 %v2377, %v2412
  %v2420 = vmul.f32 %v2379, %v2413
  %v2421 = vmul.f32 %v2381, %v2411
  %v2422 = vadd.f32 %v2366, %v2418
  %v2423 = vadd.f32 %v2367, %v2419
  %v2424 = vadd.f32 %v2368, %v2420
  %v2425 = vadd.f32 %v2369, %v2421
  %v2426 = vsub.f32 %v2084, %v2174
  %v2427 = vsub.f32 %v2085, %v2175
  %v2428 = vsub.f32 %v2086, %v2176
  %v2429 = vsub.f32 %v2087, %v2177
  %v2430 = vmul.f32 %v2426, 1.442695
  %v2431 = vpow.pop %v2430
  %v2432 = vmul.f32 %v2427, 1.442695
  %v2433 = vpow.pop %v2432
  %v2434 = vmul.f32 %v2428, 1.442695
  %v2435 = vpow.pop %v2434
  %v2436 = vmul.f32 %v2429, 1.442695
  %v2437 = vpow.pop %v2436
  %v2438 = vadd.f32 %v2382, %v2431
  %v2439 = vadd.f32 %v2383, %v2433
  %v2440 = vadd.f32 %v2384, %v2435
  %v2441 = vadd.f32 %v2385, %v2437
  %2442 = vrot.lane.b32.xlu0 %v1487, 43
  %v2443 = vpop.permute.xlu0 %2442
  %2444 = vrot.lane.b32.xlu0 %v1488, 43
  %v2445 = vpop.permute.xlu0 %2444
  %2446 = vrot.lane.b32.xlu0 %v1489, 43
  %v2447 = vpop.permute.xlu0 %2446
  %v2448 = vsel %vm2057, %v2443, %v2445
  %v2449 = vsel %vm2057, %v2445, %v2447
  %v2454 = vmul.f32 %v2431, %v2443
  %v2455 = vmul.f32 %v2433, %v2448
  %v2456 = vmul.f32 %v2435, %v2449
  %v2457 = vmul.f32 %v2437, %v2447
  %v2458 = vadd.f32 %v2402, %v2454
  %v2459 = vadd.f32 %v2403, %v2455
  %v2460 = vadd.f32 %v2404, %v2456
  %v2461 = vadd.f32 %v2405, %v2457
  %2462 = vrot.lane.b32.xlu0 %v1490, 43
  %v2463 = vpop.permute.xlu0 %2462
  %2464 = vrot.lane.b32.xlu0 %v1491, 43
  %v2465 = vpop.permute.xlu0 %2464
  %2466 = vrot.lane.b32.xlu0 %v1492, 43
  %v2467 = vpop.permute.xlu0 %2466
  %v2468 = vsel %vm2057, %v2463, %v2465
  %v2469 = vsel %vm2057, %v2465, %v2467
  %v2474 = vmul.f32 %v2431, %v2463
  %v2475 = vmul.f32 %v2433, %v2468
  %v2476 = vmul.f32 %v2435, %v2469
  %v2477 = vmul.f32 %v2437, %v2467
  %v2478 = vadd.f32 %v2422, %v2474
  %v2479 = vadd.f32 %v2423, %v2475
  %v2480 = vadd.f32 %v2424, %v2476
  %v2481 = vadd.f32 %v2425, %v2477
  %v2482 = vsub.f32 %v2125, %v2174
  %v2483 = vsub.f32 %v2126, %v2175
  %v2484 = vsub.f32 %v2127, %v2176
  %v2485 = vsub.f32 %v2128, %v2177
  %v2486 = vmul.f32 %v2482, 1.442695
  %v2487 = vpow.pop %v2486
  %v2488 = vmul.f32 %v2483, 1.442695
  %v2489 = vpow.pop %v2488
  %v2490 = vmul.f32 %v2484, 1.442695
  %v2491 = vpow.pop %v2490
  %v2492 = vmul.f32 %v2485, 1.442695
  %v2493 = vpow.pop %v2492
  %v2494 = vadd.f32 %v2438, %v2487
  %v2495 = vadd.f32 %v2439, %v2489
  %v2496 = vadd.f32 %v2440, %v2491
  %v2497 = vadd.f32 %v2441, %v2493
  %2498 = vrot.lane.b32.xlu0 %v1487, 42
  %v2499 = vpop.permute.xlu0 %2498
  %2500 = vrot.lane.b32.xlu0 %v1488, 42
  %v2501 = vpop.permute.xlu0 %2500
  %2502 = vrot.lane.b32.xlu0 %v1489, 42
  %v2503 = vpop.permute.xlu0 %2502
  %v2504 = vsel %vm2098, %v2499, %v2501
  %v2505 = vsel %vm2098, %v2501, %v2503
  %v2510 = vmul.f32 %v2487, %v2499
  %v2511 = vmul.f32 %v2489, %v2504
  %v2512 = vmul.f32 %v2491, %v2505
  %v2513 = vmul.f32 %v2493, %v2503
  %v2514 = vadd.f32 %v2458, %v2510
  %v2515 = vadd.f32 %v2459, %v2511
  %v2516 = vadd.f32 %v2460, %v2512
  %v2517 = vadd.f32 %v2461, %v2513
  %2518 = vrot.lane.b32.xlu0 %v1490, 42
  %v2519 = vpop.permute.xlu0 %2518
  %2520 = vrot.lane.b32.xlu0 %v1491, 42
  %v2521 = vpop.permute.xlu0 %2520
  %2522 = vrot.lane.b32.xlu0 %v1492, 42
  %v2523 = vpop.permute.xlu0 %2522
  %v2524 = vsel %vm2098, %v2519, %v2521
  %v2525 = vsel %vm2098, %v2521, %v2523
  %v2530 = vmul.f32 %v2487, %v2519
  %v2531 = vmul.f32 %v2489, %v2524
  %v2532 = vmul.f32 %v2491, %v2525
  %v2533 = vmul.f32 %v2493, %v2523
  %v2534 = vadd.f32 %v2478, %v2530
  %v2535 = vadd.f32 %v2479, %v2531
  %v2536 = vadd.f32 %v2480, %v2532
  %v2537 = vadd.f32 %v2481, %v2533
  %v2538 = vsub.f32 %v2166, %v2174
  %v2539 = vsub.f32 %v2167, %v2175
  %v2540 = vsub.f32 %v2168, %v2176
  %v2541 = vsub.f32 %v2169, %v2177
  %v2542 = vmul.f32 %v2538, 1.442695
  %v2543 = vpow.pop %v2542
  %v2544 = vmul.f32 %v2539, 1.442695
  %v2545 = vpow.pop %v2544
  %v2546 = vmul.f32 %v2540, 1.442695
  %v2547 = vpow.pop %v2546
  %v2548 = vmul.f32 %v2541, 1.442695
  %v2549 = vpow.pop %v2548
  %v2550 = vadd.f32 %v2494, %v2543
  %v2551 = vadd.f32 %v2495, %v2545
  %v2552 = vadd.f32 %v2496, %v2547
  %v2553 = vadd.f32 %v2497, %v2549
  %2554 = vrot.lane.b32.xlu0 %v1487, 41
  %v2555 = vpop.permute.xlu0 %2554
  %2556 = vrot.lane.b32.xlu0 %v1488, 41
  %v2557 = vpop.permute.xlu0 %2556
  %2558 = vrot.lane.b32.xlu0 %v1489, 41
  %v2559 = vpop.permute.xlu0 %2558
  %v2560 = vsel %vm2139, %v2555, %v2557
  %v2561 = vsel %vm2139, %v2557, %v2559
  %v2566 = vmul.f32 %v2543, %v2555
  %v2567 = vmul.f32 %v2545, %v2560
  %v2568 = vmul.f32 %v2547, %v2561
  %v2569 = vmul.f32 %v2549, %v2559
  %v2570 = vadd.f32 %v2514, %v2566
  %v2571 = vadd.f32 %v2515, %v2567
  %v2572 = vadd.f32 %v2516, %v2568
  %v2573 = vadd.f32 %v2517, %v2569
  %2574 = vrot.lane.b32.xlu0 %v1490, 41
  %v2575 = vpop.permute.xlu0 %2574
  %2576 = vrot.lane.b32.xlu0 %v1491, 41
  %v2577 = vpop.permute.xlu0 %2576
  %2578 = vrot.lane.b32.xlu0 %v1492, 41
  %v2579 = vpop.permute.xlu0 %2578
  %v2580 = vsel %vm2139, %v2575, %v2577
  %v2581 = vsel %vm2139, %v2577, %v2579
  %v2586 = vmul.f32 %v2543, %v2575
  %v2587 = vmul.f32 %v2545, %v2580
  %v2588 = vmul.f32 %v2547, %v2581
  %v2589 = vmul.f32 %v2549, %v2579
  %v2590 = vadd.f32 %v2534, %v2586
  %v2591 = vadd.f32 %v2535, %v2587
  %v2592 = vadd.f32 %v2536, %v2588
  %v2593 = vadd.f32 %v2537, %v2589
  %v2594 = vld [vmem:[#allocation2] sm:$0xff]
  %v2595 = vld [vmem:[#allocation2 + $0x8] sm:$0xff]
  %v2596 = vld [vmem:[#allocation2 + $0x10] sm:$0xff]
  %v2597 = vld [vmem:[#allocation2 + $0x18] sm:$0xff]
  %v2598 = vld [vmem:[#allocation2 + $0x20] sm:$0xff]
  %v2599 = vld [vmem:[#allocation2 + $0x28] sm:$0xff]
  %v2600 = vld [vmem:[#allocation2 + $0x30] sm:$0xff]
  %v2601 = vld [vmem:[#allocation2 + $0x38] sm:$0xff]
  %2606 = vrot.lane.b32.xlu0 %v2594, 25
  %v2607 = vpop.permute.xlu0 %2606
  %2608 = vrot.lane.b32.xlu0 %v2595, 25
  %v2609 = vpop.permute.xlu0 %2608
  %2610 = vrot.lane.b32.xlu0 %v2596, 25
  %v2611 = vpop.permute.xlu0 %2610
  %2612 = vrot.lane.b32.xlu0 %v2597, 25
  %v2613 = vpop.permute.xlu0 %2612
  %vm2614 = vcmask 203776
  %v2615 = vsel %vm2614, %v2607, %v2609
  %v2616 = vsel %vm2614, %v2609, %v2611
  %v2617 = vsel %vm2614, %v2611, %v2613
  %v2622 = vmul.f32 %v412, %v2607
  %v2623 = vmul.f32 %v481, %v2615
  %v2624 = vmul.f32 %v550, %v2616
  %v2625 = vmul.f32 %v619, %v2617
  %2630 = vrot.lane.b32.xlu0 %v2598, 25
  %v2631 = vpop.permute.xlu0 %2630
  %2632 = vrot.lane.b32.xlu0 %v2599, 25
  %v2633 = vpop.permute.xlu0 %2632
  %2634 = vrot.lane.b32.xlu0 %v2600, 25
  %v2635 = vpop.permute.xlu0 %2634
  %2636 = vrot.lane.b32.xlu0 %v2601, 25
  %v2637 = vpop.permute.xlu0 %2636
  %v2638 = vsel %vm2614, %v2631, %v2633
  %v2639 = vsel %vm2614, %v2633, %v2635
  %v2640 = vsel %vm2614, %v2635, %v2637
  %v2645 = vmul.f32 %v415, %v2631
  %v2646 = vmul.f32 %v484, %v2638
  %v2647 = vmul.f32 %v553, %v2639
  %v2648 = vmul.f32 %v622, %v2640
  %v2649 = vadd.f32 %v2622, %v2645
  %v2650 = vadd.f32 %v2623, %v2646
  %v2651 = vadd.f32 %v2624, %v2647
  %v2652 = vadd.f32 %v2625, %v2648
  %2653 = vrot.lane.b32.xlu0 %v2594, 24
  %v2654 = vpop.permute.xlu0 %2653
  %2655 = vrot.lane.b32.xlu0 %v2595, 24
  %v2656 = vpop.permute.xlu0 %2655
  %2657 = vrot.lane.b32.xlu0 %v2596, 24
  %v2658 = vpop.permute.xlu0 %2657
  %2659 = vrot.lane.b32.xlu0 %v2597, 24
  %v2660 = vpop.permute.xlu0 %2659
  %vm2661 = vcmask 195584
  %v2662 = vsel %vm2661, %v2654, %v2656
  %v2663 = vsel %vm2661, %v2656, %v2658
  %v2664 = vsel %vm2661, %v2658, %v2660
  %v2669 = vmul.f32 %v412, %v2654
  %v2670 = vmul.f32 %v481, %v2662
  %v2671 = vmul.f32 %v550, %v2663
  %v2672 = vmul.f32 %v619, %v2664
  %2673 = vrot.lane.b32.xlu0 %v2598, 24
  %v2674 = vpop.permute.xlu0 %2673
  %2675 = vrot.lane.b32.xlu0 %v2599, 24
  %v2676 = vpop.permute.xlu0 %2675
  %2677 = vrot.lane.b32.xlu0 %v2600, 24
  %v2678 = vpop.permute.xlu0 %2677
  %2679 = vrot.lane.b32.xlu0 %v2601, 24
  %v2680 = vpop.permute.xlu0 %2679
  %v2681 = vsel %vm2661, %v2674, %v2676
  %v2682 = vsel %vm2661, %v2676, %v2678
  %v2683 = vsel %vm2661, %v2678, %v2680
  %v2688 = vmul.f32 %v415, %v2674
  %v2689 = vmul.f32 %v484, %v2681
  %v2690 = vmul.f32 %v553, %v2682
  %v2691 = vmul.f32 %v622, %v2683
  %v2692 = vadd.f32 %v2669, %v2688
  %v2693 = vadd.f32 %v2670, %v2689
  %v2694 = vadd.f32 %v2671, %v2690
  %v2695 = vadd.f32 %v2672, %v2691
  %v2696 = vmax.f32 %v2649, %v2692
  %v2697 = vmax.f32 %v2650, %v2693
  %v2698 = vmax.f32 %v2651, %v2694
  %v2699 = vmax.f32 %v2652, %v2695
  %2700 = vrot.lane.b32.xlu0 %v2594, 23
  %v2701 = vpop.permute.xlu0 %2700
  %2702 = vrot.lane.b32.xlu0 %v2595, 23
  %v2703 = vpop.permute.xlu0 %2702
  %2704 = vrot.lane.b32.xlu0 %v2596, 23
  %v2705 = vpop.permute.xlu0 %2704
  %2706 = vrot.lane.b32.xlu0 %v2597, 23
  %v2707 = vpop.permute.xlu0 %2706
  %vm2708 = vcmask 187392
  %v2709 = vsel %vm2708, %v2701, %v2703
  %v2710 = vsel %vm2708, %v2703, %v2705
  %v2711 = vsel %vm2708, %v2705, %v2707
  %v2716 = vmul.f32 %v412, %v2701
  %v2717 = vmul.f32 %v481, %v2709
  %v2718 = vmul.f32 %v550, %v2710
  %v2719 = vmul.f32 %v619, %v2711
  %2720 = vrot.lane.b32.xlu0 %v2598, 23
  %v2721 = vpop.permute.xlu0 %2720
  %2722 = vrot.lane.b32.xlu0 %v2599, 23
  %v2723 = vpop.permute.xlu0 %2722
  %2724 = vrot.lane.b32.xlu0 %v2600, 23
  %v2725 = vpop.permute.xlu0 %2724
  %2726 = vrot.lane.b32.xlu0 %v2601, 23
  %v2727 = vpop.permute.xlu0 %2726
  %v2728 = vsel %vm2708, %v2721, %v2723
  %v2729 = vsel %vm2708, %v2723, %v2725
  %v2730 = vsel %vm2708, %v2725, %v2727
  %v2735 = vmul.f32 %v415, %v2721
  %v2736 = vmul.f32 %v484, %v2728
  %v2737 = vmul.f32 %v553, %v2729
  %v2738 = vmul.f32 %v622, %v2730
  %v2739 = vadd.f32 %v2716, %v2735
  %v2740 = vadd.f32 %v2717, %v2736
  %v2741 = vadd.f32 %v2718, %v2737
  %v2742 = vadd.f32 %v2719, %v2738
  %v2743 = vmax.f32 %v2696, %v2739
  %v2744 = vmax.f32 %v2697, %v2740
  %v2745 = vmax.f32 %v2698, %v2741
  %v2746 = vmax.f32 %v2699, %v2742
  %2747 = vrot.lane.b32.xlu0 %v2594, 22
  %v2748 = vpop.permute.xlu0 %2747
  %2749 = vrot.lane.b32.xlu0 %v2595, 22
  %v2750 = vpop.permute.xlu0 %2749
  %2751 = vrot.lane.b32.xlu0 %v2596, 22
  %v2752 = vpop.permute.xlu0 %2751
  %2753 = vrot.lane.b32.xlu0 %v2597, 22
  %v2754 = vpop.permute.xlu0 %2753
  %vm2755 = vcmask 179200
  %v2756 = vsel %vm2755, %v2748, %v2750
  %v2757 = vsel %vm2755, %v2750, %v2752
  %v2758 = vsel %vm2755, %v2752, %v2754
  %v2763 = vmul.f32 %v412, %v2748
  %v2764 = vmul.f32 %v481, %v2756
  %v2765 = vmul.f32 %v550, %v2757
  %v2766 = vmul.f32 %v619, %v2758
  %2767 = vrot.lane.b32.xlu0 %v2598, 22
  %v2768 = vpop.permute.xlu0 %2767
  %2769 = vrot.lane.b32.xlu0 %v2599, 22
  %v2770 = vpop.permute.xlu0 %2769
  %2771 = vrot.lane.b32.xlu0 %v2600, 22
  %v2772 = vpop.permute.xlu0 %2771
  %2773 = vrot.lane.b32.xlu0 %v2601, 22
  %v2774 = vpop.permute.xlu0 %2773
  %v2775 = vsel %vm2755, %v2768, %v2770
  %v2776 = vsel %vm2755, %v2770, %v2772
  %v2777 = vsel %vm2755, %v2772, %v2774
  %v2782 = vmul.f32 %v415, %v2768
  %v2783 = vmul.f32 %v484, %v2775
  %v2784 = vmul.f32 %v553, %v2776
  %v2785 = vmul.f32 %v622, %v2777
  %v2786 = vadd.f32 %v2763, %v2782
  %v2787 = vadd.f32 %v2764, %v2783
  %v2788 = vadd.f32 %v2765, %v2784
  %v2789 = vadd.f32 %v2766, %v2785
  %v2790 = vmax.f32 %v2743, %v2786
  %v2791 = vmax.f32 %v2744, %v2787
  %v2792 = vmax.f32 %v2745, %v2788
  %v2793 = vmax.f32 %v2746, %v2789
  %2794 = vrot.lane.b32.xlu0 %v2594, 21
  %v2795 = vpop.permute.xlu0 %2794
  %2796 = vrot.lane.b32.xlu0 %v2595, 21
  %v2797 = vpop.permute.xlu0 %2796
  %2798 = vrot.lane.b32.xlu0 %v2596, 21
  %v2799 = vpop.permute.xlu0 %2798
  %2800 = vrot.lane.b32.xlu0 %v2597, 21
  %v2801 = vpop.permute.xlu0 %2800
  %vm2802 = vcmask 171008
  %v2803 = vsel %vm2802, %v2795, %v2797
  %v2804 = vsel %vm2802, %v2797, %v2799
  %v2805 = vsel %vm2802, %v2799, %v2801
  %v2810 = vmul.f32 %v412, %v2795
  %v2811 = vmul.f32 %v481, %v2803
  %v2812 = vmul.f32 %v550, %v2804
  %v2813 = vmul.f32 %v619, %v2805
  %2814 = vrot.lane.b32.xlu0 %v2598, 21
  %v2815 = vpop.permute.xlu0 %2814
  %2816 = vrot.lane.b32.xlu0 %v2599, 21
  %v2817 = vpop.permute.xlu0 %2816
  %2818 = vrot.lane.b32.xlu0 %v2600, 21
  %v2819 = vpop.permute.xlu0 %2818
  %2820 = vrot.lane.b32.xlu0 %v2601, 21
  %v2821 = vpop.permute.xlu0 %2820
  %v2822 = vsel %vm2802, %v2815, %v2817
  %v2823 = vsel %vm2802, %v2817, %v2819
  %v2824 = vsel %vm2802, %v2819, %v2821
  %v2829 = vmul.f32 %v415, %v2815
  %v2830 = vmul.f32 %v484, %v2822
  %v2831 = vmul.f32 %v553, %v2823
  %v2832 = vmul.f32 %v622, %v2824
  %v2833 = vadd.f32 %v2810, %v2829
  %v2834 = vadd.f32 %v2811, %v2830
  %v2835 = vadd.f32 %v2812, %v2831
  %v2836 = vadd.f32 %v2813, %v2832
  %v2837 = vmax.f32 %v2790, %v2833
  %v2838 = vmax.f32 %v2791, %v2834
  %v2839 = vmax.f32 %v2792, %v2835
  %v2840 = vmax.f32 %v2793, %v2836
  %2841 = vrot.lane.b32.xlu0 %v2594, 20
  %v2842 = vpop.permute.xlu0 %2841
  %2843 = vrot.lane.b32.xlu0 %v2595, 20
  %v2844 = vpop.permute.xlu0 %2843
  %2845 = vrot.lane.b32.xlu0 %v2596, 20
  %v2846 = vpop.permute.xlu0 %2845
  %2847 = vrot.lane.b32.xlu0 %v2597, 20
  %v2848 = vpop.permute.xlu0 %2847
  %vm2849 = vcmask 162816
  %v2850 = vsel %vm2849, %v2842, %v2844
  %v2851 = vsel %vm2849, %v2844, %v2846
  %v2852 = vsel %vm2849, %v2846, %v2848
  %v2857 = vmul.f32 %v412, %v2842
  %v2858 = vmul.f32 %v481, %v2850
  %v2859 = vmul.f32 %v550, %v2851
  %v2860 = vmul.f32 %v619, %v2852
  %2861 = vrot.lane.b32.xlu0 %v2598, 20
  %v2862 = vpop.permute.xlu0 %2861
  %2863 = vrot.lane.b32.xlu0 %v2599, 20
  %v2864 = vpop.permute.xlu0 %2863
  %2865 = vrot.lane.b32.xlu0 %v2600, 20
  %v2866 = vpop.permute.xlu0 %2865
  %2867 = vrot.lane.b32.xlu0 %v2601, 20
  %v2868 = vpop.permute.xlu0 %2867
  %v2869 = vsel %vm2849, %v2862, %v2864
  %v2870 = vsel %vm2849, %v2864, %v2866
  %v2871 = vsel %vm2849, %v2866, %v2868
  %v2876 = vmul.f32 %v415, %v2862
  %v2877 = vmul.f32 %v484, %v2869
  %v2878 = vmul.f32 %v553, %v2870
  %v2879 = vmul.f32 %v622, %v2871
  %v2880 = vadd.f32 %v2857, %v2876
  %v2881 = vadd.f32 %v2858, %v2877
  %v2882 = vadd.f32 %v2859, %v2878
  %v2883 = vadd.f32 %v2860, %v2879
  %v2884 = vmax.f32 %v2837, %v2880
  %v2885 = vmax.f32 %v2838, %v2881
  %v2886 = vmax.f32 %v2839, %v2882
  %v2887 = vmax.f32 %v2840, %v2883
  %2888 = vrot.lane.b32.xlu0 %v2594, 19
  %v2889 = vpop.permute.xlu0 %2888
  %2890 = vrot.lane.b32.xlu0 %v2595, 19
  %v2891 = vpop.permute.xlu0 %2890
  %2892 = vrot.lane.b32.xlu0 %v2596, 19
  %v2893 = vpop.permute.xlu0 %2892
  %2894 = vrot.lane.b32.xlu0 %v2597, 19
  %v2895 = vpop.permute.xlu0 %2894
  %vm2896 = vcmask 154624
  %v2897 = vsel %vm2896, %v2889, %v2891
  %v2898 = vsel %vm2896, %v2891, %v2893
  %v2899 = vsel %vm2896, %v2893, %v2895
  %v2904 = vmul.f32 %v412, %v2889
  %v2905 = vmul.f32 %v481, %v2897
  %v2906 = vmul.f32 %v550, %v2898
  %v2907 = vmul.f32 %v619, %v2899
  %2908 = vrot.lane.b32.xlu0 %v2598, 19
  %v2909 = vpop.permute.xlu0 %2908
  %2910 = vrot.lane.b32.xlu0 %v2599, 19
  %v2911 = vpop.permute.xlu0 %2910
  %2912 = vrot.lane.b32.xlu0 %v2600, 19
  %v2913 = vpop.permute.xlu0 %2912
  %2914 = vrot.lane.b32.xlu0 %v2601, 19
  %v2915 = vpop.permute.xlu0 %2914
  %v2916 = vsel %vm2896, %v2909, %v2911
  %v2917 = vsel %vm2896, %v2911, %v2913
  %v2918 = vsel %vm2896, %v2913, %v2915
  %v2923 = vmul.f32 %v415, %v2909
  %v2924 = vmul.f32 %v484, %v2916
  %v2925 = vmul.f32 %v553, %v2917
  %v2926 = vmul.f32 %v622, %v2918
  %v2927 = vadd.f32 %v2904, %v2923
  %v2928 = vadd.f32 %v2905, %v2924
  %v2929 = vadd.f32 %v2906, %v2925
  %v2930 = vadd.f32 %v2907, %v2926
  %v2931 = vmax.f32 %v2884, %v2927
  %v2932 = vmax.f32 %v2885, %v2928
  %v2933 = vmax.f32 %v2886, %v2929
  %v2934 = vmax.f32 %v2887, %v2930
  %v2935 = vmax.f32 %v2174, %v2931
  %v2936 = vmax.f32 %v2175, %v2932
  %v2937 = vmax.f32 %v2176, %v2933
  %v2938 = vmax.f32 %v2177, %v2934
  %v2939 = vsub.f32 %v2174, %v2935
  %v2940 = vsub.f32 %v2175, %v2936
  %v2941 = vsub.f32 %v2176, %v2937
  %v2942 = vsub.f32 %v2177, %v2938
  %v2943 = vmul.f32 %v2939, 1.442695
  %v2944 = vpow.pop %v2943
  %v2945 = vmul.f32 %v2940, 1.442695
  %v2946 = vpow.pop %v2945
  %v2947 = vmul.f32 %v2941, 1.442695
  %v2948 = vpow.pop %v2947
  %v2949 = vmul.f32 %v2942, 1.442695
  %v2950 = vpow.pop %v2949
  %v2951 = vmul.f32 %v2944, %v2550
  %v2952 = vmul.f32 %v2946, %v2551
  %v2953 = vmul.f32 %v2948, %v2552
  %v2954 = vmul.f32 %v2950, %v2553
  %v2955 = vmul.f32 %v2944, %v2570
  %v2956 = vmul.f32 %v2946, %v2571
  %v2957 = vmul.f32 %v2948, %v2572
  %v2958 = vmul.f32 %v2950, %v2573
  %v2959 = vmul.f32 %v2944, %v2590
  %v2960 = vmul.f32 %v2946, %v2591
  %v2961 = vmul.f32 %v2948, %v2592
  %v2962 = vmul.f32 %v2950, %v2593
  %v2963 = vld [vmem:[#allocation3] sm:$0xff]
  %v2964 = vld [vmem:[#allocation3 + $0x8] sm:$0xff]
  %v2965 = vld [vmem:[#allocation3 + $0x10] sm:$0xff]
  %v2966 = vld [vmem:[#allocation3 + $0x18] sm:$0xff]
  %v2967 = vld [vmem:[#allocation3 + $0x20] sm:$0xff]
  %v2968 = vld [vmem:[#allocation3 + $0x28] sm:$0xff]
  %v2969 = vld [vmem:[#allocation3 + $0x30] sm:$0xff]
  %v2970 = vld [vmem:[#allocation3 + $0x38] sm:$0xff]
  %v2971 = vsub.f32 %v2649, %v2935
  %v2972 = vsub.f32 %v2650, %v2936
  %v2973 = vsub.f32 %v2651, %v2937
  %v2974 = vsub.f32 %v2652, %v2938
  %v2975 = vmul.f32 %v2971, 1.442695
  %v2976 = vpow.pop %v2975
  %v2977 = vmul.f32 %v2972, 1.442695
  %v2978 = vpow.pop %v2977
  %v2979 = vmul.f32 %v2973, 1.442695
  %v2980 = vpow.pop %v2979
  %v2981 = vmul.f32 %v2974, 1.442695
  %v2982 = vpow.pop %v2981
  %v2983 = vadd.f32 %v2951, %v2976
  %v2984 = vadd.f32 %v2952, %v2978
  %v2985 = vadd.f32 %v2953, %v2980
  %v2986 = vadd.f32 %v2954, %v2982
  %2991 = vrot.lane.b32.xlu0 %v2963, 25
  %v2992 = vpop.permute.xlu0 %2991
  %2993 = vrot.lane.b32.xlu0 %v2964, 25
  %v2994 = vpop.permute.xlu0 %2993
  %2995 = vrot.lane.b32.xlu0 %v2965, 25
  %v2996 = vpop.permute.xlu0 %2995
  %2997 = vrot.lane.b32.xlu0 %v2966, 25
  %v2998 = vpop.permute.xlu0 %2997
  %v2999 = vsel %vm2614, %v2992, %v2994
  %v3000 = vsel %vm2614, %v2994, %v2996
  %v3001 = vsel %vm2614, %v2996, %v2998
  %v3006 = vmul.f32 %v2976, %v2992
  %v3007 = vmul.f32 %v2978, %v2999
  %v3008 = vmul.f32 %v2980, %v3000
  %v3009 = vmul.f32 %v2982, %v3001
  %v3010 = vadd.f32 %v2955, %v3006
  %v3011 = vadd.f32 %v2956, %v3007
  %v3012 = vadd.f32 %v2957, %v3008
  %v3013 = vadd.f32 %v2958, %v3009
  %3018 = vrot.lane.b32.xlu0 %v2967, 25
  %v3019 = vpop.permute.xlu0 %3018
  %3020 = vrot.lane.b32.xlu0 %v2968, 25
  %v3021 = vpop.permute.xlu0 %3020
  %3022 = vrot.lane.b32.xlu0 %v2969, 25
  %v3023 = vpop.permute.xlu0 %3022
  %3024 = vrot.lane.b32.xlu0 %v2970, 25
  %v3025 = vpop.permute.xlu0 %3024
  %v3026 = vsel %vm2614, %v3019, %v3021
  %v3027 = vsel %vm2614, %v3021, %v3023
  %v3028 = vsel %vm2614, %v3023, %v3025
  %v3033 = vmul.f32 %v2976, %v3019
  %v3034 = vmul.f32 %v2978, %v3026
  %v3035 = vmul.f32 %v2980, %v3027
  %v3036 = vmul.f32 %v2982, %v3028
  %v3037 = vadd.f32 %v2959, %v3033
  %v3038 = vadd.f32 %v2960, %v3034
  %v3039 = vadd.f32 %v2961, %v3035
  %v3040 = vadd.f32 %v2962, %v3036
  %v3041 = vsub.f32 %v2692, %v2935
  %v3042 = vsub.f32 %v2693, %v2936
  %v3043 = vsub.f32 %v2694, %v2937
  %v3044 = vsub.f32 %v2695, %v2938
  %v3045 = vmul.f32 %v3041, 1.442695
  %v3046 = vpow.pop %v3045
  %v3047 = vmul.f32 %v3042, 1.442695
  %v3048 = vpow.pop %v3047
  %v3049 = vmul.f32 %v3043, 1.442695
  %v3050 = vpow.pop %v3049
  %v3051 = vmul.f32 %v3044, 1.442695
  %v3052 = vpow.pop %v3051
  %v3053 = vadd.f32 %v2983, %v3046
  %v3054 = vadd.f32 %v2984, %v3048
  %v3055 = vadd.f32 %v2985, %v3050
  %v3056 = vadd.f32 %v2986, %v3052
  %3057 = vrot.lane.b32.xlu0 %v2963, 24
  %v3058 = vpop.permute.xlu0 %3057
  %3059 = vrot.lane.b32.xlu0 %v2964, 24
  %v3060 = vpop.permute.xlu0 %3059
  %3061 = vrot.lane.b32.xlu0 %v2965, 24
  %v3062 = vpop.permute.xlu0 %3061
  %3063 = vrot.lane.b32.xlu0 %v2966, 24
  %v3064 = vpop.permute.xlu0 %3063
  %v3065 = vsel %vm2661, %v3058, %v3060
  %v3066 = vsel %vm2661, %v3060, %v3062
  %v3067 = vsel %vm2661, %v3062, %v3064
  %v3072 = vmul.f32 %v3046, %v3058
  %v3073 = vmul.f32 %v3048, %v3065
  %v3074 = vmul.f32 %v3050, %v3066
  %v3075 = vmul.f32 %v3052, %v3067
  %v3076 = vadd.f32 %v3010, %v3072
  %v3077 = vadd.f32 %v3011, %v3073
  %v3078 = vadd.f32 %v3012, %v3074
  %v3079 = vadd.f32 %v3013, %v3075
  %3080 = vrot.lane.b32.xlu0 %v2967, 24
  %v3081 = vpop.permute.xlu0 %3080
  %3082 = vrot.lane.b32.xlu0 %v2968, 24
  %v3083 = vpop.permute.xlu0 %3082
  %3084 = vrot.lane.b32.xlu0 %v2969, 24
  %v3085 = vpop.permute.xlu0 %3084
  %3086 = vrot.lane.b32.xlu0 %v2970, 24
  %v3087 = vpop.permute.xlu0 %3086
  %v3088 = vsel %vm2661, %v3081, %v3083
  %v3089 = vsel %vm2661, %v3083, %v3085
  %v3090 = vsel %vm2661, %v3085, %v3087
  %v3095 = vmul.f32 %v3046, %v3081
  %v3096 = vmul.f32 %v3048, %v3088
  %v3097 = vmul.f32 %v3050, %v3089
  %v3098 = vmul.f32 %v3052, %v3090
  %v3099 = vadd.f32 %v3037, %v3095
  %v3100 = vadd.f32 %v3038, %v3096
  %v3101 = vadd.f32 %v3039, %v3097
  %v3102 = vadd.f32 %v3040, %v3098
  %v3103 = vsub.f32 %v2739, %v2935
  %v3104 = vsub.f32 %v2740, %v2936
  %v3105 = vsub.f32 %v2741, %v2937
  %v3106 = vsub.f32 %v2742, %v2938
  %v3107 = vmul.f32 %v3103, 1.442695
  %v3108 = vpow.pop %v3107
  %v3109 = vmul.f32 %v3104, 1.442695
  %v3110 = vpow.pop %v3109
  %v3111 = vmul.f32 %v3105, 1.442695
  %v3112 = vpow.pop %v3111
  %v3113 = vmul.f32 %v3106, 1.442695
  %v3114 = vpow.pop %v3113
  %v3115 = vadd.f32 %v3053, %v3108
  %v3116 = vadd.f32 %v3054, %v3110
  %v3117 = vadd.f32 %v3055, %v3112
  %v3118 = vadd.f32 %v3056, %v3114
  %3119 = vrot.lane.b32.xlu0 %v2963, 23
  %v3120 = vpop.permute.xlu0 %3119
  %3121 = vrot.lane.b32.xlu0 %v2964, 23
  %v3122 = vpop.permute.xlu0 %3121
  %3123 = vrot.lane.b32.xlu0 %v2965, 23
  %v3124 = vpop.permute.xlu0 %3123
  %3125 = vrot.lane.b32.xlu0 %v2966, 23
  %v3126 = vpop.permute.xlu0 %3125
  %v3127 = vsel %vm2708, %v3120, %v3122
  %v3128 = vsel %vm2708, %v3122, %v3124
  %v3129 = vsel %vm2708, %v3124, %v3126
  %v3134 = vmul.f32 %v3108, %v3120
  %v3135 = vmul.f32 %v3110, %v3127
  %v3136 = vmul.f32 %v3112, %v3128
  %v3137 = vmul.f32 %v3114, %v3129
  %v3138 = vadd.f32 %v3076, %v3134
  %v3139 = vadd.f32 %v3077, %v3135
  %v3140 = vadd.f32 %v3078, %v3136
  %v3141 = vadd.f32 %v3079, %v3137
  %3142 = vrot.lane.b32.xlu0 %v2967, 23
  %v3143 = vpop.permute.xlu0 %3142
  %3144 = vrot.lane.b32.xlu0 %v2968, 23
  %v3145 = vpop.permute.xlu0 %3144
  %3146 = vrot.lane.b32.xlu0 %v2969, 23
  %v3147 = vpop.permute.xlu0 %3146
  %3148 = vrot.lane.b32.xlu0 %v2970, 23
  %v3149 = vpop.permute.xlu0 %3148
  %v3150 = vsel %vm2708, %v3143, %v3145
  %v3151 = vsel %vm2708, %v3145, %v3147
  %v3152 = vsel %vm2708, %v3147, %v3149
  %v3157 = vmul.f32 %v3108, %v3143
  %v3158 = vmul.f32 %v3110, %v3150
  %v3159 = vmul.f32 %v3112, %v3151
  %v3160 = vmul.f32 %v3114, %v3152
  %v3161 = vadd.f32 %v3099, %v3157
  %v3162 = vadd.f32 %v3100, %v3158
  %v3163 = vadd.f32 %v3101, %v3159
  %v3164 = vadd.f32 %v3102, %v3160
  %v3165 = vsub.f32 %v2786, %v2935
  %v3166 = vsub.f32 %v2787, %v2936
  %v3167 = vsub.f32 %v2788, %v2937
  %v3168 = vsub.f32 %v2789, %v2938
  %v3169 = vmul.f32 %v3165, 1.442695
  %v3170 = vpow.pop %v3169
  %v3171 = vmul.f32 %v3166, 1.442695
  %v3172 = vpow.pop %v3171
  %v3173 = vmul.f32 %v3167, 1.442695
  %v3174 = vpow.pop %v3173
  %v3175 = vmul.f32 %v3168, 1.442695
  %v3176 = vpow.pop %v3175
  %v3177 = vadd.f32 %v3115, %v3170
  %v3178 = vadd.f32 %v3116, %v3172
  %v3179 = vadd.f32 %v3117, %v3174
  %v3180 = vadd.f32 %v3118, %v3176
  %3181 = vrot.lane.b32.xlu0 %v2963, 22
  %v3182 = vpop.permute.xlu0 %3181
  %3183 = vrot.lane.b32.xlu0 %v2964, 22
  %v3184 = vpop.permute.xlu0 %3183
  %3185 = vrot.lane.b32.xlu0 %v2965, 22
  %v3186 = vpop.permute.xlu0 %3185
  %3187 = vrot.lane.b32.xlu0 %v2966, 22
  %v3188 = vpop.permute.xlu0 %3187
  %v3189 = vsel %vm2755, %v3182, %v3184
  %v3190 = vsel %vm2755, %v3184, %v3186
  %v3191 = vsel %vm2755, %v3186, %v3188
  %v3196 = vmul.f32 %v3170, %v3182
  %v3197 = vmul.f32 %v3172, %v3189
  %v3198 = vmul.f32 %v3174, %v3190
  %v3199 = vmul.f32 %v3176, %v3191
  %v3200 = vadd.f32 %v3138, %v3196
  %v3201 = vadd.f32 %v3139, %v3197
  %v3202 = vadd.f32 %v3140, %v3198
  %v3203 = vadd.f32 %v3141, %v3199
  %3204 = vrot.lane.b32.xlu0 %v2967, 22
  %v3205 = vpop.permute.xlu0 %3204
  %3206 = vrot.lane.b32.xlu0 %v2968, 22
  %v3207 = vpop.permute.xlu0 %3206
  %3208 = vrot.lane.b32.xlu0 %v2969, 22
  %v3209 = vpop.permute.xlu0 %3208
  %3210 = vrot.lane.b32.xlu0 %v2970, 22
  %v3211 = vpop.permute.xlu0 %3210
  %v3212 = vsel %vm2755, %v3205, %v3207
  %v3213 = vsel %vm2755, %v3207, %v3209
  %v3214 = vsel %vm2755, %v3209, %v3211
  %v3219 = vmul.f32 %v3170, %v3205
  %v3220 = vmul.f32 %v3172, %v3212
  %v3221 = vmul.f32 %v3174, %v3213
  %v3222 = vmul.f32 %v3176, %v3214
  %v3223 = vadd.f32 %v3161, %v3219
  %v3224 = vadd.f32 %v3162, %v3220
  %v3225 = vadd.f32 %v3163, %v3221
  %v3226 = vadd.f32 %v3164, %v3222
  %v3227 = vsub.f32 %v2833, %v2935
  %v3228 = vsub.f32 %v2834, %v2936
  %v3229 = vsub.f32 %v2835, %v2937
  %v3230 = vsub.f32 %v2836, %v2938
  %v3231 = vmul.f32 %v3227, 1.442695
  %v3232 = vpow.pop %v3231
  %v3233 = vmul.f32 %v3228, 1.442695
  %v3234 = vpow.pop %v3233
  %v3235 = vmul.f32 %v3229, 1.442695
  %v3236 = vpow.pop %v3235
  %v3237 = vmul.f32 %v3230, 1.442695
  %v3238 = vpow.pop %v3237
  %v3239 = vadd.f32 %v3177, %v3232
  %v3240 = vadd.f32 %v3178, %v3234
  %v3241 = vadd.f32 %v3179, %v3236
  %v3242 = vadd.f32 %v3180, %v3238
  %3243 = vrot.lane.b32.xlu0 %v2963, 21
  %v3244 = vpop.permute.xlu0 %3243
  %3245 = vrot.lane.b32.xlu0 %v2964, 21
  %v3246 = vpop.permute.xlu0 %3245
  %3247 = vrot.lane.b32.xlu0 %v2965, 21
  %v3248 = vpop.permute.xlu0 %3247
  %3249 = vrot.lane.b32.xlu0 %v2966, 21
  %v3250 = vpop.permute.xlu0 %3249
  %v3251 = vsel %vm2802, %v3244, %v3246
  %v3252 = vsel %vm2802, %v3246, %v3248
  %v3253 = vsel %vm2802, %v3248, %v3250
  %v3258 = vmul.f32 %v3232, %v3244
  %v3259 = vmul.f32 %v3234, %v3251
  %v3260 = vmul.f32 %v3236, %v3252
  %v3261 = vmul.f32 %v3238, %v3253
  %v3262 = vadd.f32 %v3200, %v3258
  %v3263 = vadd.f32 %v3201, %v3259
  %v3264 = vadd.f32 %v3202, %v3260
  %v3265 = vadd.f32 %v3203, %v3261
  %3266 = vrot.lane.b32.xlu0 %v2967, 21
  %v3267 = vpop.permute.xlu0 %3266
  %3268 = vrot.lane.b32.xlu0 %v2968, 21
  %v3269 = vpop.permute.xlu0 %3268
  %3270 = vrot.lane.b32.xlu0 %v2969, 21
  %v3271 = vpop.permute.xlu0 %3270
  %3272 = vrot.lane.b32.xlu0 %v2970, 21
  %v3273 = vpop.permute.xlu0 %3272
  %v3274 = vsel %vm2802, %v3267, %v3269
  %v3275 = vsel %vm2802, %v3269, %v3271
  %v3276 = vsel %vm2802, %v3271, %v3273
  %v3281 = vmul.f32 %v3232, %v3267
  %v3282 = vmul.f32 %v3234, %v3274
  %v3283 = vmul.f32 %v3236, %v3275
  %v3284 = vmul.f32 %v3238, %v3276
  %v3285 = vadd.f32 %v3223, %v3281
  %v3286 = vadd.f32 %v3224, %v3282
  %v3287 = vadd.f32 %v3225, %v3283
  %v3288 = vadd.f32 %v3226, %v3284
  %v3289 = vsub.f32 %v2880, %v2935
  %v3290 = vsub.f32 %v2881, %v2936
  %v3291 = vsub.f32 %v2882, %v2937
  %v3292 = vsub.f32 %v2883, %v2938
  %v3293 = vmul.f32 %v3289, 1.442695
  %v3294 = vpow.pop %v3293
  %v3295 = vmul.f32 %v3290, 1.442695
  %v3296 = vpow.pop %v3295
  %v3297 = vmul.f32 %v3291, 1.442695
  %v3298 = vpow.pop %v3297
  %v3299 = vmul.f32 %v3292, 1.442695
  %v3300 = vpow.pop %v3299
  %v3301 = vadd.f32 %v3239, %v3294
  %v3302 = vadd.f32 %v3240, %v3296
  %v3303 = vadd.f32 %v3241, %v3298
  %v3304 = vadd.f32 %v3242, %v3300
  %3305 = vrot.lane.b32.xlu0 %v2963, 20
  %v3306 = vpop.permute.xlu0 %3305
  %3307 = vrot.lane.b32.xlu0 %v2964, 20
  %v3308 = vpop.permute.xlu0 %3307
  %3309 = vrot.lane.b32.xlu0 %v2965, 20
  %v3310 = vpop.permute.xlu0 %3309
  %3311 = vrot.lane.b32.xlu0 %v2966, 20
  %v3312 = vpop.permute.xlu0 %3311
  %v3313 = vsel %vm2849, %v3306, %v3308
  %v3314 = vsel %vm2849, %v3308, %v3310
  %v3315 = vsel %vm2849, %v3310, %v3312
  %v3320 = vmul.f32 %v3294, %v3306
  %v3321 = vmul.f32 %v3296, %v3313
  %v3322 = vmul.f32 %v3298, %v3314
  %v3323 = vmul.f32 %v3300, %v3315
  %v3324 = vadd.f32 %v3262, %v3320
  %v3325 = vadd.f32 %v3263, %v3321
  %v3326 = vadd.f32 %v3264, %v3322
  %v3327 = vadd.f32 %v3265, %v3323
  %3328 = vrot.lane.b32.xlu0 %v2967, 20
  %v3329 = vpop.permute.xlu0 %3328
  %3330 = vrot.lane.b32.xlu0 %v2968, 20
  %v3331 = vpop.permute.xlu0 %3330
  %3332 = vrot.lane.b32.xlu0 %v2969, 20
  %v3333 = vpop.permute.xlu0 %3332
  %3334 = vrot.lane.b32.xlu0 %v2970, 20
  %v3335 = vpop.permute.xlu0 %3334
  %v3336 = vsel %vm2849, %v3329, %v3331
  %v3337 = vsel %vm2849, %v3331, %v3333
  %v3338 = vsel %vm2849, %v3333, %v3335
  %v3343 = vmul.f32 %v3294, %v3329
  %v3344 = vmul.f32 %v3296, %v3336
  %v3345 = vmul.f32 %v3298, %v3337
  %v3346 = vmul.f32 %v3300, %v3338
  %v3347 = vadd.f32 %v3285, %v3343
  %v3348 = vadd.f32 %v3286, %v3344
  %v3349 = vadd.f32 %v3287, %v3345
  %v3350 = vadd.f32 %v3288, %v3346
  %v3351 = vsub.f32 %v2927, %v2935
  %v3352 = vsub.f32 %v2928, %v2936
  %v3353 = vsub.f32 %v2929, %v2937
  %v3354 = vsub.f32 %v2930, %v2938
  %v3355 = vmul.f32 %v3351, 1.442695
  %v3356 = vpow.pop %v3355
  %v3357 = vmul.f32 %v3352, 1.442695
  %v3358 = vpow.pop %v3357
  %v3359 = vmul.f32 %v3353, 1.442695
  %v3360 = vpow.pop %v3359
  %v3361 = vmul.f32 %v3354, 1.442695
  %v3362 = vpow.pop %v3361
  %v3363 = vadd.f32 %v3301, %v3356
  %v3364 = vadd.f32 %v3302, %v3358
  %v3365 = vadd.f32 %v3303, %v3360
  %v3366 = vadd.f32 %v3304, %v3362
  %3367 = vrot.lane.b32.xlu0 %v2963, 19
  %v3368 = vpop.permute.xlu0 %3367
  %3369 = vrot.lane.b32.xlu0 %v2964, 19
  %v3370 = vpop.permute.xlu0 %3369
  %3371 = vrot.lane.b32.xlu0 %v2965, 19
  %v3372 = vpop.permute.xlu0 %3371
  %3373 = vrot.lane.b32.xlu0 %v2966, 19
  %v3374 = vpop.permute.xlu0 %3373
  %v3375 = vsel %vm2896, %v3368, %v3370
  %v3376 = vsel %vm2896, %v3370, %v3372
  %v3377 = vsel %vm2896, %v3372, %v3374
  %v3382 = vmul.f32 %v3356, %v3368
  %v3383 = vmul.f32 %v3358, %v3375
  %v3384 = vmul.f32 %v3360, %v3376
  %v3385 = vmul.f32 %v3362, %v3377
  %v3386 = vadd.f32 %v3324, %v3382
  %v3387 = vadd.f32 %v3325, %v3383
  %v3388 = vadd.f32 %v3326, %v3384
  %v3389 = vadd.f32 %v3327, %v3385
  %3390 = vrot.lane.b32.xlu0 %v2967, 19
  %v3391 = vpop.permute.xlu0 %3390
  %3392 = vrot.lane.b32.xlu0 %v2968, 19
  %v3393 = vpop.permute.xlu0 %3392
  %3394 = vrot.lane.b32.xlu0 %v2969, 19
  %v3395 = vpop.permute.xlu0 %3394
  %3396 = vrot.lane.b32.xlu0 %v2970, 19
  %v3397 = vpop.permute.xlu0 %3396
  %v3398 = vsel %vm2896, %v3391, %v3393
  %v3399 = vsel %vm2896, %v3393, %v3395
  %v3400 = vsel %vm2896, %v3395, %v3397
  %v3405 = vmul.f32 %v3356, %v3391
  %v3406 = vmul.f32 %v3358, %v3398
  %v3407 = vmul.f32 %v3360, %v3399
  %v3408 = vmul.f32 %v3362, %v3400
  %v3409 = vadd.f32 %v3347, %v3405
  %v3410 = vadd.f32 %v3348, %v3406
  %v3411 = vadd.f32 %v3349, %v3407
  %v3412 = vadd.f32 %v3350, %v3408
  %3413 = vrot.lane.b32.xlu0 %v2594, 3
  %v3414 = vpop.permute.xlu0 %3413
  %3415 = vrot.lane.b32.xlu0 %v2595, 3
  %v3416 = vpop.permute.xlu0 %3415
  %3417 = vrot.lane.b32.xlu0 %v2596, 3
  %v3418 = vpop.permute.xlu0 %3417
  %3419 = vrot.lane.b32.xlu0 %v2597, 3
  %v3420 = vpop.permute.xlu0 %3419
  %vm3421 = vcmask 23552
  %v3422 = vsel %vm3421, %v3414, %v3416
  %v3423 = vsel %vm3421, %v3416, %v3418
  %v3424 = vsel %vm3421, %v3418, %v3420
  %v3429 = vmul.f32 %v412, %v3414
  %v3430 = vmul.f32 %v481, %v3422
  %v3431 = vmul.f32 %v550, %v3423
  %v3432 = vmul.f32 %v619, %v3424
  %3433 = vrot.lane.b32.xlu0 %v2598, 3
  %v3434 = vpop.permute.xlu0 %3433
  %3435 = vrot.lane.b32.xlu0 %v2599, 3
  %v3436 = vpop.permute.xlu0 %3435
  %3437 = vrot.lane.b32.xlu0 %v2600, 3
  %v3438 = vpop.permute.xlu0 %3437
  %3439 = vrot.lane.b32.xlu0 %v2601, 3
  %v3440 = vpop.permute.xlu0 %3439
  %v3441 = vsel %vm3421, %v3434, %v3436
  %v3442 = vsel %vm3421, %v3436, %v3438
  %v3443 = vsel %vm3421, %v3438, %v3440
  %v3448 = vmul.f32 %v415, %v3434
  %v3449 = vmul.f32 %v484, %v3441
  %v3450 = vmul.f32 %v553, %v3442
  %v3451 = vmul.f32 %v622, %v3443
  %v3452 = vadd.f32 %v3429, %v3448
  %v3453 = vadd.f32 %v3430, %v3449
  %v3454 = vadd.f32 %v3431, %v3450
  %v3455 = vadd.f32 %v3432, %v3451
  %3456 = vrot.lane.b32.xlu0 %v2594, 2
  %v3457 = vpop.permute.xlu0 %3456
  %3458 = vrot.lane.b32.xlu0 %v2595, 2
  %v3459 = vpop.permute.xlu0 %3458
  %3460 = vrot.lane.b32.xlu0 %v2596, 2
  %v3461 = vpop.permute.xlu0 %3460
  %3462 = vrot.lane.b32.xlu0 %v2597, 2
  %v3463 = vpop.permute.xlu0 %3462
  %vm3464 = vcmask 15360
  %v3465 = vsel %vm3464, %v3457, %v3459
  %v3466 = vsel %vm3464, %v3459, %v3461
  %v3467 = vsel %vm3464, %v3461, %v3463
  %v3472 = vmul.f32 %v412, %v3457
  %v3473 = vmul.f32 %v481, %v3465
  %v3474 = vmul.f32 %v550, %v3466
  %v3475 = vmul.f32 %v619, %v3467
  %3476 = vrot.lane.b32.xlu0 %v2598, 2
  %v3477 = vpop.permute.xlu0 %3476
  %3478 = vrot.lane.b32.xlu0 %v2599, 2
  %v3479 = vpop.permute.xlu0 %3478
  %3480 = vrot.lane.b32.xlu0 %v2600, 2
  %v3481 = vpop.permute.xlu0 %3480
  %3482 = vrot.lane.b32.xlu0 %v2601, 2
  %v3483 = vpop.permute.xlu0 %3482
  %v3484 = vsel %vm3464, %v3477, %v3479
  %v3485 = vsel %vm3464, %v3479, %v3481
  %v3486 = vsel %vm3464, %v3481, %v3483
  %v3491 = vmul.f32 %v415, %v3477
  %v3492 = vmul.f32 %v484, %v3484
  %v3493 = vmul.f32 %v553, %v3485
  %v3494 = vmul.f32 %v622, %v3486
  %v3495 = vadd.f32 %v3472, %v3491
  %v3496 = vadd.f32 %v3473, %v3492
  %v3497 = vadd.f32 %v3474, %v3493
  %v3498 = vadd.f32 %v3475, %v3494
  %v3499 = vmax.f32 %v3452, %v3495
  %v3500 = vmax.f32 %v3453, %v3496
  %v3501 = vmax.f32 %v3454, %v3497
  %v3502 = vmax.f32 %v3455, %v3498
  %3503 = vrot.lane.b32.xlu0 %v2594, 1
  %v3504 = vpop.permute.xlu0 %3503
  %3505 = vrot.lane.b32.xlu0 %v2595, 1
  %v3506 = vpop.permute.xlu0 %3505
  %3507 = vrot.lane.b32.xlu0 %v2596, 1
  %v3508 = vpop.permute.xlu0 %3507
  %3509 = vrot.lane.b32.xlu0 %v2597, 1
  %v3510 = vpop.permute.xlu0 %3509
  %vm3511 = vcmask 7168
  %v3512 = vsel %vm3511, %v3504, %v3506
  %v3513 = vsel %vm3511, %v3506, %v3508
  %v3514 = vsel %vm3511, %v3508, %v3510
  %v3519 = vmul.f32 %v412, %v3504
  %v3520 = vmul.f32 %v481, %v3512
  %v3521 = vmul.f32 %v550, %v3513
  %v3522 = vmul.f32 %v619, %v3514
  %3523 = vrot.lane.b32.xlu0 %v2598, 1
  %v3524 = vpop.permute.xlu0 %3523
  %3525 = vrot.lane.b32.xlu0 %v2599, 1
  %v3526 = vpop.permute.xlu0 %3525
  %3527 = vrot.lane.b32.xlu0 %v2600, 1
  %v3528 = vpop.permute.xlu0 %3527
  %3529 = vrot.lane.b32.xlu0 %v2601, 1
  %v3530 = vpop.permute.xlu0 %3529
  %v3531 = vsel %vm3511, %v3524, %v3526
  %v3532 = vsel %vm3511, %v3526, %v3528
  %v3533 = vsel %vm3511, %v3528, %v3530
  %v3538 = vmul.f32 %v415, %v3524
  %v3539 = vmul.f32 %v484, %v3531
  %v3540 = vmul.f32 %v553, %v3532
  %v3541 = vmul.f32 %v622, %v3533
  %v3542 = vadd.f32 %v3519, %v3538
  %v3543 = vadd.f32 %v3520, %v3539
  %v3544 = vadd.f32 %v3521, %v3540
  %v3545 = vadd.f32 %v3522, %v3541
  %v3546 = vmax.f32 %v3499, %v3542
  %v3547 = vmax.f32 %v3500, %v3543
  %v3548 = vmax.f32 %v3501, %v3544
  %v3549 = vmax.f32 %v3502, %v3545
  %v3550 = vmul.f32 %v412, %v2594
  %v3551 = vmul.f32 %v481, %v2595
  %v3552 = vmul.f32 %v550, %v2596
  %v3553 = vmul.f32 %v619, %v2597
  %v3554 = vmul.f32 %v415, %v2598
  %v3555 = vmul.f32 %v484, %v2599
  %v3556 = vmul.f32 %v553, %v2600
  %v3557 = vmul.f32 %v622, %v2601
  %v3558 = vadd.f32 %v3550, %v3554
  %v3559 = vadd.f32 %v3551, %v3555
  %v3560 = vadd.f32 %v3552, %v3556
  %v3561 = vadd.f32 %v3553, %v3557
  %v3562 = vmax.f32 %v3546, %v3558
  %v3563 = vmax.f32 %v3547, %v3559
  %v3564 = vmax.f32 %v3548, %v3560
  %v3565 = vmax.f32 %v3549, %v3561
  %3566 = vrot.lane.b32.xlu0 %v2594, 127
  %v3567 = vpop.permute.xlu0 %3566
  %3568 = vrot.lane.b32.xlu0 %v2595, 127
  %v3569 = vpop.permute.xlu0 %3568
  %3570 = vrot.lane.b32.xlu0 %v2596, 127
  %v3571 = vpop.permute.xlu0 %3570
  %3572 = vrot.lane.b32.xlu0 %v2597, 127
  %v3573 = vpop.permute.xlu0 %3572
  %vm3574 = vcmask 1039360
  %v3575 = vsel %vm3574, %v3567, %v3569
  %v3576 = vsel %vm3574, %v3569, %v3571
  %v3577 = vsel %vm3574, %v3571, %v3573
  %v3582 = vmul.f32 %v412, %v3575
  %v3583 = vmul.f32 %v481, %v3576
  %v3584 = vmul.f32 %v550, %v3577
  %v3585 = vmul.f32 %v619, %v3573
  %3586 = vrot.lane.b32.xlu0 %v2598, 127
  %v3587 = vpop.permute.xlu0 %3586
  %3588 = vrot.lane.b32.xlu0 %v2599, 127
  %v3589 = vpop.permute.xlu0 %3588
  %3590 = vrot.lane.b32.xlu0 %v2600, 127
  %v3591 = vpop.permute.xlu0 %3590
  %3592 = vrot.lane.b32.xlu0 %v2601, 127
  %v3593 = vpop.permute.xlu0 %3592
  %v3594 = vsel %vm3574, %v3587, %v3589
  %v3595 = vsel %vm3574, %v3589, %v3591
  %v3596 = vsel %vm3574, %v3591, %v3593
  %v3601 = vmul.f32 %v415, %v3594
  %v3602 = vmul.f32 %v484, %v3595
  %v3603 = vmul.f32 %v553, %v3596
  %v3604 = vmul.f32 %v622, %v3593
  %v3605 = vadd.f32 %v3582, %v3601
  %v3606 = vadd.f32 %v3583, %v3602
  %v3607 = vadd.f32 %v3584, %v3603
  %v3608 = vadd.f32 %v3585, %v3604
  %v3609 = vmax.f32 %v3562, %v3605
  %v3610 = vmax.f32 %v3563, %v3606
  %v3611 = vmax.f32 %v3564, %v3607
  %v3612 = vmax.f32 %v3565, %v3608
  %3613 = vrot.lane.b32.xlu0 %v2594, 126
  %v3614 = vpop.permute.xlu0 %3613
  %3615 = vrot.lane.b32.xlu0 %v2595, 126
  %v3616 = vpop.permute.xlu0 %3615
  %3617 = vrot.lane.b32.xlu0 %v2596, 126
  %v3618 = vpop.permute.xlu0 %3617
  %3619 = vrot.lane.b32.xlu0 %v2597, 126
  %v3620 = vpop.permute.xlu0 %3619
  %vm3621 = vcmask 1031168
  %v3622 = vsel %vm3621, %v3614, %v3616
  %v3623 = vsel %vm3621, %v3616, %v3618
  %v3624 = vsel %vm3621, %v3618, %v3620
  %v3629 = vmul.f32 %v412, %v3622
  %v3630 = vmul.f32 %v481, %v3623
  %v3631 = vmul.f32 %v550, %v3624
  %v3632 = vmul.f32 %v619, %v3620
  %3633 = vrot.lane.b32.xlu0 %v2598, 126
  %v3634 = vpop.permute.xlu0 %3633
  %3635 = vrot.lane.b32.xlu0 %v2599, 126
  %v3636 = vpop.permute.xlu0 %3635
  %3637 = vrot.lane.b32.xlu0 %v2600, 126
  %v3638 = vpop.permute.xlu0 %3637
  %3639 = vrot.lane.b32.xlu0 %v2601, 126
  %v3640 = vpop.permute.xlu0 %3639
  %v3641 = vsel %vm3621, %v3634, %v3636
  %v3642 = vsel %vm3621, %v3636, %v3638
  %v3643 = vsel %vm3621, %v3638, %v3640
  %v3648 = vmul.f32 %v415, %v3641
  %v3649 = vmul.f32 %v484, %v3642
  %v3650 = vmul.f32 %v553, %v3643
  %v3651 = vmul.f32 %v622, %v3640
  %v3652 = vadd.f32 %v3629, %v3648
  %v3653 = vadd.f32 %v3630, %v3649
  %v3654 = vadd.f32 %v3631, %v3650
  %v3655 = vadd.f32 %v3632, %v3651
  %v3656 = vmax.f32 %v3609, %v3652
  %v3657 = vmax.f32 %v3610, %v3653
  %v3658 = vmax.f32 %v3611, %v3654
  %v3659 = vmax.f32 %v3612, %v3655
  %3660 = vrot.lane.b32.xlu0 %v2594, 125
  %v3661 = vpop.permute.xlu0 %3660
  %3662 = vrot.lane.b32.xlu0 %v2595, 125
  %v3663 = vpop.permute.xlu0 %3662
  %3664 = vrot.lane.b32.xlu0 %v2596, 125
  %v3665 = vpop.permute.xlu0 %3664
  %3666 = vrot.lane.b32.xlu0 %v2597, 125
  %v3667 = vpop.permute.xlu0 %3666
  %vm3668 = vcmask 1022976
  %v3669 = vsel %vm3668, %v3661, %v3663
  %v3670 = vsel %vm3668, %v3663, %v3665
  %v3671 = vsel %vm3668, %v3665, %v3667
  %v3676 = vmul.f32 %v412, %v3669
  %v3677 = vmul.f32 %v481, %v3670
  %v3678 = vmul.f32 %v550, %v3671
  %v3679 = vmul.f32 %v619, %v3667
  %3680 = vrot.lane.b32.xlu0 %v2598, 125
  %v3681 = vpop.permute.xlu0 %3680
  %3682 = vrot.lane.b32.xlu0 %v2599, 125
  %v3683 = vpop.permute.xlu0 %3682
  %3684 = vrot.lane.b32.xlu0 %v2600, 125
  %v3685 = vpop.permute.xlu0 %3684
  %3686 = vrot.lane.b32.xlu0 %v2601, 125
  %v3687 = vpop.permute.xlu0 %3686
  %v3688 = vsel %vm3668, %v3681, %v3683
  %v3689 = vsel %vm3668, %v3683, %v3685
  %v3690 = vsel %vm3668, %v3685, %v3687
  %v3695 = vmul.f32 %v415, %v3688
  %v3696 = vmul.f32 %v484, %v3689
  %v3697 = vmul.f32 %v553, %v3690
  %v3698 = vmul.f32 %v622, %v3687
  %v3699 = vadd.f32 %v3676, %v3695
  %v3700 = vadd.f32 %v3677, %v3696
  %v3701 = vadd.f32 %v3678, %v3697
  %v3702 = vadd.f32 %v3679, %v3698
  %v3703 = vmax.f32 %v3656, %v3699
  %v3704 = vmax.f32 %v3657, %v3700
  %v3705 = vmax.f32 %v3658, %v3701
  %v3706 = vmax.f32 %v3659, %v3702
  %v3707 = vmax.f32 %v2935, %v3703
  %v3708 = vmax.f32 %v2936, %v3704
  %v3709 = vmax.f32 %v2937, %v3705
  %v3710 = vmax.f32 %v2938, %v3706
  %v3711 = vsub.f32 %v2935, %v3707
  %v3712 = vsub.f32 %v2936, %v3708
  %v3713 = vsub.f32 %v2937, %v3709
  %v3714 = vsub.f32 %v2938, %v3710
  %v3715 = vmul.f32 %v3711, 1.442695
  %v3716 = vpow.pop %v3715
  %v3717 = vmul.f32 %v3712, 1.442695
  %v3718 = vpow.pop %v3717
  %v3719 = vmul.f32 %v3713, 1.442695
  %v3720 = vpow.pop %v3719
  %v3721 = vmul.f32 %v3714, 1.442695
  %v3722 = vpow.pop %v3721
  %v3723 = vmul.f32 %v3716, %v3363
  %v3724 = vmul.f32 %v3718, %v3364
  %v3725 = vmul.f32 %v3720, %v3365
  %v3726 = vmul.f32 %v3722, %v3366
  %v3727 = vmul.f32 %v3716, %v3386
  %v3728 = vmul.f32 %v3718, %v3387
  %v3729 = vmul.f32 %v3720, %v3388
  %v3730 = vmul.f32 %v3722, %v3389
  %v3731 = vmul.f32 %v3716, %v3409
  %v3732 = vmul.f32 %v3718, %v3410
  %v3733 = vmul.f32 %v3720, %v3411
  %v3734 = vmul.f32 %v3722, %v3412
  %v3735 = vsub.f32 %v3452, %v3707
  %v3736 = vsub.f32 %v3453, %v3708
  %v3737 = vsub.f32 %v3454, %v3709
  %v3738 = vsub.f32 %v3455, %v3710
  %v3739 = vmul.f32 %v3735, 1.442695
  %v3740 = vpow.pop %v3739
  %v3741 = vmul.f32 %v3736, 1.442695
  %v3742 = vpow.pop %v3741
  %v3743 = vmul.f32 %v3737, 1.442695
  %v3744 = vpow.pop %v3743
  %v3745 = vmul.f32 %v3738, 1.442695
  %v3746 = vpow.pop %v3745
  %v3747 = vadd.f32 %v3723, %v3740
  %v3748 = vadd.f32 %v3724, %v3742
  %v3749 = vadd.f32 %v3725, %v3744
  %v3750 = vadd.f32 %v3726, %v3746
  %3751 = vrot.lane.b32.xlu0 %v2963, 3
  %v3752 = vpop.permute.xlu0 %3751
  %3753 = vrot.lane.b32.xlu0 %v2964, 3
  %v3754 = vpop.permute.xlu0 %3753
  %3755 = vrot.lane.b32.xlu0 %v2965, 3
  %v3756 = vpop.permute.xlu0 %3755
  %3757 = vrot.lane.b32.xlu0 %v2966, 3
  %v3758 = vpop.permute.xlu0 %3757
  %v3759 = vsel %vm3421, %v3752, %v3754
  %v3760 = vsel %vm3421, %v3754, %v3756
  %v3761 = vsel %vm3421, %v3756, %v3758
  %v3766 = vmul.f32 %v3740, %v3752
  %v3767 = vmul.f32 %v3742, %v3759
  %v3768 = vmul.f32 %v3744, %v3760
  %v3769 = vmul.f32 %v3746, %v3761
  %v3770 = vadd.f32 %v3727, %v3766
  %v3771 = vadd.f32 %v3728, %v3767
  %v3772 = vadd.f32 %v3729, %v3768
  %v3773 = vadd.f32 %v3730, %v3769
  %3774 = vrot.lane.b32.xlu0 %v2967, 3
  %v3775 = vpop.permute.xlu0 %3774
  %3776 = vrot.lane.b32.xlu0 %v2968, 3
  %v3777 = vpop.permute.xlu0 %3776
  %3778 = vrot.lane.b32.xlu0 %v2969, 3
  %v3779 = vpop.permute.xlu0 %3778
  %3780 = vrot.lane.b32.xlu0 %v2970, 3
  %v3781 = vpop.permute.xlu0 %3780
  %v3782 = vsel %vm3421, %v3775, %v3777
  %v3783 = vsel %vm3421, %v3777, %v3779
  %v3784 = vsel %vm3421, %v3779, %v3781
  %v3789 = vmul.f32 %v3740, %v3775
  %v3790 = vmul.f32 %v3742, %v3782
  %v3791 = vmul.f32 %v3744, %v3783
  %v3792 = vmul.f32 %v3746, %v3784
  %v3793 = vadd.f32 %v3731, %v3789
  %v3794 = vadd.f32 %v3732, %v3790
  %v3795 = vadd.f32 %v3733, %v3791
  %v3796 = vadd.f32 %v3734, %v3792
  %v3797 = vsub.f32 %v3495, %v3707
  %v3798 = vsub.f32 %v3496, %v3708
  %v3799 = vsub.f32 %v3497, %v3709
  %v3800 = vsub.f32 %v3498, %v3710
  %v3801 = vmul.f32 %v3797, 1.442695
  %v3802 = vpow.pop %v3801
  %v3803 = vmul.f32 %v3798, 1.442695
  %v3804 = vpow.pop %v3803
  %v3805 = vmul.f32 %v3799, 1.442695
  %v3806 = vpow.pop %v3805
  %v3807 = vmul.f32 %v3800, 1.442695
  %v3808 = vpow.pop %v3807
  %v3809 = vadd.f32 %v3747, %v3802
  %v3810 = vadd.f32 %v3748, %v3804
  %v3811 = vadd.f32 %v3749, %v3806
  %v3812 = vadd.f32 %v3750, %v3808
  %3813 = vrot.lane.b32.xlu0 %v2963, 2
  %v3814 = vpop.permute.xlu0 %3813
  %3815 = vrot.lane.b32.xlu0 %v2964, 2
  %v3816 = vpop.permute.xlu0 %3815
  %3817 = vrot.lane.b32.xlu0 %v2965, 2
  %v3818 = vpop.permute.xlu0 %3817
  %3819 = vrot.lane.b32.xlu0 %v2966, 2
  %v3820 = vpop.permute.xlu0 %3819
  %v3821 = vsel %vm3464, %v3814, %v3816
  %v3822 = vsel %vm3464, %v3816, %v3818
  %v3823 = vsel %vm3464, %v3818, %v3820
  %v3828 = vmul.f32 %v3802, %v3814
  %v3829 = vmul.f32 %v3804, %v3821
  %v3830 = vmul.f32 %v3806, %v3822
  %v3831 = vmul.f32 %v3808, %v3823
  %v3832 = vadd.f32 %v3770, %v3828
  %v3833 = vadd.f32 %v3771, %v3829
  %v3834 = vadd.f32 %v3772, %v3830
  %v3835 = vadd.f32 %v3773, %v3831
  %3836 = vrot.lane.b32.xlu0 %v2967, 2
  %v3837 = vpop.permute.xlu0 %3836
  %3838 = vrot.lane.b32.xlu0 %v2968, 2
  %v3839 = vpop.permute.xlu0 %3838
  %3840 = vrot.lane.b32.xlu0 %v2969, 2
  %v3841 = vpop.permute.xlu0 %3840
  %3842 = vrot.lane.b32.xlu0 %v2970, 2
  %v3843 = vpop.permute.xlu0 %3842
  %v3844 = vsel %vm3464, %v3837, %v3839
  %v3845 = vsel %vm3464, %v3839, %v3841
  %v3846 = vsel %vm3464, %v3841, %v3843
  %v3851 = vmul.f32 %v3802, %v3837
  %v3852 = vmul.f32 %v3804, %v3844
  %v3853 = vmul.f32 %v3806, %v3845
  %v3854 = vmul.f32 %v3808, %v3846
  %v3855 = vadd.f32 %v3793, %v3851
  %v3856 = vadd.f32 %v3794, %v3852
  %v3857 = vadd.f32 %v3795, %v3853
  %v3858 = vadd.f32 %v3796, %v3854
  %v3859 = vsub.f32 %v3542, %v3707
  %v3860 = vsub.f32 %v3543, %v3708
  %v3861 = vsub.f32 %v3544, %v3709
  %v3862 = vsub.f32 %v3545, %v3710
  %v3863 = vmul.f32 %v3859, 1.442695
  %v3864 = vpow.pop %v3863
  %v3865 = vmul.f32 %v3860, 1.442695
  %v3866 = vpow.pop %v3865
  %v3867 = vmul.f32 %v3861, 1.442695
  %v3868 = vpow.pop %v3867
  %v3869 = vmul.f32 %v3862, 1.442695
  %v3870 = vpow.pop %v3869
  %v3871 = vadd.f32 %v3809, %v3864
  %v3872 = vadd.f32 %v3810, %v3866
  %v3873 = vadd.f32 %v3811, %v3868
  %v3874 = vadd.f32 %v3812, %v3870
  %3875 = vrot.lane.b32.xlu0 %v2963, 1
  %v3876 = vpop.permute.xlu0 %3875
  %3877 = vrot.lane.b32.xlu0 %v2964, 1
  %v3878 = vpop.permute.xlu0 %3877
  %3879 = vrot.lane.b32.xlu0 %v2965, 1
  %v3880 = vpop.permute.xlu0 %3879
  %3881 = vrot.lane.b32.xlu0 %v2966, 1
  %v3882 = vpop.permute.xlu0 %3881
  %v3883 = vsel %vm3511, %v3876, %v3878
  %v3884 = vsel %vm3511, %v3878, %v3880
  %v3885 = vsel %vm3511, %v3880, %v3882
  %v3890 = vmul.f32 %v3864, %v3876
  %v3891 = vmul.f32 %v3866, %v3883
  %v3892 = vmul.f32 %v3868, %v3884
  %v3893 = vmul.f32 %v3870, %v3885
  %v3894 = vadd.f32 %v3832, %v3890
  %v3895 = vadd.f32 %v3833, %v3891
  %v3896 = vadd.f32 %v3834, %v3892
  %v3897 = vadd.f32 %v3835, %v3893
  %3898 = vrot.lane.b32.xlu0 %v2967, 1
  %v3899 = vpop.permute.xlu0 %3898
  %3900 = vrot.lane.b32.xlu0 %v2968, 1
  %v3901 = vpop.permute.xlu0 %3900
  %3902 = vrot.lane.b32.xlu0 %v2969, 1
  %v3903 = vpop.permute.xlu0 %3902
  %3904 = vrot.lane.b32.xlu0 %v2970, 1
  %v3905 = vpop.permute.xlu0 %3904
  %v3906 = vsel %vm3511, %v3899, %v3901
  %v3907 = vsel %vm3511, %v3901, %v3903
  %v3908 = vsel %vm3511, %v3903, %v3905
  %v3913 = vmul.f32 %v3864, %v3899
  %v3914 = vmul.f32 %v3866, %v3906
  %v3915 = vmul.f32 %v3868, %v3907
  %v3916 = vmul.f32 %v3870, %v3908
  %v3917 = vadd.f32 %v3855, %v3913
  %v3918 = vadd.f32 %v3856, %v3914
  %v3919 = vadd.f32 %v3857, %v3915
  %v3920 = vadd.f32 %v3858, %v3916
  %v3921 = vsub.f32 %v3558, %v3707
  %v3922 = vsub.f32 %v3559, %v3708
  %v3923 = vsub.f32 %v3560, %v3709
  %v3924 = vsub.f32 %v3561, %v3710
  %v3925 = vmul.f32 %v3921, 1.442695
  %v3926 = vpow.pop %v3925
  %v3927 = vmul.f32 %v3922, 1.442695
  %v3928 = vpow.pop %v3927
  %v3929 = vmul.f32 %v3923, 1.442695
  %v3930 = vpow.pop %v3929
  %v3931 = vmul.f32 %v3924, 1.442695
  %v3932 = vpow.pop %v3931
  %v3933 = vadd.f32 %v3871, %v3926
  %v3934 = vadd.f32 %v3872, %v3928
  %v3935 = vadd.f32 %v3873, %v3930
  %v3936 = vadd.f32 %v3874, %v3932
  %v3937 = vmul.f32 %v3926, %v2963
  %v3938 = vmul.f32 %v3928, %v2964
  %v3939 = vmul.f32 %v3930, %v2965
  %v3940 = vmul.f32 %v3932, %v2966
  %v3941 = vadd.f32 %v3894, %v3937
  %v3942 = vadd.f32 %v3895, %v3938
  %v3943 = vadd.f32 %v3896, %v3939
  %v3944 = vadd.f32 %v3897, %v3940
  %v3945 = vmul.f32 %v3926, %v2967
  %v3946 = vmul.f32 %v3928, %v2968
  %v3947 = vmul.f32 %v3930, %v2969
  %v3948 = vmul.f32 %v3932, %v2970
  %v3949 = vadd.f32 %v3917, %v3945
  %v3950 = vadd.f32 %v3918, %v3946
  %v3951 = vadd.f32 %v3919, %v3947
  %v3952 = vadd.f32 %v3920, %v3948
  %v3953 = vsub.f32 %v3605, %v3707
  %v3954 = vsub.f32 %v3606, %v3708
  %v3955 = vsub.f32 %v3607, %v3709
  %v3956 = vsub.f32 %v3608, %v3710
  %v3957 = vmul.f32 %v3953, 1.442695
  %v3958 = vpow.pop %v3957
  %v3959 = vmul.f32 %v3954, 1.442695
  %v3960 = vpow.pop %v3959
  %v3961 = vmul.f32 %v3955, 1.442695
  %v3962 = vpow.pop %v3961
  %v3963 = vmul.f32 %v3956, 1.442695
  %v3964 = vpow.pop %v3963
  %v3965 = vadd.f32 %v3933, %v3958
  %v3966 = vadd.f32 %v3934, %v3960
  %v3967 = vadd.f32 %v3935, %v3962
  %v3968 = vadd.f32 %v3936, %v3964
  %3969 = vrot.lane.b32.xlu0 %v2963, 127
  %v3970 = vpop.permute.xlu0 %3969
  %3971 = vrot.lane.b32.xlu0 %v2964, 127
  %v3972 = vpop.permute.xlu0 %3971
  %3973 = vrot.lane.b32.xlu0 %v2965, 127
  %v3974 = vpop.permute.xlu0 %3973
  %3975 = vrot.lane.b32.xlu0 %v2966, 127
  %v3976 = vpop.permute.xlu0 %3975
  %v3977 = vsel %vm3574, %v3970, %v3972
  %v3978 = vsel %vm3574, %v3972, %v3974
  %v3979 = vsel %vm3574, %v3974, %v3976
  %v3984 = vmul.f32 %v3958, %v3977
  %v3985 = vmul.f32 %v3960, %v3978
  %v3986 = vmul.f32 %v3962, %v3979
  %v3987 = vmul.f32 %v3964, %v3976
  %v3988 = vadd.f32 %v3941, %v3984
  %v3989 = vadd.f32 %v3942, %v3985
  %v3990 = vadd.f32 %v3943, %v3986
  %v3991 = vadd.f32 %v3944, %v3987
  %3992 = vrot.lane.b32.xlu0 %v2967, 127
  %v3993 = vpop.permute.xlu0 %3992
  %3994 = vrot.lane.b32.xlu0 %v2968, 127
  %v3995 = vpop.permute.xlu0 %3994
  %3996 = vrot.lane.b32.xlu0 %v2969, 127
  %v3997 = vpop.permute.xlu0 %3996
  %3998 = vrot.lane.b32.xlu0 %v2970, 127
  %v3999 = vpop.permute.xlu0 %3998
  %v4000 = vsel %vm3574, %v3993, %v3995
  %v4001 = vsel %vm3574, %v3995, %v3997
  %v4002 = vsel %vm3574, %v3997, %v3999
  %v4007 = vmul.f32 %v3958, %v4000
  %v4008 = vmul.f32 %v3960, %v4001
  %v4009 = vmul.f32 %v3962, %v4002
  %v4010 = vmul.f32 %v3964, %v3999
  %v4011 = vadd.f32 %v3949, %v4007
  %v4012 = vadd.f32 %v3950, %v4008
  %v4013 = vadd.f32 %v3951, %v4009
  %v4014 = vadd.f32 %v3952, %v4010
  %v4015 = vsub.f32 %v3652, %v3707
  %v4016 = vsub.f32 %v3653, %v3708
  %v4017 = vsub.f32 %v3654, %v3709
  %v4018 = vsub.f32 %v3655, %v3710
  %v4019 = vmul.f32 %v4015, 1.442695
  %v4020 = vpow.pop %v4019
  %v4021 = vmul.f32 %v4016, 1.442695
  %v4022 = vpow.pop %v4021
  %v4023 = vmul.f32 %v4017, 1.442695
  %v4024 = vpow.pop %v4023
  %v4025 = vmul.f32 %v4018, 1.442695
  %v4026 = vpow.pop %v4025
  %v4027 = vadd.f32 %v3965, %v4020
  %v4028 = vadd.f32 %v3966, %v4022
  %v4029 = vadd.f32 %v3967, %v4024
  %v4030 = vadd.f32 %v3968, %v4026
  %4031 = vrot.lane.b32.xlu0 %v2963, 126
  %v4032 = vpop.permute.xlu0 %4031
  %4033 = vrot.lane.b32.xlu0 %v2964, 126
  %v4034 = vpop.permute.xlu0 %4033
  %4035 = vrot.lane.b32.xlu0 %v2965, 126
  %v4036 = vpop.permute.xlu0 %4035
  %4037 = vrot.lane.b32.xlu0 %v2966, 126
  %v4038 = vpop.permute.xlu0 %4037
  %v4039 = vsel %vm3621, %v4032, %v4034
  %v4040 = vsel %vm3621, %v4034, %v4036
  %v4041 = vsel %vm3621, %v4036, %v4038
  %v4046 = vmul.f32 %v4020, %v4039
  %v4047 = vmul.f32 %v4022, %v4040
  %v4048 = vmul.f32 %v4024, %v4041
  %v4049 = vmul.f32 %v4026, %v4038
  %v4050 = vadd.f32 %v3988, %v4046
  %v4051 = vadd.f32 %v3989, %v4047
  %v4052 = vadd.f32 %v3990, %v4048
  %v4053 = vadd.f32 %v3991, %v4049
  %4054 = vrot.lane.b32.xlu0 %v2967, 126
  %v4055 = vpop.permute.xlu0 %4054
  %4056 = vrot.lane.b32.xlu0 %v2968, 126
  %v4057 = vpop.permute.xlu0 %4056
  %4058 = vrot.lane.b32.xlu0 %v2969, 126
  %v4059 = vpop.permute.xlu0 %4058
  %4060 = vrot.lane.b32.xlu0 %v2970, 126
  %v4061 = vpop.permute.xlu0 %4060
  %v4062 = vsel %vm3621, %v4055, %v4057
  %v4063 = vsel %vm3621, %v4057, %v4059
  %v4064 = vsel %vm3621, %v4059, %v4061
  %v4069 = vmul.f32 %v4020, %v4062
  %v4070 = vmul.f32 %v4022, %v4063
  %v4071 = vmul.f32 %v4024, %v4064
  %v4072 = vmul.f32 %v4026, %v4061
  %v4073 = vadd.f32 %v4011, %v4069
  %v4074 = vadd.f32 %v4012, %v4070
  %v4075 = vadd.f32 %v4013, %v4071
  %v4076 = vadd.f32 %v4014, %v4072
  %v4077 = vsub.f32 %v3699, %v3707
  %v4078 = vsub.f32 %v3700, %v3708
  %v4079 = vsub.f32 %v3701, %v3709
  %v4080 = vsub.f32 %v3702, %v3710
  %v4081 = vmul.f32 %v4077, 1.442695
  %v4082 = vpow.pop %v4081
  %v4083 = vmul.f32 %v4078, 1.442695
  %v4084 = vpow.pop %v4083
  %v4085 = vmul.f32 %v4079, 1.442695
  %v4086 = vpow.pop %v4085
  %v4087 = vmul.f32 %v4080, 1.442695
  %v4088 = vpow.pop %v4087
  %v4089 = vadd.f32 %v4027, %v4082
  %v4090 = vadd.f32 %v4028, %v4084
  %v4091 = vadd.f32 %v4029, %v4086
  %v4092 = vadd.f32 %v4030, %v4088
  %4093 = vrot.lane.b32.xlu0 %v2963, 125
  %v4094 = vpop.permute.xlu0 %4093
  %4095 = vrot.lane.b32.xlu0 %v2964, 125
  %v4096 = vpop.permute.xlu0 %4095
  %4097 = vrot.lane.b32.xlu0 %v2965, 125
  %v4098 = vpop.permute.xlu0 %4097
  %4099 = vrot.lane.b32.xlu0 %v2966, 125
  %v4100 = vpop.permute.xlu0 %4099
  %v4101 = vsel %vm3668, %v4094, %v4096
  %v4102 = vsel %vm3668, %v4096, %v4098
  %v4103 = vsel %vm3668, %v4098, %v4100
  %v4108 = vmul.f32 %v4082, %v4101
  %v4109 = vmul.f32 %v4084, %v4102
  %v4110 = vmul.f32 %v4086, %v4103
  %v4111 = vmul.f32 %v4088, %v4100
  %v4112 = vadd.f32 %v4050, %v4108
  %v4113 = vadd.f32 %v4051, %v4109
  %v4114 = vadd.f32 %v4052, %v4110
  %v4115 = vadd.f32 %v4053, %v4111
  %4116 = vrot.lane.b32.xlu0 %v2967, 125
  %v4117 = vpop.permute.xlu0 %4116
  %4118 = vrot.lane.b32.xlu0 %v2968, 125
  %v4119 = vpop.permute.xlu0 %4118
  %4120 = vrot.lane.b32.xlu0 %v2969, 125
  %v4121 = vpop.permute.xlu0 %4120
  %4122 = vrot.lane.b32.xlu0 %v2970, 125
  %v4123 = vpop.permute.xlu0 %4122
  %v4124 = vsel %vm3668, %v4117, %v4119
  %v4125 = vsel %vm3668, %v4119, %v4121
  %v4126 = vsel %vm3668, %v4121, %v4123
  %v4131 = vmul.f32 %v4082, %v4124
  %v4132 = vmul.f32 %v4084, %v4125
  %v4133 = vmul.f32 %v4086, %v4126
  %v4134 = vmul.f32 %v4088, %v4123
  %v4135 = vadd.f32 %v4073, %v4131
  %v4136 = vadd.f32 %v4074, %v4132
  %v4137 = vadd.f32 %v4075, %v4133
  %v4138 = vadd.f32 %v4076, %v4134
  %4139 = vrot.lane.b32.xlu0 %v2594, 109
  %v4140 = vpop.permute.xlu0 %4139
  %4141 = vrot.lane.b32.xlu0 %v2595, 109
  %v4142 = vpop.permute.xlu0 %4141
  %4143 = vrot.lane.b32.xlu0 %v2596, 109
  %v4144 = vpop.permute.xlu0 %4143
  %4145 = vrot.lane.b32.xlu0 %v2597, 109
  %v4146 = vpop.permute.xlu0 %4145
  %vm4147 = vcmask 891904
  %v4148 = vsel %vm4147, %v4140, %v4142
  %v4149 = vsel %vm4147, %v4142, %v4144
  %v4150 = vsel %vm4147, %v4144, %v4146
  %v4155 = vmul.f32 %v412, %v4148
  %v4156 = vmul.f32 %v481, %v4149
  %v4157 = vmul.f32 %v550, %v4150
  %v4158 = vmul.f32 %v619, %v4146
  %4159 = vrot.lane.b32.xlu0 %v2598, 109
  %v4160 = vpop.permute.xlu0 %4159
  %4161 = vrot.lane.b32.xlu0 %v2599, 109
  %v4162 = vpop.permute.xlu0 %4161
  %4163 = vrot.lane.b32.xlu0 %v2600, 109
  %v4164 = vpop.permute.xlu0 %4163
  %4165 = vrot.lane.b32.xlu0 %v2601, 109
  %v4166 = vpop.permute.xlu0 %4165
  %v4167 = vsel %vm4147, %v4160, %v4162
  %v4168 = vsel %vm4147, %v4162, %v4164
  %v4169 = vsel %vm4147, %v4164, %v4166
  %v4174 = vmul.f32 %v415, %v4167
  %v4175 = vmul.f32 %v484, %v4168
  %v4176 = vmul.f32 %v553, %v4169
  %v4177 = vmul.f32 %v622, %v4166
  %v4178 = vadd.f32 %v4155, %v4174
  %v4179 = vadd.f32 %v4156, %v4175
  %v4180 = vadd.f32 %v4157, %v4176
  %v4181 = vadd.f32 %v4158, %v4177
  %4182 = vrot.lane.b32.xlu0 %v2594, 108
  %v4183 = vpop.permute.xlu0 %4182
  %4184 = vrot.lane.b32.xlu0 %v2595, 108
  %v4185 = vpop.permute.xlu0 %4184
  %4186 = vrot.lane.b32.xlu0 %v2596, 108
  %v4187 = vpop.permute.xlu0 %4186
  %4188 = vrot.lane.b32.xlu0 %v2597, 108
  %v4189 = vpop.permute.xlu0 %4188
  %vm4190 = vcmask 883712
  %v4191 = vsel %vm4190, %v4183, %v4185
  %v4192 = vsel %vm4190, %v4185, %v4187
  %v4193 = vsel %vm4190, %v4187, %v4189
  %v4198 = vmul.f32 %v412, %v4191
  %v4199 = vmul.f32 %v481, %v4192
  %v4200 = vmul.f32 %v550, %v4193
  %v4201 = vmul.f32 %v619, %v4189
  %4202 = vrot.lane.b32.xlu0 %v2598, 108
  %v4203 = vpop.permute.xlu0 %4202
  %4204 = vrot.lane.b32.xlu0 %v2599, 108
  %v4205 = vpop.permute.xlu0 %4204
  %4206 = vrot.lane.b32.xlu0 %v2600, 108
  %v4207 = vpop.permute.xlu0 %4206
  %4208 = vrot.lane.b32.xlu0 %v2601, 108
  %v4209 = vpop.permute.xlu0 %4208
  %v4210 = vsel %vm4190, %v4203, %v4205
  %v4211 = vsel %vm4190, %v4205, %v4207
  %v4212 = vsel %vm4190, %v4207, %v4209
  %v4217 = vmul.f32 %v415, %v4210
  %v4218 = vmul.f32 %v484, %v4211
  %v4219 = vmul.f32 %v553, %v4212
  %v4220 = vmul.f32 %v622, %v4209
  %v4221 = vadd.f32 %v4198, %v4217
  %v4222 = vadd.f32 %v4199, %v4218
  %v4223 = vadd.f32 %v4200, %v4219
  %v4224 = vadd.f32 %v4201, %v4220
  %v4225 = vmax.f32 %v4178, %v4221
  %v4226 = vmax.f32 %v4179, %v4222
  %v4227 = vmax.f32 %v4180, %v4223
  %v4228 = vmax.f32 %v4181, %v4224
  %4229 = vrot.lane.b32.xlu0 %v2594, 107
  %v4230 = vpop.permute.xlu0 %4229
  %4231 = vrot.lane.b32.xlu0 %v2595, 107
  %v4232 = vpop.permute.xlu0 %4231
  %4233 = vrot.lane.b32.xlu0 %v2596, 107
  %v4234 = vpop.permute.xlu0 %4233
  %4235 = vrot.lane.b32.xlu0 %v2597, 107
  %v4236 = vpop.permute.xlu0 %4235
  %vm4237 = vcmask 875520
  %v4238 = vsel %vm4237, %v4230, %v4232
  %v4239 = vsel %vm4237, %v4232, %v4234
  %v4240 = vsel %vm4237, %v4234, %v4236
  %v4245 = vmul.f32 %v412, %v4238
  %v4246 = vmul.f32 %v481, %v4239
  %v4247 = vmul.f32 %v550, %v4240
  %v4248 = vmul.f32 %v619, %v4236
  %4249 = vrot.lane.b32.xlu0 %v2598, 107
  %v4250 = vpop.permute.xlu0 %4249
  %4251 = vrot.lane.b32.xlu0 %v2599, 107
  %v4252 = vpop.permute.xlu0 %4251
  %4253 = vrot.lane.b32.xlu0 %v2600, 107
  %v4254 = vpop.permute.xlu0 %4253
  %4255 = vrot.lane.b32.xlu0 %v2601, 107
  %v4256 = vpop.permute.xlu0 %4255
  %v4257 = vsel %vm4237, %v4250, %v4252
  %v4258 = vsel %vm4237, %v4252, %v4254
  %v4259 = vsel %vm4237, %v4254, %v4256
  %v4264 = vmul.f32 %v415, %v4257
  %v4265 = vmul.f32 %v484, %v4258
  %v4266 = vmul.f32 %v553, %v4259
  %v4267 = vmul.f32 %v622, %v4256
  %v4268 = vadd.f32 %v4245, %v4264
  %v4269 = vadd.f32 %v4246, %v4265
  %v4270 = vadd.f32 %v4247, %v4266
  %v4271 = vadd.f32 %v4248, %v4267
  %v4272 = vmax.f32 %v4225, %v4268
  %v4273 = vmax.f32 %v4226, %v4269
  %v4274 = vmax.f32 %v4227, %v4270
  %v4275 = vmax.f32 %v4228, %v4271
  %4276 = vrot.lane.b32.xlu0 %v2594, 106
  %v4277 = vpop.permute.xlu0 %4276
  %4278 = vrot.lane.b32.xlu0 %v2595, 106
  %v4279 = vpop.permute.xlu0 %4278
  %4280 = vrot.lane.b32.xlu0 %v2596, 106
  %v4281 = vpop.permute.xlu0 %4280
  %4282 = vrot.lane.b32.xlu0 %v2597, 106
  %v4283 = vpop.permute.xlu0 %4282
  %vm4284 = vcmask 867328
  %v4285 = vsel %vm4284, %v4277, %v4279
  %v4286 = vsel %vm4284, %v4279, %v4281
  %v4287 = vsel %vm4284, %v4281, %v4283
  %v4292 = vmul.f32 %v412, %v4285
  %v4293 = vmul.f32 %v481, %v4286
  %v4294 = vmul.f32 %v550, %v4287
  %v4295 = vmul.f32 %v619, %v4283
  %4296 = vrot.lane.b32.xlu0 %v2598, 106
  %v4297 = vpop.permute.xlu0 %4296
  %4298 = vrot.lane.b32.xlu0 %v2599, 106
  %v4299 = vpop.permute.xlu0 %4298
  %4300 = vrot.lane.b32.xlu0 %v2600, 106
  %v4301 = vpop.permute.xlu0 %4300
  %4302 = vrot.lane.b32.xlu0 %v2601, 106
  %v4303 = vpop.permute.xlu0 %4302
  %v4304 = vsel %vm4284, %v4297, %v4299
  %v4305 = vsel %vm4284, %v4299, %v4301
  %v4306 = vsel %vm4284, %v4301, %v4303
  %v4311 = vmul.f32 %v415, %v4304
  %v4312 = vmul.f32 %v484, %v4305
  %v4313 = vmul.f32 %v553, %v4306
  %v4314 = vmul.f32 %v622, %v4303
  %v4315 = vadd.f32 %v4292, %v4311
  %v4316 = vadd.f32 %v4293, %v4312
  %v4317 = vadd.f32 %v4294, %v4313
  %v4318 = vadd.f32 %v4295, %v4314
  %v4319 = vmax.f32 %v4272, %v4315
  %v4320 = vmax.f32 %v4273, %v4316
  %v4321 = vmax.f32 %v4274, %v4317
  %v4322 = vmax.f32 %v4275, %v4318
  %4323 = vrot.lane.b32.xlu0 %v2594, 105
  %v4324 = vpop.permute.xlu0 %4323
  %4325 = vrot.lane.b32.xlu0 %v2595, 105
  %v4326 = vpop.permute.xlu0 %4325
  %4327 = vrot.lane.b32.xlu0 %v2596, 105
  %v4328 = vpop.permute.xlu0 %4327
  %4329 = vrot.lane.b32.xlu0 %v2597, 105
  %v4330 = vpop.permute.xlu0 %4329
  %vm4331 = vcmask 859136
  %v4332 = vsel %vm4331, %v4324, %v4326
  %v4333 = vsel %vm4331, %v4326, %v4328
  %v4334 = vsel %vm4331, %v4328, %v4330
  %v4339 = vmul.f32 %v412, %v4332
  %v4340 = vmul.f32 %v481, %v4333
  %v4341 = vmul.f32 %v550, %v4334
  %v4342 = vmul.f32 %v619, %v4330
  %4343 = vrot.lane.b32.xlu0 %v2598, 105
  %v4344 = vpop.permute.xlu0 %4343
  %4345 = vrot.lane.b32.xlu0 %v2599, 105
  %v4346 = vpop.permute.xlu0 %4345
  %4347 = vrot.lane.b32.xlu0 %v2600, 105
  %v4348 = vpop.permute.xlu0 %4347
  %4349 = vrot.lane.b32.xlu0 %v2601, 105
  %v4350 = vpop.permute.xlu0 %4349
  %v4351 = vsel %vm4331, %v4344, %v4346
  %v4352 = vsel %vm4331, %v4346, %v4348
  %v4353 = vsel %vm4331, %v4348, %v4350
  %v4358 = vmul.f32 %v415, %v4351
  %v4359 = vmul.f32 %v484, %v4352
  %v4360 = vmul.f32 %v553, %v4353
  %v4361 = vmul.f32 %v622, %v4350
  %v4362 = vadd.f32 %v4339, %v4358
  %v4363 = vadd.f32 %v4340, %v4359
  %v4364 = vadd.f32 %v4341, %v4360
  %v4365 = vadd.f32 %v4342, %v4361
  %v4366 = vmax.f32 %v4319, %v4362
  %v4367 = vmax.f32 %v4320, %v4363
  %v4368 = vmax.f32 %v4321, %v4364
  %v4369 = vmax.f32 %v4322, %v4365
  %4370 = vrot.lane.b32.xlu0 %v2594, 104
  %v4371 = vpop.permute.xlu0 %4370
  %4372 = vrot.lane.b32.xlu0 %v2595, 104
  %v4373 = vpop.permute.xlu0 %4372
  %4374 = vrot.lane.b32.xlu0 %v2596, 104
  %v4375 = vpop.permute.xlu0 %4374
  %4376 = vrot.lane.b32.xlu0 %v2597, 104
  %v4377 = vpop.permute.xlu0 %4376
  %vm4378 = vcmask 850944
  %v4379 = vsel %vm4378, %v4371, %v4373
  %v4380 = vsel %vm4378, %v4373, %v4375
  %v4381 = vsel %vm4378, %v4375, %v4377
  %v4386 = vmul.f32 %v412, %v4379
  %v4387 = vmul.f32 %v481, %v4380
  %v4388 = vmul.f32 %v550, %v4381
  %v4389 = vmul.f32 %v619, %v4377
  %4390 = vrot.lane.b32.xlu0 %v2598, 104
  %v4391 = vpop.permute.xlu0 %4390
  %4392 = vrot.lane.b32.xlu0 %v2599, 104
  %v4393 = vpop.permute.xlu0 %4392
  %4394 = vrot.lane.b32.xlu0 %v2600, 104
  %v4395 = vpop.permute.xlu0 %4394
  %4396 = vrot.lane.b32.xlu0 %v2601, 104
  %v4397 = vpop.permute.xlu0 %4396
  %v4398 = vsel %vm4378, %v4391, %v4393
  %v4399 = vsel %vm4378, %v4393, %v4395
  %v4400 = vsel %vm4378, %v4395, %v4397
  %v4405 = vmul.f32 %v415, %v4398
  %v4406 = vmul.f32 %v484, %v4399
  %v4407 = vmul.f32 %v553, %v4400
  %v4408 = vmul.f32 %v622, %v4397
  %v4409 = vadd.f32 %v4386, %v4405
  %v4410 = vadd.f32 %v4387, %v4406
  %v4411 = vadd.f32 %v4388, %v4407
  %v4412 = vadd.f32 %v4389, %v4408
  %v4413 = vmax.f32 %v4366, %v4409
  %v4414 = vmax.f32 %v4367, %v4410
  %v4415 = vmax.f32 %v4368, %v4411
  %v4416 = vmax.f32 %v4369, %v4412
  %4417 = vrot.lane.b32.xlu0 %v2594, 103
  %v4418 = vpop.permute.xlu0 %4417
  %4419 = vrot.lane.b32.xlu0 %v2595, 103
  %v4420 = vpop.permute.xlu0 %4419
  %4421 = vrot.lane.b32.xlu0 %v2596, 103
  %v4422 = vpop.permute.xlu0 %4421
  %4423 = vrot.lane.b32.xlu0 %v2597, 103
  %v4424 = vpop.permute.xlu0 %4423
  %vm4425 = vcmask 842752
  %v4426 = vsel %vm4425, %v4418, %v4420
  %v4427 = vsel %vm4425, %v4420, %v4422
  %v4428 = vsel %vm4425, %v4422, %v4424
  %v4433 = vmul.f32 %v412, %v4426
  %v4434 = vmul.f32 %v481, %v4427
  %v4435 = vmul.f32 %v550, %v4428
  %v4436 = vmul.f32 %v619, %v4424
  %4437 = vrot.lane.b32.xlu0 %v2598, 103
  %v4438 = vpop.permute.xlu0 %4437
  %4439 = vrot.lane.b32.xlu0 %v2599, 103
  %v4440 = vpop.permute.xlu0 %4439
  %4441 = vrot.lane.b32.xlu0 %v2600, 103
  %v4442 = vpop.permute.xlu0 %4441
  %4443 = vrot.lane.b32.xlu0 %v2601, 103
  %v4444 = vpop.permute.xlu0 %4443
  %v4445 = vsel %vm4425, %v4438, %v4440
  %v4446 = vsel %vm4425, %v4440, %v4442
  %v4447 = vsel %vm4425, %v4442, %v4444
  %v4452 = vmul.f32 %v415, %v4445
  %v4453 = vmul.f32 %v484, %v4446
  %v4454 = vmul.f32 %v553, %v4447
  %v4455 = vmul.f32 %v622, %v4444
  %v4456 = vadd.f32 %v4433, %v4452
  %v4457 = vadd.f32 %v4434, %v4453
  %v4458 = vadd.f32 %v4435, %v4454
  %v4459 = vadd.f32 %v4436, %v4455
  %v4460 = vmax.f32 %v4413, %v4456
  %v4461 = vmax.f32 %v4414, %v4457
  %v4462 = vmax.f32 %v4415, %v4458
  %v4463 = vmax.f32 %v4416, %v4459
  %v4464 = vmax.f32 %v3707, %v4460
  %v4465 = vmax.f32 %v3708, %v4461
  %v4466 = vmax.f32 %v3709, %v4462
  %v4467 = vmax.f32 %v3710, %v4463
  %v4468 = vsub.f32 %v3707, %v4464
  %v4469 = vsub.f32 %v3708, %v4465
  %v4470 = vsub.f32 %v3709, %v4466
  %v4471 = vsub.f32 %v3710, %v4467
  %v4472 = vmul.f32 %v4468, 1.442695
  %v4473 = vpow.pop %v4472
  %v4474 = vmul.f32 %v4469, 1.442695
  %v4475 = vpow.pop %v4474
  %v4476 = vmul.f32 %v4470, 1.442695
  %v4477 = vpow.pop %v4476
  %v4478 = vmul.f32 %v4471, 1.442695
  %v4479 = vpow.pop %v4478
  %v4480 = vmul.f32 %v4473, %v4089
  %v4481 = vmul.f32 %v4475, %v4090
  %v4482 = vmul.f32 %v4477, %v4091
  %v4483 = vmul.f32 %v4479, %v4092
  %v4484 = vmul.f32 %v4473, %v4112
  %v4485 = vmul.f32 %v4475, %v4113
  %v4486 = vmul.f32 %v4477, %v4114
  %v4487 = vmul.f32 %v4479, %v4115
  %v4488 = vmul.f32 %v4473, %v4135
  %v4489 = vmul.f32 %v4475, %v4136
  %v4490 = vmul.f32 %v4477, %v4137
  %v4491 = vmul.f32 %v4479, %v4138
  %v4492 = vsub.f32 %v4178, %v4464
  %v4493 = vsub.f32 %v4179, %v4465
  %v4494 = vsub.f32 %v4180, %v4466
  %v4495 = vsub.f32 %v4181, %v4467
  %v4496 = vmul.f32 %v4492, 1.442695
  %v4497 = vpow.pop %v4496
  %v4498 = vmul.f32 %v4493, 1.442695
  %v4499 = vpow.pop %v4498
  %v4500 = vmul.f32 %v4494, 1.442695
  %v4501 = vpow.pop %v4500
  %v4502 = vmul.f32 %v4495, 1.442695
  %v4503 = vpow.pop %v4502
  %v4504 = vadd.f32 %v4480, %v4497
  %v4505 = vadd.f32 %v4481, %v4499
  %v4506 = vadd.f32 %v4482, %v4501
  %v4507 = vadd.f32 %v4483, %v4503
  %4508 = vrot.lane.b32.xlu0 %v2963, 109
  %v4509 = vpop.permute.xlu0 %4508
  %4510 = vrot.lane.b32.xlu0 %v2964, 109
  %v4511 = vpop.permute.xlu0 %4510
  %4512 = vrot.lane.b32.xlu0 %v2965, 109
  %v4513 = vpop.permute.xlu0 %4512
  %4514 = vrot.lane.b32.xlu0 %v2966, 109
  %v4515 = vpop.permute.xlu0 %4514
  %v4516 = vsel %vm4147, %v4509, %v4511
  %v4517 = vsel %vm4147, %v4511, %v4513
  %v4518 = vsel %vm4147, %v4513, %v4515
  %v4523 = vmul.f32 %v4497, %v4516
  %v4524 = vmul.f32 %v4499, %v4517
  %v4525 = vmul.f32 %v4501, %v4518
  %v4526 = vmul.f32 %v4503, %v4515
  %v4527 = vadd.f32 %v4484, %v4523
  %v4528 = vadd.f32 %v4485, %v4524
  %v4529 = vadd.f32 %v4486, %v4525
  %v4530 = vadd.f32 %v4487, %v4526
  %4531 = vrot.lane.b32.xlu0 %v2967, 109
  %v4532 = vpop.permute.xlu0 %4531
  %4533 = vrot.lane.b32.xlu0 %v2968, 109
  %v4534 = vpop.permute.xlu0 %4533
  %4535 = vrot.lane.b32.xlu0 %v2969, 109
  %v4536 = vpop.permute.xlu0 %4535
  %4537 = vrot.lane.b32.xlu0 %v2970, 109
  %v4538 = vpop.permute.xlu0 %4537
  %v4539 = vsel %vm4147, %v4532, %v4534
  %v4540 = vsel %vm4147, %v4534, %v4536
  %v4541 = vsel %vm4147, %v4536, %v4538
  %v4546 = vmul.f32 %v4497, %v4539
  %v4547 = vmul.f32 %v4499, %v4540
  %v4548 = vmul.f32 %v4501, %v4541
  %v4549 = vmul.f32 %v4503, %v4538
  %v4550 = vadd.f32 %v4488, %v4546
  %v4551 = vadd.f32 %v4489, %v4547
  %v4552 = vadd.f32 %v4490, %v4548
  %v4553 = vadd.f32 %v4491, %v4549
  %v4554 = vsub.f32 %v4221, %v4464
  %v4555 = vsub.f32 %v4222, %v4465
  %v4556 = vsub.f32 %v4223, %v4466
  %v4557 = vsub.f32 %v4224, %v4467
  %v4558 = vmul.f32 %v4554, 1.442695
  %v4559 = vpow.pop %v4558
  %v4560 = vmul.f32 %v4555, 1.442695
  %v4561 = vpow.pop %v4560
  %v4562 = vmul.f32 %v4556, 1.442695
  %v4563 = vpow.pop %v4562
  %v4564 = vmul.f32 %v4557, 1.442695
  %v4565 = vpow.pop %v4564
  %v4566 = vadd.f32 %v4504, %v4559
  %v4567 = vadd.f32 %v4505, %v4561
  %v4568 = vadd.f32 %v4506, %v4563
  %v4569 = vadd.f32 %v4507, %v4565
  %4570 = vrot.lane.b32.xlu0 %v2963, 108
  %v4571 = vpop.permute.xlu0 %4570
  %4572 = vrot.lane.b32.xlu0 %v2964, 108
  %v4573 = vpop.permute.xlu0 %4572
  %4574 = vrot.lane.b32.xlu0 %v2965, 108
  %v4575 = vpop.permute.xlu0 %4574
  %4576 = vrot.lane.b32.xlu0 %v2966, 108
  %v4577 = vpop.permute.xlu0 %4576
  %v4578 = vsel %vm4190, %v4571, %v4573
  %v4579 = vsel %vm4190, %v4573, %v4575
  %v4580 = vsel %vm4190, %v4575, %v4577
  %v4585 = vmul.f32 %v4559, %v4578
  %v4586 = vmul.f32 %v4561, %v4579
  %v4587 = vmul.f32 %v4563, %v4580
  %v4588 = vmul.f32 %v4565, %v4577
  %v4589 = vadd.f32 %v4527, %v4585
  %v4590 = vadd.f32 %v4528, %v4586
  %v4591 = vadd.f32 %v4529, %v4587
  %v4592 = vadd.f32 %v4530, %v4588
  %4593 = vrot.lane.b32.xlu0 %v2967, 108
  %v4594 = vpop.permute.xlu0 %4593
  %4595 = vrot.lane.b32.xlu0 %v2968, 108
  %v4596 = vpop.permute.xlu0 %4595
  %4597 = vrot.lane.b32.xlu0 %v2969, 108
  %v4598 = vpop.permute.xlu0 %4597
  %4599 = vrot.lane.b32.xlu0 %v2970, 108
  %v4600 = vpop.permute.xlu0 %4599
  %v4601 = vsel %vm4190, %v4594, %v4596
  %v4602 = vsel %vm4190, %v4596, %v4598
  %v4603 = vsel %vm4190, %v4598, %v4600
  %v4608 = vmul.f32 %v4559, %v4601
  %v4609 = vmul.f32 %v4561, %v4602
  %v4610 = vmul.f32 %v4563, %v4603
  %v4611 = vmul.f32 %v4565, %v4600
  %v4612 = vadd.f32 %v4550, %v4608
  %v4613 = vadd.f32 %v4551, %v4609
  %v4614 = vadd.f32 %v4552, %v4610
  %v4615 = vadd.f32 %v4553, %v4611
  %v4616 = vsub.f32 %v4268, %v4464
  %v4617 = vsub.f32 %v4269, %v4465
  %v4618 = vsub.f32 %v4270, %v4466
  %v4619 = vsub.f32 %v4271, %v4467
  %v4620 = vmul.f32 %v4616, 1.442695
  %v4621 = vpow.pop %v4620
  %v4622 = vmul.f32 %v4617, 1.442695
  %v4623 = vpow.pop %v4622
  %v4624 = vmul.f32 %v4618, 1.442695
  %v4625 = vpow.pop %v4624
  %v4626 = vmul.f32 %v4619, 1.442695
  %v4627 = vpow.pop %v4626
  %v4628 = vadd.f32 %v4566, %v4621
  %v4629 = vadd.f32 %v4567, %v4623
  %v4630 = vadd.f32 %v4568, %v4625
  %v4631 = vadd.f32 %v4569, %v4627
  %4632 = vrot.lane.b32.xlu0 %v2963, 107
  %v4633 = vpop.permute.xlu0 %4632
  %4634 = vrot.lane.b32.xlu0 %v2964, 107
  %v4635 = vpop.permute.xlu0 %4634
  %4636 = vrot.lane.b32.xlu0 %v2965, 107
  %v4637 = vpop.permute.xlu0 %4636
  %4638 = vrot.lane.b32.xlu0 %v2966, 107
  %v4639 = vpop.permute.xlu0 %4638
  %v4640 = vsel %vm4237, %v4633, %v4635
  %v4641 = vsel %vm4237, %v4635, %v4637
  %v4642 = vsel %vm4237, %v4637, %v4639
  %v4647 = vmul.f32 %v4621, %v4640
  %v4648 = vmul.f32 %v4623, %v4641
  %v4649 = vmul.f32 %v4625, %v4642
  %v4650 = vmul.f32 %v4627, %v4639
  %v4651 = vadd.f32 %v4589, %v4647
  %v4652 = vadd.f32 %v4590, %v4648
  %v4653 = vadd.f32 %v4591, %v4649
  %v4654 = vadd.f32 %v4592, %v4650
  %4655 = vrot.lane.b32.xlu0 %v2967, 107
  %v4656 = vpop.permute.xlu0 %4655
  %4657 = vrot.lane.b32.xlu0 %v2968, 107
  %v4658 = vpop.permute.xlu0 %4657
  %4659 = vrot.lane.b32.xlu0 %v2969, 107
  %v4660 = vpop.permute.xlu0 %4659
  %4661 = vrot.lane.b32.xlu0 %v2970, 107
  %v4662 = vpop.permute.xlu0 %4661
  %v4663 = vsel %vm4237, %v4656, %v4658
  %v4664 = vsel %vm4237, %v4658, %v4660
  %v4665 = vsel %vm4237, %v4660, %v4662
  %v4670 = vmul.f32 %v4621, %v4663
  %v4671 = vmul.f32 %v4623, %v4664
  %v4672 = vmul.f32 %v4625, %v4665
  %v4673 = vmul.f32 %v4627, %v4662
  %v4674 = vadd.f32 %v4612, %v4670
  %v4675 = vadd.f32 %v4613, %v4671
  %v4676 = vadd.f32 %v4614, %v4672
  %v4677 = vadd.f32 %v4615, %v4673
  %v4678 = vsub.f32 %v4315, %v4464
  %v4679 = vsub.f32 %v4316, %v4465
  %v4680 = vsub.f32 %v4317, %v4466
  %v4681 = vsub.f32 %v4318, %v4467
  %v4682 = vmul.f32 %v4678, 1.442695
  %v4683 = vpow.pop %v4682
  %v4684 = vmul.f32 %v4679, 1.442695
  %v4685 = vpow.pop %v4684
  %v4686 = vmul.f32 %v4680, 1.442695
  %v4687 = vpow.pop %v4686
  %v4688 = vmul.f32 %v4681, 1.442695
  %v4689 = vpow.pop %v4688
  %v4690 = vadd.f32 %v4628, %v4683
  %v4691 = vadd.f32 %v4629, %v4685
  %v4692 = vadd.f32 %v4630, %v4687
  %v4693 = vadd.f32 %v4631, %v4689
  %4694 = vrot.lane.b32.xlu0 %v2963, 106
  %v4695 = vpop.permute.xlu0 %4694
  %4696 = vrot.lane.b32.xlu0 %v2964, 106
  %v4697 = vpop.permute.xlu0 %4696
  %4698 = vrot.lane.b32.xlu0 %v2965, 106
  %v4699 = vpop.permute.xlu0 %4698
  %4700 = vrot.lane.b32.xlu0 %v2966, 106
  %v4701 = vpop.permute.xlu0 %4700
  %v4702 = vsel %vm4284, %v4695, %v4697
  %v4703 = vsel %vm4284, %v4697, %v4699
  %v4704 = vsel %vm4284, %v4699, %v4701
  %v4709 = vmul.f32 %v4683, %v4702
  %v4710 = vmul.f32 %v4685, %v4703
  %v4711 = vmul.f32 %v4687, %v4704
  %v4712 = vmul.f32 %v4689, %v4701
  %v4713 = vadd.f32 %v4651, %v4709
  %v4714 = vadd.f32 %v4652, %v4710
  %v4715 = vadd.f32 %v4653, %v4711
  %v4716 = vadd.f32 %v4654, %v4712
  %4717 = vrot.lane.b32.xlu0 %v2967, 106
  %v4718 = vpop.permute.xlu0 %4717
  %4719 = vrot.lane.b32.xlu0 %v2968, 106
  %v4720 = vpop.permute.xlu0 %4719
  %4721 = vrot.lane.b32.xlu0 %v2969, 106
  %v4722 = vpop.permute.xlu0 %4721
  %4723 = vrot.lane.b32.xlu0 %v2970, 106
  %v4724 = vpop.permute.xlu0 %4723
  %v4725 = vsel %vm4284, %v4718, %v4720
  %v4726 = vsel %vm4284, %v4720, %v4722
  %v4727 = vsel %vm4284, %v4722, %v4724
  %v4732 = vmul.f32 %v4683, %v4725
  %v4733 = vmul.f32 %v4685, %v4726
  %v4734 = vmul.f32 %v4687, %v4727
  %v4735 = vmul.f32 %v4689, %v4724
  %v4736 = vadd.f32 %v4674, %v4732
  %v4737 = vadd.f32 %v4675, %v4733
  %v4738 = vadd.f32 %v4676, %v4734
  %v4739 = vadd.f32 %v4677, %v4735
  %v4740 = vsub.f32 %v4362, %v4464
  %v4741 = vsub.f32 %v4363, %v4465
  %v4742 = vsub.f32 %v4364, %v4466
  %v4743 = vsub.f32 %v4365, %v4467
  %v4744 = vmul.f32 %v4740, 1.442695
  %v4745 = vpow.pop %v4744
  %v4746 = vmul.f32 %v4741, 1.442695
  %v4747 = vpow.pop %v4746
  %v4748 = vmul.f32 %v4742, 1.442695
  %v4749 = vpow.pop %v4748
  %v4750 = vmul.f32 %v4743, 1.442695
  %v4751 = vpow.pop %v4750
  %v4752 = vadd.f32 %v4690, %v4745
  %v4753 = vadd.f32 %v4691, %v4747
  %v4754 = vadd.f32 %v4692, %v4749
  %v4755 = vadd.f32 %v4693, %v4751
  %4756 = vrot.lane.b32.xlu0 %v2963, 105
  %v4757 = vpop.permute.xlu0 %4756
  %4758 = vrot.lane.b32.xlu0 %v2964, 105
  %v4759 = vpop.permute.xlu0 %4758
  %4760 = vrot.lane.b32.xlu0 %v2965, 105
  %v4761 = vpop.permute.xlu0 %4760
  %4762 = vrot.lane.b32.xlu0 %v2966, 105
  %v4763 = vpop.permute.xlu0 %4762
  %v4764 = vsel %vm4331, %v4757, %v4759
  %v4765 = vsel %vm4331, %v4759, %v4761
  %v4766 = vsel %vm4331, %v4761, %v4763
  %v4771 = vmul.f32 %v4745, %v4764
  %v4772 = vmul.f32 %v4747, %v4765
  %v4773 = vmul.f32 %v4749, %v4766
  %v4774 = vmul.f32 %v4751, %v4763
  %v4775 = vadd.f32 %v4713, %v4771
  %v4776 = vadd.f32 %v4714, %v4772
  %v4777 = vadd.f32 %v4715, %v4773
  %v4778 = vadd.f32 %v4716, %v4774
  %4779 = vrot.lane.b32.xlu0 %v2967, 105
  %v4780 = vpop.permute.xlu0 %4779
  %4781 = vrot.lane.b32.xlu0 %v2968, 105
  %v4782 = vpop.permute.xlu0 %4781
  %4783 = vrot.lane.b32.xlu0 %v2969, 105
  %v4784 = vpop.permute.xlu0 %4783
  %4785 = vrot.lane.b32.xlu0 %v2970, 105
  %v4786 = vpop.permute.xlu0 %4785
  %v4787 = vsel %vm4331, %v4780, %v4782
  %v4788 = vsel %vm4331, %v4782, %v4784
  %v4789 = vsel %vm4331, %v4784, %v4786
  %v4794 = vmul.f32 %v4745, %v4787
  %v4795 = vmul.f32 %v4747, %v4788
  %v4796 = vmul.f32 %v4749, %v4789
  %v4797 = vmul.f32 %v4751, %v4786
  %v4798 = vadd.f32 %v4736, %v4794
  %v4799 = vadd.f32 %v4737, %v4795
  %v4800 = vadd.f32 %v4738, %v4796
  %v4801 = vadd.f32 %v4739, %v4797
  %v4802 = vsub.f32 %v4409, %v4464
  %v4803 = vsub.f32 %v4410, %v4465
  %v4804 = vsub.f32 %v4411, %v4466
  %v4805 = vsub.f32 %v4412, %v4467
  %v4806 = vmul.f32 %v4802, 1.442695
  %v4807 = vpow.pop %v4806
  %v4808 = vmul.f32 %v4803, 1.442695
  %v4809 = vpow.pop %v4808
  %v4810 = vmul.f32 %v4804, 1.442695
  %v4811 = vpow.pop %v4810
  %v4812 = vmul.f32 %v4805, 1.442695
  %v4813 = vpow.pop %v4812
  %v4814 = vadd.f32 %v4752, %v4807
  %v4815 = vadd.f32 %v4753, %v4809
  %v4816 = vadd.f32 %v4754, %v4811
  %v4817 = vadd.f32 %v4755, %v4813
  %4818 = vrot.lane.b32.xlu0 %v2963, 104
  %v4819 = vpop.permute.xlu0 %4818
  %4820 = vrot.lane.b32.xlu0 %v2964, 104
  %v4821 = vpop.permute.xlu0 %4820
  %4822 = vrot.lane.b32.xlu0 %v2965, 104
  %v4823 = vpop.permute.xlu0 %4822
  %4824 = vrot.lane.b32.xlu0 %v2966, 104
  %v4825 = vpop.permute.xlu0 %4824
  %v4826 = vsel %vm4378, %v4819, %v4821
  %v4827 = vsel %vm4378, %v4821, %v4823
  %v4828 = vsel %vm4378, %v4823, %v4825
  %v4833 = vmul.f32 %v4807, %v4826
  %v4834 = vmul.f32 %v4809, %v4827
  %v4835 = vmul.f32 %v4811, %v4828
  %v4836 = vmul.f32 %v4813, %v4825
  %v4837 = vadd.f32 %v4775, %v4833
  %v4838 = vadd.f32 %v4776, %v4834
  %v4839 = vadd.f32 %v4777, %v4835
  %v4840 = vadd.f32 %v4778, %v4836
  %4841 = vrot.lane.b32.xlu0 %v2967, 104
  %v4842 = vpop.permute.xlu0 %4841
  %4843 = vrot.lane.b32.xlu0 %v2968, 104
  %v4844 = vpop.permute.xlu0 %4843
  %4845 = vrot.lane.b32.xlu0 %v2969, 104
  %v4846 = vpop.permute.xlu0 %4845
  %4847 = vrot.lane.b32.xlu0 %v2970, 104
  %v4848 = vpop.permute.xlu0 %4847
  %v4849 = vsel %vm4378, %v4842, %v4844
  %v4850 = vsel %vm4378, %v4844, %v4846
  %v4851 = vsel %vm4378, %v4846, %v4848
  %v4856 = vmul.f32 %v4807, %v4849
  %v4857 = vmul.f32 %v4809, %v4850
  %v4858 = vmul.f32 %v4811, %v4851
  %v4859 = vmul.f32 %v4813, %v4848
  %v4860 = vadd.f32 %v4798, %v4856
  %v4861 = vadd.f32 %v4799, %v4857
  %v4862 = vadd.f32 %v4800, %v4858
  %v4863 = vadd.f32 %v4801, %v4859
  %v4864 = vsub.f32 %v4456, %v4464
  %v4865 = vsub.f32 %v4457, %v4465
  %v4866 = vsub.f32 %v4458, %v4466
  %v4867 = vsub.f32 %v4459, %v4467
  %v4868 = vmul.f32 %v4864, 1.442695
  %v4869 = vpow.pop %v4868
  %v4870 = vmul.f32 %v4865, 1.442695
  %v4871 = vpow.pop %v4870
  %v4872 = vmul.f32 %v4866, 1.442695
  %v4873 = vpow.pop %v4872
  %v4874 = vmul.f32 %v4867, 1.442695
  %v4875 = vpow.pop %v4874
  %v4876 = vadd.f32 %v4814, %v4869
  %v4877 = vadd.f32 %v4815, %v4871
  %v4878 = vadd.f32 %v4816, %v4873
  %v4879 = vadd.f32 %v4817, %v4875
  %4880 = vrot.lane.b32.xlu0 %v2963, 103
  %v4881 = vpop.permute.xlu0 %4880
  %4882 = vrot.lane.b32.xlu0 %v2964, 103
  %v4883 = vpop.permute.xlu0 %4882
  %4884 = vrot.lane.b32.xlu0 %v2965, 103
  %v4885 = vpop.permute.xlu0 %4884
  %4886 = vrot.lane.b32.xlu0 %v2966, 103
  %v4887 = vpop.permute.xlu0 %4886
  %v4888 = vsel %vm4425, %v4881, %v4883
  %v4889 = vsel %vm4425, %v4883, %v4885
  %v4890 = vsel %vm4425, %v4885, %v4887
  %v4895 = vmul.f32 %v4869, %v4888
  %v4896 = vmul.f32 %v4871, %v4889
  %v4897 = vmul.f32 %v4873, %v4890
  %v4898 = vmul.f32 %v4875, %v4887
  %v4899 = vadd.f32 %v4837, %v4895
  %v4900 = vadd.f32 %v4838, %v4896
  %v4901 = vadd.f32 %v4839, %v4897
  %v4902 = vadd.f32 %v4840, %v4898
  %4903 = vrot.lane.b32.xlu0 %v2967, 103
  %v4904 = vpop.permute.xlu0 %4903
  %4905 = vrot.lane.b32.xlu0 %v2968, 103
  %v4906 = vpop.permute.xlu0 %4905
  %4907 = vrot.lane.b32.xlu0 %v2969, 103
  %v4908 = vpop.permute.xlu0 %4907
  %4909 = vrot.lane.b32.xlu0 %v2970, 103
  %v4910 = vpop.permute.xlu0 %4909
  %v4911 = vsel %vm4425, %v4904, %v4906
  %v4912 = vsel %vm4425, %v4906, %v4908
  %v4913 = vsel %vm4425, %v4908, %v4910
  %v4918 = vmul.f32 %v4869, %v4911
  %v4919 = vmul.f32 %v4871, %v4912
  %v4920 = vmul.f32 %v4873, %v4913
  %v4921 = vmul.f32 %v4875, %v4910
  %v4922 = vadd.f32 %v4860, %v4918
  %v4923 = vadd.f32 %v4861, %v4919
  %v4924 = vadd.f32 %v4862, %v4920
  %v4925 = vadd.f32 %v4863, %v4921
  %4926 = vrot.lane.b32.xlu0 %v2594, 87
  %v4927 = vpop.permute.xlu0 %4926
  %4928 = vrot.lane.b32.xlu0 %v2595, 87
  %v4929 = vpop.permute.xlu0 %4928
  %4930 = vrot.lane.b32.xlu0 %v2596, 87
  %v4931 = vpop.permute.xlu0 %4930
  %4932 = vrot.lane.b32.xlu0 %v2597, 87
  %v4933 = vpop.permute.xlu0 %4932
  %vm4934 = vcmask 711680
  %v4935 = vsel %vm4934, %v4927, %v4929
  %v4936 = vsel %vm4934, %v4929, %v4931
  %v4937 = vsel %vm4934, %v4931, %v4933
  %v4942 = vmul.f32 %v412, %v4935
  %v4943 = vmul.f32 %v481, %v4936
  %v4944 = vmul.f32 %v550, %v4937
  %v4945 = vmul.f32 %v619, %v4933
  %4946 = vrot.lane.b32.xlu0 %v2598, 87
  %v4947 = vpop.permute.xlu0 %4946
  %4948 = vrot.lane.b32.xlu0 %v2599, 87
  %v4949 = vpop.permute.xlu0 %4948
  %4950 = vrot.lane.b32.xlu0 %v2600, 87
  %v4951 = vpop.permute.xlu0 %4950
  %4952 = vrot.lane.b32.xlu0 %v2601, 87
  %v4953 = vpop.permute.xlu0 %4952
  %v4954 = vsel %vm4934, %v4947, %v4949
  %v4955 = vsel %vm4934, %v4949, %v4951
  %v4956 = vsel %vm4934, %v4951, %v4953
  %v4961 = vmul.f32 %v415, %v4954
  %v4962 = vmul.f32 %v484, %v4955
  %v4963 = vmul.f32 %v553, %v4956
  %v4964 = vmul.f32 %v622, %v4953
  %v4965 = vadd.f32 %v4942, %v4961
  %v4966 = vadd.f32 %v4943, %v4962
  %v4967 = vadd.f32 %v4944, %v4963
  %v4968 = vadd.f32 %v4945, %v4964
  %4969 = vrot.lane.b32.xlu0 %v2594, 86
  %v4970 = vpop.permute.xlu0 %4969
  %4971 = vrot.lane.b32.xlu0 %v2595, 86
  %v4972 = vpop.permute.xlu0 %4971
  %4973 = vrot.lane.b32.xlu0 %v2596, 86
  %v4974 = vpop.permute.xlu0 %4973
  %4975 = vrot.lane.b32.xlu0 %v2597, 86
  %v4976 = vpop.permute.xlu0 %4975
  %vm4977 = vcmask 703488
  %v4978 = vsel %vm4977, %v4970, %v4972
  %v4979 = vsel %vm4977, %v4972, %v4974
  %v4980 = vsel %vm4977, %v4974, %v4976
  %v4985 = vmul.f32 %v412, %v4978
  %v4986 = vmul.f32 %v481, %v4979
  %v4987 = vmul.f32 %v550, %v4980
  %v4988 = vmul.f32 %v619, %v4976
  %4989 = vrot.lane.b32.xlu0 %v2598, 86
  %v4990 = vpop.permute.xlu0 %4989
  %4991 = vrot.lane.b32.xlu0 %v2599, 86
  %v4992 = vpop.permute.xlu0 %4991
  %4993 = vrot.lane.b32.xlu0 %v2600, 86
  %v4994 = vpop.permute.xlu0 %4993
  %4995 = vrot.lane.b32.xlu0 %v2601, 86
  %v4996 = vpop.permute.xlu0 %4995
  %v4997 = vsel %vm4977, %v4990, %v4992
  %v4998 = vsel %vm4977, %v4992, %v4994
  %v4999 = vsel %vm4977, %v4994, %v4996
  %v5004 = vmul.f32 %v415, %v4997
  %v5005 = vmul.f32 %v484, %v4998
  %v5006 = vmul.f32 %v553, %v4999
  %v5007 = vmul.f32 %v622, %v4996
  %v5008 = vadd.f32 %v4985, %v5004
  %v5009 = vadd.f32 %v4986, %v5005
  %v5010 = vadd.f32 %v4987, %v5006
  %v5011 = vadd.f32 %v4988, %v5007
  %v5012 = vmax.f32 %v4965, %v5008
  %v5013 = vmax.f32 %v4966, %v5009
  %v5014 = vmax.f32 %v4967, %v5010
  %v5015 = vmax.f32 %v4968, %v5011
  %5016 = vrot.lane.b32.xlu0 %v2594, 85
  %v5017 = vpop.permute.xlu0 %5016
  %5018 = vrot.lane.b32.xlu0 %v2595, 85
  %v5019 = vpop.permute.xlu0 %5018
  %5020 = vrot.lane.b32.xlu0 %v2596, 85
  %v5021 = vpop.permute.xlu0 %5020
  %5022 = vrot.lane.b32.xlu0 %v2597, 85
  %v5023 = vpop.permute.xlu0 %5022
  %vm5024 = vcmask 695296
  %v5025 = vsel %vm5024, %v5017, %v5019
  %v5026 = vsel %vm5024, %v5019, %v5021
  %v5027 = vsel %vm5024, %v5021, %v5023
  %v5032 = vmul.f32 %v412, %v5025
  %v5033 = vmul.f32 %v481, %v5026
  %v5034 = vmul.f32 %v550, %v5027
  %v5035 = vmul.f32 %v619, %v5023
  %5036 = vrot.lane.b32.xlu0 %v2598, 85
  %v5037 = vpop.permute.xlu0 %5036
  %5038 = vrot.lane.b32.xlu0 %v2599, 85
  %v5039 = vpop.permute.xlu0 %5038
  %5040 = vrot.lane.b32.xlu0 %v2600, 85
  %v5041 = vpop.permute.xlu0 %5040
  %5042 = vrot.lane.b32.xlu0 %v2601, 85
  %v5043 = vpop.permute.xlu0 %5042
  %v5044 = vsel %vm5024, %v5037, %v5039
  %v5045 = vsel %vm5024, %v5039, %v5041
  %v5046 = vsel %vm5024, %v5041, %v5043
  %v5051 = vmul.f32 %v415, %v5044
  %v5052 = vmul.f32 %v484, %v5045
  %v5053 = vmul.f32 %v553, %v5046
  %v5054 = vmul.f32 %v622, %v5043
  %v5055 = vadd.f32 %v5032, %v5051
  %v5056 = vadd.f32 %v5033, %v5052
  %v5057 = vadd.f32 %v5034, %v5053
  %v5058 = vadd.f32 %v5035, %v5054
  %v5059 = vmax.f32 %v5012, %v5055
  %v5060 = vmax.f32 %v5013, %v5056
  %v5061 = vmax.f32 %v5014, %v5057
  %v5062 = vmax.f32 %v5015, %v5058
  %5063 = vrot.lane.b32.xlu0 %v2594, 84
  %v5064 = vpop.permute.xlu0 %5063
  %5065 = vrot.lane.b32.xlu0 %v2595, 84
  %v5066 = vpop.permute.xlu0 %5065
  %5067 = vrot.lane.b32.xlu0 %v2596, 84
  %v5068 = vpop.permute.xlu0 %5067
  %5069 = vrot.lane.b32.xlu0 %v2597, 84
  %v5070 = vpop.permute.xlu0 %5069
  %vm5071 = vcmask 687104
  %v5072 = vsel %vm5071, %v5064, %v5066
  %v5073 = vsel %vm5071, %v5066, %v5068
  %v5074 = vsel %vm5071, %v5068, %v5070
  %v5079 = vmul.f32 %v412, %v5072
  %v5080 = vmul.f32 %v481, %v5073
  %v5081 = vmul.f32 %v550, %v5074
  %v5082 = vmul.f32 %v619, %v5070
  %5083 = vrot.lane.b32.xlu0 %v2598, 84
  %v5084 = vpop.permute.xlu0 %5083
  %5085 = vrot.lane.b32.xlu0 %v2599, 84
  %v5086 = vpop.permute.xlu0 %5085
  %5087 = vrot.lane.b32.xlu0 %v2600, 84
  %v5088 = vpop.permute.xlu0 %5087
  %5089 = vrot.lane.b32.xlu0 %v2601, 84
  %v5090 = vpop.permute.xlu0 %5089
  %v5091 = vsel %vm5071, %v5084, %v5086
  %v5092 = vsel %vm5071, %v5086, %v5088
  %v5093 = vsel %vm5071, %v5088, %v5090
  %v5098 = vmul.f32 %v415, %v5091
  %v5099 = vmul.f32 %v484, %v5092
  %v5100 = vmul.f32 %v553, %v5093
  %v5101 = vmul.f32 %v622, %v5090
  %v5102 = vadd.f32 %v5079, %v5098
  %v5103 = vadd.f32 %v5080, %v5099
  %v5104 = vadd.f32 %v5081, %v5100
  %v5105 = vadd.f32 %v5082, %v5101
  %v5106 = vmax.f32 %v5059, %v5102
  %v5107 = vmax.f32 %v5060, %v5103
  %v5108 = vmax.f32 %v5061, %v5104
  %v5109 = vmax.f32 %v5062, %v5105
  %5110 = vrot.lane.b32.xlu0 %v2594, 83
  %v5111 = vpop.permute.xlu0 %5110
  %5112 = vrot.lane.b32.xlu0 %v2595, 83
  %v5113 = vpop.permute.xlu0 %5112
  %5114 = vrot.lane.b32.xlu0 %v2596, 83
  %v5115 = vpop.permute.xlu0 %5114
  %5116 = vrot.lane.b32.xlu0 %v2597, 83
  %v5117 = vpop.permute.xlu0 %5116
  %vm5118 = vcmask 678912
  %v5119 = vsel %vm5118, %v5111, %v5113
  %v5120 = vsel %vm5118, %v5113, %v5115
  %v5121 = vsel %vm5118, %v5115, %v5117
  %v5126 = vmul.f32 %v412, %v5119
  %v5127 = vmul.f32 %v481, %v5120
  %v5128 = vmul.f32 %v550, %v5121
  %v5129 = vmul.f32 %v619, %v5117
  %5130 = vrot.lane.b32.xlu0 %v2598, 83
  %v5131 = vpop.permute.xlu0 %5130
  %5132 = vrot.lane.b32.xlu0 %v2599, 83
  %v5133 = vpop.permute.xlu0 %5132
  %5134 = vrot.lane.b32.xlu0 %v2600, 83
  %v5135 = vpop.permute.xlu0 %5134
  %5136 = vrot.lane.b32.xlu0 %v2601, 83
  %v5137 = vpop.permute.xlu0 %5136
  %v5138 = vsel %vm5118, %v5131, %v5133
  %v5139 = vsel %vm5118, %v5133, %v5135
  %v5140 = vsel %vm5118, %v5135, %v5137
  %v5145 = vmul.f32 %v415, %v5138
  %v5146 = vmul.f32 %v484, %v5139
  %v5147 = vmul.f32 %v553, %v5140
  %v5148 = vmul.f32 %v622, %v5137
  %v5149 = vadd.f32 %v5126, %v5145
  %v5150 = vadd.f32 %v5127, %v5146
  %v5151 = vadd.f32 %v5128, %v5147
  %v5152 = vadd.f32 %v5129, %v5148
  %v5153 = vmax.f32 %v5106, %v5149
  %v5154 = vmax.f32 %v5107, %v5150
  %v5155 = vmax.f32 %v5108, %v5151
  %v5156 = vmax.f32 %v5109, %v5152
  %5157 = vrot.lane.b32.xlu0 %v2594, 82
  %v5158 = vpop.permute.xlu0 %5157
  %5159 = vrot.lane.b32.xlu0 %v2595, 82
  %v5160 = vpop.permute.xlu0 %5159
  %5161 = vrot.lane.b32.xlu0 %v2596, 82
  %v5162 = vpop.permute.xlu0 %5161
  %5163 = vrot.lane.b32.xlu0 %v2597, 82
  %v5164 = vpop.permute.xlu0 %5163
  %vm5165 = vcmask 670720
  %v5166 = vsel %vm5165, %v5158, %v5160
  %v5167 = vsel %vm5165, %v5160, %v5162
  %v5168 = vsel %vm5165, %v5162, %v5164
  %v5173 = vmul.f32 %v412, %v5166
  %v5174 = vmul.f32 %v481, %v5167
  %v5175 = vmul.f32 %v550, %v5168
  %v5176 = vmul.f32 %v619, %v5164
  %5177 = vrot.lane.b32.xlu0 %v2598, 82
  %v5178 = vpop.permute.xlu0 %5177
  %5179 = vrot.lane.b32.xlu0 %v2599, 82
  %v5180 = vpop.permute.xlu0 %5179
  %5181 = vrot.lane.b32.xlu0 %v2600, 82
  %v5182 = vpop.permute.xlu0 %5181
  %5183 = vrot.lane.b32.xlu0 %v2601, 82
  %v5184 = vpop.permute.xlu0 %5183
  %v5185 = vsel %vm5165, %v5178, %v5180
  %v5186 = vsel %vm5165, %v5180, %v5182
  %v5187 = vsel %vm5165, %v5182, %v5184
  %v5192 = vmul.f32 %v415, %v5185
  %v5193 = vmul.f32 %v484, %v5186
  %v5194 = vmul.f32 %v553, %v5187
  %v5195 = vmul.f32 %v622, %v5184
  %v5196 = vadd.f32 %v5173, %v5192
  %v5197 = vadd.f32 %v5174, %v5193
  %v5198 = vadd.f32 %v5175, %v5194
  %v5199 = vadd.f32 %v5176, %v5195
  %v5200 = vmax.f32 %v5153, %v5196
  %v5201 = vmax.f32 %v5154, %v5197
  %v5202 = vmax.f32 %v5155, %v5198
  %v5203 = vmax.f32 %v5156, %v5199
  %5204 = vrot.lane.b32.xlu0 %v2594, 81
  %v5205 = vpop.permute.xlu0 %5204
  %5206 = vrot.lane.b32.xlu0 %v2595, 81
  %v5207 = vpop.permute.xlu0 %5206
  %5208 = vrot.lane.b32.xlu0 %v2596, 81
  %v5209 = vpop.permute.xlu0 %5208
  %5210 = vrot.lane.b32.xlu0 %v2597, 81
  %v5211 = vpop.permute.xlu0 %5210
  %vm5212 = vcmask 662528
  %v5213 = vsel %vm5212, %v5205, %v5207
  %v5214 = vsel %vm5212, %v5207, %v5209
  %v5215 = vsel %vm5212, %v5209, %v5211
  %v5220 = vmul.f32 %v412, %v5213
  %v5221 = vmul.f32 %v481, %v5214
  %v5222 = vmul.f32 %v550, %v5215
  %v5223 = vmul.f32 %v619, %v5211
  %5224 = vrot.lane.b32.xlu0 %v2598, 81
  %v5225 = vpop.permute.xlu0 %5224
  %5226 = vrot.lane.b32.xlu0 %v2599, 81
  %v5227 = vpop.permute.xlu0 %5226
  %5228 = vrot.lane.b32.xlu0 %v2600, 81
  %v5229 = vpop.permute.xlu0 %5228
  %5230 = vrot.lane.b32.xlu0 %v2601, 81
  %v5231 = vpop.permute.xlu0 %5230
  %v5232 = vsel %vm5212, %v5225, %v5227
  %v5233 = vsel %vm5212, %v5227, %v5229
  %v5234 = vsel %vm5212, %v5229, %v5231
  %v5239 = vmul.f32 %v415, %v5232
  %v5240 = vmul.f32 %v484, %v5233
  %v5241 = vmul.f32 %v553, %v5234
  %v5242 = vmul.f32 %v622, %v5231
  %v5243 = vadd.f32 %v5220, %v5239
  %v5244 = vadd.f32 %v5221, %v5240
  %v5245 = vadd.f32 %v5222, %v5241
  %v5246 = vadd.f32 %v5223, %v5242
  %v5247 = vmax.f32 %v5200, %v5243
  %v5248 = vmax.f32 %v5201, %v5244
  %v5249 = vmax.f32 %v5202, %v5245
  %v5250 = vmax.f32 %v5203, %v5246
  %v5251 = vmax.f32 %v4464, %v5247
  %v5252 = vmax.f32 %v4465, %v5248
  %v5253 = vmax.f32 %v4466, %v5249
  %v5254 = vmax.f32 %v4467, %v5250
  %v5255 = vsub.f32 %v4464, %v5251
  %v5256 = vsub.f32 %v4465, %v5252
  %v5257 = vsub.f32 %v4466, %v5253
  %v5258 = vsub.f32 %v4467, %v5254
  %v5259 = vmul.f32 %v5255, 1.442695
  %v5260 = vpow.pop %v5259
  %v5261 = vmul.f32 %v5256, 1.442695
  %v5262 = vpow.pop %v5261
  %v5263 = vmul.f32 %v5257, 1.442695
  %v5264 = vpow.pop %v5263
  %v5265 = vmul.f32 %v5258, 1.442695
  %v5266 = vpow.pop %v5265
  %v5267 = vmul.f32 %v5260, %v4876
  %v5268 = vmul.f32 %v5262, %v4877
  %v5269 = vmul.f32 %v5264, %v4878
  %v5270 = vmul.f32 %v5266, %v4879
  %v5271 = vmul.f32 %v5260, %v4899
  %v5272 = vmul.f32 %v5262, %v4900
  %v5273 = vmul.f32 %v5264, %v4901
  %v5274 = vmul.f32 %v5266, %v4902
  %v5275 = vmul.f32 %v5260, %v4922
  %v5276 = vmul.f32 %v5262, %v4923
  %v5277 = vmul.f32 %v5264, %v4924
  %v5278 = vmul.f32 %v5266, %v4925
  %v5279 = vsub.f32 %v4965, %v5251
  %v5280 = vsub.f32 %v4966, %v5252
  %v5281 = vsub.f32 %v4967, %v5253
  %v5282 = vsub.f32 %v4968, %v5254
  %v5283 = vmul.f32 %v5279, 1.442695
  %v5284 = vpow.pop %v5283
  %v5285 = vmul.f32 %v5280, 1.442695
  %v5286 = vpow.pop %v5285
  %v5287 = vmul.f32 %v5281, 1.442695
  %v5288 = vpow.pop %v5287
  %v5289 = vmul.f32 %v5282, 1.442695
  %v5290 = vpow.pop %v5289
  %v5291 = vadd.f32 %v5267, %v5284
  %v5292 = vadd.f32 %v5268, %v5286
  %v5293 = vadd.f32 %v5269, %v5288
  %v5294 = vadd.f32 %v5270, %v5290
  %5295 = vrot.lane.b32.xlu0 %v2963, 87
  %v5296 = vpop.permute.xlu0 %5295
  %5297 = vrot.lane.b32.xlu0 %v2964, 87
  %v5298 = vpop.permute.xlu0 %5297
  %5299 = vrot.lane.b32.xlu0 %v2965, 87
  %v5300 = vpop.permute.xlu0 %5299
  %5301 = vrot.lane.b32.xlu0 %v2966, 87
  %v5302 = vpop.permute.xlu0 %5301
  %v5303 = vsel %vm4934, %v5296, %v5298
  %v5304 = vsel %vm4934, %v5298, %v5300
  %v5305 = vsel %vm4934, %v5300, %v5302
  %v5310 = vmul.f32 %v5284, %v5303
  %v5311 = vmul.f32 %v5286, %v5304
  %v5312 = vmul.f32 %v5288, %v5305
  %v5313 = vmul.f32 %v5290, %v5302
  %v5314 = vadd.f32 %v5271, %v5310
  %v5315 = vadd.f32 %v5272, %v5311
  %v5316 = vadd.f32 %v5273, %v5312
  %v5317 = vadd.f32 %v5274, %v5313
  %5318 = vrot.lane.b32.xlu0 %v2967, 87
  %v5319 = vpop.permute.xlu0 %5318
  %5320 = vrot.lane.b32.xlu0 %v2968, 87
  %v5321 = vpop.permute.xlu0 %5320
  %5322 = vrot.lane.b32.xlu0 %v2969, 87
  %v5323 = vpop.permute.xlu0 %5322
  %5324 = vrot.lane.b32.xlu0 %v2970, 87
  %v5325 = vpop.permute.xlu0 %5324
  %v5326 = vsel %vm4934, %v5319, %v5321
  %v5327 = vsel %vm4934, %v5321, %v5323
  %v5328 = vsel %vm4934, %v5323, %v5325
  %v5333 = vmul.f32 %v5284, %v5326
  %v5334 = vmul.f32 %v5286, %v5327
  %v5335 = vmul.f32 %v5288, %v5328
  %v5336 = vmul.f32 %v5290, %v5325
  %v5337 = vadd.f32 %v5275, %v5333
  %v5338 = vadd.f32 %v5276, %v5334
  %v5339 = vadd.f32 %v5277, %v5335
  %v5340 = vadd.f32 %v5278, %v5336
  %v5341 = vsub.f32 %v5008, %v5251
  %v5342 = vsub.f32 %v5009, %v5252
  %v5343 = vsub.f32 %v5010, %v5253
  %v5344 = vsub.f32 %v5011, %v5254
  %v5345 = vmul.f32 %v5341, 1.442695
  %v5346 = vpow.pop %v5345
  %v5347 = vmul.f32 %v5342, 1.442695
  %v5348 = vpow.pop %v5347
  %v5349 = vmul.f32 %v5343, 1.442695
  %v5350 = vpow.pop %v5349
  %v5351 = vmul.f32 %v5344, 1.442695
  %v5352 = vpow.pop %v5351
  %v5353 = vadd.f32 %v5291, %v5346
  %v5354 = vadd.f32 %v5292, %v5348
  %v5355 = vadd.f32 %v5293, %v5350
  %v5356 = vadd.f32 %v5294, %v5352
  %5357 = vrot.lane.b32.xlu0 %v2963, 86
  %v5358 = vpop.permute.xlu0 %5357
  %5359 = vrot.lane.b32.xlu0 %v2964, 86
  %v5360 = vpop.permute.xlu0 %5359
  %5361 = vrot.lane.b32.xlu0 %v2965, 86
  %v5362 = vpop.permute.xlu0 %5361
  %5363 = vrot.lane.b32.xlu0 %v2966, 86
  %v5364 = vpop.permute.xlu0 %5363
  %v5365 = vsel %vm4977, %v5358, %v5360
  %v5366 = vsel %vm4977, %v5360, %v5362
  %v5367 = vsel %vm4977, %v5362, %v5364
  %v5372 = vmul.f32 %v5346, %v5365
  %v5373 = vmul.f32 %v5348, %v5366
  %v5374 = vmul.f32 %v5350, %v5367
  %v5375 = vmul.f32 %v5352, %v5364
  %v5376 = vadd.f32 %v5314, %v5372
  %v5377 = vadd.f32 %v5315, %v5373
  %v5378 = vadd.f32 %v5316, %v5374
  %v5379 = vadd.f32 %v5317, %v5375
  %5380 = vrot.lane.b32.xlu0 %v2967, 86
  %v5381 = vpop.permute.xlu0 %5380
  %5382 = vrot.lane.b32.xlu0 %v2968, 86
  %v5383 = vpop.permute.xlu0 %5382
  %5384 = vrot.lane.b32.xlu0 %v2969, 86
  %v5385 = vpop.permute.xlu0 %5384
  %5386 = vrot.lane.b32.xlu0 %v2970, 86
  %v5387 = vpop.permute.xlu0 %5386
  %v5388 = vsel %vm4977, %v5381, %v5383
  %v5389 = vsel %vm4977, %v5383, %v5385
  %v5390 = vsel %vm4977, %v5385, %v5387
  %v5395 = vmul.f32 %v5346, %v5388
  %v5396 = vmul.f32 %v5348, %v5389
  %v5397 = vmul.f32 %v5350, %v5390
  %v5398 = vmul.f32 %v5352, %v5387
  %v5399 = vadd.f32 %v5337, %v5395
  %v5400 = vadd.f32 %v5338, %v5396
  %v5401 = vadd.f32 %v5339, %v5397
  %v5402 = vadd.f32 %v5340, %v5398
  %v5403 = vsub.f32 %v5055, %v5251
  %v5404 = vsub.f32 %v5056, %v5252
  %v5405 = vsub.f32 %v5057, %v5253
  %v5406 = vsub.f32 %v5058, %v5254
  %v5407 = vmul.f32 %v5403, 1.442695
  %v5408 = vpow.pop %v5407
  %v5409 = vmul.f32 %v5404, 1.442695
  %v5410 = vpow.pop %v5409
  %v5411 = vmul.f32 %v5405, 1.442695
  %v5412 = vpow.pop %v5411
  %v5413 = vmul.f32 %v5406, 1.442695
  %v5414 = vpow.pop %v5413
  %v5415 = vadd.f32 %v5353, %v5408
  %v5416 = vadd.f32 %v5354, %v5410
  %v5417 = vadd.f32 %v5355, %v5412
  %v5418 = vadd.f32 %v5356, %v5414
  %5419 = vrot.lane.b32.xlu0 %v2963, 85
  %v5420 = vpop.permute.xlu0 %5419
  %5421 = vrot.lane.b32.xlu0 %v2964, 85
  %v5422 = vpop.permute.xlu0 %5421
  %5423 = vrot.lane.b32.xlu0 %v2965, 85
  %v5424 = vpop.permute.xlu0 %5423
  %5425 = vrot.lane.b32.xlu0 %v2966, 85
  %v5426 = vpop.permute.xlu0 %5425
  %v5427 = vsel %vm5024, %v5420, %v5422
  %v5428 = vsel %vm5024, %v5422, %v5424
  %v5429 = vsel %vm5024, %v5424, %v5426
  %v5434 = vmul.f32 %v5408, %v5427
  %v5435 = vmul.f32 %v5410, %v5428
  %v5436 = vmul.f32 %v5412, %v5429
  %v5437 = vmul.f32 %v5414, %v5426
  %v5438 = vadd.f32 %v5376, %v5434
  %v5439 = vadd.f32 %v5377, %v5435
  %v5440 = vadd.f32 %v5378, %v5436
  %v5441 = vadd.f32 %v5379, %v5437
  %5442 = vrot.lane.b32.xlu0 %v2967, 85
  %v5443 = vpop.permute.xlu0 %5442
  %5444 = vrot.lane.b32.xlu0 %v2968, 85
  %v5445 = vpop.permute.xlu0 %5444
  %5446 = vrot.lane.b32.xlu0 %v2969, 85
  %v5447 = vpop.permute.xlu0 %5446
  %5448 = vrot.lane.b32.xlu0 %v2970, 85
  %v5449 = vpop.permute.xlu0 %5448
  %v5450 = vsel %vm5024, %v5443, %v5445
  %v5451 = vsel %vm5024, %v5445, %v5447
  %v5452 = vsel %vm5024, %v5447, %v5449
  %v5457 = vmul.f32 %v5408, %v5450
  %v5458 = vmul.f32 %v5410, %v5451
  %v5459 = vmul.f32 %v5412, %v5452
  %v5460 = vmul.f32 %v5414, %v5449
  %v5461 = vadd.f32 %v5399, %v5457
  %v5462 = vadd.f32 %v5400, %v5458
  %v5463 = vadd.f32 %v5401, %v5459
  %v5464 = vadd.f32 %v5402, %v5460
  %v5465 = vsub.f32 %v5102, %v5251
  %v5466 = vsub.f32 %v5103, %v5252
  %v5467 = vsub.f32 %v5104, %v5253
  %v5468 = vsub.f32 %v5105, %v5254
  %v5469 = vmul.f32 %v5465, 1.442695
  %v5470 = vpow.pop %v5469
  %v5471 = vmul.f32 %v5466, 1.442695
  %v5472 = vpow.pop %v5471
  %v5473 = vmul.f32 %v5467, 1.442695
  %v5474 = vpow.pop %v5473
  %v5475 = vmul.f32 %v5468, 1.442695
  %v5476 = vpow.pop %v5475
  %v5477 = vadd.f32 %v5415, %v5470
  %v5478 = vadd.f32 %v5416, %v5472
  %v5479 = vadd.f32 %v5417, %v5474
  %v5480 = vadd.f32 %v5418, %v5476
  %5481 = vrot.lane.b32.xlu0 %v2963, 84
  %v5482 = vpop.permute.xlu0 %5481
  %5483 = vrot.lane.b32.xlu0 %v2964, 84
  %v5484 = vpop.permute.xlu0 %5483
  %5485 = vrot.lane.b32.xlu0 %v2965, 84
  %v5486 = vpop.permute.xlu0 %5485
  %5487 = vrot.lane.b32.xlu0 %v2966, 84
  %v5488 = vpop.permute.xlu0 %5487
  %v5489 = vsel %vm5071, %v5482, %v5484
  %v5490 = vsel %vm5071, %v5484, %v5486
  %v5491 = vsel %vm5071, %v5486, %v5488
  %v5496 = vmul.f32 %v5470, %v5489
  %v5497 = vmul.f32 %v5472, %v5490
  %v5498 = vmul.f32 %v5474, %v5491
  %v5499 = vmul.f32 %v5476, %v5488
  %v5500 = vadd.f32 %v5438, %v5496
  %v5501 = vadd.f32 %v5439, %v5497
  %v5502 = vadd.f32 %v5440, %v5498
  %v5503 = vadd.f32 %v5441, %v5499
  %5504 = vrot.lane.b32.xlu0 %v2967, 84
  %v5505 = vpop.permute.xlu0 %5504
  %5506 = vrot.lane.b32.xlu0 %v2968, 84
  %v5507 = vpop.permute.xlu0 %5506
  %5508 = vrot.lane.b32.xlu0 %v2969, 84
  %v5509 = vpop.permute.xlu0 %5508
  %5510 = vrot.lane.b32.xlu0 %v2970, 84
  %v5511 = vpop.permute.xlu0 %5510
  %v5512 = vsel %vm5071, %v5505, %v5507
  %v5513 = vsel %vm5071, %v5507, %v5509
  %v5514 = vsel %vm5071, %v5509, %v5511
  %v5519 = vmul.f32 %v5470, %v5512
  %v5520 = vmul.f32 %v5472, %v5513
  %v5521 = vmul.f32 %v5474, %v5514
  %v5522 = vmul.f32 %v5476, %v5511
  %v5523 = vadd.f32 %v5461, %v5519
  %v5524 = vadd.f32 %v5462, %v5520
  %v5525 = vadd.f32 %v5463, %v5521
  %v5526 = vadd.f32 %v5464, %v5522
  %v5527 = vsub.f32 %v5149, %v5251
  %v5528 = vsub.f32 %v5150, %v5252
  %v5529 = vsub.f32 %v5151, %v5253
  %v5530 = vsub.f32 %v5152, %v5254
  %v5531 = vmul.f32 %v5527, 1.442695
  %v5532 = vpow.pop %v5531
  %v5533 = vmul.f32 %v5528, 1.442695
  %v5534 = vpow.pop %v5533
  %v5535 = vmul.f32 %v5529, 1.442695
  %v5536 = vpow.pop %v5535
  %v5537 = vmul.f32 %v5530, 1.442695
  %v5538 = vpow.pop %v5537
  %v5539 = vadd.f32 %v5477, %v5532
  %v5540 = vadd.f32 %v5478, %v5534
  %v5541 = vadd.f32 %v5479, %v5536
  %v5542 = vadd.f32 %v5480, %v5538
  %5543 = vrot.lane.b32.xlu0 %v2963, 83
  %v5544 = vpop.permute.xlu0 %5543
  %5545 = vrot.lane.b32.xlu0 %v2964, 83
  %v5546 = vpop.permute.xlu0 %5545
  %5547 = vrot.lane.b32.xlu0 %v2965, 83
  %v5548 = vpop.permute.xlu0 %5547
  %5549 = vrot.lane.b32.xlu0 %v2966, 83
  %v5550 = vpop.permute.xlu0 %5549
  %v5551 = vsel %vm5118, %v5544, %v5546
  %v5552 = vsel %vm5118, %v5546, %v5548
  %v5553 = vsel %vm5118, %v5548, %v5550
  %v5558 = vmul.f32 %v5532, %v5551
  %v5559 = vmul.f32 %v5534, %v5552
  %v5560 = vmul.f32 %v5536, %v5553
  %v5561 = vmul.f32 %v5538, %v5550
  %v5562 = vadd.f32 %v5500, %v5558
  %v5563 = vadd.f32 %v5501, %v5559
  %v5564 = vadd.f32 %v5502, %v5560
  %v5565 = vadd.f32 %v5503, %v5561
  %5566 = vrot.lane.b32.xlu0 %v2967, 83
  %v5567 = vpop.permute.xlu0 %5566
  %5568 = vrot.lane.b32.xlu0 %v2968, 83
  %v5569 = vpop.permute.xlu0 %5568
  %5570 = vrot.lane.b32.xlu0 %v2969, 83
  %v5571 = vpop.permute.xlu0 %5570
  %5572 = vrot.lane.b32.xlu0 %v2970, 83
  %v5573 = vpop.permute.xlu0 %5572
  %v5574 = vsel %vm5118, %v5567, %v5569
  %v5575 = vsel %vm5118, %v5569, %v5571
  %v5576 = vsel %vm5118, %v5571, %v5573
  %v5581 = vmul.f32 %v5532, %v5574
  %v5582 = vmul.f32 %v5534, %v5575
  %v5583 = vmul.f32 %v5536, %v5576
  %v5584 = vmul.f32 %v5538, %v5573
  %v5585 = vadd.f32 %v5523, %v5581
  %v5586 = vadd.f32 %v5524, %v5582
  %v5587 = vadd.f32 %v5525, %v5583
  %v5588 = vadd.f32 %v5526, %v5584
  %v5589 = vsub.f32 %v5196, %v5251
  %v5590 = vsub.f32 %v5197, %v5252
  %v5591 = vsub.f32 %v5198, %v5253
  %v5592 = vsub.f32 %v5199, %v5254
  %v5593 = vmul.f32 %v5589, 1.442695
  %v5594 = vpow.pop %v5593
  %v5595 = vmul.f32 %v5590, 1.442695
  %v5596 = vpow.pop %v5595
  %v5597 = vmul.f32 %v5591, 1.442695
  %v5598 = vpow.pop %v5597
  %v5599 = vmul.f32 %v5592, 1.442695
  %v5600 = vpow.pop %v5599
  %v5601 = vadd.f32 %v5539, %v5594
  %v5602 = vadd.f32 %v5540, %v5596
  %v5603 = vadd.f32 %v5541, %v5598
  %v5604 = vadd.f32 %v5542, %v5600
  %5605 = vrot.lane.b32.xlu0 %v2963, 82
  %v5606 = vpop.permute.xlu0 %5605
  %5607 = vrot.lane.b32.xlu0 %v2964, 82
  %v5608 = vpop.permute.xlu0 %5607
  %5609 = vrot.lane.b32.xlu0 %v2965, 82
  %v5610 = vpop.permute.xlu0 %5609
  %5611 = vrot.lane.b32.xlu0 %v2966, 82
  %v5612 = vpop.permute.xlu0 %5611
  %v5613 = vsel %vm5165, %v5606, %v5608
  %v5614 = vsel %vm5165, %v5608, %v5610
  %v5615 = vsel %vm5165, %v5610, %v5612
  %v5620 = vmul.f32 %v5594, %v5613
  %v5621 = vmul.f32 %v5596, %v5614
  %v5622 = vmul.f32 %v5598, %v5615
  %v5623 = vmul.f32 %v5600, %v5612
  %v5624 = vadd.f32 %v5562, %v5620
  %v5625 = vadd.f32 %v5563, %v5621
  %v5626 = vadd.f32 %v5564, %v5622
  %v5627 = vadd.f32 %v5565, %v5623
  %5628 = vrot.lane.b32.xlu0 %v2967, 82
  %v5629 = vpop.permute.xlu0 %5628
  %5630 = vrot.lane.b32.xlu0 %v2968, 82
  %v5631 = vpop.permute.xlu0 %5630
  %5632 = vrot.lane.b32.xlu0 %v2969, 82
  %v5633 = vpop.permute.xlu0 %5632
  %5634 = vrot.lane.b32.xlu0 %v2970, 82
  %v5635 = vpop.permute.xlu0 %5634
  %v5636 = vsel %vm5165, %v5629, %v5631
  %v5637 = vsel %vm5165, %v5631, %v5633
  %v5638 = vsel %vm5165, %v5633, %v5635
  %v5643 = vmul.f32 %v5594, %v5636
  %v5644 = vmul.f32 %v5596, %v5637
  %v5645 = vmul.f32 %v5598, %v5638
  %v5646 = vmul.f32 %v5600, %v5635
  %v5647 = vadd.f32 %v5585, %v5643
  %v5648 = vadd.f32 %v5586, %v5644
  %v5649 = vadd.f32 %v5587, %v5645
  %v5650 = vadd.f32 %v5588, %v5646
  %v5651 = vsub.f32 %v5243, %v5251
  %v5652 = vsub.f32 %v5244, %v5252
  %v5653 = vsub.f32 %v5245, %v5253
  %v5654 = vsub.f32 %v5246, %v5254
  %v5655 = vmul.f32 %v5651, 1.442695
  %v5656 = vpow.pop %v5655
  %v5657 = vmul.f32 %v5652, 1.442695
  %v5658 = vpow.pop %v5657
  %v5659 = vmul.f32 %v5653, 1.442695
  %v5660 = vpow.pop %v5659
  %v5661 = vmul.f32 %v5654, 1.442695
  %v5662 = vpow.pop %v5661
  %v5663 = vadd.f32 %v5601, %v5656
  %v5664 = vadd.f32 %v5602, %v5658
  %v5665 = vadd.f32 %v5603, %v5660
  %v5666 = vadd.f32 %v5604, %v5662
  %5667 = vrot.lane.b32.xlu0 %v2963, 81
  %v5668 = vpop.permute.xlu0 %5667
  %5669 = vrot.lane.b32.xlu0 %v2964, 81
  %v5670 = vpop.permute.xlu0 %5669
  %5671 = vrot.lane.b32.xlu0 %v2965, 81
  %v5672 = vpop.permute.xlu0 %5671
  %5673 = vrot.lane.b32.xlu0 %v2966, 81
  %v5674 = vpop.permute.xlu0 %5673
  %v5675 = vsel %vm5212, %v5668, %v5670
  %v5676 = vsel %vm5212, %v5670, %v5672
  %v5677 = vsel %vm5212, %v5672, %v5674
  %v5682 = vmul.f32 %v5656, %v5675
  %v5683 = vmul.f32 %v5658, %v5676
  %v5684 = vmul.f32 %v5660, %v5677
  %v5685 = vmul.f32 %v5662, %v5674
  %v5686 = vadd.f32 %v5624, %v5682
  %v5687 = vadd.f32 %v5625, %v5683
  %v5688 = vadd.f32 %v5626, %v5684
  %v5689 = vadd.f32 %v5627, %v5685
  %5690 = vrot.lane.b32.xlu0 %v2967, 81
  %v5691 = vpop.permute.xlu0 %5690
  %5692 = vrot.lane.b32.xlu0 %v2968, 81
  %v5693 = vpop.permute.xlu0 %5692
  %5694 = vrot.lane.b32.xlu0 %v2969, 81
  %v5695 = vpop.permute.xlu0 %5694
  %5696 = vrot.lane.b32.xlu0 %v2970, 81
  %v5697 = vpop.permute.xlu0 %5696
  %v5698 = vsel %vm5212, %v5691, %v5693
  %v5699 = vsel %vm5212, %v5693, %v5695
  %v5700 = vsel %vm5212, %v5695, %v5697
  %v5705 = vmul.f32 %v5656, %v5698
  %v5706 = vmul.f32 %v5658, %v5699
  %v5707 = vmul.f32 %v5660, %v5700
  %v5708 = vmul.f32 %v5662, %v5697
  %v5709 = vadd.f32 %v5647, %v5705
  %v5710 = vadd.f32 %v5648, %v5706
  %v5711 = vadd.f32 %v5649, %v5707
  %v5712 = vadd.f32 %v5650, %v5708
  %5713 = vrot.lane.b32.xlu0 %v2595, 65
  %v5714 = vpop.permute.xlu0 %5713
  %5715 = vrot.lane.b32.xlu0 %v2596, 65
  %v5716 = vpop.permute.xlu0 %5715
  %5717 = vrot.lane.b32.xlu0 %v2597, 65
  %v5718 = vpop.permute.xlu0 %5717
  %v5719 = vsel %vm1370, %v5714, %v5716
  %v5720 = vsel %vm1370, %v5716, %v5718
  %v5725 = vmul.f32 %v412, %v5714
  %v5726 = vmul.f32 %v481, %v5719
  %v5727 = vmul.f32 %v550, %v5720
  %v5728 = vmul.f32 %v619, %v5718
  %5729 = vrot.lane.b32.xlu0 %v2599, 65
  %v5730 = vpop.permute.xlu0 %5729
  %5731 = vrot.lane.b32.xlu0 %v2600, 65
  %v5732 = vpop.permute.xlu0 %5731
  %5733 = vrot.lane.b32.xlu0 %v2601, 65
  %v5734 = vpop.permute.xlu0 %5733
  %v5735 = vsel %vm1370, %v5730, %v5732
  %v5736 = vsel %vm1370, %v5732, %v5734
  %v5741 = vmul.f32 %v415, %v5730
  %v5742 = vmul.f32 %v484, %v5735
  %v5743 = vmul.f32 %v553, %v5736
  %v5744 = vmul.f32 %v622, %v5734
  %v5745 = vadd.f32 %v5725, %v5741
  %v5746 = vadd.f32 %v5726, %v5742
  %v5747 = vadd.f32 %v5727, %v5743
  %v5748 = vadd.f32 %v5728, %v5744
  %5749 = vrot.lane.b32.xlu0 %v2595, 64
  %v5750 = vpop.permute.xlu0 %5749
  %5751 = vrot.lane.b32.xlu0 %v2596, 64
  %v5752 = vpop.permute.xlu0 %5751
  %5753 = vrot.lane.b32.xlu0 %v2597, 64
  %v5754 = vpop.permute.xlu0 %5753
  %v5755 = vsel %vm1411, %v5750, %v5752
  %v5756 = vsel %vm1411, %v5752, %v5754
  %v5761 = vmul.f32 %v412, %v5750
  %v5762 = vmul.f32 %v481, %v5755
  %v5763 = vmul.f32 %v550, %v5756
  %v5764 = vmul.f32 %v619, %v5754
  %5765 = vrot.lane.b32.xlu0 %v2599, 64
  %v5766 = vpop.permute.xlu0 %5765
  %5767 = vrot.lane.b32.xlu0 %v2600, 64
  %v5768 = vpop.permute.xlu0 %5767
  %5769 = vrot.lane.b32.xlu0 %v2601, 64
  %v5770 = vpop.permute.xlu0 %5769
  %v5771 = vsel %vm1411, %v5766, %v5768
  %v5772 = vsel %vm1411, %v5768, %v5770
  %v5777 = vmul.f32 %v415, %v5766
  %v5778 = vmul.f32 %v484, %v5771
  %v5779 = vmul.f32 %v553, %v5772
  %v5780 = vmul.f32 %v622, %v5770
  %v5781 = vadd.f32 %v5761, %v5777
  %v5782 = vadd.f32 %v5762, %v5778
  %v5783 = vadd.f32 %v5763, %v5779
  %v5784 = vadd.f32 %v5764, %v5780
  %v5785 = vmax.f32 %v5745, %v5781
  %v5786 = vmax.f32 %v5746, %v5782
  %v5787 = vmax.f32 %v5747, %v5783
  %v5788 = vmax.f32 %v5748, %v5784
  %5789 = vrot.lane.b32.xlu0 %v2595, 63
  %v5790 = vpop.permute.xlu0 %5789
  %5791 = vrot.lane.b32.xlu0 %v2596, 63
  %v5792 = vpop.permute.xlu0 %5791
  %5793 = vrot.lane.b32.xlu0 %v2597, 63
  %v5794 = vpop.permute.xlu0 %5793
  %v5795 = vsel %vm1452, %v5790, %v5792
  %v5796 = vsel %vm1452, %v5792, %v5794
  %v5801 = vmul.f32 %v412, %v5790
  %v5802 = vmul.f32 %v481, %v5795
  %v5803 = vmul.f32 %v550, %v5796
  %v5804 = vmul.f32 %v619, %v5794
  %5805 = vrot.lane.b32.xlu0 %v2599, 63
  %v5806 = vpop.permute.xlu0 %5805
  %5807 = vrot.lane.b32.xlu0 %v2600, 63
  %v5808 = vpop.permute.xlu0 %5807
  %5809 = vrot.lane.b32.xlu0 %v2601, 63
  %v5810 = vpop.permute.xlu0 %5809
  %v5811 = vsel %vm1452, %v5806, %v5808
  %v5812 = vsel %vm1452, %v5808, %v5810
  %v5817 = vmul.f32 %v415, %v5806
  %v5818 = vmul.f32 %v484, %v5811
  %v5819 = vmul.f32 %v553, %v5812
  %v5820 = vmul.f32 %v622, %v5810
  %v5821 = vadd.f32 %v5801, %v5817
  %v5822 = vadd.f32 %v5802, %v5818
  %v5823 = vadd.f32 %v5803, %v5819
  %v5824 = vadd.f32 %v5804, %v5820
  %v5825 = vmax.f32 %v5785, %v5821
  %v5826 = vmax.f32 %v5786, %v5822
  %v5827 = vmax.f32 %v5787, %v5823
  %v5828 = vmax.f32 %v5788, %v5824
  %5829 = vrot.lane.b32.xlu0 %v2595, 62
  %v5830 = vpop.permute.xlu0 %5829
  %5831 = vrot.lane.b32.xlu0 %v2596, 62
  %v5832 = vpop.permute.xlu0 %5831
  %5833 = vrot.lane.b32.xlu0 %v2597, 62
  %v5834 = vpop.permute.xlu0 %5833
  %vm5835 = vcmask 506880
  %v5836 = vsel %vm5835, %v5830, %v5832
  %v5837 = vsel %vm5835, %v5832, %v5834
  %v5842 = vmul.f32 %v412, %v5830
  %v5843 = vmul.f32 %v481, %v5836
  %v5844 = vmul.f32 %v550, %v5837
  %v5845 = vmul.f32 %v619, %v5834
  %5846 = vrot.lane.b32.xlu0 %v2599, 62
  %v5847 = vpop.permute.xlu0 %5846
  %5848 = vrot.lane.b32.xlu0 %v2600, 62
  %v5849 = vpop.permute.xlu0 %5848
  %5850 = vrot.lane.b32.xlu0 %v2601, 62
  %v5851 = vpop.permute.xlu0 %5850
  %v5852 = vsel %vm5835, %v5847, %v5849
  %v5853 = vsel %vm5835, %v5849, %v5851
  %v5858 = vmul.f32 %v415, %v5847
  %v5859 = vmul.f32 %v484, %v5852
  %v5860 = vmul.f32 %v553, %v5853
  %v5861 = vmul.f32 %v622, %v5851
  %v5862 = vadd.f32 %v5842, %v5858
  %v5863 = vadd.f32 %v5843, %v5859
  %v5864 = vadd.f32 %v5844, %v5860
  %v5865 = vadd.f32 %v5845, %v5861
  %v5866 = vmax.f32 %v5825, %v5862
  %v5867 = vmax.f32 %v5826, %v5863
  %v5868 = vmax.f32 %v5827, %v5864
  %v5869 = vmax.f32 %v5828, %v5865
  %5870 = vrot.lane.b32.xlu0 %v2595, 61
  %v5871 = vpop.permute.xlu0 %5870
  %5872 = vrot.lane.b32.xlu0 %v2596, 61
  %v5873 = vpop.permute.xlu0 %5872
  %5874 = vrot.lane.b32.xlu0 %v2597, 61
  %v5875 = vpop.permute.xlu0 %5874
  %vm5876 = vcmask 498688
  %v5877 = vsel %vm5876, %v5871, %v5873
  %v5878 = vsel %vm5876, %v5873, %v5875
  %v5883 = vmul.f32 %v412, %v5871
  %v5884 = vmul.f32 %v481, %v5877
  %v5885 = vmul.f32 %v550, %v5878
  %v5886 = vmul.f32 %v619, %v5875
  %5887 = vrot.lane.b32.xlu0 %v2599, 61
  %v5888 = vpop.permute.xlu0 %5887
  %5889 = vrot.lane.b32.xlu0 %v2600, 61
  %v5890 = vpop.permute.xlu0 %5889
  %5891 = vrot.lane.b32.xlu0 %v2601, 61
  %v5892 = vpop.permute.xlu0 %5891
  %v5893 = vsel %vm5876, %v5888, %v5890
  %v5894 = vsel %vm5876, %v5890, %v5892
  %v5899 = vmul.f32 %v415, %v5888
  %v5900 = vmul.f32 %v484, %v5893
  %v5901 = vmul.f32 %v553, %v5894
  %v5902 = vmul.f32 %v622, %v5892
  %v5903 = vadd.f32 %v5883, %v5899
  %v5904 = vadd.f32 %v5884, %v5900
  %v5905 = vadd.f32 %v5885, %v5901
  %v5906 = vadd.f32 %v5886, %v5902
  %v5907 = vmax.f32 %v5866, %v5903
  %v5908 = vmax.f32 %v5867, %v5904
  %v5909 = vmax.f32 %v5868, %v5905
  %v5910 = vmax.f32 %v5869, %v5906
  %5911 = vrot.lane.b32.xlu0 %v2595, 60
  %v5912 = vpop.permute.xlu0 %5911
  %5913 = vrot.lane.b32.xlu0 %v2596, 60
  %v5914 = vpop.permute.xlu0 %5913
  %5915 = vrot.lane.b32.xlu0 %v2597, 60
  %v5916 = vpop.permute.xlu0 %5915
  %vm5917 = vcmask 490496
  %v5918 = vsel %vm5917, %v5912, %v5914
  %v5919 = vsel %vm5917, %v5914, %v5916
  %v5924 = vmul.f32 %v412, %v5912
  %v5925 = vmul.f32 %v481, %v5918
  %v5926 = vmul.f32 %v550, %v5919
  %v5927 = vmul.f32 %v619, %v5916
  %5928 = vrot.lane.b32.xlu0 %v2599, 60
  %v5929 = vpop.permute.xlu0 %5928
  %5930 = vrot.lane.b32.xlu0 %v2600, 60
  %v5931 = vpop.permute.xlu0 %5930
  %5932 = vrot.lane.b32.xlu0 %v2601, 60
  %v5933 = vpop.permute.xlu0 %5932
  %v5934 = vsel %vm5917, %v5929, %v5931
  %v5935 = vsel %vm5917, %v5931, %v5933
  %v5940 = vmul.f32 %v415, %v5929
  %v5941 = vmul.f32 %v484, %v5934
  %v5942 = vmul.f32 %v553, %v5935
  %v5943 = vmul.f32 %v622, %v5933
  %v5944 = vadd.f32 %v5924, %v5940
  %v5945 = vadd.f32 %v5925, %v5941
  %v5946 = vadd.f32 %v5926, %v5942
  %v5947 = vadd.f32 %v5927, %v5943
  %v5948 = vmax.f32 %v5907, %v5944
  %v5949 = vmax.f32 %v5908, %v5945
  %v5950 = vmax.f32 %v5909, %v5946
  %v5951 = vmax.f32 %v5910, %v5947
  %5952 = vrot.lane.b32.xlu0 %v2595, 59
  %v5953 = vpop.permute.xlu0 %5952
  %5954 = vrot.lane.b32.xlu0 %v2596, 59
  %v5955 = vpop.permute.xlu0 %5954
  %5956 = vrot.lane.b32.xlu0 %v2597, 59
  %v5957 = vpop.permute.xlu0 %5956
  %vm5958 = vcmask 482304
  %v5959 = vsel %vm5958, %v5953, %v5955
  %v5960 = vsel %vm5958, %v5955, %v5957
  %v5965 = vmul.f32 %v412, %v5953
  %v5966 = vmul.f32 %v481, %v5959
  %v5967 = vmul.f32 %v550, %v5960
  %v5968 = vmul.f32 %v619, %v5957
  %5969 = vrot.lane.b32.xlu0 %v2599, 59
  %v5970 = vpop.permute.xlu0 %5969
  %5971 = vrot.lane.b32.xlu0 %v2600, 59
  %v5972 = vpop.permute.xlu0 %5971
  %5973 = vrot.lane.b32.xlu0 %v2601, 59
  %v5974 = vpop.permute.xlu0 %5973
  %v5975 = vsel %vm5958, %v5970, %v5972
  %v5976 = vsel %vm5958, %v5972, %v5974
  %v5981 = vmul.f32 %v415, %v5970
  %v5982 = vmul.f32 %v484, %v5975
  %v5983 = vmul.f32 %v553, %v5976
  %v5984 = vmul.f32 %v622, %v5974
  %v5985 = vadd.f32 %v5965, %v5981
  %v5986 = vadd.f32 %v5966, %v5982
  %v5987 = vadd.f32 %v5967, %v5983
  %v5988 = vadd.f32 %v5968, %v5984
  %v5989 = vmax.f32 %v5948, %v5985
  %v5990 = vmax.f32 %v5949, %v5986
  %v5991 = vmax.f32 %v5950, %v5987
  %v5992 = vmax.f32 %v5951, %v5988
  %v5993 = vmax.f32 %v5251, %v5989
  %v5994 = vmax.f32 %v5252, %v5990
  %v5995 = vmax.f32 %v5253, %v5991
  %v5996 = vmax.f32 %v5254, %v5992
  %v5997 = vsub.f32 %v5251, %v5993
  %v5998 = vsub.f32 %v5252, %v5994
  %v5999 = vsub.f32 %v5253, %v5995
  %v6000 = vsub.f32 %v5254, %v5996
  %v6001 = vmul.f32 %v5997, 1.442695
  %v6002 = vpow.pop %v6001
  %v6003 = vmul.f32 %v5998, 1.442695
  %v6004 = vpow.pop %v6003
  %v6005 = vmul.f32 %v5999, 1.442695
  %v6006 = vpow.pop %v6005
  %v6007 = vmul.f32 %v6000, 1.442695
  %v6008 = vpow.pop %v6007
  %v6009 = vmul.f32 %v6002, %v5663
  %v6010 = vmul.f32 %v6004, %v5664
  %v6011 = vmul.f32 %v6006, %v5665
  %v6012 = vmul.f32 %v6008, %v5666
  %v6013 = vmul.f32 %v6002, %v5686
  %v6014 = vmul.f32 %v6004, %v5687
  %v6015 = vmul.f32 %v6006, %v5688
  %v6016 = vmul.f32 %v6008, %v5689
  %v6017 = vmul.f32 %v6002, %v5709
  %v6018 = vmul.f32 %v6004, %v5710
  %v6019 = vmul.f32 %v6006, %v5711
  %v6020 = vmul.f32 %v6008, %v5712
  %v6021 = vsub.f32 %v5745, %v5993
  %v6022 = vsub.f32 %v5746, %v5994
  %v6023 = vsub.f32 %v5747, %v5995
  %v6024 = vsub.f32 %v5748, %v5996
  %v6025 = vmul.f32 %v6021, 1.442695
  %v6026 = vpow.pop %v6025
  %v6027 = vmul.f32 %v6022, 1.442695
  %v6028 = vpow.pop %v6027
  %v6029 = vmul.f32 %v6023, 1.442695
  %v6030 = vpow.pop %v6029
  %v6031 = vmul.f32 %v6024, 1.442695
  %v6032 = vpow.pop %v6031
  %v6033 = vadd.f32 %v6009, %v6026
  %v6034 = vadd.f32 %v6010, %v6028
  %v6035 = vadd.f32 %v6011, %v6030
  %v6036 = vadd.f32 %v6012, %v6032
  %6037 = vrot.lane.b32.xlu0 %v2964, 65
  %v6038 = vpop.permute.xlu0 %6037
  %6039 = vrot.lane.b32.xlu0 %v2965, 65
  %v6040 = vpop.permute.xlu0 %6039
  %6041 = vrot.lane.b32.xlu0 %v2966, 65
  %v6042 = vpop.permute.xlu0 %6041
  %v6043 = vsel %vm1370, %v6038, %v6040
  %v6044 = vsel %vm1370, %v6040, %v6042
  %v6049 = vmul.f32 %v6026, %v6038
  %v6050 = vmul.f32 %v6028, %v6043
  %v6051 = vmul.f32 %v6030, %v6044
  %v6052 = vmul.f32 %v6032, %v6042
  %v6053 = vadd.f32 %v6013, %v6049
  %v6054 = vadd.f32 %v6014, %v6050
  %v6055 = vadd.f32 %v6015, %v6051
  %v6056 = vadd.f32 %v6016, %v6052
  %6057 = vrot.lane.b32.xlu0 %v2968, 65
  %v6058 = vpop.permute.xlu0 %6057
  %6059 = vrot.lane.b32.xlu0 %v2969, 65
  %v6060 = vpop.permute.xlu0 %6059
  %6061 = vrot.lane.b32.xlu0 %v2970, 65
  %v6062 = vpop.permute.xlu0 %6061
  %v6063 = vsel %vm1370, %v6058, %v6060
  %v6064 = vsel %vm1370, %v6060, %v6062
  %v6069 = vmul.f32 %v6026, %v6058
  %v6070 = vmul.f32 %v6028, %v6063
  %v6071 = vmul.f32 %v6030, %v6064
  %v6072 = vmul.f32 %v6032, %v6062
  %v6073 = vadd.f32 %v6017, %v6069
  %v6074 = vadd.f32 %v6018, %v6070
  %v6075 = vadd.f32 %v6019, %v6071
  %v6076 = vadd.f32 %v6020, %v6072
  %v6077 = vsub.f32 %v5781, %v5993
  %v6078 = vsub.f32 %v5782, %v5994
  %v6079 = vsub.f32 %v5783, %v5995
  %v6080 = vsub.f32 %v5784, %v5996
  %v6081 = vmul.f32 %v6077, 1.442695
  %v6082 = vpow.pop %v6081
  %v6083 = vmul.f32 %v6078, 1.442695
  %v6084 = vpow.pop %v6083
  %v6085 = vmul.f32 %v6079, 1.442695
  %v6086 = vpow.pop %v6085
  %v6087 = vmul.f32 %v6080, 1.442695
  %v6088 = vpow.pop %v6087
  %v6089 = vadd.f32 %v6033, %v6082
  %v6090 = vadd.f32 %v6034, %v6084
  %v6091 = vadd.f32 %v6035, %v6086
  %v6092 = vadd.f32 %v6036, %v6088
  %6093 = vrot.lane.b32.xlu0 %v2964, 64
  %v6094 = vpop.permute.xlu0 %6093
  %6095 = vrot.lane.b32.xlu0 %v2965, 64
  %v6096 = vpop.permute.xlu0 %6095
  %6097 = vrot.lane.b32.xlu0 %v2966, 64
  %v6098 = vpop.permute.xlu0 %6097
  %v6099 = vsel %vm1411, %v6094, %v6096
  %v6100 = vsel %vm1411, %v6096, %v6098
  %v6105 = vmul.f32 %v6082, %v6094
  %v6106 = vmul.f32 %v6084, %v6099
  %v6107 = vmul.f32 %v6086, %v6100
  %v6108 = vmul.f32 %v6088, %v6098
  %v6109 = vadd.f32 %v6053, %v6105
  %v6110 = vadd.f32 %v6054, %v6106
  %v6111 = vadd.f32 %v6055, %v6107
  %v6112 = vadd.f32 %v6056, %v6108
  %6113 = vrot.lane.b32.xlu0 %v2968, 64
  %v6114 = vpop.permute.xlu0 %6113
  %6115 = vrot.lane.b32.xlu0 %v2969, 64
  %v6116 = vpop.permute.xlu0 %6115
  %6117 = vrot.lane.b32.xlu0 %v2970, 64
  %v6118 = vpop.permute.xlu0 %6117
  %v6119 = vsel %vm1411, %v6114, %v6116
  %v6120 = vsel %vm1411, %v6116, %v6118
  %v6125 = vmul.f32 %v6082, %v6114
  %v6126 = vmul.f32 %v6084, %v6119
  %v6127 = vmul.f32 %v6086, %v6120
  %v6128 = vmul.f32 %v6088, %v6118
  %v6129 = vadd.f32 %v6073, %v6125
  %v6130 = vadd.f32 %v6074, %v6126
  %v6131 = vadd.f32 %v6075, %v6127
  %v6132 = vadd.f32 %v6076, %v6128
  %v6133 = vsub.f32 %v5821, %v5993
  %v6134 = vsub.f32 %v5822, %v5994
  %v6135 = vsub.f32 %v5823, %v5995
  %v6136 = vsub.f32 %v5824, %v5996
  %v6137 = vmul.f32 %v6133, 1.442695
  %v6138 = vpow.pop %v6137
  %v6139 = vmul.f32 %v6134, 1.442695
  %v6140 = vpow.pop %v6139
  %v6141 = vmul.f32 %v6135, 1.442695
  %v6142 = vpow.pop %v6141
  %v6143 = vmul.f32 %v6136, 1.442695
  %v6144 = vpow.pop %v6143
  %v6145 = vadd.f32 %v6089, %v6138
  %v6146 = vadd.f32 %v6090, %v6140
  %v6147 = vadd.f32 %v6091, %v6142
  %v6148 = vadd.f32 %v6092, %v6144
  %6149 = vrot.lane.b32.xlu0 %v2964, 63
  %v6150 = vpop.permute.xlu0 %6149
  %6151 = vrot.lane.b32.xlu0 %v2965, 63
  %v6152 = vpop.permute.xlu0 %6151
  %6153 = vrot.lane.b32.xlu0 %v2966, 63
  %v6154 = vpop.permute.xlu0 %6153
  %v6155 = vsel %vm1452, %v6150, %v6152
  %v6156 = vsel %vm1452, %v6152, %v6154
  %v6161 = vmul.f32 %v6138, %v6150
  %v6162 = vmul.f32 %v6140, %v6155
  %v6163 = vmul.f32 %v6142, %v6156
  %v6164 = vmul.f32 %v6144, %v6154
  %v6165 = vadd.f32 %v6109, %v6161
  %v6166 = vadd.f32 %v6110, %v6162
  %v6167 = vadd.f32 %v6111, %v6163
  %v6168 = vadd.f32 %v6112, %v6164
  %6169 = vrot.lane.b32.xlu0 %v2968, 63
  %v6170 = vpop.permute.xlu0 %6169
  %6171 = vrot.lane.b32.xlu0 %v2969, 63
  %v6172 = vpop.permute.xlu0 %6171
  %6173 = vrot.lane.b32.xlu0 %v2970, 63
  %v6174 = vpop.permute.xlu0 %6173
  %v6175 = vsel %vm1452, %v6170, %v6172
  %v6176 = vsel %vm1452, %v6172, %v6174
  %v6181 = vmul.f32 %v6138, %v6170
  %v6182 = vmul.f32 %v6140, %v6175
  %v6183 = vmul.f32 %v6142, %v6176
  %v6184 = vmul.f32 %v6144, %v6174
  %v6185 = vadd.f32 %v6129, %v6181
  %v6186 = vadd.f32 %v6130, %v6182
  %v6187 = vadd.f32 %v6131, %v6183
  %v6188 = vadd.f32 %v6132, %v6184
  %v6189 = vsub.f32 %v5862, %v5993
  %v6190 = vsub.f32 %v5863, %v5994
  %v6191 = vsub.f32 %v5864, %v5995
  %v6192 = vsub.f32 %v5865, %v5996
  %v6193 = vmul.f32 %v6189, 1.442695
  %v6194 = vpow.pop %v6193
  %v6195 = vmul.f32 %v6190, 1.442695
  %v6196 = vpow.pop %v6195
  %v6197 = vmul.f32 %v6191, 1.442695
  %v6198 = vpow.pop %v6197
  %v6199 = vmul.f32 %v6192, 1.442695
  %v6200 = vpow.pop %v6199
  %v6201 = vadd.f32 %v6145, %v6194
  %v6202 = vadd.f32 %v6146, %v6196
  %v6203 = vadd.f32 %v6147, %v6198
  %v6204 = vadd.f32 %v6148, %v6200
  %6205 = vrot.lane.b32.xlu0 %v2964, 62
  %v6206 = vpop.permute.xlu0 %6205
  %6207 = vrot.lane.b32.xlu0 %v2965, 62
  %v6208 = vpop.permute.xlu0 %6207
  %6209 = vrot.lane.b32.xlu0 %v2966, 62
  %v6210 = vpop.permute.xlu0 %6209
  %v6211 = vsel %vm5835, %v6206, %v6208
  %v6212 = vsel %vm5835, %v6208, %v6210
  %v6217 = vmul.f32 %v6194, %v6206
  %v6218 = vmul.f32 %v6196, %v6211
  %v6219 = vmul.f32 %v6198, %v6212
  %v6220 = vmul.f32 %v6200, %v6210
  %v6221 = vadd.f32 %v6165, %v6217
  %v6222 = vadd.f32 %v6166, %v6218
  %v6223 = vadd.f32 %v6167, %v6219
  %v6224 = vadd.f32 %v6168, %v6220
  %6225 = vrot.lane.b32.xlu0 %v2968, 62
  %v6226 = vpop.permute.xlu0 %6225
  %6227 = vrot.lane.b32.xlu0 %v2969, 62
  %v6228 = vpop.permute.xlu0 %6227
  %6229 = vrot.lane.b32.xlu0 %v2970, 62
  %v6230 = vpop.permute.xlu0 %6229
  %v6231 = vsel %vm5835, %v6226, %v6228
  %v6232 = vsel %vm5835, %v6228, %v6230
  %v6237 = vmul.f32 %v6194, %v6226
  %v6238 = vmul.f32 %v6196, %v6231
  %v6239 = vmul.f32 %v6198, %v6232
  %v6240 = vmul.f32 %v6200, %v6230
  %v6241 = vadd.f32 %v6185, %v6237
  %v6242 = vadd.f32 %v6186, %v6238
  %v6243 = vadd.f32 %v6187, %v6239
  %v6244 = vadd.f32 %v6188, %v6240
  %v6245 = vsub.f32 %v5903, %v5993
  %v6246 = vsub.f32 %v5904, %v5994
  %v6247 = vsub.f32 %v5905, %v5995
  %v6248 = vsub.f32 %v5906, %v5996
  %v6249 = vmul.f32 %v6245, 1.442695
  %v6250 = vpow.pop %v6249
  %v6251 = vmul.f32 %v6246, 1.442695
  %v6252 = vpow.pop %v6251
  %v6253 = vmul.f32 %v6247, 1.442695
  %v6254 = vpow.pop %v6253
  %v6255 = vmul.f32 %v6248, 1.442695
  %v6256 = vpow.pop %v6255
  %v6257 = vadd.f32 %v6201, %v6250
  %v6258 = vadd.f32 %v6202, %v6252
  %v6259 = vadd.f32 %v6203, %v6254
  %v6260 = vadd.f32 %v6204, %v6256
  %6261 = vrot.lane.b32.xlu0 %v2964, 61
  %v6262 = vpop.permute.xlu0 %6261
  %6263 = vrot.lane.b32.xlu0 %v2965, 61
  %v6264 = vpop.permute.xlu0 %6263
  %6265 = vrot.lane.b32.xlu0 %v2966, 61
  %v6266 = vpop.permute.xlu0 %6265
  %v6267 = vsel %vm5876, %v6262, %v6264
  %v6268 = vsel %vm5876, %v6264, %v6266
  %v6273 = vmul.f32 %v6250, %v6262
  %v6274 = vmul.f32 %v6252, %v6267
  %v6275 = vmul.f32 %v6254, %v6268
  %v6276 = vmul.f32 %v6256, %v6266
  %v6277 = vadd.f32 %v6221, %v6273
  %v6278 = vadd.f32 %v6222, %v6274
  %v6279 = vadd.f32 %v6223, %v6275
  %v6280 = vadd.f32 %v6224, %v6276
  %6281 = vrot.lane.b32.xlu0 %v2968, 61
  %v6282 = vpop.permute.xlu0 %6281
  %6283 = vrot.lane.b32.xlu0 %v2969, 61
  %v6284 = vpop.permute.xlu0 %6283
  %6285 = vrot.lane.b32.xlu0 %v2970, 61
  %v6286 = vpop.permute.xlu0 %6285
  %v6287 = vsel %vm5876, %v6282, %v6284
  %v6288 = vsel %vm5876, %v6284, %v6286
  %v6293 = vmul.f32 %v6250, %v6282
  %v6294 = vmul.f32 %v6252, %v6287
  %v6295 = vmul.f32 %v6254, %v6288
  %v6296 = vmul.f32 %v6256, %v6286
  %v6297 = vadd.f32 %v6241, %v6293
  %v6298 = vadd.f32 %v6242, %v6294
  %v6299 = vadd.f32 %v6243, %v6295
  %v6300 = vadd.f32 %v6244, %v6296
  %v6301 = vsub.f32 %v5944, %v5993
  %v6302 = vsub.f32 %v5945, %v5994
  %v6303 = vsub.f32 %v5946, %v5995
  %v6304 = vsub.f32 %v5947, %v5996
  %v6305 = vmul.f32 %v6301, 1.442695
  %v6306 = vpow.pop %v6305
  %v6307 = vmul.f32 %v6302, 1.442695
  %v6308 = vpow.pop %v6307
  %v6309 = vmul.f32 %v6303, 1.442695
  %v6310 = vpow.pop %v6309
  %v6311 = vmul.f32 %v6304, 1.442695
  %v6312 = vpow.pop %v6311
  %v6313 = vadd.f32 %v6257, %v6306
  %v6314 = vadd.f32 %v6258, %v6308
  %v6315 = vadd.f32 %v6259, %v6310
  %v6316 = vadd.f32 %v6260, %v6312
  %6317 = vrot.lane.b32.xlu0 %v2964, 60
  %v6318 = vpop.permute.xlu0 %6317
  %6319 = vrot.lane.b32.xlu0 %v2965, 60
  %v6320 = vpop.permute.xlu0 %6319
  %6321 = vrot.lane.b32.xlu0 %v2966, 60
  %v6322 = vpop.permute.xlu0 %6321
  %v6323 = vsel %vm5917, %v6318, %v6320
  %v6324 = vsel %vm5917, %v6320, %v6322
  %v6329 = vmul.f32 %v6306, %v6318
  %v6330 = vmul.f32 %v6308, %v6323
  %v6331 = vmul.f32 %v6310, %v6324
  %v6332 = vmul.f32 %v6312, %v6322
  %v6333 = vadd.f32 %v6277, %v6329
  %v6334 = vadd.f32 %v6278, %v6330
  %v6335 = vadd.f32 %v6279, %v6331
  %v6336 = vadd.f32 %v6280, %v6332
  %6337 = vrot.lane.b32.xlu0 %v2968, 60
  %v6338 = vpop.permute.xlu0 %6337
  %6339 = vrot.lane.b32.xlu0 %v2969, 60
  %v6340 = vpop.permute.xlu0 %6339
  %6341 = vrot.lane.b32.xlu0 %v2970, 60
  %v6342 = vpop.permute.xlu0 %6341
  %v6343 = vsel %vm5917, %v6338, %v6340
  %v6344 = vsel %vm5917, %v6340, %v6342
  %v6349 = vmul.f32 %v6306, %v6338
  %v6350 = vmul.f32 %v6308, %v6343
  %v6351 = vmul.f32 %v6310, %v6344
  %v6352 = vmul.f32 %v6312, %v6342
  %v6353 = vadd.f32 %v6297, %v6349
  %v6354 = vadd.f32 %v6298, %v6350
  %v6355 = vadd.f32 %v6299, %v6351
  %v6356 = vadd.f32 %v6300, %v6352
  %v6357 = vsub.f32 %v5985, %v5993
  %v6358 = vsub.f32 %v5986, %v5994
  %v6359 = vsub.f32 %v5987, %v5995
  %v6360 = vsub.f32 %v5988, %v5996
  %v6361 = vmul.f32 %v6357, 1.442695
  %v6362 = vpow.pop %v6361
  %v6363 = vmul.f32 %v6358, 1.442695
  %v6364 = vpow.pop %v6363
  %v6365 = vmul.f32 %v6359, 1.442695
  %v6366 = vpow.pop %v6365
  %v6367 = vmul.f32 %v6360, 1.442695
  %v6368 = vpow.pop %v6367
  %v6369 = vadd.f32 %v6313, %v6362
  %v6370 = vadd.f32 %v6314, %v6364
  %v6371 = vadd.f32 %v6315, %v6366
  %v6372 = vadd.f32 %v6316, %v6368
  %6373 = vrot.lane.b32.xlu0 %v2964, 59
  %v6374 = vpop.permute.xlu0 %6373
  %6375 = vrot.lane.b32.xlu0 %v2965, 59
  %v6376 = vpop.permute.xlu0 %6375
  %6377 = vrot.lane.b32.xlu0 %v2966, 59
  %v6378 = vpop.permute.xlu0 %6377
  %v6379 = vsel %vm5958, %v6374, %v6376
  %v6380 = vsel %vm5958, %v6376, %v6378
  %v6385 = vmul.f32 %v6362, %v6374
  %v6386 = vmul.f32 %v6364, %v6379
  %v6387 = vmul.f32 %v6366, %v6380
  %v6388 = vmul.f32 %v6368, %v6378
  %v6389 = vadd.f32 %v6333, %v6385
  %v6390 = vadd.f32 %v6334, %v6386
  %v6391 = vadd.f32 %v6335, %v6387
  %v6392 = vadd.f32 %v6336, %v6388
  %6393 = vrot.lane.b32.xlu0 %v2968, 59
  %v6394 = vpop.permute.xlu0 %6393
  %6395 = vrot.lane.b32.xlu0 %v2969, 59
  %v6396 = vpop.permute.xlu0 %6395
  %6397 = vrot.lane.b32.xlu0 %v2970, 59
  %v6398 = vpop.permute.xlu0 %6397
  %v6399 = vsel %vm5958, %v6394, %v6396
  %v6400 = vsel %vm5958, %v6396, %v6398
  %v6405 = vmul.f32 %v6362, %v6394
  %v6406 = vmul.f32 %v6364, %v6399
  %v6407 = vmul.f32 %v6366, %v6400
  %v6408 = vmul.f32 %v6368, %v6398
  %v6409 = vadd.f32 %v6353, %v6405
  %v6410 = vadd.f32 %v6354, %v6406
  %v6411 = vadd.f32 %v6355, %v6407
  %v6412 = vadd.f32 %v6356, %v6408
  %v6413 = vrcp.pop %v6369
  %v6414 = vrcp.pop %v6370
  %v6415 = vrcp.pop %v6371
  %v6416 = vrcp.pop %v6372
  %v6417 = vmul.f32 %v6389, %v6413
  %v6418 = vmul.f32 %v6390, %v6414
  %v6419 = vmul.f32 %v6391, %v6415
  %v6420 = vmul.f32 %v6392, %v6416
  %v6421 = vmul.f32 %v6409, %v6413
  %v6422 = vmul.f32 %v6410, %v6414
  %v6423 = vmul.f32 %v6411, %v6415
  %v6424 = vmul.f32 %v6412, %v6416
  %v6425 = vld [vmem:[%s2 + $0x600] sm:$0xff]
  %v6426 = vld [vmem:[%s2 + $0x608] sm:$0xff]
  %v6427 = vld [vmem:[%s2 + $0x610] sm:$0xff]
  %v6428 = vld [vmem:[%s2 + $0x620] sm:$0xff]
  %v6429 = vld [vmem:[%s2 + $0x628] sm:$0xff]
  %v6430 = vld [vmem:[%s2 + $0x630] sm:$0xff]
  %v6431 = vld [vmem:[%s2 + $0x640] sm:$0xff]
  %v6432 = vld [vmem:[%s2 + $0x648] sm:$0xff]
  %v6433 = vld [vmem:[%s2 + $0x650] sm:$0xff]
  %v6434 = vld [vmem:[%s2 + $0x660] sm:$0xff]
  %v6435 = vld [vmem:[%s2 + $0x668] sm:$0xff]
  %v6436 = vld [vmem:[%s2 + $0x670] sm:$0xff]
  %v6437 = vld [vmem:[%s2 + $0x680] sm:$0xff]
  %v6438 = vld [vmem:[%s2 + $0x688] sm:$0xff]
  %v6439 = vld [vmem:[%s2 + $0x690] sm:$0xff]
  %v6440 = vld [vmem:[%s2 + $0x6a0] sm:$0xff]
  %v6441 = vld [vmem:[%s2 + $0x6a8] sm:$0xff]
  %v6442 = vld [vmem:[%s2 + $0x6b0] sm:$0xff]
  %v6443 = vld [vmem:[%s2 + $0x6c0] sm:$0xff]
  %v6444 = vld [vmem:[%s2 + $0x6c8] sm:$0xff]
  %v6445 = vld [vmem:[%s2 + $0x6d0] sm:$0xff]
  %v6446 = vld [vmem:[%s2 + $0x6e0] sm:$0xff]
  %v6447 = vld [vmem:[%s2 + $0x6e8] sm:$0xff]
  %v6448 = vld [vmem:[%s2 + $0x6f0] sm:$0xff]
  %v6449 = vld [vmem:[%s2 + $0x700] sm:$0xff]
  %v6450 = vld [vmem:[%s2 + $0x708] sm:$0xff]
  %v6451 = vld [vmem:[%s2 + $0x710] sm:$0xff]
  %v6452 = vld [vmem:[%s2 + $0x720] sm:$0xff]
  %v6453 = vld [vmem:[%s2 + $0x728] sm:$0xff]
  %v6454 = vld [vmem:[%s2 + $0x730] sm:$0xff]
  %v6455 = vld [vmem:[%s2 + $0x740] sm:$0xff]
  %v6456 = vld [vmem:[%s2 + $0x748] sm:$0xff]
  %v6457 = vld [vmem:[%s2 + $0x750] sm:$0xff]
  %v6458 = vld [vmem:[%s2 + $0x760] sm:$0xff]
  %v6459 = vld [vmem:[%s2 + $0x768] sm:$0xff]
  %v6460 = vld [vmem:[%s2 + $0x770] sm:$0xff]
  %v6461 = vld [vmem:[%s2 + $0x780] sm:$0xff]
  %v6462 = vld [vmem:[%s2 + $0x788] sm:$0xff]
  %v6463 = vld [vmem:[%s2 + $0x790] sm:$0xff]
  %v6464 = vld [vmem:[%s2 + $0x7a0] sm:$0xff]
  %v6465 = vld [vmem:[%s2 + $0x7a8] sm:$0xff]
  %v6466 = vld [vmem:[%s2 + $0x7b0] sm:$0xff]
  %v6467 = vld [vmem:[%s2 + $0x7c0] sm:$0xff]
  %v6468 = vld [vmem:[%s2 + $0x7c8] sm:$0xff]
  %v6469 = vld [vmem:[%s2 + $0x7d0] sm:$0xff]
  %v6470 = vld [vmem:[%s2 + $0x7e0] sm:$0xff]
  %v6471 = vld [vmem:[%s2 + $0x7e8] sm:$0xff]
  %v6472 = vld [vmem:[%s2 + $0x7f0] sm:$0xff]
  %v6473 = vld [vmem:[%s2 + $0x800] sm:$0xff]
  %v6474 = vld [vmem:[%s2 + $0x808] sm:$0xff]
  %v6475 = vld [vmem:[%s2 + $0x810] sm:$0xff]
  %v6476 = vld [vmem:[%s2 + $0x820] sm:$0xff]
  %v6477 = vld [vmem:[%s2 + $0x828] sm:$0xff]
  %v6478 = vld [vmem:[%s2 + $0x830] sm:$0xff]
  %v6479 = vld [vmem:[%s2 + $0x840] sm:$0xff]
  %v6480 = vld [vmem:[%s2 + $0x848] sm:$0xff]
  %v6481 = vld [vmem:[%s2 + $0x850] sm:$0xff]
  %v6482 = vld [vmem:[%s2 + $0x860] sm:$0xff]
  %v6483 = vld [vmem:[%s2 + $0x868] sm:$0xff]
  %v6484 = vld [vmem:[%s2 + $0x870] sm:$0xff]
  %v6485 = vld [vmem:[%s2 + $0x880] sm:$0xff]
  %v6486 = vld [vmem:[%s2 + $0x888] sm:$0xff]
  %v6487 = vld [vmem:[%s2 + $0x890] sm:$0xff]
  %v6488 = vld [vmem:[%s2 + $0x8a0] sm:$0xff]
  %v6489 = vld [vmem:[%s2 + $0x8a8] sm:$0xff]
  %v6490 = vld [vmem:[%s2 + $0x8b0] sm:$0xff]
  %v6491 = vld [vmem:[%s2 + $0x8c0] sm:$0xff]
  %v6492 = vld [vmem:[%s2 + $0x8c8] sm:$0xff]
  %v6493 = vld [vmem:[%s2 + $0x8d0] sm:$0xff]
  %v6494 = vld [vmem:[%s2 + $0x8e0] sm:$0xff]
  %v6495 = vld [vmem:[%s2 + $0x8e8] sm:$0xff]
  %v6496 = vld [vmem:[%s2 + $0x8f0] sm:$0xff]
  %v6497 = vld [vmem:[%s2 + $0x900] sm:$0xff]
  %v6498 = vld [vmem:[%s2 + $0x908] sm:$0xff]
  %v6499 = vld [vmem:[%s2 + $0x910] sm:$0xff]
  %v6500 = vld [vmem:[%s2 + $0x920] sm:$0xff]
  %v6501 = vld [vmem:[%s2 + $0x928] sm:$0xff]
  %v6502 = vld [vmem:[%s2 + $0x930] sm:$0xff]
  %v6503 = vld [vmem:[%s2 + $0x940] sm:$0xff]
  %v6504 = vld [vmem:[%s2 + $0x948] sm:$0xff]
  %v6505 = vld [vmem:[%s2 + $0x950] sm:$0xff]
  %v6506 = vld [vmem:[%s2 + $0x960] sm:$0xff]
  %v6507 = vld [vmem:[%s2 + $0x968] sm:$0xff]
  %v6508 = vld [vmem:[%s2 + $0x970] sm:$0xff]
  %v6509 = vld [vmem:[%s2 + $0x980] sm:$0xff]
  %v6510 = vld [vmem:[%s2 + $0x988] sm:$0xff]
  %v6511 = vld [vmem:[%s2 + $0x990] sm:$0xff]
  %v6512 = vld [vmem:[%s2 + $0x9a0] sm:$0xff]
  %v6513 = vld [vmem:[%s2 + $0x9a8] sm:$0xff]
  %v6514 = vld [vmem:[%s2 + $0x9b0] sm:$0xff]
  %v6515 = vld [vmem:[%s2 + $0x9c0] sm:$0xff]
  %v6516 = vld [vmem:[%s2 + $0x9c8] sm:$0xff]
  %v6517 = vld [vmem:[%s2 + $0x9d0] sm:$0xff]
  %v6518 = vld [vmem:[%s2 + $0x9e0] sm:$0xff]
  %v6519 = vld [vmem:[%s2 + $0x9e8] sm:$0xff]
  %v6520 = vld [vmem:[%s2 + $0x9f0] sm:$0xff]
  %v6521 = vld [vmem:[%s2 + $0xa00] sm:$0xff]
  %v6522 = vld [vmem:[%s2 + $0xa08] sm:$0xff]
  %v6523 = vld [vmem:[%s2 + $0xa10] sm:$0xff]
  %v6524 = vld [vmem:[%s2 + $0xa20] sm:$0xff]
  %v6525 = vld [vmem:[%s2 + $0xa28] sm:$0xff]
  %v6526 = vld [vmem:[%s2 + $0xa30] sm:$0xff]
  %v6527 = vld [vmem:[%s2 + $0xa40] sm:$0xff]
  %v6528 = vld [vmem:[%s2 + $0xa48] sm:$0xff]
  %v6529 = vld [vmem:[%s2 + $0xa50] sm:$0xff]
  %v6530 = vld [vmem:[%s2 + $0xa60] sm:$0xff]
  %v6531 = vld [vmem:[%s2 + $0xa68] sm:$0xff]
  %v6532 = vld [vmem:[%s2 + $0xa70] sm:$0xff]
  %v6533 = vld [vmem:[%s2 + $0xa80] sm:$0xff]
  %v6534 = vld [vmem:[%s2 + $0xa88] sm:$0xff]
  %v6535 = vld [vmem:[%s2 + $0xa90] sm:$0xff]
  %v6536 = vld [vmem:[%s2 + $0xaa0] sm:$0xff]
  %v6537 = vld [vmem:[%s2 + $0xaa8] sm:$0xff]
  %v6538 = vld [vmem:[%s2 + $0xab0] sm:$0xff]
  %v6539 = vld [vmem:[%s2 + $0xac0] sm:$0xff]
  %v6540 = vld [vmem:[%s2 + $0xac8] sm:$0xff]
  %v6541 = vld [vmem:[%s2 + $0xad0] sm:$0xff]
  %v6542 = vld [vmem:[%s2 + $0xae0] sm:$0xff]
  %v6543 = vld [vmem:[%s2 + $0xae8] sm:$0xff]
  %v6544 = vld [vmem:[%s2 + $0xaf0] sm:$0xff]
  %v6545 = vld [vmem:[%s2 + $0xb00] sm:$0xff]
  %v6546 = vld [vmem:[%s2 + $0xb08] sm:$0xff]
  %v6547 = vld [vmem:[%s2 + $0xb10] sm:$0xff]
  %v6548 = vld [vmem:[%s2 + $0xb20] sm:$0xff]
  %v6549 = vld [vmem:[%s2 + $0xb28] sm:$0xff]
  %v6550 = vld [vmem:[%s2 + $0xb30] sm:$0xff]
  %v6551 = vld [vmem:[%s2 + $0xb40] sm:$0xff]
  %v6552 = vld [vmem:[%s2 + $0xb48] sm:$0xff]
  %v6553 = vld [vmem:[%s2 + $0xb50] sm:$0xff]
  %v6554 = vld [vmem:[%s2 + $0xb60] sm:$0x3]
  %v6555 = vld [vmem:[%s2 + $0xb68] sm:$0x3]
  %v6556 = vld [vmem:[%s2 + $0xb70] sm:$0x3]
  %v6557 = vld [vmem:[%s1 + $0x30] sm:$0xff]
  %v6558 = vld [vmem:[%s1 + $0x38] sm:$0xff]
  %v6559 = vld [vmem:[%s0] sm:$0xff]
  %v6560 = vld [vmem:[%s0 + $0x8] sm:$0xff]
  %v6561 = vld [vmem:[%s0 + $0x10] sm:$0xff]
  %v6562 = vld [vmem:[%s0 + $0x18] sm:$0xff]
  %v6563 = vld [vmem:[%s0 + $0x20] sm:$0xff]
  %v6564 = vld [vmem:[%s0 + $0x28] sm:$0xff]
  %v6565 = vld [vmem:[%s0 + $0x30] sm:$0xff]
  %v6566 = vld [vmem:[%s0 + $0x38] sm:$0xff]
  %v6567 = vld [vmem:[%s0 + $0x40] sm:$0xff]
  %v6568 = vld [vmem:[%s0 + $0x48] sm:$0xff]
  %v6569 = vld [vmem:[%s0 + $0x50] sm:$0xff]
  %v6570 = vld [vmem:[%s0 + $0x58] sm:$0xff]
  %v6572 = vsel %vm32, %v6557, 0
  %v6575 = vsel %vm32, %v6558, 0
  %6577 = vmatpush.msra.mxu0 0.0
  %6578 = vmatpush.msra.mxu0 0.0
  %6579 = vmatpush.msra.mxu0 0.0
  %6580 = vmatpush.msra.mxu0 0.0
  %6581 = vmatpush.msra.mxu0 0.0
  %6582 = vmatpush.msra.mxu0 0.0
  %6583 = vmatpush.msra.mxu0 0.0
  %6584 = vmatpush.msra.mxu0 0.0
  %6585 = vmatpush.msra.mxu0 0.0
  %6586 = vmatpush.msra.mxu0 0.0
  %6587 = vmatpush.msra.mxu0 0.0
  %6588 = vmatpush.msra.mxu0 0.0
  %6589 = vmatpush.msra.mxu0 %v6568
  %6590 = vmatpush.msra.mxu0 %v6565
  %6591 = vmatpush.msra.mxu0 %v6562
  %6592 = vmatpush.msra.mxu0 %v6559
  %6593 = vmatmul.f32.gmra.mxu0 %v6572
  %v6594 = vpop.f32.mrf.mxu0
  %v6595 = vadd.f32 0.0, %v6594
  %6596 = vmatmul.f32.gmra.mxu0 %v6575
  %v6597 = vpop.f32.mrf.mxu0
  %v6598 = vadd.f32 0.0, %v6597
  %6599 = vdwg.mxu0
  %6600 = vmatpush.msra.mxu0 0.0
  %6601 = vmatpush.msra.mxu0 0.0
  %6602 = vmatpush.msra.mxu0 0.0
  %6603 = vmatpush.msra.mxu0 0.0
  %6604 = vmatpush.msra.mxu0 0.0
  %6605 = vmatpush.msra.mxu0 0.0
  %6606 = vmatpush.msra.mxu0 0.0
  %6607 = vmatpush.msra.mxu0 0.0
  %6608 = vmatpush.msra.mxu0 0.0
  %6609 = vmatpush.msra.mxu0 0.0
  %6610 = vmatpush.msra.mxu0 0.0
  %6611 = vmatpush.msra.mxu0 0.0
  %6612 = vmatpush.msra.mxu0 %v6569
  %6613 = vmatpush.msra.mxu0 %v6566
  %6614 = vmatpush.msra.mxu0 %v6563
  %6615 = vmatpush.msra.mxu0 %v6560
  %6616 = vmatmul.f32.gmra.mxu0 %v6572
  %v6617 = vpop.f32.mrf.mxu0
  %v6618 = vadd.f32 0.0, %v6617
  %6619 = vmatmul.f32.gmra.mxu0 %v6575
  %v6620 = vpop.f32.mrf.mxu0
  %v6621 = vadd.f32 0.0, %v6620
  %6622 = vdwg.mxu0
  %6623 = vmatpush.msra.mxu0 0.0
  %6624 = vmatpush.msra.mxu0 0.0
  %6625 = vmatpush.msra.mxu0 0.0
  %6626 = vmatpush.msra.mxu0 0.0
  %6627 = vmatpush.msra.mxu0 0.0
  %6628 = vmatpush.msra.mxu0 0.0
  %6629 = vmatpush.msra.mxu0 0.0
  %6630 = vmatpush.msra.mxu0 0.0
  %6631 = vmatpush.msra.mxu0 0.0
  %6632 = vmatpush.msra.mxu0 0.0
  %6633 = vmatpush.msra.mxu0 0.0
  %6634 = vmatpush.msra.mxu0 0.0
  %6635 = vmatpush.msra.mxu0 %v6570
  %6636 = vmatpush.msra.mxu0 %v6567
  %6637 = vmatpush.msra.mxu0 %v6564
  %6638 = vmatpush.msra.mxu0 %v6561
  %6639 = vmatmul.f32.gmra.mxu0 %v6572
  %v6640 = vpop.f32.mrf.mxu0
  %v6641 = vadd.f32 0.0, %v6640
  %6642 = vmatmul.f32.gmra.mxu0 %v6575
  %v6643 = vpop.f32.mrf.mxu0
  %v6644 = vadd.f32 0.0, %v6643
  %6645 = vdwg.mxu0
  %6654 = vrot.lane.b32.xlu0 %v6417, 59
  %v6655 = vpop.permute.xlu0 %6654
  %6656 = vrot.lane.b32.xlu0 %v6418, 59
  %v6657 = vpop.permute.xlu0 %6656
  %6658 = vrot.lane.b32.xlu0 %v6419, 59
  %v6659 = vpop.permute.xlu0 %6658
  %6660 = vrot.lane.b32.xlu0 %v6420, 59
  %v6661 = vpop.permute.xlu0 %6660
  %6662 = vrot.lane.b32.xlu0 %v6421, 59
  %v6663 = vpop.permute.xlu0 %6662
  %6664 = vrot.lane.b32.xlu0 %v6422, 59
  %v6665 = vpop.permute.xlu0 %6664
  %6666 = vrot.lane.b32.xlu0 %v6423, 59
  %v6667 = vpop.permute.xlu0 %6666
  %6668 = vrot.lane.b32.xlu0 %v6424, 59
  %v6669 = vpop.permute.xlu0 %6668
  %v6670 = vsel %vm5958, %v6655, %v6657
  %v6671 = vsel %vm5958, %v6657, %v6659
  %v6672 = vsel %vm5958, %v6659, %v6661
  %v6673 = vsel %vm5958, %v6663, %v6665
  %v6674 = vsel %vm5958, %v6665, %v6667
  %v6675 = vsel %vm5958, %v6667, %v6669
  %vm6680 = vcmask 736256
  %v6681 = vsel %vm6680, %v6672, 0
  %v6683 = vsel %vm6680, %v6675, 0
  %vm6685 = vcmask 1041408
  %v6687 = vsel %vm6685, %v6554, 0
  %v6690 = vsel %vm6685, %v6555, 0
  %v6693 = vsel %vm6685, %v6556, 0
  %6695 = vmatpush.msra.mxu0 %v6470
  %6696 = vmatpush.msra.mxu0 %v6467
  %6697 = vmatpush.msra.mxu0 %v6464
  %6698 = vmatpush.msra.mxu0 %v6461
  %6699 = vmatpush.msra.mxu0 %v6458
  %6700 = vmatpush.msra.mxu0 %v6455
  %6701 = vmatpush.msra.mxu0 %v6452
  %6702 = vmatpush.msra.mxu0 %v6449
  %6703 = vmatpush.msra.mxu0 %v6446
  %6704 = vmatpush.msra.mxu0 %v6443
  %6705 = vmatpush.msra.mxu0 %v6440
  %6706 = vmatpush.msra.mxu0 %v6437
  %6707 = vmatpush.msra.mxu0 %v6434
  %6708 = vmatpush.msra.mxu0 %v6431
  %6709 = vmatpush.msra.mxu0 %v6428
  %6710 = vmatpush.msra.mxu0 %v6425
  %6711 = vmatmul.f32.gmra.mxu0 %v6670
  %v6712 = vpop.f32.mrf.mxu0
  %v6713 = vadd.f32 %v6595, %v6712
  %6714 = vmatmul.f32.gmra.mxu0 %v6673
  %v6715 = vpop.f32.mrf.mxu0
  %v6716 = vadd.f32 %v6598, %v6715
  %6717 = vdwg.mxu0
  %6718 = vmatpush.msra.mxu0 %v6518
  %6719 = vmatpush.msra.mxu0 %v6515
  %6720 = vmatpush.msra.mxu0 %v6512
  %6721 = vmatpush.msra.mxu0 %v6509
  %6722 = vmatpush.msra.mxu0 %v6506
  %6723 = vmatpush.msra.mxu0 %v6503
  %6724 = vmatpush.msra.mxu0 %v6500
  %6725 = vmatpush.msra.mxu0 %v6497
  %6726 = vmatpush.msra.mxu0 %v6494
  %6727 = vmatpush.msra.mxu0 %v6491
  %6728 = vmatpush.msra.mxu0 %v6488
  %6729 = vmatpush.msra.mxu0 %v6485
  %6730 = vmatpush.msra.mxu0 %v6482
  %6731 = vmatpush.msra.mxu0 %v6479
  %6732 = vmatpush.msra.mxu0 %v6476
  %6733 = vmatpush.msra.mxu0 %v6473
  %6734 = vmatmul.f32.gmra.mxu0 %v6671
  %v6735 = vpop.f32.mrf.mxu0
  %v6736 = vadd.f32 %v6713, %v6735
  %6737 = vmatmul.f32.gmra.mxu0 %v6674
  %v6738 = vpop.f32.mrf.mxu0
  %v6739 = vadd.f32 %v6716, %v6738
  %6740 = vdwg.mxu0
  %6741 = vmatpush.msra.mxu0 0.0
  %6742 = vmatpush.msra.mxu0 0.0
  %6743 = vmatpush.msra.mxu0 0.0
  %6744 = vmatpush.msra.mxu0 0.0
  %6745 = vmatpush.msra.mxu0 %v6687
  %6746 = vmatpush.msra.mxu0 %v6551
  %6747 = vmatpush.msra.mxu0 %v6548
  %6748 = vmatpush.msra.mxu0 %v6545
  %6749 = vmatpush.msra.mxu0 %v6542
  %6750 = vmatpush.msra.mxu0 %v6539
  %6751 = vmatpush.msra.mxu0 %v6536
  %6752 = vmatpush.msra.mxu0 %v6533
  %6753 = vmatpush.msra.mxu0 %v6530
  %6754 = vmatpush.msra.mxu0 %v6527
  %6755 = vmatpush.msra.mxu0 %v6524
  %6756 = vmatpush.msra.mxu0 %v6521
  %6757 = vmatmul.f32.gmra.mxu0 %v6681
  %v6758 = vpop.f32.mrf.mxu0
  %v6759 = vadd.f32 %v6736, %v6758
  %6760 = vmatmul.f32.gmra.mxu0 %v6683
  %v6761 = vpop.f32.mrf.mxu0
  %v6762 = vadd.f32 %v6739, %v6761
  %6763 = vdwg.mxu0
  %6764 = vmatpush.msra.mxu0 %v6471
  %6765 = vmatpush.msra.mxu0 %v6468
  %6766 = vmatpush.msra.mxu0 %v6465
  %6767 = vmatpush.msra.mxu0 %v6462
  %6768 = vmatpush.msra.mxu0 %v6459
  %6769 = vmatpush.msra.mxu0 %v6456
  %6770 = vmatpush.msra.mxu0 %v6453
  %6771 = vmatpush.msra.mxu0 %v6450
  %6772 = vmatpush.msra.mxu0 %v6447
  %6773 = vmatpush.msra.mxu0 %v6444
  %6774 = vmatpush.msra.mxu0 %v6441
  %6775 = vmatpush.msra.mxu0 %v6438
  %6776 = vmatpush.msra.mxu0 %v6435
  %6777 = vmatpush.msra.mxu0 %v6432
  %6778 = vmatpush.msra.mxu0 %v6429
  %6779 = vmatpush.msra.mxu0 %v6426
  %6780 = vmatmul.f32.gmra.mxu0 %v6670
  %v6781 = vpop.f32.mrf.mxu0
  %v6782 = vadd.f32 %v6618, %v6781
  %6783 = vmatmul.f32.gmra.mxu0 %v6673
  %v6784 = vpop.f32.mrf.mxu0
  %v6785 = vadd.f32 %v6621, %v6784
  %6786 = vdwg.mxu0
  %6787 = vmatpush.msra.mxu0 %v6519
  %6788 = vmatpush.msra.mxu0 %v6516
  %6789 = vmatpush.msra.mxu0 %v6513
  %6790 = vmatpush.msra.mxu0 %v6510
  %6791 = vmatpush.msra.mxu0 %v6507
  %6792 = vmatpush.msra.mxu0 %v6504
  %6793 = vmatpush.msra.mxu0 %v6501
  %6794 = vmatpush.msra.mxu0 %v6498
  %6795 = vmatpush.msra.mxu0 %v6495
  %6796 = vmatpush.msra.mxu0 %v6492
  %6797 = vmatpush.msra.mxu0 %v6489
  %6798 = vmatpush.msra.mxu0 %v6486
  %6799 = vmatpush.msra.mxu0 %v6483
  %6800 = vmatpush.msra.mxu0 %v6480
  %6801 = vmatpush.msra.mxu0 %v6477
  %6802 = vmatpush.msra.mxu0 %v6474
  %6803 = vmatmul.f32.gmra.mxu0 %v6671
  %v6804 = vpop.f32.mrf.mxu0
  %v6805 = vadd.f32 %v6782, %v6804
  %6806 = vmatmul.f32.gmra.mxu0 %v6674
  %v6807 = vpop.f32.mrf.mxu0
  %v6808 = vadd.f32 %v6785, %v6807
  %6809 = vdwg.mxu0
  %6810 = vmatpush.msra.mxu0 0.0
  %6811 = vmatpush.msra.mxu0 0.0
  %6812 = vmatpush.msra.mxu0 0.0
  %6813 = vmatpush.msra.mxu0 0.0
  %6814 = vmatpush.msra.mxu0 %v6690
  %6815 = vmatpush.msra.mxu0 %v6552
  %6816 = vmatpush.msra.mxu0 %v6549
  %6817 = vmatpush.msra.mxu0 %v6546
  %6818 = vmatpush.msra.mxu0 %v6543
  %6819 = vmatpush.msra.mxu0 %v6540
  %6820 = vmatpush.msra.mxu0 %v6537
  %6821 = vmatpush.msra.mxu0 %v6534
  %6822 = vmatpush.msra.mxu0 %v6531
  %6823 = vmatpush.msra.mxu0 %v6528
  %6824 = vmatpush.msra.mxu0 %v6525
  %6825 = vmatpush.msra.mxu0 %v6522
  %6826 = vmatmul.f32.gmra.mxu0 %v6681
  %v6827 = vpop.f32.mrf.mxu0
  %v6828 = vadd.f32 %v6805, %v6827
  %6829 = vmatmul.f32.gmra.mxu0 %v6683
  %v6830 = vpop.f32.mrf.mxu0
  %v6831 = vadd.f32 %v6808, %v6830
  %6832 = vdwg.mxu0
  %6833 = vmatpush.msra.mxu0 %v6472
  %6834 = vmatpush.msra.mxu0 %v6469
  %6835 = vmatpush.msra.mxu0 %v6466
  %6836 = vmatpush.msra.mxu0 %v6463
  %6837 = vmatpush.msra.mxu0 %v6460
  %6838 = vmatpush.msra.mxu0 %v6457
  %6839 = vmatpush.msra.mxu0 %v6454
  %6840 = vmatpush.msra.mxu0 %v6451
  %6841 = vmatpush.msra.mxu0 %v6448
  %6842 = vmatpush.msra.mxu0 %v6445
  %6843 = vmatpush.msra.mxu0 %v6442
  %6844 = vmatpush.msra.mxu0 %v6439
  %6845 = vmatpush.msra.mxu0 %v6436
  %6846 = vmatpush.msra.mxu0 %v6433
  %6847 = vmatpush.msra.mxu0 %v6430
  %6848 = vmatpush.msra.mxu0 %v6427
  %6849 = vmatmul.f32.gmra.mxu0 %v6670
  %v6850 = vpop.f32.mrf.mxu0
  %v6851 = vadd.f32 %v6641, %v6850
  %6852 = vmatmul.f32.gmra.mxu0 %v6673
  %v6853 = vpop.f32.mrf.mxu0
  %v6854 = vadd.f32 %v6644, %v6853
  %6855 = vdwg.mxu0
  %6856 = vmatpush.msra.mxu0 %v6520
  %6857 = vmatpush.msra.mxu0 %v6517
  %6858 = vmatpush.msra.mxu0 %v6514
  %6859 = vmatpush.msra.mxu0 %v6511
  %6860 = vmatpush.msra.mxu0 %v6508
  %6861 = vmatpush.msra.mxu0 %v6505
  %6862 = vmatpush.msra.mxu0 %v6502
  %6863 = vmatpush.msra.mxu0 %v6499
  %6864 = vmatpush.msra.mxu0 %v6496
  %6865 = vmatpush.msra.mxu0 %v6493
  %6866 = vmatpush.msra.mxu0 %v6490
  %6867 = vmatpush.msra.mxu0 %v6487
  %6868 = vmatpush.msra.mxu0 %v6484
  %6869 = vmatpush.msra.mxu0 %v6481
  %6870 = vmatpush.msra.mxu0 %v6478
  %6871 = vmatpush.msra.mxu0 %v6475
  %6872 = vmatmul.f32.gmra.mxu0 %v6671
  %v6873 = vpop.f32.mrf.mxu0
  %v6874 = vadd.f32 %v6851, %v6873
  %6875 = vmatmul.f32.gmra.mxu0 %v6674
  %v6876 = vpop.f32.mrf.mxu0
  %v6877 = vadd.f32 %v6854, %v6876
  %6878 = vdwg.mxu0
  %6879 = vmatpush.msra.mxu0 0.0
  %6880 = vmatpush.msra.mxu0 0.0
  %6881 = vmatpush.msra.mxu0 0.0
  %6882 = vmatpush.msra.mxu0 0.0
  %6883 = vmatpush.msra.mxu0 %v6693
  %6884 = vmatpush.msra.mxu0 %v6553
  %6885 = vmatpush.msra.mxu0 %v6550
  %6886 = vmatpush.msra.mxu0 %v6547
  %6887 = vmatpush.msra.mxu0 %v6544
  %6888 = vmatpush.msra.mxu0 %v6541
  %6889 = vmatpush.msra.mxu0 %v6538
  %6890 = vmatpush.msra.mxu0 %v6535
  %6891 = vmatpush.msra.mxu0 %v6532
  %6892 = vmatpush.msra.mxu0 %v6529
  %6893 = vmatpush.msra.mxu0 %v6526
  %6894 = vmatpush.msra.mxu0 %v6523
  %6895 = vmatmul.f32.gmra.mxu0 %v6681
  %v6896 = vpop.f32.mrf.mxu0
  %v6897 = vadd.f32 %v6874, %v6896
  %6898 = vmatmul.f32.gmra.mxu0 %v6683
  %v6899 = vpop.f32.mrf.mxu0
  %v6900 = vadd.f32 %v6877, %v6899
  %6901 = vdwg.mxu0
  %v6902 = vld [vmem:[%s1 + $0x40] sm:$0xff]
  %v6903 = vld [vmem:[%s1 + $0x48] sm:$0xff]
  %6916 = vrot.lane.b32.xlu0 %v6559, 127
  %v6917 = vpop.permute.xlu0 %6916
  %6918 = vrot.lane.b32.xlu0 %v6560, 127
  %v6919 = vpop.permute.xlu0 %6918
  %6920 = vrot.lane.b32.xlu0 %v6561, 127
  %v6921 = vpop.permute.xlu0 %6920
  %6922 = vrot.lane.b32.xlu0 %v6562, 127
  %v6923 = vpop.permute.xlu0 %6922
  %6924 = vrot.lane.b32.xlu0 %v6563, 127
  %v6925 = vpop.permute.xlu0 %6924
  %6926 = vrot.lane.b32.xlu0 %v6564, 127
  %v6927 = vpop.permute.xlu0 %6926
  %6928 = vrot.lane.b32.xlu0 %v6565, 127
  %v6929 = vpop.permute.xlu0 %6928
  %6930 = vrot.lane.b32.xlu0 %v6566, 127
  %v6931 = vpop.permute.xlu0 %6930
  %6932 = vrot.lane.b32.xlu0 %v6567, 127
  %v6933 = vpop.permute.xlu0 %6932
  %6934 = vrot.lane.b32.xlu0 %v6568, 127
  %v6935 = vpop.permute.xlu0 %6934
  %6936 = vrot.lane.b32.xlu0 %v6569, 127
  %v6937 = vpop.permute.xlu0 %6936
  %6938 = vrot.lane.b32.xlu0 %v6570, 127
  %v6939 = vpop.permute.xlu0 %6938
  %v6940 = vsel %vm3574, %v6917, %v6919
  %v6941 = vsel %vm3574, %v6919, %v6921
  %v6942 = vsel %vm3574, %v6923, %v6925
  %v6943 = vsel %vm3574, %v6925, %v6927
  %v6944 = vsel %vm3574, %v6929, %v6931
  %v6945 = vsel %vm3574, %v6931, %v6933
  %v6946 = vsel %vm3574, %v6935, %v6937
  %v6947 = vsel %vm3574, %v6937, %v6939
  %v6961 = vsel %vm32, %v6902, 0
  %v6964 = vsel %vm32, %v6903, 0
  %6966 = vmatpush.msra.mxu0 0.0
  %6967 = vmatpush.msra.mxu0 0.0
  %6968 = vmatpush.msra.mxu0 0.0
  %6969 = vmatpush.msra.mxu0 0.0
  %6970 = vmatpush.msra.mxu0 0.0
  %6971 = vmatpush.msra.mxu0 0.0
  %6972 = vmatpush.msra.mxu0 0.0
  %6973 = vmatpush.msra.mxu0 0.0
  %6974 = vmatpush.msra.mxu0 0.0
  %6975 = vmatpush.msra.mxu0 0.0
  %6976 = vmatpush.msra.mxu0 0.0
  %6977 = vmatpush.msra.mxu0 0.0
  %6978 = vmatpush.msra.mxu0 %v6946
  %6979 = vmatpush.msra.mxu0 %v6944
  %6980 = vmatpush.msra.mxu0 %v6942
  %6981 = vmatpush.msra.mxu0 %v6940
  %6982 = vmatmul.f32.gmra.mxu0 %v6961
  %v6983 = vpop.f32.mrf.mxu0
  %v6984 = vadd.f32 0.0, %v6983
  %6985 = vmatmul.f32.gmra.mxu0 %v6964
  %v6986 = vpop.f32.mrf.mxu0
  %v6987 = vadd.f32 0.0, %v6986
  %6988 = vdwg.mxu0
  %6989 = vmatpush.msra.mxu0 0.0
  %6990 = vmatpush.msra.mxu0 0.0
  %6991 = vmatpush.msra.mxu0 0.0
  %6992 = vmatpush.msra.mxu0 0.0
  %6993 = vmatpush.msra.mxu0 0.0
  %6994 = vmatpush.msra.mxu0 0.0
  %6995 = vmatpush.msra.mxu0 0.0
  %6996 = vmatpush.msra.mxu0 0.0
  %6997 = vmatpush.msra.mxu0 0.0
  %6998 = vmatpush.msra.mxu0 0.0
  %6999 = vmatpush.msra.mxu0 0.0
  %7000 = vmatpush.msra.mxu0 0.0
  %7001 = vmatpush.msra.mxu0 %v6947
  %7002 = vmatpush.msra.mxu0 %v6945
  %7003 = vmatpush.msra.mxu0 %v6943
  %7004 = vmatpush.msra.mxu0 %v6941
  %7005 = vmatmul.f32.gmra.mxu0 %v6961
  %v7006 = vpop.f32.mrf.mxu0
  %v7007 = vadd.f32 0.0, %v7006
  %7008 = vmatmul.f32.gmra.mxu0 %v6964
  %v7009 = vpop.f32.mrf.mxu0
  %v7010 = vadd.f32 0.0, %v7009
  %7011 = vdwg.mxu0
  %7012 = vmatpush.msra.mxu0 0.0
  %7013 = vmatpush.msra.mxu0 0.0
  %7014 = vmatpush.msra.mxu0 0.0
  %7015 = vmatpush.msra.mxu0 0.0
  %7016 = vmatpush.msra.mxu0 0.0
  %7017 = vmatpush.msra.mxu0 0.0
  %7018 = vmatpush.msra.mxu0 0.0
  %7019 = vmatpush.msra.mxu0 0.0
  %7020 = vmatpush.msra.mxu0 0.0
  %7021 = vmatpush.msra.mxu0 0.0
  %7022 = vmatpush.msra.mxu0 0.0
  %7023 = vmatpush.msra.mxu0 0.0
  %7024 = vmatpush.msra.mxu0 %v6939
  %7025 = vmatpush.msra.mxu0 %v6933
  %7026 = vmatpush.msra.mxu0 %v6927
  %7027 = vmatpush.msra.mxu0 %v6921
  %7028 = vmatmul.f32.gmra.mxu0 %v6961
  %v7029 = vpop.f32.mrf.mxu0
  %v7030 = vadd.f32 0.0, %v7029
  %7031 = vmatmul.f32.gmra.mxu0 %v6964
  %v7032 = vpop.f32.mrf.mxu0
  %v7033 = vadd.f32 0.0, %v7032
  %7034 = vdwg.mxu0
  %v7035 = vadd.f32 %v6759, %v6984
  %v7036 = vadd.f32 %v6828, %v7007
  %v7037 = vadd.f32 %v6897, %v7030
  %v7038 = vadd.f32 %v6762, %v6987
  %v7039 = vadd.f32 %v6831, %v7010
  %v7040 = vadd.f32 %v6900, %v7033
  %v7041 = vld [vmem:[%s1 + $0x50] sm:$0xff]
  %v7042 = vld [vmem:[%s1 + $0x58] sm:$0xff]
  %7043 = vrot.lane.b32.xlu0 %v6559, 126
  %v7044 = vpop.permute.xlu0 %7043
  %7045 = vrot.lane.b32.xlu0 %v6560, 126
  %v7046 = vpop.permute.xlu0 %7045
  %7047 = vrot.lane.b32.xlu0 %v6561, 126
  %v7048 = vpop.permute.xlu0 %7047
  %7049 = vrot.lane.b32.xlu0 %v6562, 126
  %v7050 = vpop.permute.xlu0 %7049
  %7051 = vrot.lane.b32.xlu0 %v6563, 126
  %v7052 = vpop.permute.xlu0 %7051
  %7053 = vrot.lane.b32.xlu0 %v6564, 126
  %v7054 = vpop.permute.xlu0 %7053
  %7055 = vrot.lane.b32.xlu0 %v6565, 126
  %v7056 = vpop.permute.xlu0 %7055
  %7057 = vrot.lane.b32.xlu0 %v6566, 126
  %v7058 = vpop.permute.xlu0 %7057
  %7059 = vrot.lane.b32.xlu0 %v6567, 126
  %v7060 = vpop.permute.xlu0 %7059
  %7061 = vrot.lane.b32.xlu0 %v6568, 126
  %v7062 = vpop.permute.xlu0 %7061
  %7063 = vrot.lane.b32.xlu0 %v6569, 126
  %v7064 = vpop.permute.xlu0 %7063
  %7065 = vrot.lane.b32.xlu0 %v6570, 126
  %v7066 = vpop.permute.xlu0 %7065
  %v7067 = vsel %vm3621, %v7044, %v7046
  %v7068 = vsel %vm3621, %v7046, %v7048
  %v7069 = vsel %vm3621, %v7050, %v7052
  %v7070 = vsel %vm3621, %v7052, %v7054
  %v7071 = vsel %vm3621, %v7056, %v7058
  %v7072 = vsel %vm3621, %v7058, %v7060
  %v7073 = vsel %vm3621, %v7062, %v7064
  %v7074 = vsel %vm3621, %v7064, %v7066
  %v7088 = vsel %vm32, %v7041, 0
  %v7091 = vsel %vm32, %v7042, 0
  %7093 = vmatpush.msra.mxu0 0.0
  %7094 = vmatpush.msra.mxu0 0.0
  %7095 = vmatpush.msra.mxu0 0.0
  %7096 = vmatpush.msra.mxu0 0.0
  %7097 = vmatpush.msra.mxu0 0.0
  %7098 = vmatpush.msra.mxu0 0.0
  %7099 = vmatpush.msra.mxu0 0.0
  %7100 = vmatpush.msra.mxu0 0.0
  %7101 = vmatpush.msra.mxu0 0.0
  %7102 = vmatpush.msra.mxu0 0.0
  %7103 = vmatpush.msra.mxu0 0.0
  %7104 = vmatpush.msra.mxu0 0.0
  %7105 = vmatpush.msra.mxu0 %v7073
  %7106 = vmatpush.msra.mxu0 %v7071
  %7107 = vmatpush.msra.mxu0 %v7069
  %7108 = vmatpush.msra.mxu0 %v7067
  %7109 = vmatmul.f32.gmra.mxu0 %v7088
  %v7110 = vpop.f32.mrf.mxu0
  %v7111 = vadd.f32 0.0, %v7110
  %7112 = vmatmul.f32.gmra.mxu0 %v7091
  %v7113 = vpop.f32.mrf.mxu0
  %v7114 = vadd.f32 0.0, %v7113
  %7115 = vdwg.mxu0
  %7116 = vmatpush.msra.mxu0 0.0
  %7117 = vmatpush.msra.mxu0 0.0
  %7118 = vmatpush.msra.mxu0 0.0
  %7119 = vmatpush.msra.mxu0 0.0
  %7120 = vmatpush.msra.mxu0 0.0
  %7121 = vmatpush.msra.mxu0 0.0
  %7122 = vmatpush.msra.mxu0 0.0
  %7123 = vmatpush.msra.mxu0 0.0
  %7124 = vmatpush.msra.mxu0 0.0
  %7125 = vmatpush.msra.mxu0 0.0
  %7126 = vmatpush.msra.mxu0 0.0
  %7127 = vmatpush.msra.mxu0 0.0
  %7128 = vmatpush.msra.mxu0 %v7074
  %7129 = vmatpush.msra.mxu0 %v7072
  %7130 = vmatpush.msra.mxu0 %v7070
  %7131 = vmatpush.msra.mxu0 %v7068
  %7132 = vmatmul.f32.gmra.mxu0 %v7088
  %v7133 = vpop.f32.mrf.mxu0
  %v7134 = vadd.f32 0.0, %v7133
  %7135 = vmatmul.f32.gmra.mxu0 %v7091
  %v7136 = vpop.f32.mrf.mxu0
  %v7137 = vadd.f32 0.0, %v7136
  %7138 = vdwg.mxu0
  %7139 = vmatpush.msra.mxu0 0.0
  %7140 = vmatpush.msra.mxu0 0.0
  %7141 = vmatpush.msra.mxu0 0.0
  %7142 = vmatpush.msra.mxu0 0.0
  %7143 = vmatpush.msra.mxu0 0.0
  %7144 = vmatpush.msra.mxu0 0.0
  %7145 = vmatpush.msra.mxu0 0.0
  %7146 = vmatpush.msra.mxu0 0.0
  %7147 = vmatpush.msra.mxu0 0.0
  %7148 = vmatpush.msra.mxu0 0.0
  %7149 = vmatpush.msra.mxu0 0.0
  %7150 = vmatpush.msra.mxu0 0.0
  %7151 = vmatpush.msra.mxu0 %v7066
  %7152 = vmatpush.msra.mxu0 %v7060
  %7153 = vmatpush.msra.mxu0 %v7054
  %7154 = vmatpush.msra.mxu0 %v7048
  %7155 = vmatmul.f32.gmra.mxu0 %v7088
  %v7156 = vpop.f32.mrf.mxu0
  %v7157 = vadd.f32 0.0, %v7156
  %7158 = vmatmul.f32.gmra.mxu0 %v7091
  %v7159 = vpop.f32.mrf.mxu0
  %v7160 = vadd.f32 0.0, %v7159
  %7161 = vdwg.mxu0
  %v7162 = vadd.f32 %v7035, %v7111
  %v7163 = vadd.f32 %v7036, %v7134
  %v7164 = vadd.f32 %v7037, %v7157
  %v7165 = vadd.f32 %v7038, %v7114
  %v7166 = vadd.f32 %v7039, %v7137
  %v7167 = vadd.f32 %v7040, %v7160
  %v7168 = vld [vmem:[%s1 + $0x60] sm:$0xff]
  %v7169 = vld [vmem:[%s1 + $0x68] sm:$0xff]
  %7170 = vrot.lane.b32.xlu0 %v6559, 110
  %v7171 = vpop.permute.xlu0 %7170
  %7172 = vrot.lane.b32.xlu0 %v6560, 110
  %v7173 = vpop.permute.xlu0 %7172
  %7174 = vrot.lane.b32.xlu0 %v6561, 110
  %v7175 = vpop.permute.xlu0 %7174
  %7176 = vrot.lane.b32.xlu0 %v6562, 110
  %v7177 = vpop.permute.xlu0 %7176
  %7178 = vrot.lane.b32.xlu0 %v6563, 110
  %v7179 = vpop.permute.xlu0 %7178
  %7180 = vrot.lane.b32.xlu0 %v6564, 110
  %v7181 = vpop.permute.xlu0 %7180
  %7182 = vrot.lane.b32.xlu0 %v6565, 110
  %v7183 = vpop.permute.xlu0 %7182
  %7184 = vrot.lane.b32.xlu0 %v6566, 110
  %v7185 = vpop.permute.xlu0 %7184
  %7186 = vrot.lane.b32.xlu0 %v6567, 110
  %v7187 = vpop.permute.xlu0 %7186
  %7188 = vrot.lane.b32.xlu0 %v6568, 110
  %v7189 = vpop.permute.xlu0 %7188
  %7190 = vrot.lane.b32.xlu0 %v6569, 110
  %v7191 = vpop.permute.xlu0 %7190
  %7192 = vrot.lane.b32.xlu0 %v6570, 110
  %v7193 = vpop.permute.xlu0 %7192
  %vm7194 = vcmask 900096
  %v7195 = vsel %vm7194, %v7171, %v7173
  %v7196 = vsel %vm7194, %v7173, %v7175
  %v7197 = vsel %vm7194, %v7177, %v7179
  %v7198 = vsel %vm7194, %v7179, %v7181
  %v7199 = vsel %vm7194, %v7183, %v7185
  %v7200 = vsel %vm7194, %v7185, %v7187
  %v7201 = vsel %vm7194, %v7189, %v7191
  %v7202 = vsel %vm7194, %v7191, %v7193
  %v7216 = vsel %vm32, %v7168, 0
  %v7219 = vsel %vm32, %v7169, 0
  %7221 = vmatpush.msra.mxu0 0.0
  %7222 = vmatpush.msra.mxu0 0.0
  %7223 = vmatpush.msra.mxu0 0.0
  %7224 = vmatpush.msra.mxu0 0.0
  %7225 = vmatpush.msra.mxu0 0.0
  %7226 = vmatpush.msra.mxu0 0.0
  %7227 = vmatpush.msra.mxu0 0.0
  %7228 = vmatpush.msra.mxu0 0.0
  %7229 = vmatpush.msra.mxu0 0.0
  %7230 = vmatpush.msra.mxu0 0.0
  %7231 = vmatpush.msra.mxu0 0.0
  %7232 = vmatpush.msra.mxu0 0.0
  %7233 = vmatpush.msra.mxu0 %v7201
  %7234 = vmatpush.msra.mxu0 %v7199
  %7235 = vmatpush.msra.mxu0 %v7197
  %7236 = vmatpush.msra.mxu0 %v7195
  %7237 = vmatmul.f32.gmra.mxu0 %v7216
  %v7238 = vpop.f32.mrf.mxu0
  %v7239 = vadd.f32 0.0, %v7238
  %7240 = vmatmul.f32.gmra.mxu0 %v7219
  %v7241 = vpop.f32.mrf.mxu0
  %v7242 = vadd.f32 0.0, %v7241
  %7243 = vdwg.mxu0
  %7244 = vmatpush.msra.mxu0 0.0
  %7245 = vmatpush.msra.mxu0 0.0
  %7246 = vmatpush.msra.mxu0 0.0
  %7247 = vmatpush.msra.mxu0 0.0
  %7248 = vmatpush.msra.mxu0 0.0
  %7249 = vmatpush.msra.mxu0 0.0
  %7250 = vmatpush.msra.mxu0 0.0
  %7251 = vmatpush.msra.mxu0 0.0
  %7252 = vmatpush.msra.mxu0 0.0
  %7253 = vmatpush.msra.mxu0 0.0
  %7254 = vmatpush.msra.mxu0 0.0
  %7255 = vmatpush.msra.mxu0 0.0
  %7256 = vmatpush.msra.mxu0 %v7202
  %7257 = vmatpush.msra.mxu0 %v7200
  %7258 = vmatpush.msra.mxu0 %v7198
  %7259 = vmatpush.msra.mxu0 %v7196
  %7260 = vmatmul.f32.gmra.mxu0 %v7216
  %v7261 = vpop.f32.mrf.mxu0
  %v7262 = vadd.f32 0.0, %v7261
  %7263 = vmatmul.f32.gmra.mxu0 %v7219
  %v7264 = vpop.f32.mrf.mxu0
  %v7265 = vadd.f32 0.0, %v7264
  %7266 = vdwg.mxu0
  %7267 = vmatpush.msra.mxu0 0.0
  %7268 = vmatpush.msra.mxu0 0.0
  %7269 = vmatpush.msra.mxu0 0.0
  %7270 = vmatpush.msra.mxu0 0.0
  %7271 = vmatpush.msra.mxu0 0.0
  %7272 = vmatpush.msra.mxu0 0.0
  %7273 = vmatpush.msra.mxu0 0.0
  %7274 = vmatpush.msra.mxu0 0.0
  %7275 = vmatpush.msra.mxu0 0.0
  %7276 = vmatpush.msra.mxu0 0.0
  %7277 = vmatpush.msra.mxu0 0.0
  %7278 = vmatpush.msra.mxu0 0.0
  %7279 = vmatpush.msra.mxu0 %v7193
  %7280 = vmatpush.msra.mxu0 %v7187
  %7281 = vmatpush.msra.mxu0 %v7181
  %7282 = vmatpush.msra.mxu0 %v7175
  %7283 = vmatmul.f32.gmra.mxu0 %v7216
  %v7284 = vpop.f32.mrf.mxu0
  %v7285 = vadd.f32 0.0, %v7284
  %7286 = vmatmul.f32.gmra.mxu0 %v7219
  %v7287 = vpop.f32.mrf.mxu0
  %v7288 = vadd.f32 0.0, %v7287
  %7289 = vdwg.mxu0
  %v7290 = vadd.f32 %v7162, %v7239
  %v7291 = vadd.f32 %v7163, %v7262
  %v7292 = vadd.f32 %v7164, %v7285
  %v7293 = vadd.f32 %v7165, %v7242
  %v7294 = vadd.f32 %v7166, %v7265
  %v7295 = vadd.f32 %v7167, %v7288
  %v7296 = vld [vmem:[%s1 + $0x70] sm:$0xff]
  %v7297 = vld [vmem:[%s1 + $0x78] sm:$0xff]
  %7298 = vrot.lane.b32.xlu0 %v6559, 109
  %v7299 = vpop.permute.xlu0 %7298
  %7300 = vrot.lane.b32.xlu0 %v6560, 109
  %v7301 = vpop.permute.xlu0 %7300
  %7302 = vrot.lane.b32.xlu0 %v6561, 109
  %v7303 = vpop.permute.xlu0 %7302
  %7304 = vrot.lane.b32.xlu0 %v6562, 109
  %v7305 = vpop.permute.xlu0 %7304
  %7306 = vrot.lane.b32.xlu0 %v6563, 109
  %v7307 = vpop.permute.xlu0 %7306
  %7308 = vrot.lane.b32.xlu0 %v6564, 109
  %v7309 = vpop.permute.xlu0 %7308
  %7310 = vrot.lane.b32.xlu0 %v6565, 109
  %v7311 = vpop.permute.xlu0 %7310
  %7312 = vrot.lane.b32.xlu0 %v6566, 109
  %v7313 = vpop.permute.xlu0 %7312
  %7314 = vrot.lane.b32.xlu0 %v6567, 109
  %v7315 = vpop.permute.xlu0 %7314
  %7316 = vrot.lane.b32.xlu0 %v6568, 109
  %v7317 = vpop.permute.xlu0 %7316
  %7318 = vrot.lane.b32.xlu0 %v6569, 109
  %v7319 = vpop.permute.xlu0 %7318
  %7320 = vrot.lane.b32.xlu0 %v6570, 109
  %v7321 = vpop.permute.xlu0 %7320
  %v7322 = vsel %vm4147, %v7299, %v7301
  %v7323 = vsel %vm4147, %v7301, %v7303
  %v7324 = vsel %vm4147, %v7305, %v7307
  %v7325 = vsel %vm4147, %v7307, %v7309
  %v7326 = vsel %vm4147, %v7311, %v7313
  %v7327 = vsel %vm4147, %v7313, %v7315
  %v7328 = vsel %vm4147, %v7317, %v7319
  %v7329 = vsel %vm4147, %v7319, %v7321
  %v7343 = vsel %vm32, %v7296, 0
  %v7346 = vsel %vm32, %v7297, 0
  %7348 = vmatpush.msra.mxu0 0.0
  %7349 = vmatpush.msra.mxu0 0.0
  %7350 = vmatpush.msra.mxu0 0.0
  %7351 = vmatpush.msra.mxu0 0.0
  %7352 = vmatpush.msra.mxu0 0.0
  %7353 = vmatpush.msra.mxu0 0.0
  %7354 = vmatpush.msra.mxu0 0.0
  %7355 = vmatpush.msra.mxu0 0.0
  %7356 = vmatpush.msra.mxu0 0.0
  %7357 = vmatpush.msra.mxu0 0.0
  %7358 = vmatpush.msra.mxu0 0.0
  %7359 = vmatpush.msra.mxu0 0.0
  %7360 = vmatpush.msra.mxu0 %v7328
  %7361 = vmatpush.msra.mxu0 %v7326
  %7362 = vmatpush.msra.mxu0 %v7324
  %7363 = vmatpush.msra.mxu0 %v7322
  %7364 = vmatmul.f32.gmra.mxu0 %v7343
  %v7365 = vpop.f32.mrf.mxu0
  %v7366 = vadd.f32 0.0, %v7365
  %7367 = vmatmul.f32.gmra.mxu0 %v7346
  %v7368 = vpop.f32.mrf.mxu0
  %v7369 = vadd.f32 0.0, %v7368
  %7370 = vdwg.mxu0
  %7371 = vmatpush.msra.mxu0 0.0
  %7372 = vmatpush.msra.mxu0 0.0
  %7373 = vmatpush.msra.mxu0 0.0
  %7374 = vmatpush.msra.mxu0 0.0
  %7375 = vmatpush.msra.mxu0 0.0
  %7376 = vmatpush.msra.mxu0 0.0
  %7377 = vmatpush.msra.mxu0 0.0
  %7378 = vmatpush.msra.mxu0 0.0
  %7379 = vmatpush.msra.mxu0 0.0
  %7380 = vmatpush.msra.mxu0 0.0
  %7381 = vmatpush.msra.mxu0 0.0
  %7382 = vmatpush.msra.mxu0 0.0
  %7383 = vmatpush.msra.mxu0 %v7329
  %7384 = vmatpush.msra.mxu0 %v7327
  %7385 = vmatpush.msra.mxu0 %v7325
  %7386 = vmatpush.msra.mxu0 %v7323
  %7387 = vmatmul.f32.gmra.mxu0 %v7343
  %v7388 = vpop.f32.mrf.mxu0
  %v7389 = vadd.f32 0.0, %v7388
  %7390 = vmatmul.f32.gmra.mxu0 %v7346
  %v7391 = vpop.f32.mrf.mxu0
  %v7392 = vadd.f32 0.0, %v7391
  %7393 = vdwg.mxu0
  %7394 = vmatpush.msra.mxu0 0.0
  %7395 = vmatpush.msra.mxu0 0.0
  %7396 = vmatpush.msra.mxu0 0.0
  %7397 = vmatpush.msra.mxu0 0.0
  %7398 = vmatpush.msra.mxu0 0.0
  %7399 = vmatpush.msra.mxu0 0.0
  %7400 = vmatpush.msra.mxu0 0.0
  %7401 = vmatpush.msra.mxu0 0.0
  %7402 = vmatpush.msra.mxu0 0.0
  %7403 = vmatpush.msra.mxu0 0.0
  %7404 = vmatpush.msra.mxu0 0.0
  %7405 = vmatpush.msra.mxu0 0.0
  %7406 = vmatpush.msra.mxu0 %v7321
  %7407 = vmatpush.msra.mxu0 %v7315
  %7408 = vmatpush.msra.mxu0 %v7309
  %7409 = vmatpush.msra.mxu0 %v7303
  %7410 = vmatmul.f32.gmra.mxu0 %v7343
  %v7411 = vpop.f32.mrf.mxu0
  %v7412 = vadd.f32 0.0, %v7411
  %7413 = vmatmul.f32.gmra.mxu0 %v7346
  %v7414 = vpop.f32.mrf.mxu0
  %v7415 = vadd.f32 0.0, %v7414
  %7416 = vdwg.mxu0
  %v7417 = vadd.f32 %v7290, %v7366
  %v7418 = vadd.f32 %v7291, %v7389
  %v7419 = vadd.f32 %v7292, %v7412
  %v7420 = vadd.f32 %v7293, %v7369
  %v7421 = vadd.f32 %v7294, %v7392
  %v7422 = vadd.f32 %v7295, %v7415
  %v7423 = vld [vmem:[%s1 + $0x80] sm:$0xff]
  %v7424 = vld [vmem:[%s1 + $0x88] sm:$0xff]
  %7425 = vrot.lane.b32.xlu0 %v6559, 108
  %v7426 = vpop.permute.xlu0 %7425
  %7427 = vrot.lane.b32.xlu0 %v6560, 108
  %v7428 = vpop.permute.xlu0 %7427
  %7429 = vrot.lane.b32.xlu0 %v6561, 108
  %v7430 = vpop.permute.xlu0 %7429
  %7431 = vrot.lane.b32.xlu0 %v6562, 108
  %v7432 = vpop.permute.xlu0 %7431
  %7433 = vrot.lane.b32.xlu0 %v6563, 108
  %v7434 = vpop.permute.xlu0 %7433
  %7435 = vrot.lane.b32.xlu0 %v6564, 108
  %v7436 = vpop.permute.xlu0 %7435
  %7437 = vrot.lane.b32.xlu0 %v6565, 108
  %v7438 = vpop.permute.xlu0 %7437
  %7439 = vrot.lane.b32.xlu0 %v6566, 108
  %v7440 = vpop.permute.xlu0 %7439
  %7441 = vrot.lane.b32.xlu0 %v6567, 108
  %v7442 = vpop.permute.xlu0 %7441
  %7443 = vrot.lane.b32.xlu0 %v6568, 108
  %v7444 = vpop.permute.xlu0 %7443
  %7445 = vrot.lane.b32.xlu0 %v6569, 108
  %v7446 = vpop.permute.xlu0 %7445
  %7447 = vrot.lane.b32.xlu0 %v6570, 108
  %v7448 = vpop.permute.xlu0 %7447
  %v7449 = vsel %vm4190, %v7426, %v7428
  %v7450 = vsel %vm4190, %v7428, %v7430
  %v7451 = vsel %vm4190, %v7432, %v7434
  %v7452 = vsel %vm4190, %v7434, %v7436
  %v7453 = vsel %vm4190, %v7438, %v7440
  %v7454 = vsel %vm4190, %v7440, %v7442
  %v7455 = vsel %vm4190, %v7444, %v7446
  %v7456 = vsel %vm4190, %v7446, %v7448
  %v7470 = vsel %vm32, %v7423, 0
  %v7473 = vsel %vm32, %v7424, 0
  %7475 = vmatpush.msra.mxu0 0.0
  %7476 = vmatpush.msra.mxu0 0.0
  %7477 = vmatpush.msra.mxu0 0.0
  %7478 = vmatpush.msra.mxu0 0.0
  %7479 = vmatpush.msra.mxu0 0.0
  %7480 = vmatpush.msra.mxu0 0.0
  %7481 = vmatpush.msra.mxu0 0.0
  %7482 = vmatpush.msra.mxu0 0.0
  %7483 = vmatpush.msra.mxu0 0.0
  %7484 = vmatpush.msra.mxu0 0.0
  %7485 = vmatpush.msra.mxu0 0.0
  %7486 = vmatpush.msra.mxu0 0.0
  %7487 = vmatpush.msra.mxu0 %v7455
  %7488 = vmatpush.msra.mxu0 %v7453
  %7489 = vmatpush.msra.mxu0 %v7451
  %7490 = vmatpush.msra.mxu0 %v7449
  %7491 = vmatmul.f32.gmra.mxu0 %v7470
  %v7492 = vpop.f32.mrf.mxu0
  %v7493 = vadd.f32 0.0, %v7492
  %7494 = vmatmul.f32.gmra.mxu0 %v7473
  %v7495 = vpop.f32.mrf.mxu0
  %v7496 = vadd.f32 0.0, %v7495
  %7497 = vdwg.mxu0
  %7498 = vmatpush.msra.mxu0 0.0
  %7499 = vmatpush.msra.mxu0 0.0
  %7500 = vmatpush.msra.mxu0 0.0
  %7501 = vmatpush.msra.mxu0 0.0
  %7502 = vmatpush.msra.mxu0 0.0
  %7503 = vmatpush.msra.mxu0 0.0
  %7504 = vmatpush.msra.mxu0 0.0
  %7505 = vmatpush.msra.mxu0 0.0
  %7506 = vmatpush.msra.mxu0 0.0
  %7507 = vmatpush.msra.mxu0 0.0
  %7508 = vmatpush.msra.mxu0 0.0
  %7509 = vmatpush.msra.mxu0 0.0
  %7510 = vmatpush.msra.mxu0 %v7456
  %7511 = vmatpush.msra.mxu0 %v7454
  %7512 = vmatpush.msra.mxu0 %v7452
  %7513 = vmatpush.msra.mxu0 %v7450
  %7514 = vmatmul.f32.gmra.mxu0 %v7470
  %v7515 = vpop.f32.mrf.mxu0
  %v7516 = vadd.f32 0.0, %v7515
  %7517 = vmatmul.f32.gmra.mxu0 %v7473
  %v7518 = vpop.f32.mrf.mxu0
  %v7519 = vadd.f32 0.0, %v7518
  %7520 = vdwg.mxu0
  %7521 = vmatpush.msra.mxu0 0.0
  %7522 = vmatpush.msra.mxu0 0.0
  %7523 = vmatpush.msra.mxu0 0.0
  %7524 = vmatpush.msra.mxu0 0.0
  %7525 = vmatpush.msra.mxu0 0.0
  %7526 = vmatpush.msra.mxu0 0.0
  %7527 = vmatpush.msra.mxu0 0.0
  %7528 = vmatpush.msra.mxu0 0.0
  %7529 = vmatpush.msra.mxu0 0.0
  %7530 = vmatpush.msra.mxu0 0.0
  %7531 = vmatpush.msra.mxu0 0.0
  %7532 = vmatpush.msra.mxu0 0.0
  %7533 = vmatpush.msra.mxu0 %v7448
  %7534 = vmatpush.msra.mxu0 %v7442
  %7535 = vmatpush.msra.mxu0 %v7436
  %7536 = vmatpush.msra.mxu0 %v7430
  %7537 = vmatmul.f32.gmra.mxu0 %v7470
  %v7538 = vpop.f32.mrf.mxu0
  %v7539 = vadd.f32 0.0, %v7538
  %7540 = vmatmul.f32.gmra.mxu0 %v7473
  %v7541 = vpop.f32.mrf.mxu0
  %v7542 = vadd.f32 0.0, %v7541
  %7543 = vdwg.mxu0
  %v7544 = vadd.f32 %v7417, %v7493
  %v7545 = vadd.f32 %v7418, %v7516
  %v7546 = vadd.f32 %v7419, %v7539
  %v7547 = vadd.f32 %v7420, %v7496
  %v7548 = vadd.f32 %v7421, %v7519
  %v7549 = vadd.f32 %v7422, %v7542
  %v7550 = vld [vmem:[%s1 + $0x90] sm:$0xff]
  %v7551 = vld [vmem:[%s1 + $0x98] sm:$0xff]
  %7552 = vrot.lane.b32.xlu0 %v6559, 92
  %v7553 = vpop.permute.xlu0 %7552
  %7554 = vrot.lane.b32.xlu0 %v6560, 92
  %v7555 = vpop.permute.xlu0 %7554
  %7556 = vrot.lane.b32.xlu0 %v6561, 92
  %v7557 = vpop.permute.xlu0 %7556
  %7558 = vrot.lane.b32.xlu0 %v6562, 92
  %v7559 = vpop.permute.xlu0 %7558
  %7560 = vrot.lane.b32.xlu0 %v6563, 92
  %v7561 = vpop.permute.xlu0 %7560
  %7562 = vrot.lane.b32.xlu0 %v6564, 92
  %v7563 = vpop.permute.xlu0 %7562
  %7564 = vrot.lane.b32.xlu0 %v6565, 92
  %v7565 = vpop.permute.xlu0 %7564
  %7566 = vrot.lane.b32.xlu0 %v6566, 92
  %v7567 = vpop.permute.xlu0 %7566
  %7568 = vrot.lane.b32.xlu0 %v6567, 92
  %v7569 = vpop.permute.xlu0 %7568
  %7570 = vrot.lane.b32.xlu0 %v6568, 92
  %v7571 = vpop.permute.xlu0 %7570
  %7572 = vrot.lane.b32.xlu0 %v6569, 92
  %v7573 = vpop.permute.xlu0 %7572
  %7574 = vrot.lane.b32.xlu0 %v6570, 92
  %v7575 = vpop.permute.xlu0 %7574
  %vm7576 = vcmask 752640
  %v7577 = vsel %vm7576, %v7553, %v7555
  %v7578 = vsel %vm7576, %v7555, %v7557
  %v7579 = vsel %vm7576, %v7559, %v7561
  %v7580 = vsel %vm7576, %v7561, %v7563
  %v7581 = vsel %vm7576, %v7565, %v7567
  %v7582 = vsel %vm7576, %v7567, %v7569
  %v7583 = vsel %vm7576, %v7571, %v7573
  %v7584 = vsel %vm7576, %v7573, %v7575
  %v7598 = vsel %vm32, %v7550, 0
  %v7601 = vsel %vm32, %v7551, 0
  %7603 = vmatpush.msra.mxu0 0.0
  %7604 = vmatpush.msra.mxu0 0.0
  %7605 = vmatpush.msra.mxu0 0.0
  %7606 = vmatpush.msra.mxu0 0.0
  %7607 = vmatpush.msra.mxu0 0.0
  %7608 = vmatpush.msra.mxu0 0.0
  %7609 = vmatpush.msra.mxu0 0.0
  %7610 = vmatpush.msra.mxu0 0.0
  %7611 = vmatpush.msra.mxu0 0.0
  %7612 = vmatpush.msra.mxu0 0.0
  %7613 = vmatpush.msra.mxu0 0.0
  %7614 = vmatpush.msra.mxu0 0.0
  %7615 = vmatpush.msra.mxu0 %v7583
  %7616 = vmatpush.msra.mxu0 %v7581
  %7617 = vmatpush.msra.mxu0 %v7579
  %7618 = vmatpush.msra.mxu0 %v7577
  %7619 = vmatmul.f32.gmra.mxu0 %v7598
  %v7620 = vpop.f32.mrf.mxu0
  %v7621 = vadd.f32 0.0, %v7620
  %7622 = vmatmul.f32.gmra.mxu0 %v7601
  %v7623 = vpop.f32.mrf.mxu0
  %v7624 = vadd.f32 0.0, %v7623
  %7625 = vdwg.mxu0
  %7626 = vmatpush.msra.mxu0 0.0
  %7627 = vmatpush.msra.mxu0 0.0
  %7628 = vmatpush.msra.mxu0 0.0
  %7629 = vmatpush.msra.mxu0 0.0
  %7630 = vmatpush.msra.mxu0 0.0
  %7631 = vmatpush.msra.mxu0 0.0
  %7632 = vmatpush.msra.mxu0 0.0
  %7633 = vmatpush.msra.mxu0 0.0
  %7634 = vmatpush.msra.mxu0 0.0
  %7635 = vmatpush.msra.mxu0 0.0
  %7636 = vmatpush.msra.mxu0 0.0
  %7637 = vmatpush.msra.mxu0 0.0
  %7638 = vmatpush.msra.mxu0 %v7584
  %7639 = vmatpush.msra.mxu0 %v7582
  %7640 = vmatpush.msra.mxu0 %v7580
  %7641 = vmatpush.msra.mxu0 %v7578
  %7642 = vmatmul.f32.gmra.mxu0 %v7598
  %v7643 = vpop.f32.mrf.mxu0
  %v7644 = vadd.f32 0.0, %v7643
  %7645 = vmatmul.f32.gmra.mxu0 %v7601
  %v7646 = vpop.f32.mrf.mxu0
  %v7647 = vadd.f32 0.0, %v7646
  %7648 = vdwg.mxu0
  %7649 = vmatpush.msra.mxu0 0.0
  %7650 = vmatpush.msra.mxu0 0.0
  %7651 = vmatpush.msra.mxu0 0.0
  %7652 = vmatpush.msra.mxu0 0.0
  %7653 = vmatpush.msra.mxu0 0.0
  %7654 = vmatpush.msra.mxu0 0.0
  %7655 = vmatpush.msra.mxu0 0.0
  %7656 = vmatpush.msra.mxu0 0.0
  %7657 = vmatpush.msra.mxu0 0.0
  %7658 = vmatpush.msra.mxu0 0.0
  %7659 = vmatpush.msra.mxu0 0.0
  %7660 = vmatpush.msra.mxu0 0.0
  %7661 = vmatpush.msra.mxu0 %v7575
  %7662 = vmatpush.msra.mxu0 %v7569
  %7663 = vmatpush.msra.mxu0 %v7563
  %7664 = vmatpush.msra.mxu0 %v7557
  %7665 = vmatmul.f32.gmra.mxu0 %v7598
  %v7666 = vpop.f32.mrf.mxu0
  %v7667 = vadd.f32 0.0, %v7666
  %7668 = vmatmul.f32.gmra.mxu0 %v7601
  %v7669 = vpop.f32.mrf.mxu0
  %v7670 = vadd.f32 0.0, %v7669
  %7671 = vdwg.mxu0
  %v7672 = vadd.f32 %v7544, %v7621
  %v7673 = vadd.f32 %v7545, %v7644
  %v7674 = vadd.f32 %v7546, %v7667
  %v7675 = vadd.f32 %v7547, %v7624
  %v7676 = vadd.f32 %v7548, %v7647
  %v7677 = vadd.f32 %v7549, %v7670
  %v7678 = vld [vmem:[%s1 + $0xa0] sm:$0xff]
  %v7679 = vld [vmem:[%s1 + $0xa8] sm:$0xff]
  %7680 = vrot.lane.b32.xlu0 %v6559, 91
  %v7681 = vpop.permute.xlu0 %7680
  %7682 = vrot.lane.b32.xlu0 %v6560, 91
  %v7683 = vpop.permute.xlu0 %7682
  %7684 = vrot.lane.b32.xlu0 %v6561, 91
  %v7685 = vpop.permute.xlu0 %7684
  %7686 = vrot.lane.b32.xlu0 %v6562, 91
  %v7687 = vpop.permute.xlu0 %7686
  %7688 = vrot.lane.b32.xlu0 %v6563, 91
  %v7689 = vpop.permute.xlu0 %7688
  %7690 = vrot.lane.b32.xlu0 %v6564, 91
  %v7691 = vpop.permute.xlu0 %7690
  %7692 = vrot.lane.b32.xlu0 %v6565, 91
  %v7693 = vpop.permute.xlu0 %7692
  %7694 = vrot.lane.b32.xlu0 %v6566, 91
  %v7695 = vpop.permute.xlu0 %7694
  %7696 = vrot.lane.b32.xlu0 %v6567, 91
  %v7697 = vpop.permute.xlu0 %7696
  %7698 = vrot.lane.b32.xlu0 %v6568, 91
  %v7699 = vpop.permute.xlu0 %7698
  %7700 = vrot.lane.b32.xlu0 %v6569, 91
  %v7701 = vpop.permute.xlu0 %7700
  %7702 = vrot.lane.b32.xlu0 %v6570, 91
  %v7703 = vpop.permute.xlu0 %7702
  %vm7704 = vcmask 744448
  %v7705 = vsel %vm7704, %v7681, %v7683
  %v7706 = vsel %vm7704, %v7683, %v7685
  %v7707 = vsel %vm7704, %v7687, %v7689
  %v7708 = vsel %vm7704, %v7689, %v7691
  %v7709 = vsel %vm7704, %v7693, %v7695
  %v7710 = vsel %vm7704, %v7695, %v7697
  %v7711 = vsel %vm7704, %v7699, %v7701
  %v7712 = vsel %vm7704, %v7701, %v7703
  %v7726 = vsel %vm32, %v7678, 0
  %v7729 = vsel %vm32, %v7679, 0
  %7731 = vmatpush.msra.mxu0 0.0
  %7732 = vmatpush.msra.mxu0 0.0
  %7733 = vmatpush.msra.mxu0 0.0
  %7734 = vmatpush.msra.mxu0 0.0
  %7735 = vmatpush.msra.mxu0 0.0
  %7736 = vmatpush.msra.mxu0 0.0
  %7737 = vmatpush.msra.mxu0 0.0
  %7738 = vmatpush.msra.mxu0 0.0
  %7739 = vmatpush.msra.mxu0 0.0
  %7740 = vmatpush.msra.mxu0 0.0
  %7741 = vmatpush.msra.mxu0 0.0
  %7742 = vmatpush.msra.mxu0 0.0
  %7743 = vmatpush.msra.mxu0 %v7711
  %7744 = vmatpush.msra.mxu0 %v7709
  %7745 = vmatpush.msra.mxu0 %v7707
  %7746 = vmatpush.msra.mxu0 %v7705
  %7747 = vmatmul.f32.gmra.mxu0 %v7726
  %v7748 = vpop.f32.mrf.mxu0
  %v7749 = vadd.f32 0.0, %v7748
  %7750 = vmatmul.f32.gmra.mxu0 %v7729
  %v7751 = vpop.f32.mrf.mxu0
  %v7752 = vadd.f32 0.0, %v7751
  %7753 = vdwg.mxu0
  %7754 = vmatpush.msra.mxu0 0.0
  %7755 = vmatpush.msra.mxu0 0.0
  %7756 = vmatpush.msra.mxu0 0.0
  %7757 = vmatpush.msra.mxu0 0.0
  %7758 = vmatpush.msra.mxu0 0.0
  %7759 = vmatpush.msra.mxu0 0.0
  %7760 = vmatpush.msra.mxu0 0.0
  %7761 = vmatpush.msra.mxu0 0.0
  %7762 = vmatpush.msra.mxu0 0.0
  %7763 = vmatpush.msra.mxu0 0.0
  %7764 = vmatpush.msra.mxu0 0.0
  %7765 = vmatpush.msra.mxu0 0.0
  %7766 = vmatpush.msra.mxu0 %v7712
  %7767 = vmatpush.msra.mxu0 %v7710
  %7768 = vmatpush.msra.mxu0 %v7708
  %7769 = vmatpush.msra.mxu0 %v7706
  %7770 = vmatmul.f32.gmra.mxu0 %v7726
  %v7771 = vpop.f32.mrf.mxu0
  %v7772 = vadd.f32 0.0, %v7771
  %7773 = vmatmul.f32.gmra.mxu0 %v7729
  %v7774 = vpop.f32.mrf.mxu0
  %v7775 = vadd.f32 0.0, %v7774
  %7776 = vdwg.mxu0
  %7777 = vmatpush.msra.mxu0 0.0
  %7778 = vmatpush.msra.mxu0 0.0
  %7779 = vmatpush.msra.mxu0 0.0
  %7780 = vmatpush.msra.mxu0 0.0
  %7781 = vmatpush.msra.mxu0 0.0
  %7782 = vmatpush.msra.mxu0 0.0
  %7783 = vmatpush.msra.mxu0 0.0
  %7784 = vmatpush.msra.mxu0 0.0
  %7785 = vmatpush.msra.mxu0 0.0
  %7786 = vmatpush.msra.mxu0 0.0
  %7787 = vmatpush.msra.mxu0 0.0
  %7788 = vmatpush.msra.mxu0 0.0
  %7789 = vmatpush.msra.mxu0 %v7703
  %7790 = vmatpush.msra.mxu0 %v7697
  %7791 = vmatpush.msra.mxu0 %v7691
  %7792 = vmatpush.msra.mxu0 %v7685
  %7793 = vmatmul.f32.gmra.mxu0 %v7726
  %v7794 = vpop.f32.mrf.mxu0
  %v7795 = vadd.f32 0.0, %v7794
  %7796 = vmatmul.f32.gmra.mxu0 %v7729
  %v7797 = vpop.f32.mrf.mxu0
  %v7798 = vadd.f32 0.0, %v7797
  %7799 = vdwg.mxu0
  %v7800 = vadd.f32 %v7672, %v7749
  %v7801 = vadd.f32 %v7673, %v7772
  %v7802 = vadd.f32 %v7674, %v7795
  %v7803 = vadd.f32 %v7675, %v7752
  %v7804 = vadd.f32 %v7676, %v7775
  %v7805 = vadd.f32 %v7677, %v7798
  %v7806 = vld [vmem:[%s1 + $0xb0] sm:$0xff]
  %v7807 = vld [vmem:[%s1 + $0xb8] sm:$0xff]
  %7808 = vrot.lane.b32.xlu0 %v6559, 90
  %v7809 = vpop.permute.xlu0 %7808
  %7810 = vrot.lane.b32.xlu0 %v6560, 90
  %v7811 = vpop.permute.xlu0 %7810
  %7812 = vrot.lane.b32.xlu0 %v6561, 90
  %v7813 = vpop.permute.xlu0 %7812
  %7814 = vrot.lane.b32.xlu0 %v6562, 90
  %v7815 = vpop.permute.xlu0 %7814
  %7816 = vrot.lane.b32.xlu0 %v6563, 90
  %v7817 = vpop.permute.xlu0 %7816
  %7818 = vrot.lane.b32.xlu0 %v6564, 90
  %v7819 = vpop.permute.xlu0 %7818
  %7820 = vrot.lane.b32.xlu0 %v6565, 90
  %v7821 = vpop.permute.xlu0 %7820
  %7822 = vrot.lane.b32.xlu0 %v6566, 90
  %v7823 = vpop.permute.xlu0 %7822
  %7824 = vrot.lane.b32.xlu0 %v6567, 90
  %v7825 = vpop.permute.xlu0 %7824
  %7826 = vrot.lane.b32.xlu0 %v6568, 90
  %v7827 = vpop.permute.xlu0 %7826
  %7828 = vrot.lane.b32.xlu0 %v6569, 90
  %v7829 = vpop.permute.xlu0 %7828
  %7830 = vrot.lane.b32.xlu0 %v6570, 90
  %v7831 = vpop.permute.xlu0 %7830
  %v7832 = vsel %vm6680, %v7809, %v7811
  %v7833 = vsel %vm6680, %v7811, %v7813
  %v7834 = vsel %vm6680, %v7815, %v7817
  %v7835 = vsel %vm6680, %v7817, %v7819
  %v7836 = vsel %vm6680, %v7821, %v7823
  %v7837 = vsel %vm6680, %v7823, %v7825
  %v7838 = vsel %vm6680, %v7827, %v7829
  %v7839 = vsel %vm6680, %v7829, %v7831
  %v7853 = vsel %vm32, %v7806, 0
  %v7856 = vsel %vm32, %v7807, 0
  %7858 = vmatpush.msra.mxu0 0.0
  %7859 = vmatpush.msra.mxu0 0.0
  %7860 = vmatpush.msra.mxu0 0.0
  %7861 = vmatpush.msra.mxu0 0.0
  %7862 = vmatpush.msra.mxu0 0.0
  %7863 = vmatpush.msra.mxu0 0.0
  %7864 = vmatpush.msra.mxu0 0.0
  %7865 = vmatpush.msra.mxu0 0.0
  %7866 = vmatpush.msra.mxu0 0.0
  %7867 = vmatpush.msra.mxu0 0.0
  %7868 = vmatpush.msra.mxu0 0.0
  %7869 = vmatpush.msra.mxu0 0.0
  %7870 = vmatpush.msra.mxu0 %v7838
  %7871 = vmatpush.msra.mxu0 %v7836
  %7872 = vmatpush.msra.mxu0 %v7834
  %7873 = vmatpush.msra.mxu0 %v7832
  %7874 = vmatmul.f32.gmra.mxu0 %v7853
  %v7875 = vpop.f32.mrf.mxu0
  %v7876 = vadd.f32 0.0, %v7875
  %7877 = vmatmul.f32.gmra.mxu0 %v7856
  %v7878 = vpop.f32.mrf.mxu0
  %v7879 = vadd.f32 0.0, %v7878
  %7880 = vdwg.mxu0
  %7881 = vmatpush.msra.mxu0 0.0
  %7882 = vmatpush.msra.mxu0 0.0
  %7883 = vmatpush.msra.mxu0 0.0
  %7884 = vmatpush.msra.mxu0 0.0
  %7885 = vmatpush.msra.mxu0 0.0
  %7886 = vmatpush.msra.mxu0 0.0
  %7887 = vmatpush.msra.mxu0 0.0
  %7888 = vmatpush.msra.mxu0 0.0
  %7889 = vmatpush.msra.mxu0 0.0
  %7890 = vmatpush.msra.mxu0 0.0
  %7891 = vmatpush.msra.mxu0 0.0
  %7892 = vmatpush.msra.mxu0 0.0
  %7893 = vmatpush.msra.mxu0 %v7839
  %7894 = vmatpush.msra.mxu0 %v7837
  %7895 = vmatpush.msra.mxu0 %v7835
  %7896 = vmatpush.msra.mxu0 %v7833
  %7897 = vmatmul.f32.gmra.mxu0 %v7853
  %v7898 = vpop.f32.mrf.mxu0
  %v7899 = vadd.f32 0.0, %v7898
  %7900 = vmatmul.f32.gmra.mxu0 %v7856
  %v7901 = vpop.f32.mrf.mxu0
  %v7902 = vadd.f32 0.0, %v7901
  %7903 = vdwg.mxu0
  %7904 = vmatpush.msra.mxu0 0.0
  %7905 = vmatpush.msra.mxu0 0.0
  %7906 = vmatpush.msra.mxu0 0.0
  %7907 = vmatpush.msra.mxu0 0.0
  %7908 = vmatpush.msra.mxu0 0.0
  %7909 = vmatpush.msra.mxu0 0.0
  %7910 = vmatpush.msra.mxu0 0.0
  %7911 = vmatpush.msra.mxu0 0.0
  %7912 = vmatpush.msra.mxu0 0.0
  %7913 = vmatpush.msra.mxu0 0.0
  %7914 = vmatpush.msra.mxu0 0.0
  %7915 = vmatpush.msra.mxu0 0.0
  %7916 = vmatpush.msra.mxu0 %v7831
  %7917 = vmatpush.msra.mxu0 %v7825
  %7918 = vmatpush.msra.mxu0 %v7819
  %7919 = vmatpush.msra.mxu0 %v7813
  %7920 = vmatmul.f32.gmra.mxu0 %v7853
  %v7921 = vpop.f32.mrf.mxu0
  %v7922 = vadd.f32 0.0, %v7921
  %7923 = vmatmul.f32.gmra.mxu0 %v7856
  %v7924 = vpop.f32.mrf.mxu0
  %v7925 = vadd.f32 0.0, %v7924
  %7926 = vdwg.mxu0
  %v7927 = vadd.f32 %v7800, %v7876
  %v7928 = vadd.f32 %v7801, %v7899
  %v7929 = vadd.f32 %v7802, %v7922
  %v7930 = vadd.f32 %v7803, %v7879
  %v7931 = vadd.f32 %v7804, %v7902
  %v7932 = vadd.f32 %v7805, %v7925
  %7933 = vst [vmem:[%s3] sm:$0xff] %v7927
  %7934 = vst [vmem:[%s3 + $0x8] sm:$0xff] %v7928
  %vm7935 = vcmask 244736
  %7936 = vst.msk [vmem:[%s3 + $0x10] sm:$0xff] %vm7935, %v7929
  %7937 = vst [vmem:[%s3 + $0x18] sm:$0xff] %v7930
  %7938 = vst [vmem:[%s3 + $0x20] sm:$0xff] %v7931
  %7939 = vst.msk [vmem:[%s3 + $0x28] sm:$0xff] %vm7935, %v7932
  // Predicated region
  $region14: #{acmix_forward.1} parent=0 // pred_check
    _
  $region15: #{acmix_forward.1} parent=0 // pred_check_branch
    %7941 = sbr.rel (0) target = $region17
  $region16: #{acmix_forward.1} parent=0 // pred_region
    _
  $region17: #{acmix_forward.1} parent=0 // pred_fallthru
    _
  // Predicated region
  $region18: #{acmix_forward.1} parent=0 // pred_check
    _
  $region19: #{acmix_forward.1} parent=0 // pred_check_branch
    %7943 = sbr.rel (0) target = $region21
  $region20: #{acmix_forward.1} parent=0 // pred_region
    _
  $region21: #{acmix_forward.1} parent=0 // pred_fallthru
    _

</llo_original>
